<compile_context>
chip_gen: v5e
topology: v5e:2x2
jax: 0.10.0
libtpu: 0.0.40
codegen_flags: <defaults>
</compile_context>

<pallas_src>
import functools

import jax
import jax.numpy as jnp
from jax.experimental import pallas as pl
from jax.experimental.pallas import tpu as pltpu

# ---- fixed module geometry ---------------------------------------------------
KH = KW = 3            # conv kernel size
C_IN = 3               # real input channels  (RGB)
C_OUT = 3              # real output channels
C = 128                # unified lane-aligned channel width inside the kernel
K_COL = KH * KW * C    # im2col contraction size (1152)
OFF = 8                # interior column offset in padded scratch (8-aligned sublanes)

_LAYERS = ("enc1_conv1", "enc1_conv2", "dec1_conv1", "dec1_conv2")


def _fused_unet_kernel(x_ref, w_ref, b_ref, o_ref, pad_ref, col_ref, *, H, W):
    """All 4 conv3x3(same) layers of SimpleUNet for ONE image, fully VMEM-resident.

    x_ref  : (1, H, W, C)          channel-padded NHWC input image
    w_ref  : (4, 9*C, C)           per-layer weights, im2col layout, zero padded
    b_ref  : (4, 1, C)             per-layer biases, zero padded
    o_ref  : (1, H*W, C)           final activation (only channels [:C_OUT] valid)
    pad_ref: (H+2, W+2*OFF, C)     zero-halo padded activation scratch
    col_ref: (H*W, 9*C)            im2col scratch
    """
    relu = (True, True, True, False)

    # Zero fill once: provides the conv zero halo AND keeps the padded channels
    # exactly zero for every layer (their weight rows are zero too).
    pad_ref[...] = jnp.zeros_like(pad_ref)
    # Interior starts at column OFF so interior stores are sublane-aligned.
    pad_ref[1:H + 1, OFF:OFF + W, :] = x_ref[0]

    for layer in range(4):
        # --- im2col: 9 shifted taps of the padded activation -> (H*W, 9*C) ---
        for dy in range(KH):
            for dx in range(KW):
                tap = dy * KW + dx
                patch = pad_ref[dy:dy + H, OFF - 1 + dx:OFF - 1 + dx + W, :]
                col_ref[:, tap * C:(tap + 1) * C] = patch.reshape(H * W, C)
        # --- one large-K MXU matmul + bias (+ ReLU) ---------------------------
        acc = jnp.dot(col_ref[...], w_ref[layer],
                      preferred_element_type=jnp.float32)
        acc = acc + b_ref[layer]
        if relu[layer]:
            acc = jnp.maximum(acc, 0.0)
        if layer < 3:
            # Feed next layer: overwrite interior only, halo stays zero.
            pad_ref[1:H + 1, OFF:OFF + W, :] = acc.reshape(H, W, C)
        else:
            # Lane-dense (H*W, 128) full-width store of the final activation.
            o_ref[0] = acc.astype(o_ref.dtype)


def _pack_params(params):
    """Stack the 4 conv layers into im2col form, zero-padded to C channels."""
    ws, bs = [], []
    for name in _LAYERS:
        w, b = params[name]                           # w: (3,3,cin,cout), b: (cout,)
        cin, cout = w.shape[2], w.shape[3]
        wp = jnp.zeros((KH, KW, C, C), jnp.float32).at[:, :, :cin, :cout].set(w)
        bp = jnp.zeros((1, C), jnp.float32).at[0, :cout].set(b)
        ws.append(wp.reshape(KH * KW * C, C))         # row = (dy, dx, cin) row-major
        bs.append(bp)
    return jnp.stack(ws), jnp.stack(bs)               # (4, 9*C, C), (4, 1, C)


def simple_unet_forward(params, x_nchw, t):
    """Matches SimpleUNet.forward (t is unused by the reference module)."""
    del t
    N, cin, H, W = x_nchw.shape
    assert cin == C_IN
    # NCHW -> NHWC once, and zero-pad channels to C so every in-kernel access
    # is lane-aligned (the 3-channel input would otherwise be 97% masked).
    x = jnp.transpose(x_nchw, (0, 2, 3, 1))
    x = jnp.pad(x, ((0, 0), (0, 0), (0, 0), (0, C - cin)))
    w_stack, b_stack = _pack_params(params)

    kernel = functools.partial(_fused_unet_kernel, H=H, W=W)
    out = pl.pallas_call(
        kernel,
        out_shape=jax.ShapeDtypeStruct((N, H * W, C), jnp.float32),
        grid_spec=pltpu.PrefetchScalarGridSpec(
            num_scalar_prefetch=0,
            grid=(N,),
            in_specs=[
                pl.BlockSpec((1, H, W, C), lambda n: (n, 0, 0, 0)),
                pl.BlockSpec((4, K_COL, C), lambda n: (0, 0, 0)),   # weights resident
                pl.BlockSpec((4, 1, C), lambda n: (0, 0, 0)),       # biases resident
            ],
            out_specs=pl.BlockSpec((1, H * W, C), lambda n: (n, 0, 0)),
            scratch_shapes=[
                pltpu.VMEM((H + 2, W + 2 * OFF, C), jnp.float32),   # padded activation
                pltpu.VMEM((H * W, K_COL), jnp.float32),            # im2col matrix
            ],
        ),
        compiler_params=pltpu.CompilerParams(
            dimension_semantics=("parallel",),        # v7x: one image per TensorCore
            vmem_limit_bytes=32 * 1024 * 1024,
        ),
    )(x, w_stack, b_stack)

    out = out[:, :, :C_OUT].reshape(N, H, W, C_OUT)
    return jnp.transpose(out, (0, 3, 1, 2))           # NHWC -> NCHW


# ---- parameter init (PyTorch Conv2d default: uniform +/- 1/sqrt(fan_in)) -----
def _init_conv_params(key, cin, cout):
    fan_in = cin * KH * KW
    bound = 1.0 / jnp.sqrt(jnp.float32(fan_in))
    kw_, kb_ = jax.random.split(key)
    w = jax.random.uniform(kw_, (KH, KW, cin, cout), jnp.float32, -bound, bound)
    b = jax.random.uniform(kb_, (cout,), jnp.float32, -bound, bound)
    return w, b


def init_simple_unet_params(key):
    keys = jax.random.split(key, 4)
    return {
        "enc1_conv1": _init_conv_params(keys[0], 3, 64),
        "enc1_conv2": _init_conv_params(keys[1], 64, 64),
        "dec1_conv1": _init_conv_params(keys[2], 64, 64),
        "dec1_conv2": _init_conv_params(keys[3], 64, 3),
    }


if __name__ == "__main__":
    key = jax.random.PRNGKey(0)
    k_params, k_x = jax.random.split(key)

    params = init_simple_unet_params(k_params)
    x = jax.random.normal(k_x, (2, 3, 16, 16), jnp.float32)   # NCHW like PyTorch
    t = jnp.zeros((2,), jnp.int32)                            # timestep (unused)

    out = jax.block_until_ready(simple_unet_forward(params, x, t))

    # Reference with XLA convs (SAME padding, NHWC/HWIO).
    def ref_conv(xh, w, b, do_relu):
        y = jax.lax.conv_general_dilated(
            xh, w, (1, 1), "SAME",
            dimension_numbers=("NHWC", "HWIO", "NHWC")) + b
        return jnp.maximum(y, 0.0) if do_relu else y

    xr = jnp.transpose(x, (0, 2, 3, 1))
    xr = ref_conv(xr, *params["enc1_conv1"], True)
    xr = ref_conv(xr, *params["enc1_conv2"], True)
    xr = ref_conv(xr, *params["dec1_conv1"], True)
    xr = ref_conv(xr, *params["dec1_conv2"], False)
    ref = jnp.transpose(xr, (0, 3, 1, 2))

    assert out.shape == (2, 3, 16, 16)
    assert jnp.allclose(out, ref, atol=1e-4, rtol=1e-4)
    print("KERNEL_OK")
</pallas_src>

<mosaic_0001>
module attributes {stable_mosaic.version = 11 : i64} {
  func.func @_fused_unet_kernel(%arg0: i32, %arg1: memref<1x16x16x128xf32, #tpu.memory_space<vmem>>, %arg2: memref<4x1152x128xf32, #tpu.memory_space<vmem>>, %arg3: memref<4x1x128xf32, #tpu.memory_space<vmem>>, %arg4: memref<1x256x128xf32, #tpu.memory_space<vmem>>, %arg5: memref<18x32x128xf32, #tpu.memory_space<vmem>>, %arg6: memref<256x1152xf32, #tpu.memory_space<vmem>>) attributes {dimension_semantics = [#tpu.dimension_semantics<parallel>], iteration_bounds = array<i64: 2>, scalar_prefetch = 0 : i64, scratch_operands = 2 : i64, tpu.core_type = #tpu.core_type<tc>, window_params = [{transform_indices = @transform_0, window_bounds = array<i64: 1, 16, 16, 128>}, {pipeline_mode = #tpu.pipeline_mode<synchronous>, transform_indices = @transform_1, window_bounds = array<i64: 4, 1152, 128>}, {pipeline_mode = #tpu.pipeline_mode<synchronous>, transform_indices = @transform_2, window_bounds = array<i64: 4, 1, 128>}, {transform_indices = @transform_3, window_bounds = array<i64: 1, 256, 128>}]} {
    %cst = arith.constant 0.000000e+00 : f32
    %0 = vector.broadcast %cst : f32 to vector<18x32x128xf32>
    %c0 = arith.constant 0 : index
    %c0_0 = arith.constant 0 : index
    %c0_1 = arith.constant 0 : index
    %1 = vector.load %arg5[%c0, %c0_0, %c0_1] : memref<18x32x128xf32, #tpu.memory_space<vmem>>, vector<18x32x128xf32>
    tpu.vector_store %arg5[%c0, %c0_0, %c0_1], %0 {strides = array<i32>} : memref<18x32x128xf32, #tpu.memory_space<vmem>>, vector<18x32x128xf32>,
    %c0_2 = arith.constant 0 : index
    %c0_3 = arith.constant 0 : index
    %c0_4 = arith.constant 0 : index
    %c0_5 = arith.constant 0 : index
    %2 = vector.load %arg1[%c0_2, %c0_3, %c0_4, %c0_5] : memref<1x16x16x128xf32, #tpu.memory_space<vmem>>, vector<1x16x16x128xf32>
    %3 = vector.shape_cast %2 : vector<1x16x16x128xf32> to vector<16x16x128xf32>
    %c1 = arith.constant 1 : index
    %c8 = arith.constant 8 : index
    %c0_6 = arith.constant 0 : index
    %4 = vector.load %arg5[%c1, %c8, %c0_6] : memref<18x32x128xf32, #tpu.memory_space<vmem>>, vector<16x16x128xf32>
    tpu.vector_store %arg5[%c1, %c8, %c0_6], %3 {strides = array<i32>} : memref<18x32x128xf32, #tpu.memory_space<vmem>>, vector<16x16x128xf32>,
    %c0_7 = arith.constant 0 : index
    %c7 = arith.constant 7 : index
    %c0_8 = arith.constant 0 : index
    %5 = vector.load %arg5[%c0_7, %c7, %c0_8] : memref<18x32x128xf32, #tpu.memory_space<vmem>>, vector<16x16x128xf32>
    %6 = vector.shape_cast %5 : vector<16x16x128xf32> to vector<256x128xf32>
    %c0_9 = arith.constant 0 : index
    %c0_10 = arith.constant 0 : index
    %7 = vector.load %arg6[%c0_9, %c0_10] : memref<256x1152xf32, #tpu.memory_space<vmem>>, vector<256x128xf32>
    tpu.vector_store %arg6[%c0_9, %c0_10], %6 {strides = array<i32>} : memref<256x1152xf32, #tpu.memory_space<vmem>>, vector<256x128xf32>,
    %c0_11 = arith.constant 0 : index
    %c8_12 = arith.constant 8 : index
    %c0_13 = arith.constant 0 : index
    %8 = vector.load %arg5[%c0_11, %c8_12, %c0_13] : memref<18x32x128xf32, #tpu.memory_space<vmem>>, vector<16x16x128xf32>
    %9 = vector.shape_cast %8 : vector<16x16x128xf32> to vector<256x128xf32>
    %c0_14 = arith.constant 0 : index
    %c128 = arith.constant 128 : index
    %10 = vector.load %arg6[%c0_14, %c128] : memref<256x1152xf32, #tpu.memory_space<vmem>>, vector<256x128xf32>
    tpu.vector_store %arg6[%c0_14, %c128], %9 {strides = array<i32>} : memref<256x1152xf32, #tpu.memory_space<vmem>>, vector<256x128xf32>,
    %c0_15 = arith.constant 0 : index
    %c9 = arith.constant 9 : index
    %c0_16 = arith.constant 0 : index
    %11 = vector.load %arg5[%c0_15, %c9, %c0_16] : memref<18x32x128xf32, #tpu.memory_space<vmem>>, vector<16x16x128xf32>
    %12 = vector.shape_cast %11 : vector<16x16x128xf32> to vector<256x128xf32>
    %c0_17 = arith.constant 0 : index
    %c256 = arith.constant 256 : index
    %13 = vector.load %arg6[%c0_17, %c256] : memref<256x1152xf32, #tpu.memory_space<vmem>>, vector<256x128xf32>
    tpu.vector_store %arg6[%c0_17, %c256], %12 {strides = array<i32>} : memref<256x1152xf32, #tpu.memory_space<vmem>>, vector<256x128xf32>,
    %c1_18 = arith.constant 1 : index
    %c7_19 = arith.constant 7 : index
    %c0_20 = arith.constant 0 : index
    %14 = vector.load %arg5[%c1_18, %c7_19, %c0_20] : memref<18x32x128xf32, #tpu.memory_space<vmem>>, vector<16x16x128xf32>
    %15 = vector.shape_cast %14 : vector<16x16x128xf32> to vector<256x128xf32>
    %c0_21 = arith.constant 0 : index
    %c384 = arith.constant 384 : index
    %16 = vector.load %arg6[%c0_21, %c384] : memref<256x1152xf32, #tpu.memory_space<vmem>>, vector<256x128xf32>
    tpu.vector_store %arg6[%c0_21, %c384], %15 {strides = array<i32>} : memref<256x1152xf32, #tpu.memory_space<vmem>>, vector<256x128xf32>,
    %c1_22 = arith.constant 1 : index
    %c8_23 = arith.constant 8 : index
    %c0_24 = arith.constant 0 : index
    %17 = vector.load %arg5[%c1_22, %c8_23, %c0_24] : memref<18x32x128xf32, #tpu.memory_space<vmem>>, vector<16x16x128xf32>
    %18 = vector.shape_cast %17 : vector<16x16x128xf32> to vector<256x128xf32>
    %c0_25 = arith.constant 0 : index
    %c512 = arith.constant 512 : index
    %19 = vector.load %arg6[%c0_25, %c512] : memref<256x1152xf32, #tpu.memory_space<vmem>>, vector<256x128xf32>
    tpu.vector_store %arg6[%c0_25, %c512], %18 {strides = array<i32>} : memref<256x1152xf32, #tpu.memory_space<vmem>>, vector<256x128xf32>,
    %c1_26 = arith.constant 1 : index
    %c9_27 = arith.constant 9 : index
    %c0_28 = arith.constant 0 : index
    %20 = vector.load %arg5[%c1_26, %c9_27, %c0_28] : memref<18x32x128xf32, #tpu.memory_space<vmem>>, vector<16x16x128xf32>
    %21 = vector.shape_cast %20 : vector<16x16x128xf32> to vector<256x128xf32>
    %c0_29 = arith.constant 0 : index
    %c640 = arith.constant 640 : index
    %22 = vector.load %arg6[%c0_29, %c640] : memref<256x1152xf32, #tpu.memory_space<vmem>>, vector<256x128xf32>
    tpu.vector_store %arg6[%c0_29, %c640], %21 {strides = array<i32>} : memref<256x1152xf32, #tpu.memory_space<vmem>>, vector<256x128xf32>,
    %c2 = arith.constant 2 : index
    %c7_30 = arith.constant 7 : index
    %c0_31 = arith.constant 0 : index
    %23 = vector.load %arg5[%c2, %c7_30, %c0_31] : memref<18x32x128xf32, #tpu.memory_space<vmem>>, vector<16x16x128xf32>
    %24 = vector.shape_cast %23 : vector<16x16x128xf32> to vector<256x128xf32>
    %c0_32 = arith.constant 0 : index
    %c768 = arith.constant 768 : index
    %25 = vector.load %arg6[%c0_32, %c768] : memref<256x1152xf32, #tpu.memory_space<vmem>>, vector<256x128xf32>
    tpu.vector_store %arg6[%c0_32, %c768], %24 {strides = array<i32>} : memref<256x1152xf32, #tpu.memory_space<vmem>>, vector<256x128xf32>,
    %c2_33 = arith.constant 2 : index
    %c8_34 = arith.constant 8 : index
    %c0_35 = arith.constant 0 : index
    %26 = vector.load %arg5[%c2_33, %c8_34, %c0_35] : memref<18x32x128xf32, #tpu.memory_space<vmem>>, vector<16x16x128xf32>
    %27 = vector.shape_cast %26 : vector<16x16x128xf32> to vector<256x128xf32>
    %c0_36 = arith.constant 0 : index
    %c896 = arith.constant 896 : index
    %28 = vector.load %arg6[%c0_36, %c896] : memref<256x1152xf32, #tpu.memory_space<vmem>>, vector<256x128xf32>
    tpu.vector_store %arg6[%c0_36, %c896], %27 {strides = array<i32>} : memref<256x1152xf32, #tpu.memory_space<vmem>>, vector<256x128xf32>,
    %c2_37 = arith.constant 2 : index
    %c9_38 = arith.constant 9 : index
    %c0_39 = arith.constant 0 : index
    %29 = vector.load %arg5[%c2_37, %c9_38, %c0_39] : memref<18x32x128xf32, #tpu.memory_space<vmem>>, vector<16x16x128xf32>
    %30 = vector.shape_cast %29 : vector<16x16x128xf32> to vector<256x128xf32>
    %c0_40 = arith.constant 0 : index
    %c1024 = arith.constant 1024 : index
    %31 = vector.load %arg6[%c0_40, %c1024] : memref<256x1152xf32, #tpu.memory_space<vmem>>, vector<256x128xf32>
    tpu.vector_store %arg6[%c0_40, %c1024], %30 {strides = array<i32>} : memref<256x1152xf32, #tpu.memory_space<vmem>>, vector<256x128xf32>,
    %c0_41 = arith.constant 0 : index
    %c0_42 = arith.constant 0 : index
    %32 = vector.load %arg6[%c0_41, %c0_42] : memref<256x1152xf32, #tpu.memory_space<vmem>>, vector<256x1152xf32>
    %c0_43 = arith.constant 0 : index
    %c0_44 = arith.constant 0 : index
    %c0_45 = arith.constant 0 : index
    %33 = vector.load %arg2[%c0_43, %c0_44, %c0_45] : memref<4x1152x128xf32, #tpu.memory_space<vmem>>, vector<1x1152x128xf32>
    %34 = vector.shape_cast %33 : vector<1x1152x128xf32> to vector<1152x128xf32>
    %cst_46 = arith.constant dense<0.000000e+00> : vector<256x128xf32>
    %35 = tpu.matmul %32, %34, %cst_46 {dimension_numbers = #tpu.dot_dimension_numbers<[1], [0], [0], [1], [0, 0, 1, 1], [], []>} : vector<256x1152xf32>, vector<1152x128xf32>, vector<256x128xf32> -> vector<256x128xf32>
    %c0_47 = arith.constant 0 : index
    %c0_48 = arith.constant 0 : index
    %c0_49 = arith.constant 0 : index
    %36 = vector.load %arg3[%c0_47, %c0_48, %c0_49] : memref<4x1x128xf32, #tpu.memory_space<vmem>>, vector<1x1x128xf32>
    %37 = vector.shape_cast %36 : vector<1x1x128xf32> to vector<1x128xf32>
    %38 = vector.broadcast %37 : vector<1x128xf32> to vector<256x128xf32>
    %39 = arith.addf %35, %38 : vector<256x128xf32>
    %cst_50 = arith.constant 0.000000e+00 : f32
    %40 = vector.broadcast %cst_50 : f32 to vector<256x128xf32>
    %41 = arith.maximumf %39, %40 : vector<256x128xf32>
    %42 = vector.shape_cast %41 : vector<256x128xf32> to vector<16x16x128xf32>
    %c1_51 = arith.constant 1 : index
    %c8_52 = arith.constant 8 : index
    %c0_53 = arith.constant 0 : index
    %43 = vector.load %arg5[%c1_51, %c8_52, %c0_53] : memref<18x32x128xf32, #tpu.memory_space<vmem>>, vector<16x16x128xf32>
    tpu.vector_store %arg5[%c1_51, %c8_52, %c0_53], %42 {strides = array<i32>} : memref<18x32x128xf32, #tpu.memory_space<vmem>>, vector<16x16x128xf32>,
    %c0_54 = arith.constant 0 : index
    %c7_55 = arith.constant 7 : index
    %c0_56 = arith.constant 0 : index
    %44 = vector.load %arg5[%c0_54, %c7_55, %c0_56] : memref<18x32x128xf32, #tpu.memory_space<vmem>>, vector<16x16x128xf32>
    %45 = vector.shape_cast %44 : vector<16x16x128xf32> to vector<256x128xf32>
    %c0_57 = arith.constant 0 : index
    %c0_58 = arith.constant 0 : index
    %46 = vector.load %arg6[%c0_57, %c0_58] : memref<256x1152xf32, #tpu.memory_space<vmem>>, vector<256x128xf32>
    tpu.vector_store %arg6[%c0_57, %c0_58], %45 {strides = array<i32>} : memref<256x1152xf32, #tpu.memory_space<vmem>>, vector<256x128xf32>,
    %c0_59 = arith.constant 0 : index
    %c8_60 = arith.constant 8 : index
    %c0_61 = arith.constant 0 : index
    %47 = vector.load %arg5[%c0_59, %c8_60, %c0_61] : memref<18x32x128xf32, #tpu.memory_space<vmem>>, vector<16x16x128xf32>
    %48 = vector.shape_cast %47 : vector<16x16x128xf32> to vector<256x128xf32>
    %c0_62 = arith.constant 0 : index
    %c128_63 = arith.constant 128 : index
    %49 = vector.load %arg6[%c0_62, %c128_63] : memref<256x1152xf32, #tpu.memory_space<vmem>>, vector<256x128xf32>
    tpu.vector_store %arg6[%c0_62, %c128_63], %48 {strides = array<i32>} : memref<256x1152xf32, #tpu.memory_space<vmem>>, vector<256x128xf32>,
    %c0_64 = arith.constant 0 : index
    %c9_65 = arith.constant 9 : index
    %c0_66 = arith.constant 0 : index
    %50 = vector.load %arg5[%c0_64, %c9_65, %c0_66] : memref<18x32x128xf32, #tpu.memory_space<vmem>>, vector<16x16x128xf32>
    %51 = vector.shape_cast %50 : vector<16x16x128xf32> to vector<256x128xf32>
    %c0_67 = arith.constant 0 : index
    %c256_68 = arith.constant 256 : index
    %52 = vector.load %arg6[%c0_67, %c256_68] : memref<256x1152xf32, #tpu.memory_space<vmem>>, vector<256x128xf32>
    tpu.vector_store %arg6[%c0_67, %c256_68], %51 {strides = array<i32>} : memref<256x1152xf32, #tpu.memory_space<vmem>>, vector<256x128xf32>,
    %c1_69 = arith.constant 1 : index
    %c7_70 = arith.constant 7 : index
    %c0_71 = arith.constant 0 : index
    %53 = vector.load %arg5[%c1_69, %c7_70, %c0_71] : memref<18x32x128xf32, #tpu.memory_space<vmem>>, vector<16x16x128xf32>
    %54 = vector.shape_cast %53 : vector<16x16x128xf32> to vector<256x128xf32>
    %c0_72 = arith.constant 0 : index
    %c384_73 = arith.constant 384 : index
    %55 = vector.load %arg6[%c0_72, %c384_73] : memref<256x1152xf32, #tpu.memory_space<vmem>>, vector<256x128xf32>
    tpu.vector_store %arg6[%c0_72, %c384_73], %54 {strides = array<i32>} : memref<256x1152xf32, #tpu.memory_space<vmem>>, vector<256x128xf32>,
    %c1_74 = arith.constant 1 : index
    %c8_75 = arith.constant 8 : index
    %c0_76 = arith.constant 0 : index
    %56 = vector.load %arg5[%c1_74, %c8_75, %c0_76] : memref<18x32x128xf32, #tpu.memory_space<vmem>>, vector<16x16x128xf32>
    %57 = vector.shape_cast %56 : vector<16x16x128xf32> to vector<256x128xf32>
    %c0_77 = arith.constant 0 : index
    %c512_78 = arith.constant 512 : index
    %58 = vector.load %arg6[%c0_77, %c512_78] : memref<256x1152xf32, #tpu.memory_space<vmem>>, vector<256x128xf32>
    tpu.vector_store %arg6[%c0_77, %c512_78], %57 {strides = array<i32>} : memref<256x1152xf32, #tpu.memory_space<vmem>>, vector<256x128xf32>,
    %c1_79 = arith.constant 1 : index
    %c9_80 = arith.constant 9 : index
    %c0_81 = arith.constant 0 : index
    %59 = vector.load %arg5[%c1_79, %c9_80, %c0_81] : memref<18x32x128xf32, #tpu.memory_space<vmem>>, vector<16x16x128xf32>
    %60 = vector.shape_cast %59 : vector<16x16x128xf32> to vector<256x128xf32>
    %c0_82 = arith.constant 0 : index
    %c640_83 = arith.constant 640 : index
    %61 = vector.load %arg6[%c0_82, %c640_83] : memref<256x1152xf32, #tpu.memory_space<vmem>>, vector<256x128xf32>
    tpu.vector_store %arg6[%c0_82, %c640_83], %60 {strides = array<i32>} : memref<256x1152xf32, #tpu.memory_space<vmem>>, vector<256x128xf32>,
    %c2_84 = arith.constant 2 : index
    %c7_85 = arith.constant 7 : index
    %c0_86 = arith.constant 0 : index
    %62 = vector.load %arg5[%c2_84, %c7_85, %c0_86] : memref<18x32x128xf32, #tpu.memory_space<vmem>>, vector<16x16x128xf32>
    %63 = vector.shape_cast %62 : vector<16x16x128xf32> to vector<256x128xf32>
    %c0_87 = arith.constant 0 : index
    %c768_88 = arith.constant 768 : index
    %64 = vector.load %arg6[%c0_87, %c768_88] : memref<256x1152xf32, #tpu.memory_space<vmem>>, vector<256x128xf32>
    tpu.vector_store %arg6[%c0_87, %c768_88], %63 {strides = array<i32>} : memref<256x1152xf32, #tpu.memory_space<vmem>>, vector<256x128xf32>,
    %c2_89 = arith.constant 2 : index
    %c8_90 = arith.constant 8 : index
    %c0_91 = arith.constant 0 : index
    %65 = vector.load %arg5[%c2_89, %c8_90, %c0_91] : memref<18x32x128xf32, #tpu.memory_space<vmem>>, vector<16x16x128xf32>
    %66 = vector.shape_cast %65 : vector<16x16x128xf32> to vector<256x128xf32>
    %c0_92 = arith.constant 0 : index
    %c896_93 = arith.constant 896 : index
    %67 = vector.load %arg6[%c0_92, %c896_93] : memref<256x1152xf32, #tpu.memory_space<vmem>>, vector<256x128xf32>
    tpu.vector_store %arg6[%c0_92, %c896_93], %66 {strides = array<i32>} : memref<256x1152xf32, #tpu.memory_space<vmem>>, vector<256x128xf32>,
    %c2_94 = arith.constant 2 : index
    %c9_95 = arith.constant 9 : index
    %c0_96 = arith.constant 0 : index
    %68 = vector.load %arg5[%c2_94, %c9_95, %c0_96] : memref<18x32x128xf32, #tpu.memory_space<vmem>>, vector<16x16x128xf32>
    %69 = vector.shape_cast %68 : vector<16x16x128xf32> to vector<256x128xf32>
    %c0_97 = arith.constant 0 : index
    %c1024_98 = arith.constant 1024 : index
    %70 = vector.load %arg6[%c0_97, %c1024_98] : memref<256x1152xf32, #tpu.memory_space<vmem>>, vector<256x128xf32>
    tpu.vector_store %arg6[%c0_97, %c1024_98], %69 {strides = array<i32>} : memref<256x1152xf32, #tpu.memory_space<vmem>>, vector<256x128xf32>,
    %c0_99 = arith.constant 0 : index
    %c0_100 = arith.constant 0 : index
    %71 = vector.load %arg6[%c0_99, %c0_100] : memref<256x1152xf32, #tpu.memory_space<vmem>>, vector<256x1152xf32>
    %c1_101 = arith.constant 1 : index
    %c0_102 = arith.constant 0 : index
    %c0_103 = arith.constant 0 : index
    %72 = vector.load %arg2[%c1_101, %c0_102, %c0_103] : memref<4x1152x128xf32, #tpu.memory_space<vmem>>, vector<1x1152x128xf32>
    %73 = vector.shape_cast %72 : vector<1x1152x128xf32> to vector<1152x128xf32>
    %cst_104 = arith.constant dense<0.000000e+00> : vector<256x128xf32>
    %74 = tpu.matmul %71, %73, %cst_104 {dimension_numbers = #tpu.dot_dimension_numbers<[1], [0], [0], [1], [0, 0, 1, 1], [], []>} : vector<256x1152xf32>, vector<1152x128xf32>, vector<256x128xf32> -> vector<256x128xf32>
    %c1_105 = arith.constant 1 : index
    %c0_106 = arith.constant 0 : index
    %c0_107 = arith.constant 0 : index
    %75 = vector.load %arg3[%c1_105, %c0_106, %c0_107] : memref<4x1x128xf32, #tpu.memory_space<vmem>>, vector<1x1x128xf32>
    %76 = vector.shape_cast %75 : vector<1x1x128xf32> to vector<1x128xf32>
    %77 = vector.broadcast %76 : vector<1x128xf32> to vector<256x128xf32>
    %78 = arith.addf %74, %77 : vector<256x128xf32>
    %cst_108 = arith.constant 0.000000e+00 : f32
    %79 = vector.broadcast %cst_108 : f32 to vector<256x128xf32>
    %80 = arith.maximumf %78, %79 : vector<256x128xf32>
    %81 = vector.shape_cast %80 : vector<256x128xf32> to vector<16x16x128xf32>
    %c1_109 = arith.constant 1 : index
    %c8_110 = arith.constant 8 : index
    %c0_111 = arith.constant 0 : index
    %82 = vector.load %arg5[%c1_109, %c8_110, %c0_111] : memref<18x32x128xf32, #tpu.memory_space<vmem>>, vector<16x16x128xf32>
    tpu.vector_store %arg5[%c1_109, %c8_110, %c0_111], %81 {strides = array<i32>} : memref<18x32x128xf32, #tpu.memory_space<vmem>>, vector<16x16x128xf32>,
    %c0_112 = arith.constant 0 : index
    %c7_113 = arith.constant 7 : index
    %c0_114 = arith.constant 0 : index
    %83 = vector.load %arg5[%c0_112, %c7_113, %c0_114] : memref<18x32x128xf32, #tpu.memory_space<vmem>>, vector<16x16x128xf32>
    %84 = vector.shape_cast %83 : vector<16x16x128xf32> to vector<256x128xf32>
    %c0_115 = arith.constant 0 : index
    %c0_116 = arith.constant 0 : index
    %85 = vector.load %arg6[%c0_115, %c0_116] : memref<256x1152xf32, #tpu.memory_space<vmem>>, vector<256x128xf32>
    tpu.vector_store %arg6[%c0_115, %c0_116], %84 {strides = array<i32>} : memref<256x1152xf32, #tpu.memory_space<vmem>>, vector<256x128xf32>,
    %c0_117 = arith.constant 0 : index
    %c8_118 = arith.constant 8 : index
    %c0_119 = arith.constant 0 : index
    %86 = vector.load %arg5[%c0_117, %c8_118, %c0_119] : memref<18x32x128xf32, #tpu.memory_space<vmem>>, vector<16x16x128xf32>
    %87 = vector.shape_cast %86 : vector<16x16x128xf32> to vector<256x128xf32>
    %c0_120 = arith.constant 0 : index
    %c128_121 = arith.constant 128 : index
    %88 = vector.load %arg6[%c0_120, %c128_121] : memref<256x1152xf32, #tpu.memory_space<vmem>>, vector<256x128xf32>
    tpu.vector_store %arg6[%c0_120, %c128_121], %87 {strides = array<i32>} : memref<256x1152xf32, #tpu.memory_space<vmem>>, vector<256x128xf32>,
    %c0_122 = arith.constant 0 : index
    %c9_123 = arith.constant 9 : index
    %c0_124 = arith.constant 0 : index
    %89 = vector.load %arg5[%c0_122, %c9_123, %c0_124] : memref<18x32x128xf32, #tpu.memory_space<vmem>>, vector<16x16x128xf32>
    %90 = vector.shape_cast %89 : vector<16x16x128xf32> to vector<256x128xf32>
    %c0_125 = arith.constant 0 : index
    %c256_126 = arith.constant 256 : index
    %91 = vector.load %arg6[%c0_125, %c256_126] : memref<256x1152xf32, #tpu.memory_space<vmem>>, vector<256x128xf32>
    tpu.vector_store %arg6[%c0_125, %c256_126], %90 {strides = array<i32>} : memref<256x1152xf32, #tpu.memory_space<vmem>>, vector<256x128xf32>,
    %c1_127 = arith.constant 1 : index
    %c7_128 = arith.constant 7 : index
    %c0_129 = arith.constant 0 : index
    %92 = vector.load %arg5[%c1_127, %c7_128, %c0_129] : memref<18x32x128xf32, #tpu.memory_space<vmem>>, vector<16x16x128xf32>
    %93 = vector.shape_cast %92 : vector<16x16x128xf32> to vector<256x128xf32>
    %c0_130 = arith.constant 0 : index
    %c384_131 = arith.constant 384 : index
    %94 = vector.load %arg6[%c0_130, %c384_131] : memref<256x1152xf32, #tpu.memory_space<vmem>>, vector<256x128xf32>
    tpu.vector_store %arg6[%c0_130, %c384_131], %93 {strides = array<i32>} : memref<256x1152xf32, #tpu.memory_space<vmem>>, vector<256x128xf32>,
    %c1_132 = arith.constant 1 : index
    %c8_133 = arith.constant 8 : index
    %c0_134 = arith.constant 0 : index
    %95 = vector.load %arg5[%c1_132, %c8_133, %c0_134] : memref<18x32x128xf32, #tpu.memory_space<vmem>>, vector<16x16x128xf32>
    %96 = vector.shape_cast %95 : vector<16x16x128xf32> to vector<256x128xf32>
    %c0_135 = arith.constant 0 : index
    %c512_136 = arith.constant 512 : index
    %97 = vector.load %arg6[%c0_135, %c512_136] : memref<256x1152xf32, #tpu.memory_space<vmem>>, vector<256x128xf32>
    tpu.vector_store %arg6[%c0_135, %c512_136], %96 {strides = array<i32>} : memref<256x1152xf32, #tpu.memory_space<vmem>>, vector<256x128xf32>,
    %c1_137 = arith.constant 1 : index
    %c9_138 = arith.constant 9 : index
    %c0_139 = arith.constant 0 : index
    %98 = vector.load %arg5[%c1_137, %c9_138, %c0_139] : memref<18x32x128xf32, #tpu.memory_space<vmem>>, vector<16x16x128xf32>
    %99 = vector.shape_cast %98 : vector<16x16x128xf32> to vector<256x128xf32>
    %c0_140 = arith.constant 0 : index
    %c640_141 = arith.constant 640 : index
    %100 = vector.load %arg6[%c0_140, %c640_141] : memref<256x1152xf32, #tpu.memory_space<vmem>>, vector<256x128xf32>
    tpu.vector_store %arg6[%c0_140, %c640_141], %99 {strides = array<i32>} : memref<256x1152xf32, #tpu.memory_space<vmem>>, vector<256x128xf32>,
    %c2_142 = arith.constant 2 : index
    %c7_143 = arith.constant 7 : index
    %c0_144 = arith.constant 0 : index
    %101 = vector.load %arg5[%c2_142, %c7_143, %c0_144] : memref<18x32x128xf32, #tpu.memory_space<vmem>>, vector<16x16x128xf32>
    %102 = vector.shape_cast %101 : vector<16x16x128xf32> to vector<256x128xf32>
    %c0_145 = arith.constant 0 : index
    %c768_146 = arith.constant 768 : index
    %103 = vector.load %arg6[%c0_145, %c768_146] : memref<256x1152xf32, #tpu.memory_space<vmem>>, vector<256x128xf32>
    tpu.vector_store %arg6[%c0_145, %c768_146], %102 {strides = array<i32>} : memref<256x1152xf32, #tpu.memory_space<vmem>>, vector<256x128xf32>,
    %c2_147 = arith.constant 2 : index
    %c8_148 = arith.constant 8 : index
    %c0_149 = arith.constant 0 : index
    %104 = vector.load %arg5[%c2_147, %c8_148, %c0_149] : memref<18x32x128xf32, #tpu.memory_space<vmem>>, vector<16x16x128xf32>
    %105 = vector.shape_cast %104 : vector<16x16x128xf32> to vector<256x128xf32>
    %c0_150 = arith.constant 0 : index
    %c896_151 = arith.constant 896 : index
    %106 = vector.load %arg6[%c0_150, %c896_151] : memref<256x1152xf32, #tpu.memory_space<vmem>>, vector<256x128xf32>
    tpu.vector_store %arg6[%c0_150, %c896_151], %105 {strides = array<i32>} : memref<256x1152xf32, #tpu.memory_space<vmem>>, vector<256x128xf32>,
    %c2_152 = arith.constant 2 : index
    %c9_153 = arith.constant 9 : index
    %c0_154 = arith.constant 0 : index
    %107 = vector.load %arg5[%c2_152, %c9_153, %c0_154] : memref<18x32x128xf32, #tpu.memory_space<vmem>>, vector<16x16x128xf32>
    %108 = vector.shape_cast %107 : vector<16x16x128xf32> to vector<256x128xf32>
    %c0_155 = arith.constant 0 : index
    %c1024_156 = arith.constant 1024 : index
    %109 = vector.load %arg6[%c0_155, %c1024_156] : memref<256x1152xf32, #tpu.memory_space<vmem>>, vector<256x128xf32>
    tpu.vector_store %arg6[%c0_155, %c1024_156], %108 {strides = array<i32>} : memref<256x1152xf32, #tpu.memory_space<vmem>>, vector<256x128xf32>,
    %c0_157 = arith.constant 0 : index
    %c0_158 = arith.constant 0 : index
    %110 = vector.load %arg6[%c0_157, %c0_158] : memref<256x1152xf32, #tpu.memory_space<vmem>>, vector<256x1152xf32>
    %c2_159 = arith.constant 2 : index
    %c0_160 = arith.constant 0 : index
    %c0_161 = arith.constant 0 : index
    %111 = vector.load %arg2[%c2_159, %c0_160, %c0_161] : memref<4x1152x128xf32, #tpu.memory_space<vmem>>, vector<1x1152x128xf32>
    %112 = vector.shape_cast %111 : vector<1x1152x128xf32> to vector<1152x128xf32>
    %cst_162 = arith.constant dense<0.000000e+00> : vector<256x128xf32>
    %113 = tpu.matmul %110, %112, %cst_162 {dimension_numbers = #tpu.dot_dimension_numbers<[1], [0], [0], [1], [0, 0, 1, 1], [], []>} : vector<256x1152xf32>, vector<1152x128xf32>, vector<256x128xf32> -> vector<256x128xf32>
    %c2_163 = arith.constant 2 : index
    %c0_164 = arith.constant 0 : index
    %c0_165 = arith.constant 0 : index
    %114 = vector.load %arg3[%c2_163, %c0_164, %c0_165] : memref<4x1x128xf32, #tpu.memory_space<vmem>>, vector<1x1x128xf32>
    %115 = vector.shape_cast %114 : vector<1x1x128xf32> to vector<1x128xf32>
    %116 = vector.broadcast %115 : vector<1x128xf32> to vector<256x128xf32>
    %117 = arith.addf %113, %116 : vector<256x128xf32>
    %cst_166 = arith.constant 0.000000e+00 : f32
    %118 = vector.broadcast %cst_166 : f32 to vector<256x128xf32>
    %119 = arith.maximumf %117, %118 : vector<256x128xf32>
    %120 = vector.shape_cast %119 : vector<256x128xf32> to vector<16x16x128xf32>
    %c1_167 = arith.constant 1 : index
    %c8_168 = arith.constant 8 : index
    %c0_169 = arith.constant 0 : index
    %121 = vector.load %arg5[%c1_167, %c8_168, %c0_169] : memref<18x32x128xf32, #tpu.memory_space<vmem>>, vector<16x16x128xf32>
    tpu.vector_store %arg5[%c1_167, %c8_168, %c0_169], %120 {strides = array<i32>} : memref<18x32x128xf32, #tpu.memory_space<vmem>>, vector<16x16x128xf32>,
    %c0_170 = arith.constant 0 : index
    %c7_171 = arith.constant 7 : index
    %c0_172 = arith.constant 0 : index
    %122 = vector.load %arg5[%c0_170, %c7_171, %c0_172] : memref<18x32x128xf32, #tpu.memory_space<vmem>>, vector<16x16x128xf32>
    %123 = vector.shape_cast %122 : vector<16x16x128xf32> to vector<256x128xf32>
    %c0_173 = arith.constant 0 : index
    %c0_174 = arith.constant 0 : index
    %124 = vector.load %arg6[%c0_173, %c0_174] : memref<256x1152xf32, #tpu.memory_space<vmem>>, vector<256x128xf32>
    tpu.vector_store %arg6[%c0_173, %c0_174], %123 {strides = array<i32>} : memref<256x1152xf32, #tpu.memory_space<vmem>>, vector<256x128xf32>,
    %c0_175 = arith.constant 0 : index
    %c8_176 = arith.constant 8 : index
    %c0_177 = arith.constant 0 : index
    %125 = vector.load %arg5[%c0_175, %c8_176, %c0_177] : memref<18x32x128xf32, #tpu.memory_space<vmem>>, vector<16x16x128xf32>
    %126 = vector.shape_cast %125 : vector<16x16x128xf32> to vector<256x128xf32>
    %c0_178 = arith.constant 0 : index
    %c128_179 = arith.constant 128 : index
    %127 = vector.load %arg6[%c0_178, %c128_179] : memref<256x1152xf32, #tpu.memory_space<vmem>>, vector<256x128xf32>
    tpu.vector_store %arg6[%c0_178, %c128_179], %126 {strides = array<i32>} : memref<256x1152xf32, #tpu.memory_space<vmem>>, vector<256x128xf32>,
    %c0_180 = arith.constant 0 : index
    %c9_181 = arith.constant 9 : index
    %c0_182 = arith.constant 0 : index
    %128 = vector.load %arg5[%c0_180, %c9_181, %c0_182] : memref<18x32x128xf32, #tpu.memory_space<vmem>>, vector<16x16x128xf32>
    %129 = vector.shape_cast %128 : vector<16x16x128xf32> to vector<256x128xf32>
    %c0_183 = arith.constant 0 : index
    %c256_184 = arith.constant 256 : index
    %130 = vector.load %arg6[%c0_183, %c256_184] : memref<256x1152xf32, #tpu.memory_space<vmem>>, vector<256x128xf32>
    tpu.vector_store %arg6[%c0_183, %c256_184], %129 {strides = array<i32>} : memref<256x1152xf32, #tpu.memory_space<vmem>>, vector<256x128xf32>,
    %c1_185 = arith.constant 1 : index
    %c7_186 = arith.constant 7 : index
    %c0_187 = arith.constant 0 : index
    %131 = vector.load %arg5[%c1_185, %c7_186, %c0_187] : memref<18x32x128xf32, #tpu.memory_space<vmem>>, vector<16x16x128xf32>
    %132 = vector.shape_cast %131 : vector<16x16x128xf32> to vector<256x128xf32>
    %c0_188 = arith.constant 0 : index
    %c384_189 = arith.constant 384 : index
    %133 = vector.load %arg6[%c0_188, %c384_189] : memref<256x1152xf32, #tpu.memory_space<vmem>>, vector<256x128xf32>
    tpu.vector_store %arg6[%c0_188, %c384_189], %132 {strides = array<i32>} : memref<256x1152xf32, #tpu.memory_space<vmem>>, vector<256x128xf32>,
    %c1_190 = arith.constant 1 : index
    %c8_191 = arith.constant 8 : index
    %c0_192 = arith.constant 0 : index
    %134 = vector.load %arg5[%c1_190, %c8_191, %c0_192] : memref<18x32x128xf32, #tpu.memory_space<vmem>>, vector<16x16x128xf32>
    %135 = vector.shape_cast %134 : vector<16x16x128xf32> to vector<256x128xf32>
    %c0_193 = arith.constant 0 : index
    %c512_194 = arith.constant 512 : index
    %136 = vector.load %arg6[%c0_193, %c512_194] : memref<256x1152xf32, #tpu.memory_space<vmem>>, vector<256x128xf32>
    tpu.vector_store %arg6[%c0_193, %c512_194], %135 {strides = array<i32>} : memref<256x1152xf32, #tpu.memory_space<vmem>>, vector<256x128xf32>,
    %c1_195 = arith.constant 1 : index
    %c9_196 = arith.constant 9 : index
    %c0_197 = arith.constant 0 : index
    %137 = vector.load %arg5[%c1_195, %c9_196, %c0_197] : memref<18x32x128xf32, #tpu.memory_space<vmem>>, vector<16x16x128xf32>
    %138 = vector.shape_cast %137 : vector<16x16x128xf32> to vector<256x128xf32>
    %c0_198 = arith.constant 0 : index
    %c640_199 = arith.constant 640 : index
    %139 = vector.load %arg6[%c0_198, %c640_199] : memref<256x1152xf32, #tpu.memory_space<vmem>>, vector<256x128xf32>
    tpu.vector_store %arg6[%c0_198, %c640_199], %138 {strides = array<i32>} : memref<256x1152xf32, #tpu.memory_space<vmem>>, vector<256x128xf32>,
    %c2_200 = arith.constant 2 : index
    %c7_201 = arith.constant 7 : index
    %c0_202 = arith.constant 0 : index
    %140 = vector.load %arg5[%c2_200, %c7_201, %c0_202] : memref<18x32x128xf32, #tpu.memory_space<vmem>>, vector<16x16x128xf32>
    %141 = vector.shape_cast %140 : vector<16x16x128xf32> to vector<256x128xf32>
    %c0_203 = arith.constant 0 : index
    %c768_204 = arith.constant 768 : index
    %142 = vector.load %arg6[%c0_203, %c768_204] : memref<256x1152xf32, #tpu.memory_space<vmem>>, vector<256x128xf32>
    tpu.vector_store %arg6[%c0_203, %c768_204], %141 {strides = array<i32>} : memref<256x1152xf32, #tpu.memory_space<vmem>>, vector<256x128xf32>,
    %c2_205 = arith.constant 2 : index
    %c8_206 = arith.constant 8 : index
    %c0_207 = arith.constant 0 : index
    %143 = vector.load %arg5[%c2_205, %c8_206, %c0_207] : memref<18x32x128xf32, #tpu.memory_space<vmem>>, vector<16x16x128xf32>
    %144 = vector.shape_cast %143 : vector<16x16x128xf32> to vector<256x128xf32>
    %c0_208 = arith.constant 0 : index
    %c896_209 = arith.constant 896 : index
    %145 = vector.load %arg6[%c0_208, %c896_209] : memref<256x1152xf32, #tpu.memory_space<vmem>>, vector<256x128xf32>
    tpu.vector_store %arg6[%c0_208, %c896_209], %144 {strides = array<i32>} : memref<256x1152xf32, #tpu.memory_space<vmem>>, vector<256x128xf32>,
    %c2_210 = arith.constant 2 : index
    %c9_211 = arith.constant 9 : index
    %c0_212 = arith.constant 0 : index
    %146 = vector.load %arg5[%c2_210, %c9_211, %c0_212] : memref<18x32x128xf32, #tpu.memory_space<vmem>>, vector<16x16x128xf32>
    %147 = vector.shape_cast %146 : vector<16x16x128xf32> to vector<256x128xf32>
    %c0_213 = arith.constant 0 : index
    %c1024_214 = arith.constant 1024 : index
    %148 = vector.load %arg6[%c0_213, %c1024_214] : memref<256x1152xf32, #tpu.memory_space<vmem>>, vector<256x128xf32>
    tpu.vector_store %arg6[%c0_213, %c1024_214], %147 {strides = array<i32>} : memref<256x1152xf32, #tpu.memory_space<vmem>>, vector<256x128xf32>,
    %c0_215 = arith.constant 0 : index
    %c0_216 = arith.constant 0 : index
    %149 = vector.load %arg6[%c0_215, %c0_216] : memref<256x1152xf32, #tpu.memory_space<vmem>>, vector<256x1152xf32>
    %c3 = arith.constant 3 : index
    %c0_217 = arith.constant 0 : index
    %c0_218 = arith.constant 0 : index
    %150 = vector.load %arg2[%c3, %c0_217, %c0_218] : memref<4x1152x128xf32, #tpu.memory_space<vmem>>, vector<1x1152x128xf32>
    %151 = vector.shape_cast %150 : vector<1x1152x128xf32> to vector<1152x128xf32>
    %cst_219 = arith.constant dense<0.000000e+00> : vector<256x128xf32>
    %152 = tpu.matmul %149, %151, %cst_219 {dimension_numbers = #tpu.dot_dimension_numbers<[1], [0], [0], [1], [0, 0, 1, 1], [], []>} : vector<256x1152xf32>, vector<1152x128xf32>, vector<256x128xf32> -> vector<256x128xf32>
    %c3_220 = arith.constant 3 : index
    %c0_221 = arith.constant 0 : index
    %c0_222 = arith.constant 0 : index
    %153 = vector.load %arg3[%c3_220, %c0_221, %c0_222] : memref<4x1x128xf32, #tpu.memory_space<vmem>>, vector<1x1x128xf32>
    %154 = vector.shape_cast %153 : vector<1x1x128xf32> to vector<1x128xf32>
    %155 = vector.broadcast %154 : vector<1x128xf32> to vector<256x128xf32>
    %156 = arith.addf %152, %155 : vector<256x128xf32>
    %c0_223 = arith.constant 0 : index
    %c0_224 = arith.constant 0 : index
    %c0_225 = arith.constant 0 : index
    %157 = vector.load %arg4[%c0_223, %c0_224, %c0_225] : memref<1x256x128xf32, #tpu.memory_space<vmem>>, vector<1x256x128xf32>
    %158 = vector.shape_cast %157 : vector<1x256x128xf32> to vector<256x128xf32>
    %159 = vector.shape_cast %156 : vector<256x128xf32> to vector<1x256x128xf32>
    tpu.vector_store %arg4[%c0_223, %c0_224, %c0_225], %159 {strides = array<i32>} : memref<1x256x128xf32, #tpu.memory_space<vmem>>, vector<1x256x128xf32>,
    return
  }
  func.func @transform_0(%arg0: i32) -> (i32, i32, i32, i32) {
    %c0_i32 = arith.constant 0 : i32
    %c0_i32_0 = arith.constant 0 : i32
    %c0_i32_1 = arith.constant 0 : i32
    %c0_i32_2 = arith.constant 0 : i32
    return %arg0, %c0_i32, %c0_i32_0, %c0_i32_1 : i32, i32, i32, i32
  }
  func.func @transform_1(%arg0: i32) -> (i32, i32, i32) {
    %c0_i32 = arith.constant 0 : i32
    %c0_i32_0 = arith.constant 0 : i32
    %c0_i32_1 = arith.constant 0 : i32
    %c0_i32_2 = arith.constant 0 : i32
    return %c0_i32, %c0_i32_0, %c0_i32_1 : i32, i32, i32
  }
  func.func @transform_2(%arg0: i32) -> (i32, i32, i32) {
    %c0_i32 = arith.constant 0 : i32
    %c0_i32_0 = arith.constant 0 : i32
    %c0_i32_1 = arith.constant 0 : i32
    %c0_i32_2 = arith.constant 0 : i32
    return %c0_i32, %c0_i32_0, %c0_i32_1 : i32, i32, i32
  }
  func.func @transform_3(%arg0: i32) -> (i32, i32, i32) {
    %c0_i32 = arith.constant 0 : i32
    %c0_i32_0 = arith.constant 0 : i32
    %c0_i32_1 = arith.constant 0 : i32
    return %arg0, %c0_i32, %c0_i32_0 : i32, i32, i32
  }
}

</mosaic_0001>

<llo_original>
// kernel: tpu_custom_call.1
$region0: #{tpu_custom_call.1}
  #allocation0 [shape = 'u32[]', space=smem, size = 0x4, offset = 0x4, fixed_abs, tag = 'smem constant byte address 0x4 - core index']
  #allocation1 [shape = 'u32[72,128]{1,0:T(1,128)}', space=vmem, size = 0x9000, scoped, tag = 'internal scratch']
  #allocation2 [shape = 'f32[18,32,128]{2,1,0:T(8,128)}', space=vmem, size = 0x48000, scoped, tag = 'scratch operand']
  #allocation3 [shape = 'f32[256,1152]{1,0:T(8,128)}', space=vmem, size = 0x120000, scoped, tag = 'scratch operand']
  %s0 = inlined_call_operand.hbm [shape: f32[2,16,16,128], index: 0, kind: input, shape index: {}]
  %s1 = inlined_call_operand.hbm [shape: f32[4,1152,128], index: 1, kind: input, shape index: {}]
  %s2 = inlined_call_operand.hbm [shape: f32[4,1,128], index: 2, kind: input, shape index: {}]
  %s3 = inlined_call_operand.hbm [shape: f32[2,256,128], index: 3, kind: output, shape index: {}]
  %s4 = sld [smem:[#allocation0]]
  $region57: #{tpu_custom_call.1} parent=0
    _
  %s6 = ssub.s32 1, %s4
  %s7 = scalar_select 0, %s6, %s4
  $region1: #{tpu_custom_call.1} parent=0
    #allocation4 [shape = 'u8[262144]{0}', space=vmem, size = 0x40000, scoped, tag = 'input window, operand 0']
    #allocation5 [shape = 's32[2]{0}', space=sflag, size = 0x8, scoped, tag = 'scoped memory for tpu_custom_call.1']
    #allocation6 [shape = 's32[2]{0}', space=sflag, size = 0x8, scoped, tag = 'scoped memory for tpu_custom_call.1']
    #allocation7 [shape = 'u8[2359296]{0}', space=vmem, size = 0x240000, scoped, tag = 'input window, operand 1, single buffered']
    #allocation8 [shape = 's32[1]{0}', space=sflag, size = 0x4, scoped, tag = 'scoped memory for tpu_custom_call.1']
    #allocation9 [shape = 'u8[2048]{0}', space=vmem, size = 0x800, scoped, tag = 'input window, operand 2, single buffered']
    #allocation10 [shape = 'u8[262144]{0}', space=vmem, size = 0x40000, scoped, tag = 'output window, operand 0']
    %8 = vsyncpa [#allocation5], 0
    %s9 = scalar_lea.sflag [#allocation5], 1
    %10 = vsyncpa %s9, 0
    %11 = vsyncpa [#allocation8], 0
    %12 = vsyncpa [#allocation6], 0
    %s13 = scalar_lea.sflag [#allocation6], 1
    %14 = vsyncpa %s13, 0
    loop: start=0, step=1, limit=4
    $region2: #{tpu_custom_call.1} parent=1 // loop_pre_header
      _
    $region3: #{tpu_custom_call.1} parent=1 // loop_header
      %s16 = sphi 0, %s20
      %p17 = scmp.ge.s32.totalorder %s16, 4
      %s26 = sphi 0, %s28
      %s29 = sphi 0, %s26
      %s30 = sphi 0, %s29
      %s46 = sphi 0, %s30
      %s50 = sphi 0, %s50
      %s52 = sphi 0, %s50
      %s53 = sphi 0, %s52
      %s67 = sphi 0, %s53
      %s71 = sphi 0, %s71
      %s73 = sphi 0, %s71
      %s74 = sphi 0, %s73
      %s88 = sphi 0, %s74
      %s94 = sphi 0, %s96
      %s97 = sphi 0, %s94
      %s98 = sphi 0, %s97
      %s114 = sphi 0, %s98
    $region4: #{tpu_custom_call.1} parent=1 // loop_header_branch
      %19 = sbr.rel (%p17) target = $region8
    $region5: #{tpu_custom_call.1} parent=1 // loop_body
      %s21 = ssub.s32 %s16, 1
      %s22 = ssub.s32 %s16, 2
      %s23 = sadd.s32 %s16, 1
      %s24 = ssub.s32 %s16, %s23
      %p25 = scmp.eq.s32.totalorder %s24, 0
      %s27 = sadd.s32 %s26, 1
      %s28 = scalar_select %p25, %s26, %s27
      %p31 = pneg %p25
      %p32 = scmp.eq.s32.totalorder %s16, 1
      %p33 = por %p31, %p32
      %p34 = scmp.ne.s32.totalorder %s26, %s29
      %p35 = scmp.eq.s32.totalorder %s16, 0
      %p36 = por %p34, %p35
      %p37 = scmp.ne.s32.totalorder %s26, %s29
      %p38 = scmp.eq.s32.totalorder %s21, 1
      %p39 = por %p37, %p38
      %p40 = scmp.ne.s32.totalorder %s29, %s30
      %p41 = scmp.eq.s32.totalorder %s21, 0
      %p42 = por %p40, %p41
      %p43 = scmp.ne.s32.totalorder %s29, %s30
      %p44 = scmp.eq.s32.totalorder %s22, 1
      %p45 = por %p43, %p44
      %p47 = scmp.ne.s32.totalorder %s30, %s46
      %p48 = scmp.eq.s32.totalorder %s22, 0
      %p49 = por %p47, %p48
      %s51 = sadd.s32 %s50, 1
      %p54 = scmp.eq.s32.totalorder %s16, 1
      %p55 = scmp.ne.s32.totalorder %s50, %s52
      %p56 = scmp.eq.s32.totalorder %s16, 0
      %p57 = por %p55, %p56
      %p58 = scmp.ne.s32.totalorder %s50, %s52
      %p59 = scmp.eq.s32.totalorder %s21, 1
      %p60 = por %p58, %p59
      %p61 = scmp.ne.s32.totalorder %s52, %s53
      %p62 = scmp.eq.s32.totalorder %s21, 0
      %p63 = por %p61, %p62
      %p64 = scmp.ne.s32.totalorder %s52, %s53
      %p65 = scmp.eq.s32.totalorder %s22, 1
      %p66 = por %p64, %p65
      %p68 = scmp.ne.s32.totalorder %s53, %s67
      %p69 = scmp.eq.s32.totalorder %s22, 0
      %p70 = por %p68, %p69
      %s72 = sadd.s32 %s71, 1
      %p75 = scmp.eq.s32.totalorder %s16, 1
      %p76 = scmp.ne.s32.totalorder %s71, %s73
      %p77 = scmp.eq.s32.totalorder %s16, 0
      %p78 = por %p76, %p77
      %p79 = scmp.ne.s32.totalorder %s71, %s73
      %p80 = scmp.eq.s32.totalorder %s21, 1
      %p81 = por %p79, %p80
      %p82 = scmp.ne.s32.totalorder %s73, %s74
      %p83 = scmp.eq.s32.totalorder %s21, 0
      %p84 = por %p82, %p83
      %p85 = scmp.ne.s32.totalorder %s73, %s74
      %p86 = scmp.eq.s32.totalorder %s22, 1
      %p87 = por %p85, %p86
      %p89 = scmp.ne.s32.totalorder %s74, %s88
      %p90 = scmp.eq.s32.totalorder %s22, 0
      %p91 = por %p89, %p90
      %s92 = ssub.s32 %s16, %s23
      %p93 = scmp.eq.s32.totalorder %s92, 0
      %s95 = sadd.s32 %s94, 1
      %s96 = scalar_select %p93, %s94, %s95
      %p99 = pneg %p93
      %p100 = scmp.eq.s32.totalorder %s16, 1
      %p101 = por %p99, %p100
      %p102 = scmp.ne.s32.totalorder %s94, %s97
      %p103 = scmp.eq.s32.totalorder %s16, 0
      %p104 = por %p102, %p103
      %p105 = scmp.ne.s32.totalorder %s94, %s97
      %p106 = scmp.eq.s32.totalorder %s21, 1
      %p107 = por %p105, %p106
      %p108 = scmp.ne.s32.totalorder %s97, %s98
      %p109 = scmp.eq.s32.totalorder %s21, 0
      %p110 = por %p108, %p109
      %p111 = scmp.ne.s32.totalorder %s97, %s98
      %p112 = scmp.eq.s32.totalorder %s22, 1
      %p113 = por %p111, %p112
      %p115 = scmp.ne.s32.totalorder %s98, %s114
      %p116 = scmp.eq.s32.totalorder %s22, 0
      %p117 = por %p115, %p116
      %p118 = scmp.le.s32.totalorder 1, %s16
      %p119 = scmp.lt.s32.totalorder %s16, 3
      %p120 = pnand %p118, %p119
      %p121 = pneg %p120
      // Predicated region
      $region9: #{tpu_custom_call.1} parent=5 // pred_check
        _
      $region10: #{tpu_custom_call.1} parent=5 // pred_check_branch
        %123 = sbr.rel (%p120) target = $region12
      $region11: #{tpu_custom_call.1} parent=5 // pred_region
        %s124 = ssub.s32 %s16, 1
        // Predicated region
        $region13: #{tpu_custom_call.1} parent=11 // pred_check
          %p125 = pneg %p63
        $region14: #{tpu_custom_call.1} parent=11 // pred_check_branch
          %127 = sbr.rel (%p125) target = $region16
        $region15: #{tpu_custom_call.1} parent=11 // pred_region
          %129 = vsyncadd [#allocation8], 0
          %s130 = sshll.u32 %s1, 4
          %s131 = int_to_ptr.hbm [resolvable:$true] %s130
          %s132 = sshll.u32 [#allocation7], 4
          %s133 = int_to_ptr.vmem [resolvable:$true] %s132
          %138 = dma.hbm_to_vmem [thread:$0]  %s131, 73728, %s133, [#allocation8], 128, 128, 8
        $region16: #{tpu_custom_call.1} parent=11 // pred_fallthru
          _
        // Predicated region
        $region17: #{tpu_custom_call.1} parent=11 // pred_check
          %p139 = pneg %p84
        $region18: #{tpu_custom_call.1} parent=11 // pred_check_branch
          %141 = sbr.rel (%p139) target = $region20
        $region19: #{tpu_custom_call.1} parent=11 // pred_region
          %143 = vsyncadd [#allocation8], 0
          %s144 = sshll.u32 %s2, 4
          %s145 = int_to_ptr.hbm [resolvable:$true] %s144
          %s146 = sshll.u32 [#allocation9], 4
          %s147 = int_to_ptr.vmem [resolvable:$true] %s146
          %152 = dma.hbm_to_vmem [thread:$0]  %s145, 64, %s147, [#allocation8], 16, 16, 1
        $region20: #{tpu_custom_call.1} parent=11 // pred_fallthru
          _
      $region12: #{tpu_custom_call.1} parent=5 // pred_fallthru
        _
      %p153 = scmp.lt.s32.totalorder %s16, 2
      // Predicated region
      $region21: #{tpu_custom_call.1} parent=5 // pred_check
        %p154 = pneg %p153
      $region22: #{tpu_custom_call.1} parent=5 // pred_check_branch
        %156 = sbr.rel (%p154) target = $region24
      $region23: #{tpu_custom_call.1} parent=5 // pred_region
        // Predicated region
        $region25: #{tpu_custom_call.1} parent=23 // pred_check
          %p157 = pneg %p36
        $region26: #{tpu_custom_call.1} parent=23 // pred_check_branch
          %159 = sbr.rel (%p157) target = $region28
        $region27: #{tpu_custom_call.1} parent=23 // pred_region
          %s160 = sand.u32 %s26, 1
          %s161 = scalar_lea.sflag [#allocation5], %s160
          %s162 = sand.u32 %s26, 1
          %s163 = smul.addr %s162, 256
          %s164 = scalar_lea.vmem [#allocation4], %s163
          %166 = vsyncadd %s161, 0
          %s167 = smul.addr %s16, 32
          %s168 = smul.addr %s167, 8
          %s169 = scalar_lea.hbm %s0, %s168
          %s170 = sshll.u32 %s169, 4
          %s171 = int_to_ptr.hbm [resolvable:$true] %s170
          %s172 = sshll.u32 %s164, 4
          %s173 = int_to_ptr.vmem [resolvable:$true] %s172
          %178 = dma.hbm_to_vmem [thread:$0]  %s171, 4096, %s173, %s161, 128, 128, 8
        $region28: #{tpu_custom_call.1} parent=23 // pred_fallthru
          _
      $region24: #{tpu_custom_call.1} parent=5 // pred_fallthru
        _
      %p179 = scmp.le.s32.totalorder 1, %s16
      %p180 = scmp.lt.s32.totalorder %s16, 3
      %p181 = pnand %p179, %p180
      %p182 = pneg %p181
      // Predicated region
      $region29: #{tpu_custom_call.1} parent=5 // pred_check
        _
      $region30: #{tpu_custom_call.1} parent=5 // pred_check_branch
        %184 = sbr.rel (%p181) target = $region32
      $region31: #{tpu_custom_call.1} parent=5 // pred_region
        %s185 = ssub.s32 %s16, 1
        %s186 = sand.u32 %s29, 1
        %s187 = scalar_lea.sflag [#allocation5], %s186
        %s188 = sand.u32 %s29, 1
        %s189 = smul.addr %s188, 256
        %s190 = scalar_lea.vmem [#allocation4], %s189
        // Predicated region
        $region33: #{tpu_custom_call.1} parent=31 // pred_check
          %p191 = pneg %p42
        $region34: #{tpu_custom_call.1} parent=31 // pred_check_branch
          %193 = sbr.rel (%p191) target = $region36
        $region35: #{tpu_custom_call.1} parent=31 // pred_region
          %195 = dma.done %s187, 4096
        $region36: #{tpu_custom_call.1} parent=31 // pred_fallthru
          _
        // Predicated region
        $region37: #{tpu_custom_call.1} parent=31 // pred_check
          %p196 = pneg %p63
        $region38: #{tpu_custom_call.1} parent=31 // pred_check_branch
          %198 = sbr.rel (%p196) target = $region40
        $region39: #{tpu_custom_call.1} parent=31 // pred_region
          %200 = dma.done [#allocation8], 73728
        $region40: #{tpu_custom_call.1} parent=31 // pred_fallthru
          _
        // Predicated region
        $region41: #{tpu_custom_call.1} parent=31 // pred_check
          %p201 = pneg %p84
        $region42: #{tpu_custom_call.1} parent=31 // pred_check_branch
          %203 = sbr.rel (%p201) target = $region44
        $region43: #{tpu_custom_call.1} parent=31 // pred_region
          %205 = dma.done [#allocation8], 64
        $region44: #{tpu_custom_call.1} parent=31 // pred_fallthru
          _
        %s206 = sand.u32 %s29, 1
        %s207 = scalar_lea.sflag [#allocation5], %s206
        %s208 = sand.u32 %s29, 1
        %s209 = smul.addr %s208, 256
        %s210 = scalar_lea.vmem [#allocation4], %s209
        %p211 = pneg %p42
        %p212 = pneg %p39
        %p213 = pneg %p63
        %p214 = pneg %p60
        %p215 = pneg %p84
        %p216 = pneg %p81
        %p217 = pneg %p110
        %p218 = pneg %p107
        %s219 = sand.u32 %s97, 1
        %s220 = scalar_lea.sflag [#allocation6], %s219
        %s221 = sand.u32 %s97, 1
        %s222 = smul.addr %s221, 256
        %s223 = scalar_lea.vmem [#allocation10], %s222
        %224 = vst [vmem:[#allocation2] sm:$0xff] 0.0
        %225 = vst [vmem:[#allocation2 + $0x8] sm:$0xff] 0.0
        %226 = vst [vmem:[#allocation2 + $0x10] sm:$0xff] 0.0
        %227 = vst [vmem:[#allocation2 + $0x18] sm:$0xff] 0.0
        %228 = vst [vmem:[#allocation2 + $0x20] sm:$0xff] 0.0
        %229 = vst [vmem:[#allocation2 + $0x28] sm:$0xff] 0.0
        %230 = vst [vmem:[#allocation2 + $0x30] sm:$0xff] 0.0
        %231 = vst [vmem:[#allocation2 + $0x38] sm:$0xff] 0.0
        %232 = vst [vmem:[#allocation2 + $0x40] sm:$0xff] 0.0
        %233 = vst [vmem:[#allocation2 + $0x48] sm:$0xff] 0.0
        %234 = vst [vmem:[#allocation2 + $0x50] sm:$0xff] 0.0
        %235 = vst [vmem:[#allocation2 + $0x58] sm:$0xff] 0.0
        %236 = vst [vmem:[#allocation2 + $0x60] sm:$0xff] 0.0
        %237 = vst [vmem:[#allocation2 + $0x68] sm:$0xff] 0.0
        %238 = vst [vmem:[#allocation2 + $0x70] sm:$0xff] 0.0
        %239 = vst [vmem:[#allocation2 + $0x78] sm:$0xff] 0.0
        %240 = vst [vmem:[#allocation2 + $0x80] sm:$0xff] 0.0
        %241 = vst [vmem:[#allocation2 + $0x88] sm:$0xff] 0.0
        %242 = vst [vmem:[#allocation2 + $0x90] sm:$0xff] 0.0
        %243 = vst [vmem:[#allocation2 + $0x98] sm:$0xff] 0.0
        %244 = vst [vmem:[#allocation2 + $0xa0] sm:$0xff] 0.0
        %245 = vst [vmem:[#allocation2 + $0xa8] sm:$0xff] 0.0
        %246 = vst [vmem:[#allocation2 + $0xb0] sm:$0xff] 0.0
        %247 = vst [vmem:[#allocation2 + $0xb8] sm:$0xff] 0.0
        %248 = vst [vmem:[#allocation2 + $0xc0] sm:$0xff] 0.0
        %249 = vst [vmem:[#allocation2 + $0xc8] sm:$0xff] 0.0
        %250 = vst [vmem:[#allocation2 + $0xd0] sm:$0xff] 0.0
        %251 = vst [vmem:[#allocation2 + $0xd8] sm:$0xff] 0.0
        %252 = vst [vmem:[#allocation2 + $0xe0] sm:$0xff] 0.0
        %253 = vst [vmem:[#allocation2 + $0xe8] sm:$0xff] 0.0
        %254 = vst [vmem:[#allocation2 + $0xf0] sm:$0xff] 0.0
        %255 = vst [vmem:[#allocation2 + $0xf8] sm:$0xff] 0.0
        %256 = vst [vmem:[#allocation2 + $0x100] sm:$0xff] 0.0
        %257 = vst [vmem:[#allocation2 + $0x108] sm:$0xff] 0.0
        %258 = vst [vmem:[#allocation2 + $0x110] sm:$0xff] 0.0
        %259 = vst [vmem:[#allocation2 + $0x118] sm:$0xff] 0.0
        %260 = vst [vmem:[#allocation2 + $0x120] sm:$0xff] 0.0
        %261 = vst [vmem:[#allocation2 + $0x128] sm:$0xff] 0.0
        %262 = vst [vmem:[#allocation2 + $0x130] sm:$0xff] 0.0
        %263 = vst [vmem:[#allocation2 + $0x138] sm:$0xff] 0.0
        %264 = vst [vmem:[#allocation2 + $0x140] sm:$0xff] 0.0
        %265 = vst [vmem:[#allocation2 + $0x148] sm:$0xff] 0.0
        %266 = vst [vmem:[#allocation2 + $0x150] sm:$0xff] 0.0
        %267 = vst [vmem:[#allocation2 + $0x158] sm:$0xff] 0.0
        %268 = vst [vmem:[#allocation2 + $0x160] sm:$0xff] 0.0
        %269 = vst [vmem:[#allocation2 + $0x168] sm:$0xff] 0.0
        %270 = vst [vmem:[#allocation2 + $0x170] sm:$0xff] 0.0
        %271 = vst [vmem:[#allocation2 + $0x178] sm:$0xff] 0.0
        %272 = vst [vmem:[#allocation2 + $0x180] sm:$0xff] 0.0
        %273 = vst [vmem:[#allocation2 + $0x188] sm:$0xff] 0.0
        %274 = vst [vmem:[#allocation2 + $0x190] sm:$0xff] 0.0
        %275 = vst [vmem:[#allocation2 + $0x198] sm:$0xff] 0.0
        %276 = vst [vmem:[#allocation2 + $0x1a0] sm:$0xff] 0.0
        %277 = vst [vmem:[#allocation2 + $0x1a8] sm:$0xff] 0.0
        %278 = vst [vmem:[#allocation2 + $0x1b0] sm:$0xff] 0.0
        %279 = vst [vmem:[#allocation2 + $0x1b8] sm:$0xff] 0.0
        %280 = vst [vmem:[#allocation2 + $0x1c0] sm:$0xff] 0.0
        %281 = vst [vmem:[#allocation2 + $0x1c8] sm:$0xff] 0.0
        %282 = vst [vmem:[#allocation2 + $0x1d0] sm:$0xff] 0.0
        %283 = vst [vmem:[#allocation2 + $0x1d8] sm:$0xff] 0.0
        %284 = vst [vmem:[#allocation2 + $0x1e0] sm:$0xff] 0.0
        %285 = vst [vmem:[#allocation2 + $0x1e8] sm:$0xff] 0.0
        %286 = vst [vmem:[#allocation2 + $0x1f0] sm:$0xff] 0.0
        %287 = vst [vmem:[#allocation2 + $0x1f8] sm:$0xff] 0.0
        %288 = vst [vmem:[#allocation2 + $0x200] sm:$0xff] 0.0
        %289 = vst [vmem:[#allocation2 + $0x208] sm:$0xff] 0.0
        %290 = vst [vmem:[#allocation2 + $0x210] sm:$0xff] 0.0
        %291 = vst [vmem:[#allocation2 + $0x218] sm:$0xff] 0.0
        %292 = vst [vmem:[#allocation2 + $0x220] sm:$0xff] 0.0
        %293 = vst [vmem:[#allocation2 + $0x228] sm:$0xff] 0.0
        %294 = vst [vmem:[#allocation2 + $0x230] sm:$0xff] 0.0
        %295 = vst [vmem:[#allocation2 + $0x238] sm:$0xff] 0.0
        %v296 = vld [vmem:[%s190] sm:$0xff]
        %v297 = vld [vmem:[%s190 + $0x8] sm:$0xff]
        %v298 = vld [vmem:[%s190 + $0x10] sm:$0xff]
        %v299 = vld [vmem:[%s190 + $0x18] sm:$0xff]
        %v300 = vld [vmem:[%s190 + $0x20] sm:$0xff]
        %v301 = vld [vmem:[%s190 + $0x28] sm:$0xff]
        %v302 = vld [vmem:[%s190 + $0x30] sm:$0xff]
        %v303 = vld [vmem:[%s190 + $0x38] sm:$0xff]
        %v304 = vld [vmem:[%s190 + $0x40] sm:$0xff]
        %v305 = vld [vmem:[%s190 + $0x48] sm:$0xff]
        %v306 = vld [vmem:[%s190 + $0x50] sm:$0xff]
        %v307 = vld [vmem:[%s190 + $0x58] sm:$0xff]
        %v308 = vld [vmem:[%s190 + $0x60] sm:$0xff]
        %v309 = vld [vmem:[%s190 + $0x68] sm:$0xff]
        %v310 = vld [vmem:[%s190 + $0x70] sm:$0xff]
        %v311 = vld [vmem:[%s190 + $0x78] sm:$0xff]
        %v312 = vld [vmem:[%s190 + $0x80] sm:$0xff]
        %v313 = vld [vmem:[%s190 + $0x88] sm:$0xff]
        %v314 = vld [vmem:[%s190 + $0x90] sm:$0xff]
        %v315 = vld [vmem:[%s190 + $0x98] sm:$0xff]
        %v316 = vld [vmem:[%s190 + $0xa0] sm:$0xff]
        %v317 = vld [vmem:[%s190 + $0xa8] sm:$0xff]
        %v318 = vld [vmem:[%s190 + $0xb0] sm:$0xff]
        %v319 = vld [vmem:[%s190 + $0xb8] sm:$0xff]
        %v320 = vld [vmem:[%s190 + $0xc0] sm:$0xff]
        %v321 = vld [vmem:[%s190 + $0xc8] sm:$0xff]
        %v322 = vld [vmem:[%s190 + $0xd0] sm:$0xff]
        %v323 = vld [vmem:[%s190 + $0xd8] sm:$0xff]
        %v324 = vld [vmem:[%s190 + $0xe0] sm:$0xff]
        %v325 = vld [vmem:[%s190 + $0xe8] sm:$0xff]
        %v326 = vld [vmem:[%s190 + $0xf0] sm:$0xff]
        %v327 = vld [vmem:[%s190 + $0xf8] sm:$0xff]
        %s328 = scalar_lea.vmem [#allocation2], 32
        %329 = vst [vmem:[%s328 + $0x8] sm:$0xff] %v296
        %330 = vst [vmem:[%s328 + $0x10] sm:$0xff] %v297
        %331 = vst [vmem:[%s328 + $0x28] sm:$0xff] %v298
        %332 = vst [vmem:[%s328 + $0x30] sm:$0xff] %v299
        %333 = vst [vmem:[%s328 + $0x48] sm:$0xff] %v300
        %334 = vst [vmem:[%s328 + $0x50] sm:$0xff] %v301
        %335 = vst [vmem:[%s328 + $0x68] sm:$0xff] %v302
        %336 = vst [vmem:[%s328 + $0x70] sm:$0xff] %v303
        %337 = vst [vmem:[%s328 + $0x88] sm:$0xff] %v304
        %338 = vst [vmem:[%s328 + $0x90] sm:$0xff] %v305
        %339 = vst [vmem:[%s328 + $0xa8] sm:$0xff] %v306
        %340 = vst [vmem:[%s328 + $0xb0] sm:$0xff] %v307
        %341 = vst [vmem:[%s328 + $0xc8] sm:$0xff] %v308
        %342 = vst [vmem:[%s328 + $0xd0] sm:$0xff] %v309
        %343 = vst [vmem:[%s328 + $0xe8] sm:$0xff] %v310
        %344 = vst [vmem:[%s328 + $0xf0] sm:$0xff] %v311
        %345 = vst [vmem:[%s328 + $0x108] sm:$0xff] %v312
        %346 = vst [vmem:[%s328 + $0x110] sm:$0xff] %v313
        %347 = vst [vmem:[%s328 + $0x128] sm:$0xff] %v314
        %348 = vst [vmem:[%s328 + $0x130] sm:$0xff] %v315
        %349 = vst [vmem:[%s328 + $0x148] sm:$0xff] %v316
        %350 = vst [vmem:[%s328 + $0x150] sm:$0xff] %v317
        %351 = vst [vmem:[%s328 + $0x168] sm:$0xff] %v318
        %352 = vst [vmem:[%s328 + $0x170] sm:$0xff] %v319
        %353 = vst [vmem:[%s328 + $0x188] sm:$0xff] %v320
        %354 = vst [vmem:[%s328 + $0x190] sm:$0xff] %v321
        %355 = vst [vmem:[%s328 + $0x1a8] sm:$0xff] %v322
        %356 = vst [vmem:[%s328 + $0x1b0] sm:$0xff] %v323
        %357 = vst [vmem:[%s328 + $0x1c8] sm:$0xff] %v324
        %358 = vst [vmem:[%s328 + $0x1d0] sm:$0xff] %v325
        %359 = vst [vmem:[%s328 + $0x1e8] sm:$0xff] %v326
        %360 = vst [vmem:[%s328 + $0x1f0] sm:$0xff] %v327
        %v361 = vld [vmem:[#allocation2 + $0x7] sm:$0xff]
        %v362 = vld [vmem:[#allocation2 + $0xf] sm:$0xff]
        %v363 = vld [vmem:[#allocation2 + $0x27] sm:$0xff]
        %v364 = vld [vmem:[#allocation2 + $0x2f] sm:$0xff]
        %v365 = vld [vmem:[#allocation2 + $0x47] sm:$0xff]
        %v366 = vld [vmem:[#allocation2 + $0x4f] sm:$0xff]
        %v367 = vld [vmem:[#allocation2 + $0x67] sm:$0xff]
        %v368 = vld [vmem:[#allocation2 + $0x6f] sm:$0xff]
        %v369 = vld [vmem:[#allocation2 + $0x87] sm:$0xff]
        %v370 = vld [vmem:[#allocation2 + $0x8f] sm:$0xff]
        %v371 = vld [vmem:[#allocation2 + $0xa7] sm:$0xff]
        %v372 = vld [vmem:[#allocation2 + $0xaf] sm:$0xff]
        %v373 = vld [vmem:[#allocation2 + $0xc7] sm:$0xff]
        %v374 = vld [vmem:[#allocation2 + $0xcf] sm:$0xff]
        %v375 = vld [vmem:[#allocation2 + $0xe7] sm:$0xff]
        %v376 = vld [vmem:[#allocation2 + $0xef] sm:$0xff]
        %v377 = vld [vmem:[#allocation2 + $0x107] sm:$0xff]
        %v378 = vld [vmem:[#allocation2 + $0x10f] sm:$0xff]
        %v379 = vld [vmem:[#allocation2 + $0x127] sm:$0xff]
        %v380 = vld [vmem:[#allocation2 + $0x12f] sm:$0xff]
        %v381 = vld [vmem:[#allocation2 + $0x147] sm:$0xff]
        %v382 = vld [vmem:[#allocation2 + $0x14f] sm:$0xff]
        %v383 = vld [vmem:[#allocation2 + $0x167] sm:$0xff]
        %v384 = vld [vmem:[#allocation2 + $0x16f] sm:$0xff]
        %v385 = vld [vmem:[#allocation2 + $0x187] sm:$0xff]
        %v386 = vld [vmem:[#allocation2 + $0x18f] sm:$0xff]
        %v387 = vld [vmem:[#allocation2 + $0x1a7] sm:$0xff]
        %v388 = vld [vmem:[#allocation2 + $0x1af] sm:$0xff]
        %v389 = vld [vmem:[#allocation2 + $0x1c7] sm:$0xff]
        %v390 = vld [vmem:[#allocation2 + $0x1cf] sm:$0xff]
        %v391 = vld [vmem:[#allocation2 + $0x1e7] sm:$0xff]
        %v392 = vld [vmem:[#allocation2 + $0x1ef] sm:$0xff]
        %393 = vst [vmem:[#allocation3] sm:$0xff] %v361
        %394 = vst [vmem:[#allocation3 + $0x48] sm:$0xff] %v362
        %395 = vst [vmem:[#allocation3 + $0x90] sm:$0xff] %v363
        %396 = vst [vmem:[#allocation3 + $0xd8] sm:$0xff] %v364
        %397 = vst [vmem:[#allocation3 + $0x120] sm:$0xff] %v365
        %398 = vst [vmem:[#allocation3 + $0x168] sm:$0xff] %v366
        %399 = vst [vmem:[#allocation3 + $0x1b0] sm:$0xff] %v367
        %400 = vst [vmem:[#allocation3 + $0x1f8] sm:$0xff] %v368
        %401 = vst [vmem:[#allocation3 + $0x240] sm:$0xff] %v369
        %402 = vst [vmem:[#allocation3 + $0x288] sm:$0xff] %v370
        %403 = vst [vmem:[#allocation3 + $0x2d0] sm:$0xff] %v371
        %404 = vst [vmem:[#allocation3 + $0x318] sm:$0xff] %v372
        %405 = vst [vmem:[#allocation3 + $0x360] sm:$0xff] %v373
        %406 = vst [vmem:[#allocation3 + $0x3a8] sm:$0xff] %v374
        %407 = vst [vmem:[#allocation3 + $0x3f0] sm:$0xff] %v375
        %408 = vst [vmem:[#allocation3 + $0x438] sm:$0xff] %v376
        %409 = vst [vmem:[#allocation3 + $0x480] sm:$0xff] %v377
        %410 = vst [vmem:[#allocation3 + $0x4c8] sm:$0xff] %v378
        %411 = vst [vmem:[#allocation3 + $0x510] sm:$0xff] %v379
        %412 = vst [vmem:[#allocation3 + $0x558] sm:$0xff] %v380
        %413 = vst [vmem:[#allocation3 + $0x5a0] sm:$0xff] %v381
        %414 = vst [vmem:[#allocation3 + $0x5e8] sm:$0xff] %v382
        %415 = vst [vmem:[#allocation3 + $0x630] sm:$0xff] %v383
        %416 = vst [vmem:[#allocation3 + $0x678] sm:$0xff] %v384
        %417 = vst [vmem:[#allocation3 + $0x6c0] sm:$0xff] %v385
        %418 = vst [vmem:[#allocation3 + $0x708] sm:$0xff] %v386
        %419 = vst [vmem:[#allocation3 + $0x750] sm:$0xff] %v387
        %420 = vst [vmem:[#allocation3 + $0x798] sm:$0xff] %v388
        %421 = vst [vmem:[#allocation3 + $0x7e0] sm:$0xff] %v389
        %422 = vst [vmem:[#allocation3 + $0x828] sm:$0xff] %v390
        %423 = vst [vmem:[#allocation3 + $0x870] sm:$0xff] %v391
        %424 = vst [vmem:[#allocation3 + $0x8b8] sm:$0xff] %v392
        %v425 = vld [vmem:[#allocation2 + $0x8] sm:$0xff]
        %v426 = vld [vmem:[#allocation2 + $0x10] sm:$0xff]
        %v427 = vld [vmem:[#allocation2 + $0x28] sm:$0xff]
        %v428 = vld [vmem:[#allocation2 + $0x30] sm:$0xff]
        %v429 = vld [vmem:[#allocation2 + $0x48] sm:$0xff]
        %v430 = vld [vmem:[#allocation2 + $0x50] sm:$0xff]
        %v431 = vld [vmem:[#allocation2 + $0x68] sm:$0xff]
        %v432 = vld [vmem:[#allocation2 + $0x70] sm:$0xff]
        %v433 = vld [vmem:[#allocation2 + $0x88] sm:$0xff]
        %v434 = vld [vmem:[#allocation2 + $0x90] sm:$0xff]
        %v435 = vld [vmem:[#allocation2 + $0xa8] sm:$0xff]
        %v436 = vld [vmem:[#allocation2 + $0xb0] sm:$0xff]
        %v437 = vld [vmem:[#allocation2 + $0xc8] sm:$0xff]
        %v438 = vld [vmem:[#allocation2 + $0xd0] sm:$0xff]
        %v439 = vld [vmem:[#allocation2 + $0xe8] sm:$0xff]
        %v440 = vld [vmem:[#allocation2 + $0xf0] sm:$0xff]
        %v441 = vld [vmem:[#allocation2 + $0x108] sm:$0xff]
        %v442 = vld [vmem:[#allocation2 + $0x110] sm:$0xff]
        %v443 = vld [vmem:[#allocation2 + $0x128] sm:$0xff]
        %v444 = vld [vmem:[#allocation2 + $0x130] sm:$0xff]
        %v445 = vld [vmem:[#allocation2 + $0x148] sm:$0xff]
        %v446 = vld [vmem:[#allocation2 + $0x150] sm:$0xff]
        %v447 = vld [vmem:[#allocation2 + $0x168] sm:$0xff]
        %v448 = vld [vmem:[#allocation2 + $0x170] sm:$0xff]
        %v449 = vld [vmem:[#allocation2 + $0x188] sm:$0xff]
        %v450 = vld [vmem:[#allocation2 + $0x190] sm:$0xff]
        %v451 = vld [vmem:[#allocation2 + $0x1a8] sm:$0xff]
        %v452 = vld [vmem:[#allocation2 + $0x1b0] sm:$0xff]
        %v453 = vld [vmem:[#allocation2 + $0x1c8] sm:$0xff]
        %v454 = vld [vmem:[#allocation2 + $0x1d0] sm:$0xff]
        %v455 = vld [vmem:[#allocation2 + $0x1e8] sm:$0xff]
        %v456 = vld [vmem:[#allocation2 + $0x1f0] sm:$0xff]
        %457 = vst [vmem:[#allocation3 + $0x8] sm:$0xff] %v425
        %458 = vst [vmem:[#allocation3 + $0x50] sm:$0xff] %v426
        %459 = vst [vmem:[#allocation3 + $0x98] sm:$0xff] %v427
        %460 = vst [vmem:[#allocation3 + $0xe0] sm:$0xff] %v428
        %461 = vst [vmem:[#allocation3 + $0x128] sm:$0xff] %v429
        %462 = vst [vmem:[#allocation3 + $0x170] sm:$0xff] %v430
        %463 = vst [vmem:[#allocation3 + $0x1b8] sm:$0xff] %v431
        %464 = vst [vmem:[#allocation3 + $0x200] sm:$0xff] %v432
        %465 = vst [vmem:[#allocation3 + $0x248] sm:$0xff] %v433
        %466 = vst [vmem:[#allocation3 + $0x290] sm:$0xff] %v434
        %467 = vst [vmem:[#allocation3 + $0x2d8] sm:$0xff] %v435
        %468 = vst [vmem:[#allocation3 + $0x320] sm:$0xff] %v436
        %469 = vst [vmem:[#allocation3 + $0x368] sm:$0xff] %v437
        %470 = vst [vmem:[#allocation3 + $0x3b0] sm:$0xff] %v438
        %471 = vst [vmem:[#allocation3 + $0x3f8] sm:$0xff] %v439
        %472 = vst [vmem:[#allocation3 + $0x440] sm:$0xff] %v440
        %473 = vst [vmem:[#allocation3 + $0x488] sm:$0xff] %v441
        %474 = vst [vmem:[#allocation3 + $0x4d0] sm:$0xff] %v442
        %475 = vst [vmem:[#allocation3 + $0x518] sm:$0xff] %v443
        %476 = vst [vmem:[#allocation3 + $0x560] sm:$0xff] %v444
        %477 = vst [vmem:[#allocation3 + $0x5a8] sm:$0xff] %v445
        %478 = vst [vmem:[#allocation3 + $0x5f0] sm:$0xff] %v446
        %479 = vst [vmem:[#allocation3 + $0x638] sm:$0xff] %v447
        %480 = vst [vmem:[#allocation3 + $0x680] sm:$0xff] %v448
        %481 = vst [vmem:[#allocation3 + $0x6c8] sm:$0xff] %v449
        %482 = vst [vmem:[#allocation3 + $0x710] sm:$0xff] %v450
        %483 = vst [vmem:[#allocation3 + $0x758] sm:$0xff] %v451
        %484 = vst [vmem:[#allocation3 + $0x7a0] sm:$0xff] %v452
        %485 = vst [vmem:[#allocation3 + $0x7e8] sm:$0xff] %v453
        %486 = vst [vmem:[#allocation3 + $0x830] sm:$0xff] %v454
        %487 = vst [vmem:[#allocation3 + $0x878] sm:$0xff] %v455
        %488 = vst [vmem:[#allocation3 + $0x8c0] sm:$0xff] %v456
        %v489 = vld [vmem:[#allocation2 + $0x9] sm:$0xff]
        %v490 = vld [vmem:[#allocation2 + $0x11] sm:$0xff]
        %v491 = vld [vmem:[#allocation2 + $0x29] sm:$0xff]
        %v492 = vld [vmem:[#allocation2 + $0x31] sm:$0xff]
        %v493 = vld [vmem:[#allocation2 + $0x49] sm:$0xff]
        %v494 = vld [vmem:[#allocation2 + $0x51] sm:$0xff]
        %v495 = vld [vmem:[#allocation2 + $0x69] sm:$0xff]
        %v496 = vld [vmem:[#allocation2 + $0x71] sm:$0xff]
        %v497 = vld [vmem:[#allocation2 + $0x89] sm:$0xff]
        %v498 = vld [vmem:[#allocation2 + $0x91] sm:$0xff]
        %v499 = vld [vmem:[#allocation2 + $0xa9] sm:$0xff]
        %v500 = vld [vmem:[#allocation2 + $0xb1] sm:$0xff]
        %v501 = vld [vmem:[#allocation2 + $0xc9] sm:$0xff]
        %v502 = vld [vmem:[#allocation2 + $0xd1] sm:$0xff]
        %v503 = vld [vmem:[#allocation2 + $0xe9] sm:$0xff]
        %v504 = vld [vmem:[#allocation2 + $0xf1] sm:$0xff]
        %v505 = vld [vmem:[#allocation2 + $0x109] sm:$0xff]
        %v506 = vld [vmem:[#allocation2 + $0x111] sm:$0xff]
        %v507 = vld [vmem:[#allocation2 + $0x129] sm:$0xff]
        %v508 = vld [vmem:[#allocation2 + $0x131] sm:$0xff]
        %v509 = vld [vmem:[#allocation2 + $0x149] sm:$0xff]
        %v510 = vld [vmem:[#allocation2 + $0x151] sm:$0xff]
        %v511 = vld [vmem:[#allocation2 + $0x169] sm:$0xff]
        %v512 = vld [vmem:[#allocation2 + $0x171] sm:$0xff]
        %v513 = vld [vmem:[#allocation2 + $0x189] sm:$0xff]
        %v514 = vld [vmem:[#allocation2 + $0x191] sm:$0xff]
        %v515 = vld [vmem:[#allocation2 + $0x1a9] sm:$0xff]
        %v516 = vld [vmem:[#allocation2 + $0x1b1] sm:$0xff]
        %v517 = vld [vmem:[#allocation2 + $0x1c9] sm:$0xff]
        %v518 = vld [vmem:[#allocation2 + $0x1d1] sm:$0xff]
        %v519 = vld [vmem:[#allocation2 + $0x1e9] sm:$0xff]
        %v520 = vld [vmem:[#allocation2 + $0x1f1] sm:$0xff]
        %521 = vst [vmem:[#allocation3 + $0x10] sm:$0xff] %v489
        %522 = vst [vmem:[#allocation3 + $0x58] sm:$0xff] %v490
        %523 = vst [vmem:[#allocation3 + $0xa0] sm:$0xff] %v491
        %524 = vst [vmem:[#allocation3 + $0xe8] sm:$0xff] %v492
        %525 = vst [vmem:[#allocation3 + $0x130] sm:$0xff] %v493
        %526 = vst [vmem:[#allocation3 + $0x178] sm:$0xff] %v494
        %527 = vst [vmem:[#allocation3 + $0x1c0] sm:$0xff] %v495
        %528 = vst [vmem:[#allocation3 + $0x208] sm:$0xff] %v496
        %529 = vst [vmem:[#allocation3 + $0x250] sm:$0xff] %v497
        %530 = vst [vmem:[#allocation3 + $0x298] sm:$0xff] %v498
        %531 = vst [vmem:[#allocation3 + $0x2e0] sm:$0xff] %v499
        %532 = vst [vmem:[#allocation3 + $0x328] sm:$0xff] %v500
        %533 = vst [vmem:[#allocation3 + $0x370] sm:$0xff] %v501
        %534 = vst [vmem:[#allocation3 + $0x3b8] sm:$0xff] %v502
        %535 = vst [vmem:[#allocation3 + $0x400] sm:$0xff] %v503
        %536 = vst [vmem:[#allocation3 + $0x448] sm:$0xff] %v504
        %537 = vst [vmem:[#allocation3 + $0x490] sm:$0xff] %v505
        %538 = vst [vmem:[#allocation3 + $0x4d8] sm:$0xff] %v506
        %539 = vst [vmem:[#allocation3 + $0x520] sm:$0xff] %v507
        %540 = vst [vmem:[#allocation3 + $0x568] sm:$0xff] %v508
        %541 = vst [vmem:[#allocation3 + $0x5b0] sm:$0xff] %v509
        %542 = vst [vmem:[#allocation3 + $0x5f8] sm:$0xff] %v510
        %543 = vst [vmem:[#allocation3 + $0x640] sm:$0xff] %v511
        %544 = vst [vmem:[#allocation3 + $0x688] sm:$0xff] %v512
        %545 = vst [vmem:[#allocation3 + $0x6d0] sm:$0xff] %v513
        %546 = vst [vmem:[#allocation3 + $0x718] sm:$0xff] %v514
        %547 = vst [vmem:[#allocation3 + $0x760] sm:$0xff] %v515
        %548 = vst [vmem:[#allocation3 + $0x7a8] sm:$0xff] %v516
        %549 = vst [vmem:[#allocation3 + $0x7f0] sm:$0xff] %v517
        %550 = vst [vmem:[#allocation3 + $0x838] sm:$0xff] %v518
        %551 = vst [vmem:[#allocation3 + $0x880] sm:$0xff] %v519
        %552 = vst [vmem:[#allocation3 + $0x8c8] sm:$0xff] %v520
        %v553 = vld [vmem:[%s328 + $0x7] sm:$0xff]
        %v554 = vld [vmem:[%s328 + $0xf] sm:$0xff]
        %v555 = vld [vmem:[%s328 + $0x27] sm:$0xff]
        %v556 = vld [vmem:[%s328 + $0x2f] sm:$0xff]
        %v557 = vld [vmem:[%s328 + $0x47] sm:$0xff]
        %v558 = vld [vmem:[%s328 + $0x4f] sm:$0xff]
        %v559 = vld [vmem:[%s328 + $0x67] sm:$0xff]
        %v560 = vld [vmem:[%s328 + $0x6f] sm:$0xff]
        %v561 = vld [vmem:[%s328 + $0x87] sm:$0xff]
        %v562 = vld [vmem:[%s328 + $0x8f] sm:$0xff]
        %v563 = vld [vmem:[%s328 + $0xa7] sm:$0xff]
        %v564 = vld [vmem:[%s328 + $0xaf] sm:$0xff]
        %v565 = vld [vmem:[%s328 + $0xc7] sm:$0xff]
        %v566 = vld [vmem:[%s328 + $0xcf] sm:$0xff]
        %v567 = vld [vmem:[%s328 + $0xe7] sm:$0xff]
        %v568 = vld [vmem:[%s328 + $0xef] sm:$0xff]
        %v569 = vld [vmem:[%s328 + $0x107] sm:$0xff]
        %v570 = vld [vmem:[%s328 + $0x10f] sm:$0xff]
        %v571 = vld [vmem:[%s328 + $0x127] sm:$0xff]
        %v572 = vld [vmem:[%s328 + $0x12f] sm:$0xff]
        %v573 = vld [vmem:[%s328 + $0x147] sm:$0xff]
        %v574 = vld [vmem:[%s328 + $0x14f] sm:$0xff]
        %v575 = vld [vmem:[%s328 + $0x167] sm:$0xff]
        %v576 = vld [vmem:[%s328 + $0x16f] sm:$0xff]
        %v577 = vld [vmem:[%s328 + $0x187] sm:$0xff]
        %v578 = vld [vmem:[%s328 + $0x18f] sm:$0xff]
        %v579 = vld [vmem:[%s328 + $0x1a7] sm:$0xff]
        %v580 = vld [vmem:[%s328 + $0x1af] sm:$0xff]
        %v581 = vld [vmem:[%s328 + $0x1c7] sm:$0xff]
        %v582 = vld [vmem:[%s328 + $0x1cf] sm:$0xff]
        %v583 = vld [vmem:[%s328 + $0x1e7] sm:$0xff]
        %v584 = vld [vmem:[%s328 + $0x1ef] sm:$0xff]
        %585 = vst [vmem:[#allocation3 + $0x18] sm:$0xff] %v553
        %586 = vst [vmem:[#allocation3 + $0x60] sm:$0xff] %v554
        %587 = vst [vmem:[#allocation3 + $0xa8] sm:$0xff] %v555
        %588 = vst [vmem:[#allocation3 + $0xf0] sm:$0xff] %v556
        %589 = vst [vmem:[#allocation3 + $0x138] sm:$0xff] %v557
        %590 = vst [vmem:[#allocation3 + $0x180] sm:$0xff] %v558
        %591 = vst [vmem:[#allocation3 + $0x1c8] sm:$0xff] %v559
        %592 = vst [vmem:[#allocation3 + $0x210] sm:$0xff] %v560
        %593 = vst [vmem:[#allocation3 + $0x258] sm:$0xff] %v561
        %594 = vst [vmem:[#allocation3 + $0x2a0] sm:$0xff] %v562
        %595 = vst [vmem:[#allocation3 + $0x2e8] sm:$0xff] %v563
        %596 = vst [vmem:[#allocation3 + $0x330] sm:$0xff] %v564
        %597 = vst [vmem:[#allocation3 + $0x378] sm:$0xff] %v565
        %598 = vst [vmem:[#allocation3 + $0x3c0] sm:$0xff] %v566
        %599 = vst [vmem:[#allocation3 + $0x408] sm:$0xff] %v567
        %600 = vst [vmem:[#allocation3 + $0x450] sm:$0xff] %v568
        %601 = vst [vmem:[#allocation3 + $0x498] sm:$0xff] %v569
        %602 = vst [vmem:[#allocation3 + $0x4e0] sm:$0xff] %v570
        %603 = vst [vmem:[#allocation3 + $0x528] sm:$0xff] %v571
        %604 = vst [vmem:[#allocation3 + $0x570] sm:$0xff] %v572
        %605 = vst [vmem:[#allocation3 + $0x5b8] sm:$0xff] %v573
        %606 = vst [vmem:[#allocation3 + $0x600] sm:$0xff] %v574
        %607 = vst [vmem:[#allocation3 + $0x648] sm:$0xff] %v575
        %608 = vst [vmem:[#allocation3 + $0x690] sm:$0xff] %v576
        %609 = vst [vmem:[#allocation3 + $0x6d8] sm:$0xff] %v577
        %610 = vst [vmem:[#allocation3 + $0x720] sm:$0xff] %v578
        %611 = vst [vmem:[#allocation3 + $0x768] sm:$0xff] %v579
        %612 = vst [vmem:[#allocation3 + $0x7b0] sm:$0xff] %v580
        %613 = vst [vmem:[#allocation3 + $0x7f8] sm:$0xff] %v581
        %614 = vst [vmem:[#allocation3 + $0x840] sm:$0xff] %v582
        %615 = vst [vmem:[#allocation3 + $0x888] sm:$0xff] %v583
        %616 = vst [vmem:[#allocation3 + $0x8d0] sm:$0xff] %v584
        %v617 = vld [vmem:[%s328 + $0x8] sm:$0xff]
        %v618 = vld [vmem:[%s328 + $0x10] sm:$0xff]
        %v619 = vld [vmem:[%s328 + $0x28] sm:$0xff]
        %v620 = vld [vmem:[%s328 + $0x30] sm:$0xff]
        %v621 = vld [vmem:[%s328 + $0x48] sm:$0xff]
        %v622 = vld [vmem:[%s328 + $0x50] sm:$0xff]
        %v623 = vld [vmem:[%s328 + $0x68] sm:$0xff]
        %v624 = vld [vmem:[%s328 + $0x70] sm:$0xff]
        %v625 = vld [vmem:[%s328 + $0x88] sm:$0xff]
        %v626 = vld [vmem:[%s328 + $0x90] sm:$0xff]
        %v627 = vld [vmem:[%s328 + $0xa8] sm:$0xff]
        %v628 = vld [vmem:[%s328 + $0xb0] sm:$0xff]
        %v629 = vld [vmem:[%s328 + $0xc8] sm:$0xff]
        %v630 = vld [vmem:[%s328 + $0xd0] sm:$0xff]
        %v631 = vld [vmem:[%s328 + $0xe8] sm:$0xff]
        %v632 = vld [vmem:[%s328 + $0xf0] sm:$0xff]
        %v633 = vld [vmem:[%s328 + $0x108] sm:$0xff]
        %v634 = vld [vmem:[%s328 + $0x110] sm:$0xff]
        %v635 = vld [vmem:[%s328 + $0x128] sm:$0xff]
        %v636 = vld [vmem:[%s328 + $0x130] sm:$0xff]
        %v637 = vld [vmem:[%s328 + $0x148] sm:$0xff]
        %v638 = vld [vmem:[%s328 + $0x150] sm:$0xff]
        %v639 = vld [vmem:[%s328 + $0x168] sm:$0xff]
        %v640 = vld [vmem:[%s328 + $0x170] sm:$0xff]
        %v641 = vld [vmem:[%s328 + $0x188] sm:$0xff]
        %v642 = vld [vmem:[%s328 + $0x190] sm:$0xff]
        %v643 = vld [vmem:[%s328 + $0x1a8] sm:$0xff]
        %v644 = vld [vmem:[%s328 + $0x1b0] sm:$0xff]
        %v645 = vld [vmem:[%s328 + $0x1c8] sm:$0xff]
        %v646 = vld [vmem:[%s328 + $0x1d0] sm:$0xff]
        %v647 = vld [vmem:[%s328 + $0x1e8] sm:$0xff]
        %v648 = vld [vmem:[%s328 + $0x1f0] sm:$0xff]
        %649 = vst [vmem:[#allocation3 + $0x20] sm:$0xff] %v617
        %650 = vst [vmem:[#allocation3 + $0x68] sm:$0xff] %v618
        %651 = vst [vmem:[#allocation3 + $0xb0] sm:$0xff] %v619
        %652 = vst [vmem:[#allocation3 + $0xf8] sm:$0xff] %v620
        %653 = vst [vmem:[#allocation3 + $0x140] sm:$0xff] %v621
        %654 = vst [vmem:[#allocation3 + $0x188] sm:$0xff] %v622
        %655 = vst [vmem:[#allocation3 + $0x1d0] sm:$0xff] %v623
        %656 = vst [vmem:[#allocation3 + $0x218] sm:$0xff] %v624
        %657 = vst [vmem:[#allocation3 + $0x260] sm:$0xff] %v625
        %658 = vst [vmem:[#allocation3 + $0x2a8] sm:$0xff] %v626
        %659 = vst [vmem:[#allocation3 + $0x2f0] sm:$0xff] %v627
        %660 = vst [vmem:[#allocation3 + $0x338] sm:$0xff] %v628
        %661 = vst [vmem:[#allocation3 + $0x380] sm:$0xff] %v629
        %662 = vst [vmem:[#allocation3 + $0x3c8] sm:$0xff] %v630
        %663 = vst [vmem:[#allocation3 + $0x410] sm:$0xff] %v631
        %664 = vst [vmem:[#allocation3 + $0x458] sm:$0xff] %v632
        %665 = vst [vmem:[#allocation3 + $0x4a0] sm:$0xff] %v633
        %666 = vst [vmem:[#allocation3 + $0x4e8] sm:$0xff] %v634
        %667 = vst [vmem:[#allocation3 + $0x530] sm:$0xff] %v635
        %668 = vst [vmem:[#allocation3 + $0x578] sm:$0xff] %v636
        %669 = vst [vmem:[#allocation3 + $0x5c0] sm:$0xff] %v637
        %670 = vst [vmem:[#allocation3 + $0x608] sm:$0xff] %v638
        %671 = vst [vmem:[#allocation3 + $0x650] sm:$0xff] %v639
        %672 = vst [vmem:[#allocation3 + $0x698] sm:$0xff] %v640
        %673 = vst [vmem:[#allocation3 + $0x6e0] sm:$0xff] %v641
        %674 = vst [vmem:[#allocation3 + $0x728] sm:$0xff] %v642
        %675 = vst [vmem:[#allocation3 + $0x770] sm:$0xff] %v643
        %676 = vst [vmem:[#allocation3 + $0x7b8] sm:$0xff] %v644
        %677 = vst [vmem:[#allocation3 + $0x800] sm:$0xff] %v645
        %678 = vst [vmem:[#allocation3 + $0x848] sm:$0xff] %v646
        %679 = vst [vmem:[#allocation3 + $0x890] sm:$0xff] %v647
        %680 = vst [vmem:[#allocation3 + $0x8d8] sm:$0xff] %v648
        %v681 = vld [vmem:[%s328 + $0x9] sm:$0xff]
        %v682 = vld [vmem:[%s328 + $0x11] sm:$0xff]
        %v683 = vld [vmem:[%s328 + $0x29] sm:$0xff]
        %v684 = vld [vmem:[%s328 + $0x31] sm:$0xff]
        %v685 = vld [vmem:[%s328 + $0x49] sm:$0xff]
        %v686 = vld [vmem:[%s328 + $0x51] sm:$0xff]
        %v687 = vld [vmem:[%s328 + $0x69] sm:$0xff]
        %v688 = vld [vmem:[%s328 + $0x71] sm:$0xff]
        %v689 = vld [vmem:[%s328 + $0x89] sm:$0xff]
        %v690 = vld [vmem:[%s328 + $0x91] sm:$0xff]
        %v691 = vld [vmem:[%s328 + $0xa9] sm:$0xff]
        %v692 = vld [vmem:[%s328 + $0xb1] sm:$0xff]
        %v693 = vld [vmem:[%s328 + $0xc9] sm:$0xff]
        %v694 = vld [vmem:[%s328 + $0xd1] sm:$0xff]
        %v695 = vld [vmem:[%s328 + $0xe9] sm:$0xff]
        %v696 = vld [vmem:[%s328 + $0xf1] sm:$0xff]
        %v697 = vld [vmem:[%s328 + $0x109] sm:$0xff]
        %v698 = vld [vmem:[%s328 + $0x111] sm:$0xff]
        %v699 = vld [vmem:[%s328 + $0x129] sm:$0xff]
        %v700 = vld [vmem:[%s328 + $0x131] sm:$0xff]
        %v701 = vld [vmem:[%s328 + $0x149] sm:$0xff]
        %v702 = vld [vmem:[%s328 + $0x151] sm:$0xff]
        %v703 = vld [vmem:[%s328 + $0x169] sm:$0xff]
        %v704 = vld [vmem:[%s328 + $0x171] sm:$0xff]
        %v705 = vld [vmem:[%s328 + $0x189] sm:$0xff]
        %v706 = vld [vmem:[%s328 + $0x191] sm:$0xff]
        %v707 = vld [vmem:[%s328 + $0x1a9] sm:$0xff]
        %v708 = vld [vmem:[%s328 + $0x1b1] sm:$0xff]
        %v709 = vld [vmem:[%s328 + $0x1c9] sm:$0xff]
        %v710 = vld [vmem:[%s328 + $0x1d1] sm:$0xff]
        %v711 = vld [vmem:[%s328 + $0x1e9] sm:$0xff]
        %v712 = vld [vmem:[%s328 + $0x1f1] sm:$0xff]
        %713 = vst [vmem:[#allocation3 + $0x28] sm:$0xff] %v681
        %714 = vst [vmem:[#allocation3 + $0x70] sm:$0xff] %v682
        %715 = vst [vmem:[#allocation3 + $0xb8] sm:$0xff] %v683
        %716 = vst [vmem:[#allocation3 + $0x100] sm:$0xff] %v684
        %717 = vst [vmem:[#allocation3 + $0x148] sm:$0xff] %v685
        %718 = vst [vmem:[#allocation3 + $0x190] sm:$0xff] %v686
        %719 = vst [vmem:[#allocation3 + $0x1d8] sm:$0xff] %v687
        %720 = vst [vmem:[#allocation3 + $0x220] sm:$0xff] %v688
        %721 = vst [vmem:[#allocation3 + $0x268] sm:$0xff] %v689
        %722 = vst [vmem:[#allocation3 + $0x2b0] sm:$0xff] %v690
        %723 = vst [vmem:[#allocation3 + $0x2f8] sm:$0xff] %v691
        %724 = vst [vmem:[#allocation3 + $0x340] sm:$0xff] %v692
        %725 = vst [vmem:[#allocation3 + $0x388] sm:$0xff] %v693
        %726 = vst [vmem:[#allocation3 + $0x3d0] sm:$0xff] %v694
        %727 = vst [vmem:[#allocation3 + $0x418] sm:$0xff] %v695
        %728 = vst [vmem:[#allocation3 + $0x460] sm:$0xff] %v696
        %729 = vst [vmem:[#allocation3 + $0x4a8] sm:$0xff] %v697
        %730 = vst [vmem:[#allocation3 + $0x4f0] sm:$0xff] %v698
        %731 = vst [vmem:[#allocation3 + $0x538] sm:$0xff] %v699
        %732 = vst [vmem:[#allocation3 + $0x580] sm:$0xff] %v700
        %733 = vst [vmem:[#allocation3 + $0x5c8] sm:$0xff] %v701
        %734 = vst [vmem:[#allocation3 + $0x610] sm:$0xff] %v702
        %735 = vst [vmem:[#allocation3 + $0x658] sm:$0xff] %v703
        %736 = vst [vmem:[#allocation3 + $0x6a0] sm:$0xff] %v704
        %737 = vst [vmem:[#allocation3 + $0x6e8] sm:$0xff] %v705
        %738 = vst [vmem:[#allocation3 + $0x730] sm:$0xff] %v706
        %739 = vst [vmem:[#allocation3 + $0x778] sm:$0xff] %v707
        %740 = vst [vmem:[#allocation3 + $0x7c0] sm:$0xff] %v708
        %741 = vst [vmem:[#allocation3 + $0x808] sm:$0xff] %v709
        %742 = vst [vmem:[#allocation3 + $0x850] sm:$0xff] %v710
        %743 = vst [vmem:[#allocation3 + $0x898] sm:$0xff] %v711
        %744 = vst [vmem:[#allocation3 + $0x8e0] sm:$0xff] %v712
        %s745 = scalar_lea.vmem [#allocation2], 64
        %v746 = vld [vmem:[%s745 + $0x7] sm:$0xff]
        %v747 = vld [vmem:[%s745 + $0xf] sm:$0xff]
        %v748 = vld [vmem:[%s745 + $0x27] sm:$0xff]
        %v749 = vld [vmem:[%s745 + $0x2f] sm:$0xff]
        %v750 = vld [vmem:[%s745 + $0x47] sm:$0xff]
        %v751 = vld [vmem:[%s745 + $0x4f] sm:$0xff]
        %v752 = vld [vmem:[%s745 + $0x67] sm:$0xff]
        %v753 = vld [vmem:[%s745 + $0x6f] sm:$0xff]
        %v754 = vld [vmem:[%s745 + $0x87] sm:$0xff]
        %v755 = vld [vmem:[%s745 + $0x8f] sm:$0xff]
        %v756 = vld [vmem:[%s745 + $0xa7] sm:$0xff]
        %v757 = vld [vmem:[%s745 + $0xaf] sm:$0xff]
        %v758 = vld [vmem:[%s745 + $0xc7] sm:$0xff]
        %v759 = vld [vmem:[%s745 + $0xcf] sm:$0xff]
        %v760 = vld [vmem:[%s745 + $0xe7] sm:$0xff]
        %v761 = vld [vmem:[%s745 + $0xef] sm:$0xff]
        %v762 = vld [vmem:[%s745 + $0x107] sm:$0xff]
        %v763 = vld [vmem:[%s745 + $0x10f] sm:$0xff]
        %v764 = vld [vmem:[%s745 + $0x127] sm:$0xff]
        %v765 = vld [vmem:[%s745 + $0x12f] sm:$0xff]
        %v766 = vld [vmem:[%s745 + $0x147] sm:$0xff]
        %v767 = vld [vmem:[%s745 + $0x14f] sm:$0xff]
        %v768 = vld [vmem:[%s745 + $0x167] sm:$0xff]
        %v769 = vld [vmem:[%s745 + $0x16f] sm:$0xff]
        %v770 = vld [vmem:[%s745 + $0x187] sm:$0xff]
        %v771 = vld [vmem:[%s745 + $0x18f] sm:$0xff]
        %v772 = vld [vmem:[%s745 + $0x1a7] sm:$0xff]
        %v773 = vld [vmem:[%s745 + $0x1af] sm:$0xff]
        %v774 = vld [vmem:[%s745 + $0x1c7] sm:$0xff]
        %v775 = vld [vmem:[%s745 + $0x1cf] sm:$0xff]
        %v776 = vld [vmem:[%s745 + $0x1e7] sm:$0xff]
        %v777 = vld [vmem:[%s745 + $0x1ef] sm:$0xff]
        %778 = vst [vmem:[#allocation3 + $0x30] sm:$0xff] %v746
        %779 = vst [vmem:[#allocation3 + $0x78] sm:$0xff] %v747
        %780 = vst [vmem:[#allocation3 + $0xc0] sm:$0xff] %v748
        %781 = vst [vmem:[#allocation3 + $0x108] sm:$0xff] %v749
        %782 = vst [vmem:[#allocation3 + $0x150] sm:$0xff] %v750
        %783 = vst [vmem:[#allocation3 + $0x198] sm:$0xff] %v751
        %784 = vst [vmem:[#allocation3 + $0x1e0] sm:$0xff] %v752
        %785 = vst [vmem:[#allocation3 + $0x228] sm:$0xff] %v753
        %786 = vst [vmem:[#allocation3 + $0x270] sm:$0xff] %v754
        %787 = vst [vmem:[#allocation3 + $0x2b8] sm:$0xff] %v755
        %788 = vst [vmem:[#allocation3 + $0x300] sm:$0xff] %v756
        %789 = vst [vmem:[#allocation3 + $0x348] sm:$0xff] %v757
        %790 = vst [vmem:[#allocation3 + $0x390] sm:$0xff] %v758
        %791 = vst [vmem:[#allocation3 + $0x3d8] sm:$0xff] %v759
        %792 = vst [vmem:[#allocation3 + $0x420] sm:$0xff] %v760
        %793 = vst [vmem:[#allocation3 + $0x468] sm:$0xff] %v761
        %794 = vst [vmem:[#allocation3 + $0x4b0] sm:$0xff] %v762
        %795 = vst [vmem:[#allocation3 + $0x4f8] sm:$0xff] %v763
        %796 = vst [vmem:[#allocation3 + $0x540] sm:$0xff] %v764
        %797 = vst [vmem:[#allocation3 + $0x588] sm:$0xff] %v765
        %798 = vst [vmem:[#allocation3 + $0x5d0] sm:$0xff] %v766
        %799 = vst [vmem:[#allocation3 + $0x618] sm:$0xff] %v767
        %800 = vst [vmem:[#allocation3 + $0x660] sm:$0xff] %v768
        %801 = vst [vmem:[#allocation3 + $0x6a8] sm:$0xff] %v769
        %802 = vst [vmem:[#allocation3 + $0x6f0] sm:$0xff] %v770
        %803 = vst [vmem:[#allocation3 + $0x738] sm:$0xff] %v771
        %804 = vst [vmem:[#allocation3 + $0x780] sm:$0xff] %v772
        %805 = vst [vmem:[#allocation3 + $0x7c8] sm:$0xff] %v773
        %806 = vst [vmem:[#allocation3 + $0x810] sm:$0xff] %v774
        %807 = vst [vmem:[#allocation3 + $0x858] sm:$0xff] %v775
        %808 = vst [vmem:[#allocation3 + $0x8a0] sm:$0xff] %v776
        %809 = vst [vmem:[#allocation3 + $0x8e8] sm:$0xff] %v777
        %v810 = vld [vmem:[%s745 + $0x8] sm:$0xff]
        %v811 = vld [vmem:[%s745 + $0x10] sm:$0xff]
        %v812 = vld [vmem:[%s745 + $0x28] sm:$0xff]
        %v813 = vld [vmem:[%s745 + $0x30] sm:$0xff]
        %v814 = vld [vmem:[%s745 + $0x48] sm:$0xff]
        %v815 = vld [vmem:[%s745 + $0x50] sm:$0xff]
        %v816 = vld [vmem:[%s745 + $0x68] sm:$0xff]
        %v817 = vld [vmem:[%s745 + $0x70] sm:$0xff]
        %v818 = vld [vmem:[%s745 + $0x88] sm:$0xff]
        %v819 = vld [vmem:[%s745 + $0x90] sm:$0xff]
        %v820 = vld [vmem:[%s745 + $0xa8] sm:$0xff]
        %v821 = vld [vmem:[%s745 + $0xb0] sm:$0xff]
        %v822 = vld [vmem:[%s745 + $0xc8] sm:$0xff]
        %v823 = vld [vmem:[%s745 + $0xd0] sm:$0xff]
        %v824 = vld [vmem:[%s745 + $0xe8] sm:$0xff]
        %v825 = vld [vmem:[%s745 + $0xf0] sm:$0xff]
        %v826 = vld [vmem:[%s745 + $0x108] sm:$0xff]
        %v827 = vld [vmem:[%s745 + $0x110] sm:$0xff]
        %v828 = vld [vmem:[%s745 + $0x128] sm:$0xff]
        %v829 = vld [vmem:[%s745 + $0x130] sm:$0xff]
        %v830 = vld [vmem:[%s745 + $0x148] sm:$0xff]
        %v831 = vld [vmem:[%s745 + $0x150] sm:$0xff]
        %v832 = vld [vmem:[%s745 + $0x168] sm:$0xff]
        %v833 = vld [vmem:[%s745 + $0x170] sm:$0xff]
        %v834 = vld [vmem:[%s745 + $0x188] sm:$0xff]
        %v835 = vld [vmem:[%s745 + $0x190] sm:$0xff]
        %v836 = vld [vmem:[%s745 + $0x1a8] sm:$0xff]
        %v837 = vld [vmem:[%s745 + $0x1b0] sm:$0xff]
        %v838 = vld [vmem:[%s745 + $0x1c8] sm:$0xff]
        %v839 = vld [vmem:[%s745 + $0x1d0] sm:$0xff]
        %v840 = vld [vmem:[%s745 + $0x1e8] sm:$0xff]
        %v841 = vld [vmem:[%s745 + $0x1f0] sm:$0xff]
        %842 = vst [vmem:[#allocation3 + $0x38] sm:$0xff] %v810
        %843 = vst [vmem:[#allocation3 + $0x80] sm:$0xff] %v811
        %844 = vst [vmem:[#allocation3 + $0xc8] sm:$0xff] %v812
        %845 = vst [vmem:[#allocation3 + $0x110] sm:$0xff] %v813
        %846 = vst [vmem:[#allocation3 + $0x158] sm:$0xff] %v814
        %847 = vst [vmem:[#allocation3 + $0x1a0] sm:$0xff] %v815
        %848 = vst [vmem:[#allocation3 + $0x1e8] sm:$0xff] %v816
        %849 = vst [vmem:[#allocation3 + $0x230] sm:$0xff] %v817
        %850 = vst [vmem:[#allocation3 + $0x278] sm:$0xff] %v818
        %851 = vst [vmem:[#allocation3 + $0x2c0] sm:$0xff] %v819
        %852 = vst [vmem:[#allocation3 + $0x308] sm:$0xff] %v820
        %853 = vst [vmem:[#allocation3 + $0x350] sm:$0xff] %v821
        %854 = vst [vmem:[#allocation3 + $0x398] sm:$0xff] %v822
        %855 = vst [vmem:[#allocation3 + $0x3e0] sm:$0xff] %v823
        %856 = vst [vmem:[#allocation3 + $0x428] sm:$0xff] %v824
        %857 = vst [vmem:[#allocation3 + $0x470] sm:$0xff] %v825
        %858 = vst [vmem:[#allocation3 + $0x4b8] sm:$0xff] %v826
        %859 = vst [vmem:[#allocation3 + $0x500] sm:$0xff] %v827
        %860 = vst [vmem:[#allocation3 + $0x548] sm:$0xff] %v828
        %861 = vst [vmem:[#allocation3 + $0x590] sm:$0xff] %v829
        %862 = vst [vmem:[#allocation3 + $0x5d8] sm:$0xff] %v830
        %863 = vst [vmem:[#allocation3 + $0x620] sm:$0xff] %v831
        %864 = vst [vmem:[#allocation3 + $0x668] sm:$0xff] %v832
        %865 = vst [vmem:[#allocation3 + $0x6b0] sm:$0xff] %v833
        %866 = vst [vmem:[#allocation3 + $0x6f8] sm:$0xff] %v834
        %867 = vst [vmem:[#allocation3 + $0x740] sm:$0xff] %v835
        %868 = vst [vmem:[#allocation3 + $0x788] sm:$0xff] %v836
        %869 = vst [vmem:[#allocation3 + $0x7d0] sm:$0xff] %v837
        %870 = vst [vmem:[#allocation3 + $0x818] sm:$0xff] %v838
        %871 = vst [vmem:[#allocation3 + $0x860] sm:$0xff] %v839
        %872 = vst [vmem:[#allocation3 + $0x8a8] sm:$0xff] %v840
        %873 = vst [vmem:[#allocation3 + $0x8f0] sm:$0xff] %v841
        %v874 = vld [vmem:[%s745 + $0x9] sm:$0xff]
        %v875 = vld [vmem:[%s745 + $0x11] sm:$0xff]
        %v876 = vld [vmem:[%s745 + $0x29] sm:$0xff]
        %v877 = vld [vmem:[%s745 + $0x31] sm:$0xff]
        %v878 = vld [vmem:[%s745 + $0x49] sm:$0xff]
        %v879 = vld [vmem:[%s745 + $0x51] sm:$0xff]
        %v880 = vld [vmem:[%s745 + $0x69] sm:$0xff]
        %v881 = vld [vmem:[%s745 + $0x71] sm:$0xff]
        %v882 = vld [vmem:[%s745 + $0x89] sm:$0xff]
        %v883 = vld [vmem:[%s745 + $0x91] sm:$0xff]
        %v884 = vld [vmem:[%s745 + $0xa9] sm:$0xff]
        %v885 = vld [vmem:[%s745 + $0xb1] sm:$0xff]
        %v886 = vld [vmem:[%s745 + $0xc9] sm:$0xff]
        %v887 = vld [vmem:[%s745 + $0xd1] sm:$0xff]
        %v888 = vld [vmem:[%s745 + $0xe9] sm:$0xff]
        %v889 = vld [vmem:[%s745 + $0xf1] sm:$0xff]
        %v890 = vld [vmem:[%s745 + $0x109] sm:$0xff]
        %v891 = vld [vmem:[%s745 + $0x111] sm:$0xff]
        %v892 = vld [vmem:[%s745 + $0x129] sm:$0xff]
        %v893 = vld [vmem:[%s745 + $0x131] sm:$0xff]
        %v894 = vld [vmem:[%s745 + $0x149] sm:$0xff]
        %v895 = vld [vmem:[%s745 + $0x151] sm:$0xff]
        %v896 = vld [vmem:[%s745 + $0x169] sm:$0xff]
        %v897 = vld [vmem:[%s745 + $0x171] sm:$0xff]
        %v898 = vld [vmem:[%s745 + $0x189] sm:$0xff]
        %v899 = vld [vmem:[%s745 + $0x191] sm:$0xff]
        %v900 = vld [vmem:[%s745 + $0x1a9] sm:$0xff]
        %v901 = vld [vmem:[%s745 + $0x1b1] sm:$0xff]
        %v902 = vld [vmem:[%s745 + $0x1c9] sm:$0xff]
        %v903 = vld [vmem:[%s745 + $0x1d1] sm:$0xff]
        %v904 = vld [vmem:[%s745 + $0x1e9] sm:$0xff]
        %v905 = vld [vmem:[%s745 + $0x1f1] sm:$0xff]
        %906 = vst [vmem:[#allocation3 + $0x40] sm:$0xff] %v874
        %907 = vst [vmem:[#allocation3 + $0x88] sm:$0xff] %v875
        %908 = vst [vmem:[#allocation3 + $0xd0] sm:$0xff] %v876
        %909 = vst [vmem:[#allocation3 + $0x118] sm:$0xff] %v877
        %910 = vst [vmem:[#allocation3 + $0x160] sm:$0xff] %v878
        %911 = vst [vmem:[#allocation3 + $0x1a8] sm:$0xff] %v879
        %912 = vst [vmem:[#allocation3 + $0x1f0] sm:$0xff] %v880
        %913 = vst [vmem:[#allocation3 + $0x238] sm:$0xff] %v881
        %914 = vst [vmem:[#allocation3 + $0x280] sm:$0xff] %v882
        %915 = vst [vmem:[#allocation3 + $0x2c8] sm:$0xff] %v883
        %916 = vst [vmem:[#allocation3 + $0x310] sm:$0xff] %v884
        %917 = vst [vmem:[#allocation3 + $0x358] sm:$0xff] %v885
        %918 = vst [vmem:[#allocation3 + $0x3a0] sm:$0xff] %v886
        %919 = vst [vmem:[#allocation3 + $0x3e8] sm:$0xff] %v887
        %920 = vst [vmem:[#allocation3 + $0x430] sm:$0xff] %v888
        %921 = vst [vmem:[#allocation3 + $0x478] sm:$0xff] %v889
        %922 = vst [vmem:[#allocation3 + $0x4c0] sm:$0xff] %v890
        %923 = vst [vmem:[#allocation3 + $0x508] sm:$0xff] %v891
        %924 = vst [vmem:[#allocation3 + $0x550] sm:$0xff] %v892
        %925 = vst [vmem:[#allocation3 + $0x598] sm:$0xff] %v893
        %926 = vst [vmem:[#allocation3 + $0x5e0] sm:$0xff] %v894
        %927 = vst [vmem:[#allocation3 + $0x628] sm:$0xff] %v895
        %928 = vst [vmem:[#allocation3 + $0x670] sm:$0xff] %v896
        %929 = vst [vmem:[#allocation3 + $0x6b8] sm:$0xff] %v897
        %930 = vst [vmem:[#allocation3 + $0x700] sm:$0xff] %v898
        %931 = vst [vmem:[#allocation3 + $0x748] sm:$0xff] %v899
        %932 = vst [vmem:[#allocation3 + $0x790] sm:$0xff] %v900
        %933 = vst [vmem:[#allocation3 + $0x7d8] sm:$0xff] %v901
        %934 = vst [vmem:[#allocation3 + $0x820] sm:$0xff] %v902
        %935 = vst [vmem:[#allocation3 + $0x868] sm:$0xff] %v903
        %936 = vst [vmem:[#allocation3 + $0x8b0] sm:$0xff] %v904
        %937 = vst [vmem:[#allocation3 + $0x8f8] sm:$0xff] %v905
        %v938 = vld [vmem:[#allocation3] sm:$0xff]
        %v939 = vld [vmem:[#allocation3 + $0x8] sm:$0xff]
        %v940 = vld [vmem:[#allocation3 + $0x10] sm:$0xff]
        %v941 = vld [vmem:[#allocation3 + $0x18] sm:$0xff]
        %v942 = vld [vmem:[#allocation3 + $0x20] sm:$0xff]
        %v943 = vld [vmem:[#allocation3 + $0x28] sm:$0xff]
        %v944 = vld [vmem:[#allocation3 + $0x30] sm:$0xff]
        %v945 = vld [vmem:[#allocation3 + $0x38] sm:$0xff]
        %v946 = vld [vmem:[#allocation3 + $0x40] sm:$0xff]
        %v947 = vld [vmem:[#allocation3 + $0x48] sm:$0xff]
        %v948 = vld [vmem:[#allocation3 + $0x50] sm:$0xff]
        %v949 = vld [vmem:[#allocation3 + $0x58] sm:$0xff]
        %v950 = vld [vmem:[#allocation3 + $0x60] sm:$0xff]
        %v951 = vld [vmem:[#allocation3 + $0x68] sm:$0xff]
        %v952 = vld [vmem:[#allocation3 + $0x70] sm:$0xff]
        %v953 = vld [vmem:[#allocation3 + $0x78] sm:$0xff]
        %v954 = vld [vmem:[#allocation3 + $0x80] sm:$0xff]
        %v955 = vld [vmem:[#allocation3 + $0x88] sm:$0xff]
        %v956 = vld [vmem:[#allocation3 + $0x90] sm:$0xff]
        %v957 = vld [vmem:[#allocation3 + $0x98] sm:$0xff]
        %v958 = vld [vmem:[#allocation3 + $0xa0] sm:$0xff]
        %v959 = vld [vmem:[#allocation3 + $0xa8] sm:$0xff]
        %v960 = vld [vmem:[#allocation3 + $0xb0] sm:$0xff]
        %v961 = vld [vmem:[#allocation3 + $0xb8] sm:$0xff]
        %v962 = vld [vmem:[#allocation3 + $0xc0] sm:$0xff]
        %v963 = vld [vmem:[#allocation3 + $0xc8] sm:$0xff]
        %v964 = vld [vmem:[#allocation3 + $0xd0] sm:$0xff]
        %v965 = vld [vmem:[#allocation3 + $0xd8] sm:$0xff]
        %v966 = vld [vmem:[#allocation3 + $0xe0] sm:$0xff]
        %v967 = vld [vmem:[#allocation3 + $0xe8] sm:$0xff]
        %v968 = vld [vmem:[#allocation3 + $0xf0] sm:$0xff]
        %v969 = vld [vmem:[#allocation3 + $0xf8] sm:$0xff]
        %v970 = vld [vmem:[#allocation3 + $0x100] sm:$0xff]
        %v971 = vld [vmem:[#allocation3 + $0x108] sm:$0xff]
        %v972 = vld [vmem:[#allocation3 + $0x110] sm:$0xff]
        %v973 = vld [vmem:[#allocation3 + $0x118] sm:$0xff]
        %v974 = vld [vmem:[#allocation3 + $0x120] sm:$0xff]
        %v975 = vld [vmem:[#allocation3 + $0x128] sm:$0xff]
        %v976 = vld [vmem:[#allocation3 + $0x130] sm:$0xff]
        %v977 = vld [vmem:[#allocation3 + $0x138] sm:$0xff]
        %v978 = vld [vmem:[#allocation3 + $0x140] sm:$0xff]
        %v979 = vld [vmem:[#allocation3 + $0x148] sm:$0xff]
        %v980 = vld [vmem:[#allocation3 + $0x150] sm:$0xff]
        %v981 = vld [vmem:[#allocation3 + $0x158] sm:$0xff]
        %v982 = vld [vmem:[#allocation3 + $0x160] sm:$0xff]
        %v983 = vld [vmem:[#allocation3 + $0x168] sm:$0xff]
        %v984 = vld [vmem:[#allocation3 + $0x170] sm:$0xff]
        %v985 = vld [vmem:[#allocation3 + $0x178] sm:$0xff]
        %v986 = vld [vmem:[#allocation3 + $0x180] sm:$0xff]
        %v987 = vld [vmem:[#allocation3 + $0x188] sm:$0xff]
        %v988 = vld [vmem:[#allocation3 + $0x190] sm:$0xff]
        %v989 = vld [vmem:[#allocation3 + $0x198] sm:$0xff]
        %v990 = vld [vmem:[#allocation3 + $0x1a0] sm:$0xff]
        %v991 = vld [vmem:[#allocation3 + $0x1a8] sm:$0xff]
        %v992 = vld [vmem:[#allocation3 + $0x1b0] sm:$0xff]
        %v993 = vld [vmem:[#allocation3 + $0x1b8] sm:$0xff]
        %v994 = vld [vmem:[#allocation3 + $0x1c0] sm:$0xff]
        %v995 = vld [vmem:[#allocation3 + $0x1c8] sm:$0xff]
        %v996 = vld [vmem:[#allocation3 + $0x1d0] sm:$0xff]
        %v997 = vld [vmem:[#allocation3 + $0x1d8] sm:$0xff]
        %v998 = vld [vmem:[#allocation3 + $0x1e0] sm:$0xff]
        %v999 = vld [vmem:[#allocation3 + $0x1e8] sm:$0xff]
        %v1000 = vld [vmem:[#allocation3 + $0x1f0] sm:$0xff]
        %v1001 = vld [vmem:[#allocation3 + $0x1f8] sm:$0xff]
        %v1002 = vld [vmem:[#allocation3 + $0x200] sm:$0xff]
        %v1003 = vld [vmem:[#allocation3 + $0x208] sm:$0xff]
        %v1004 = vld [vmem:[#allocation3 + $0x210] sm:$0xff]
        %v1005 = vld [vmem:[#allocation3 + $0x218] sm:$0xff]
        %v1006 = vld [vmem:[#allocation3 + $0x220] sm:$0xff]
        %v1007 = vld [vmem:[#allocation3 + $0x228] sm:$0xff]
        %v1008 = vld [vmem:[#allocation3 + $0x230] sm:$0xff]
        %v1009 = vld [vmem:[#allocation3 + $0x238] sm:$0xff]
        %v1010 = vld [vmem:[#allocation3 + $0x240] sm:$0xff]
        %v1011 = vld [vmem:[#allocation3 + $0x248] sm:$0xff]
        %v1012 = vld [vmem:[#allocation3 + $0x250] sm:$0xff]
        %v1013 = vld [vmem:[#allocation3 + $0x258] sm:$0xff]
        %v1014 = vld [vmem:[#allocation3 + $0x260] sm:$0xff]
        %v1015 = vld [vmem:[#allocation3 + $0x268] sm:$0xff]
        %v1016 = vld [vmem:[#allocation3 + $0x270] sm:$0xff]
        %v1017 = vld [vmem:[#allocation3 + $0x278] sm:$0xff]
        %v1018 = vld [vmem:[#allocation3 + $0x280] sm:$0xff]
        %v1019 = vld [vmem:[#allocation3 + $0x288] sm:$0xff]
        %v1020 = vld [vmem:[#allocation3 + $0x290] sm:$0xff]
        %v1021 = vld [vmem:[#allocation3 + $0x298] sm:$0xff]
        %v1022 = vld [vmem:[#allocation3 + $0x2a0] sm:$0xff]
        %v1023 = vld [vmem:[#allocation3 + $0x2a8] sm:$0xff]
        %v1024 = vld [vmem:[#allocation3 + $0x2b0] sm:$0xff]
        %v1025 = vld [vmem:[#allocation3 + $0x2b8] sm:$0xff]
        %v1026 = vld [vmem:[#allocation3 + $0x2c0] sm:$0xff]
        %v1027 = vld [vmem:[#allocation3 + $0x2c8] sm:$0xff]
        %v1028 = vld [vmem:[#allocation3 + $0x2d0] sm:$0xff]
        %v1029 = vld [vmem:[#allocation3 + $0x2d8] sm:$0xff]
        %v1030 = vld [vmem:[#allocation3 + $0x2e0] sm:$0xff]
        %v1031 = vld [vmem:[#allocation3 + $0x2e8] sm:$0xff]
        %v1032 = vld [vmem:[#allocation3 + $0x2f0] sm:$0xff]
        %v1033 = vld [vmem:[#allocation3 + $0x2f8] sm:$0xff]
        %v1034 = vld [vmem:[#allocation3 + $0x300] sm:$0xff]
        %v1035 = vld [vmem:[#allocation3 + $0x308] sm:$0xff]
        %v1036 = vld [vmem:[#allocation3 + $0x310] sm:$0xff]
        %v1037 = vld [vmem:[#allocation3 + $0x318] sm:$0xff]
        %v1038 = vld [vmem:[#allocation3 + $0x320] sm:$0xff]
        %v1039 = vld [vmem:[#allocation3 + $0x328] sm:$0xff]
        %v1040 = vld [vmem:[#allocation3 + $0x330] sm:$0xff]
        %v1041 = vld [vmem:[#allocation3 + $0x338] sm:$0xff]
        %v1042 = vld [vmem:[#allocation3 + $0x340] sm:$0xff]
        %v1043 = vld [vmem:[#allocation3 + $0x348] sm:$0xff]
        %v1044 = vld [vmem:[#allocation3 + $0x350] sm:$0xff]
        %v1045 = vld [vmem:[#allocation3 + $0x358] sm:$0xff]
        %v1046 = vld [vmem:[#allocation3 + $0x360] sm:$0xff]
        %v1047 = vld [vmem:[#allocation3 + $0x368] sm:$0xff]
        %v1048 = vld [vmem:[#allocation3 + $0x370] sm:$0xff]
        %v1049 = vld [vmem:[#allocation3 + $0x378] sm:$0xff]
        %v1050 = vld [vmem:[#allocation3 + $0x380] sm:$0xff]
        %v1051 = vld [vmem:[#allocation3 + $0x388] sm:$0xff]
        %v1052 = vld [vmem:[#allocation3 + $0x390] sm:$0xff]
        %v1053 = vld [vmem:[#allocation3 + $0x398] sm:$0xff]
        %v1054 = vld [vmem:[#allocation3 + $0x3a0] sm:$0xff]
        %v1055 = vld [vmem:[#allocation3 + $0x3a8] sm:$0xff]
        %v1056 = vld [vmem:[#allocation3 + $0x3b0] sm:$0xff]
        %v1057 = vld [vmem:[#allocation3 + $0x3b8] sm:$0xff]
        %v1058 = vld [vmem:[#allocation3 + $0x3c0] sm:$0xff]
        %v1059 = vld [vmem:[#allocation3 + $0x3c8] sm:$0xff]
        %v1060 = vld [vmem:[#allocation3 + $0x3d0] sm:$0xff]
        %v1061 = vld [vmem:[#allocation3 + $0x3d8] sm:$0xff]
        %v1062 = vld [vmem:[#allocation3 + $0x3e0] sm:$0xff]
        %v1063 = vld [vmem:[#allocation3 + $0x3e8] sm:$0xff]
        %v1064 = vld [vmem:[#allocation3 + $0x3f0] sm:$0xff]
        %v1065 = vld [vmem:[#allocation3 + $0x3f8] sm:$0xff]
        %v1066 = vld [vmem:[#allocation3 + $0x400] sm:$0xff]
        %v1067 = vld [vmem:[#allocation3 + $0x408] sm:$0xff]
        %v1068 = vld [vmem:[#allocation3 + $0x410] sm:$0xff]
        %v1069 = vld [vmem:[#allocation3 + $0x418] sm:$0xff]
        %v1070 = vld [vmem:[#allocation3 + $0x420] sm:$0xff]
        %v1071 = vld [vmem:[#allocation3 + $0x428] sm:$0xff]
        %v1072 = vld [vmem:[#allocation3 + $0x430] sm:$0xff]
        %v1073 = vld [vmem:[#allocation3 + $0x438] sm:$0xff]
        %v1074 = vld [vmem:[#allocation3 + $0x440] sm:$0xff]
        %v1075 = vld [vmem:[#allocation3 + $0x448] sm:$0xff]
        %v1076 = vld [vmem:[#allocation3 + $0x450] sm:$0xff]
        %v1077 = vld [vmem:[#allocation3 + $0x458] sm:$0xff]
        %v1078 = vld [vmem:[#allocation3 + $0x460] sm:$0xff]
        %v1079 = vld [vmem:[#allocation3 + $0x468] sm:$0xff]
        %v1080 = vld [vmem:[#allocation3 + $0x470] sm:$0xff]
        %v1081 = vld [vmem:[#allocation3 + $0x478] sm:$0xff]
        %v1082 = vld [vmem:[#allocation3 + $0x480] sm:$0xff]
        %v1083 = vld [vmem:[#allocation3 + $0x488] sm:$0xff]
        %v1084 = vld [vmem:[#allocation3 + $0x490] sm:$0xff]
        %v1085 = vld [vmem:[#allocation3 + $0x498] sm:$0xff]
        %v1086 = vld [vmem:[#allocation3 + $0x4a0] sm:$0xff]
        %v1087 = vld [vmem:[#allocation3 + $0x4a8] sm:$0xff]
        %v1088 = vld [vmem:[#allocation3 + $0x4b0] sm:$0xff]
        %v1089 = vld [vmem:[#allocation3 + $0x4b8] sm:$0xff]
        %v1090 = vld [vmem:[#allocation3 + $0x4c0] sm:$0xff]
        %v1091 = vld [vmem:[#allocation3 + $0x4c8] sm:$0xff]
        %v1092 = vld [vmem:[#allocation3 + $0x4d0] sm:$0xff]
        %v1093 = vld [vmem:[#allocation3 + $0x4d8] sm:$0xff]
        %v1094 = vld [vmem:[#allocation3 + $0x4e0] sm:$0xff]
        %v1095 = vld [vmem:[#allocation3 + $0x4e8] sm:$0xff]
        %v1096 = vld [vmem:[#allocation3 + $0x4f0] sm:$0xff]
        %v1097 = vld [vmem:[#allocation3 + $0x4f8] sm:$0xff]
        %v1098 = vld [vmem:[#allocation3 + $0x500] sm:$0xff]
        %v1099 = vld [vmem:[#allocation3 + $0x508] sm:$0xff]
        %v1100 = vld [vmem:[#allocation3 + $0x510] sm:$0xff]
        %v1101 = vld [vmem:[#allocation3 + $0x518] sm:$0xff]
        %v1102 = vld [vmem:[#allocation3 + $0x520] sm:$0xff]
        %v1103 = vld [vmem:[#allocation3 + $0x528] sm:$0xff]
        %v1104 = vld [vmem:[#allocation3 + $0x530] sm:$0xff]
        %v1105 = vld [vmem:[#allocation3 + $0x538] sm:$0xff]
        %v1106 = vld [vmem:[#allocation3 + $0x540] sm:$0xff]
        %v1107 = vld [vmem:[#allocation3 + $0x548] sm:$0xff]
        %v1108 = vld [vmem:[#allocation3 + $0x550] sm:$0xff]
        %v1109 = vld [vmem:[#allocation3 + $0x558] sm:$0xff]
        %v1110 = vld [vmem:[#allocation3 + $0x560] sm:$0xff]
        %v1111 = vld [vmem:[#allocation3 + $0x568] sm:$0xff]
        %v1112 = vld [vmem:[#allocation3 + $0x570] sm:$0xff]
        %v1113 = vld [vmem:[#allocation3 + $0x578] sm:$0xff]
        %v1114 = vld [vmem:[#allocation3 + $0x580] sm:$0xff]
        %v1115 = vld [vmem:[#allocation3 + $0x588] sm:$0xff]
        %v1116 = vld [vmem:[#allocation3 + $0x590] sm:$0xff]
        %v1117 = vld [vmem:[#allocation3 + $0x598] sm:$0xff]
        %v1118 = vld [vmem:[#allocation3 + $0x5a0] sm:$0xff]
        %v1119 = vld [vmem:[#allocation3 + $0x5a8] sm:$0xff]
        %v1120 = vld [vmem:[#allocation3 + $0x5b0] sm:$0xff]
        %v1121 = vld [vmem:[#allocation3 + $0x5b8] sm:$0xff]
        %v1122 = vld [vmem:[#allocation3 + $0x5c0] sm:$0xff]
        %v1123 = vld [vmem:[#allocation3 + $0x5c8] sm:$0xff]
        %v1124 = vld [vmem:[#allocation3 + $0x5d0] sm:$0xff]
        %v1125 = vld [vmem:[#allocation3 + $0x5d8] sm:$0xff]
        %v1126 = vld [vmem:[#allocation3 + $0x5e0] sm:$0xff]
        %v1127 = vld [vmem:[#allocation3 + $0x5e8] sm:$0xff]
        %v1128 = vld [vmem:[#allocation3 + $0x5f0] sm:$0xff]
        %v1129 = vld [vmem:[#allocation3 + $0x5f8] sm:$0xff]
        %v1130 = vld [vmem:[#allocation3 + $0x600] sm:$0xff]
        %v1131 = vld [vmem:[#allocation3 + $0x608] sm:$0xff]
        %v1132 = vld [vmem:[#allocation3 + $0x610] sm:$0xff]
        %v1133 = vld [vmem:[#allocation3 + $0x618] sm:$0xff]
        %v1134 = vld [vmem:[#allocation3 + $0x620] sm:$0xff]
        %v1135 = vld [vmem:[#allocation3 + $0x628] sm:$0xff]
        %v1136 = vld [vmem:[#allocation3 + $0x630] sm:$0xff]
        %v1137 = vld [vmem:[#allocation3 + $0x638] sm:$0xff]
        %v1138 = vld [vmem:[#allocation3 + $0x640] sm:$0xff]
        %v1139 = vld [vmem:[#allocation3 + $0x648] sm:$0xff]
        %v1140 = vld [vmem:[#allocation3 + $0x650] sm:$0xff]
        %v1141 = vld [vmem:[#allocation3 + $0x658] sm:$0xff]
        %v1142 = vld [vmem:[#allocation3 + $0x660] sm:$0xff]
        %v1143 = vld [vmem:[#allocation3 + $0x668] sm:$0xff]
        %v1144 = vld [vmem:[#allocation3 + $0x670] sm:$0xff]
        %v1145 = vld [vmem:[#allocation3 + $0x678] sm:$0xff]
        %v1146 = vld [vmem:[#allocation3 + $0x680] sm:$0xff]
        %v1147 = vld [vmem:[#allocation3 + $0x688] sm:$0xff]
        %v1148 = vld [vmem:[#allocation3 + $0x690] sm:$0xff]
        %v1149 = vld [vmem:[#allocation3 + $0x698] sm:$0xff]
        %v1150 = vld [vmem:[#allocation3 + $0x6a0] sm:$0xff]
        %v1151 = vld [vmem:[#allocation3 + $0x6a8] sm:$0xff]
        %v1152 = vld [vmem:[#allocation3 + $0x6b0] sm:$0xff]
        %v1153 = vld [vmem:[#allocation3 + $0x6b8] sm:$0xff]
        %v1154 = vld [vmem:[#allocation3 + $0x6c0] sm:$0xff]
        %v1155 = vld [vmem:[#allocation3 + $0x6c8] sm:$0xff]
        %v1156 = vld [vmem:[#allocation3 + $0x6d0] sm:$0xff]
        %v1157 = vld [vmem:[#allocation3 + $0x6d8] sm:$0xff]
        %v1158 = vld [vmem:[#allocation3 + $0x6e0] sm:$0xff]
        %v1159 = vld [vmem:[#allocation3 + $0x6e8] sm:$0xff]
        %v1160 = vld [vmem:[#allocation3 + $0x6f0] sm:$0xff]
        %v1161 = vld [vmem:[#allocation3 + $0x6f8] sm:$0xff]
        %v1162 = vld [vmem:[#allocation3 + $0x700] sm:$0xff]
        %v1163 = vld [vmem:[#allocation3 + $0x708] sm:$0xff]
        %v1164 = vld [vmem:[#allocation3 + $0x710] sm:$0xff]
        %v1165 = vld [vmem:[#allocation3 + $0x718] sm:$0xff]
        %v1166 = vld [vmem:[#allocation3 + $0x720] sm:$0xff]
        %v1167 = vld [vmem:[#allocation3 + $0x728] sm:$0xff]
        %v1168 = vld [vmem:[#allocation3 + $0x730] sm:$0xff]
        %v1169 = vld [vmem:[#allocation3 + $0x738] sm:$0xff]
        %v1170 = vld [vmem:[#allocation3 + $0x740] sm:$0xff]
        %v1171 = vld [vmem:[#allocation3 + $0x748] sm:$0xff]
        %v1172 = vld [vmem:[#allocation3 + $0x750] sm:$0xff]
        %v1173 = vld [vmem:[#allocation3 + $0x758] sm:$0xff]
        %v1174 = vld [vmem:[#allocation3 + $0x760] sm:$0xff]
        %v1175 = vld [vmem:[#allocation3 + $0x768] sm:$0xff]
        %v1176 = vld [vmem:[#allocation3 + $0x770] sm:$0xff]
        %v1177 = vld [vmem:[#allocation3 + $0x778] sm:$0xff]
        %v1178 = vld [vmem:[#allocation3 + $0x780] sm:$0xff]
        %v1179 = vld [vmem:[#allocation3 + $0x788] sm:$0xff]
        %v1180 = vld [vmem:[#allocation3 + $0x790] sm:$0xff]
        %v1181 = vld [vmem:[#allocation3 + $0x798] sm:$0xff]
        %v1182 = vld [vmem:[#allocation3 + $0x7a0] sm:$0xff]
        %v1183 = vld [vmem:[#allocation3 + $0x7a8] sm:$0xff]
        %v1184 = vld [vmem:[#allocation3 + $0x7b0] sm:$0xff]
        %v1185 = vld [vmem:[#allocation3 + $0x7b8] sm:$0xff]
        %v1186 = vld [vmem:[#allocation3 + $0x7c0] sm:$0xff]
        %v1187 = vld [vmem:[#allocation3 + $0x7c8] sm:$0xff]
        %v1188 = vld [vmem:[#allocation3 + $0x7d0] sm:$0xff]
        %v1189 = vld [vmem:[#allocation3 + $0x7d8] sm:$0xff]
        %v1190 = vld [vmem:[#allocation3 + $0x7e0] sm:$0xff]
        %v1191 = vld [vmem:[#allocation3 + $0x7e8] sm:$0xff]
        %v1192 = vld [vmem:[#allocation3 + $0x7f0] sm:$0xff]
        %v1193 = vld [vmem:[#allocation3 + $0x7f8] sm:$0xff]
        %v1194 = vld [vmem:[#allocation3 + $0x800] sm:$0xff]
        %v1195 = vld [vmem:[#allocation3 + $0x808] sm:$0xff]
        %v1196 = vld [vmem:[#allocation3 + $0x810] sm:$0xff]
        %v1197 = vld [vmem:[#allocation3 + $0x818] sm:$0xff]
        %v1198 = vld [vmem:[#allocation3 + $0x820] sm:$0xff]
        %v1199 = vld [vmem:[#allocation3 + $0x828] sm:$0xff]
        %v1200 = vld [vmem:[#allocation3 + $0x830] sm:$0xff]
        %v1201 = vld [vmem:[#allocation3 + $0x838] sm:$0xff]
        %v1202 = vld [vmem:[#allocation3 + $0x840] sm:$0xff]
        %v1203 = vld [vmem:[#allocation3 + $0x848] sm:$0xff]
        %v1204 = vld [vmem:[#allocation3 + $0x850] sm:$0xff]
        %v1205 = vld [vmem:[#allocation3 + $0x858] sm:$0xff]
        %v1206 = vld [vmem:[#allocation3 + $0x860] sm:$0xff]
        %v1207 = vld [vmem:[#allocation3 + $0x868] sm:$0xff]
        %v1208 = vld [vmem:[#allocation3 + $0x870] sm:$0xff]
        %v1209 = vld [vmem:[#allocation3 + $0x878] sm:$0xff]
        %v1210 = vld [vmem:[#allocation3 + $0x880] sm:$0xff]
        %v1211 = vld [vmem:[#allocation3 + $0x888] sm:$0xff]
        %v1212 = vld [vmem:[#allocation3 + $0x890] sm:$0xff]
        %v1213 = vld [vmem:[#allocation3 + $0x898] sm:$0xff]
        %v1214 = vld [vmem:[#allocation3 + $0x8a0] sm:$0xff]
        %v1215 = vld [vmem:[#allocation3 + $0x8a8] sm:$0xff]
        %v1216 = vld [vmem:[#allocation3 + $0x8b0] sm:$0xff]
        %v1217 = vld [vmem:[#allocation3 + $0x8b8] sm:$0xff]
        %v1218 = vld [vmem:[#allocation3 + $0x8c0] sm:$0xff]
        %v1219 = vld [vmem:[#allocation3 + $0x8c8] sm:$0xff]
        %v1220 = vld [vmem:[#allocation3 + $0x8d0] sm:$0xff]
        %v1221 = vld [vmem:[#allocation3 + $0x8d8] sm:$0xff]
        %v1222 = vld [vmem:[#allocation3 + $0x8e0] sm:$0xff]
        %v1223 = vld [vmem:[#allocation3 + $0x8e8] sm:$0xff]
        %v1224 = vld [vmem:[#allocation3 + $0x8f0] sm:$0xff]
        %v1225 = vld [vmem:[#allocation3 + $0x8f8] sm:$0xff]
        %v1226 = vld [vmem:[#allocation7] sm:$0xff]
        %v1227 = vld [vmem:[#allocation7 + $0x8] sm:$0xff]
        %v1228 = vld [vmem:[#allocation7 + $0x10] sm:$0xff]
        %v1229 = vld [vmem:[#allocation7 + $0x18] sm:$0xff]
        %v1230 = vld [vmem:[#allocation7 + $0x20] sm:$0xff]
        %v1231 = vld [vmem:[#allocation7 + $0x28] sm:$0xff]
        %v1232 = vld [vmem:[#allocation7 + $0x30] sm:$0xff]
        %v1233 = vld [vmem:[#allocation7 + $0x38] sm:$0xff]
        %v1234 = vld [vmem:[#allocation7 + $0x40] sm:$0xff]
        %v1235 = vld [vmem:[#allocation7 + $0x48] sm:$0xff]
        %v1236 = vld [vmem:[#allocation7 + $0x50] sm:$0xff]
        %v1237 = vld [vmem:[#allocation7 + $0x58] sm:$0xff]
        %v1238 = vld [vmem:[#allocation7 + $0x60] sm:$0xff]
        %v1239 = vld [vmem:[#allocation7 + $0x68] sm:$0xff]
        %v1240 = vld [vmem:[#allocation7 + $0x70] sm:$0xff]
        %v1241 = vld [vmem:[#allocation7 + $0x78] sm:$0xff]
        %v1242 = vld [vmem:[#allocation7 + $0x80] sm:$0xff]
        %v1243 = vld [vmem:[#allocation7 + $0x88] sm:$0xff]
        %v1244 = vld [vmem:[#allocation7 + $0x90] sm:$0xff]
        %v1245 = vld [vmem:[#allocation7 + $0x98] sm:$0xff]
        %v1246 = vld [vmem:[#allocation7 + $0xa0] sm:$0xff]
        %v1247 = vld [vmem:[#allocation7 + $0xa8] sm:$0xff]
        %v1248 = vld [vmem:[#allocation7 + $0xb0] sm:$0xff]
        %v1249 = vld [vmem:[#allocation7 + $0xb8] sm:$0xff]
        %v1250 = vld [vmem:[#allocation7 + $0xc0] sm:$0xff]
        %v1251 = vld [vmem:[#allocation7 + $0xc8] sm:$0xff]
        %v1252 = vld [vmem:[#allocation7 + $0xd0] sm:$0xff]
        %v1253 = vld [vmem:[#allocation7 + $0xd8] sm:$0xff]
        %v1254 = vld [vmem:[#allocation7 + $0xe0] sm:$0xff]
        %v1255 = vld [vmem:[#allocation7 + $0xe8] sm:$0xff]
        %v1256 = vld [vmem:[#allocation7 + $0xf0] sm:$0xff]
        %v1257 = vld [vmem:[#allocation7 + $0xf8] sm:$0xff]
        %v1258 = vld [vmem:[#allocation7 + $0x100] sm:$0xff]
        %v1259 = vld [vmem:[#allocation7 + $0x108] sm:$0xff]
        %v1260 = vld [vmem:[#allocation7 + $0x110] sm:$0xff]
        %v1261 = vld [vmem:[#allocation7 + $0x118] sm:$0xff]
        %v1262 = vld [vmem:[#allocation7 + $0x120] sm:$0xff]
        %v1263 = vld [vmem:[#allocation7 + $0x128] sm:$0xff]
        %v1264 = vld [vmem:[#allocation7 + $0x130] sm:$0xff]
        %v1265 = vld [vmem:[#allocation7 + $0x138] sm:$0xff]
        %v1266 = vld [vmem:[#allocation7 + $0x140] sm:$0xff]
        %v1267 = vld [vmem:[#allocation7 + $0x148] sm:$0xff]
        %v1268 = vld [vmem:[#allocation7 + $0x150] sm:$0xff]
        %v1269 = vld [vmem:[#allocation7 + $0x158] sm:$0xff]
        %v1270 = vld [vmem:[#allocation7 + $0x160] sm:$0xff]
        %v1271 = vld [vmem:[#allocation7 + $0x168] sm:$0xff]
        %v1272 = vld [vmem:[#allocation7 + $0x170] sm:$0xff]
        %v1273 = vld [vmem:[#allocation7 + $0x178] sm:$0xff]
        %v1274 = vld [vmem:[#allocation7 + $0x180] sm:$0xff]
        %v1275 = vld [vmem:[#allocation7 + $0x188] sm:$0xff]
        %v1276 = vld [vmem:[#allocation7 + $0x190] sm:$0xff]
        %v1277 = vld [vmem:[#allocation7 + $0x198] sm:$0xff]
        %v1278 = vld [vmem:[#allocation7 + $0x1a0] sm:$0xff]
        %v1279 = vld [vmem:[#allocation7 + $0x1a8] sm:$0xff]
        %v1280 = vld [vmem:[#allocation7 + $0x1b0] sm:$0xff]
        %v1281 = vld [vmem:[#allocation7 + $0x1b8] sm:$0xff]
        %v1282 = vld [vmem:[#allocation7 + $0x1c0] sm:$0xff]
        %v1283 = vld [vmem:[#allocation7 + $0x1c8] sm:$0xff]
        %v1284 = vld [vmem:[#allocation7 + $0x1d0] sm:$0xff]
        %v1285 = vld [vmem:[#allocation7 + $0x1d8] sm:$0xff]
        %v1286 = vld [vmem:[#allocation7 + $0x1e0] sm:$0xff]
        %v1287 = vld [vmem:[#allocation7 + $0x1e8] sm:$0xff]
        %v1288 = vld [vmem:[#allocation7 + $0x1f0] sm:$0xff]
        %v1289 = vld [vmem:[#allocation7 + $0x1f8] sm:$0xff]
        %v1290 = vld [vmem:[#allocation7 + $0x200] sm:$0xff]
        %v1291 = vld [vmem:[#allocation7 + $0x208] sm:$0xff]
        %v1292 = vld [vmem:[#allocation7 + $0x210] sm:$0xff]
        %v1293 = vld [vmem:[#allocation7 + $0x218] sm:$0xff]
        %v1294 = vld [vmem:[#allocation7 + $0x220] sm:$0xff]
        %v1295 = vld [vmem:[#allocation7 + $0x228] sm:$0xff]
        %v1296 = vld [vmem:[#allocation7 + $0x230] sm:$0xff]
        %v1297 = vld [vmem:[#allocation7 + $0x238] sm:$0xff]
        %v1298 = vld [vmem:[#allocation7 + $0x240] sm:$0xff]
        %v1299 = vld [vmem:[#allocation7 + $0x248] sm:$0xff]
        %v1300 = vld [vmem:[#allocation7 + $0x250] sm:$0xff]
        %v1301 = vld [vmem:[#allocation7 + $0x258] sm:$0xff]
        %v1302 = vld [vmem:[#allocation7 + $0x260] sm:$0xff]
        %v1303 = vld [vmem:[#allocation7 + $0x268] sm:$0xff]
        %v1304 = vld [vmem:[#allocation7 + $0x270] sm:$0xff]
        %v1305 = vld [vmem:[#allocation7 + $0x278] sm:$0xff]
        %v1306 = vld [vmem:[#allocation7 + $0x280] sm:$0xff]
        %v1307 = vld [vmem:[#allocation7 + $0x288] sm:$0xff]
        %v1308 = vld [vmem:[#allocation7 + $0x290] sm:$0xff]
        %v1309 = vld [vmem:[#allocation7 + $0x298] sm:$0xff]
        %v1310 = vld [vmem:[#allocation7 + $0x2a0] sm:$0xff]
        %v1311 = vld [vmem:[#allocation7 + $0x2a8] sm:$0xff]
        %v1312 = vld [vmem:[#allocation7 + $0x2b0] sm:$0xff]
        %v1313 = vld [vmem:[#allocation7 + $0x2b8] sm:$0xff]
        %v1314 = vld [vmem:[#allocation7 + $0x2c0] sm:$0xff]
        %v1315 = vld [vmem:[#allocation7 + $0x2c8] sm:$0xff]
        %v1316 = vld [vmem:[#allocation7 + $0x2d0] sm:$0xff]
        %v1317 = vld [vmem:[#allocation7 + $0x2d8] sm:$0xff]
        %v1318 = vld [vmem:[#allocation7 + $0x2e0] sm:$0xff]
        %v1319 = vld [vmem:[#allocation7 + $0x2e8] sm:$0xff]
        %v1320 = vld [vmem:[#allocation7 + $0x2f0] sm:$0xff]
        %v1321 = vld [vmem:[#allocation7 + $0x2f8] sm:$0xff]
        %v1322 = vld [vmem:[#allocation7 + $0x300] sm:$0xff]
        %v1323 = vld [vmem:[#allocation7 + $0x308] sm:$0xff]
        %v1324 = vld [vmem:[#allocation7 + $0x310] sm:$0xff]
        %v1325 = vld [vmem:[#allocation7 + $0x318] sm:$0xff]
        %v1326 = vld [vmem:[#allocation7 + $0x320] sm:$0xff]
        %v1327 = vld [vmem:[#allocation7 + $0x328] sm:$0xff]
        %v1328 = vld [vmem:[#allocation7 + $0x330] sm:$0xff]
        %v1329 = vld [vmem:[#allocation7 + $0x338] sm:$0xff]
        %v1330 = vld [vmem:[#allocation7 + $0x340] sm:$0xff]
        %v1331 = vld [vmem:[#allocation7 + $0x348] sm:$0xff]
        %v1332 = vld [vmem:[#allocation7 + $0x350] sm:$0xff]
        %v1333 = vld [vmem:[#allocation7 + $0x358] sm:$0xff]
        %v1334 = vld [vmem:[#allocation7 + $0x360] sm:$0xff]
        %v1335 = vld [vmem:[#allocation7 + $0x368] sm:$0xff]
        %v1336 = vld [vmem:[#allocation7 + $0x370] sm:$0xff]
        %v1337 = vld [vmem:[#allocation7 + $0x378] sm:$0xff]
        %v1338 = vld [vmem:[#allocation7 + $0x380] sm:$0xff]
        %v1339 = vld [vmem:[#allocation7 + $0x388] sm:$0xff]
        %v1340 = vld [vmem:[#allocation7 + $0x390] sm:$0xff]
        %v1341 = vld [vmem:[#allocation7 + $0x398] sm:$0xff]
        %v1342 = vld [vmem:[#allocation7 + $0x3a0] sm:$0xff]
        %v1343 = vld [vmem:[#allocation7 + $0x3a8] sm:$0xff]
        %v1344 = vld [vmem:[#allocation7 + $0x3b0] sm:$0xff]
        %v1345 = vld [vmem:[#allocation7 + $0x3b8] sm:$0xff]
        %v1346 = vld [vmem:[#allocation7 + $0x3c0] sm:$0xff]
        %v1347 = vld [vmem:[#allocation7 + $0x3c8] sm:$0xff]
        %v1348 = vld [vmem:[#allocation7 + $0x3d0] sm:$0xff]
        %v1349 = vld [vmem:[#allocation7 + $0x3d8] sm:$0xff]
        %v1350 = vld [vmem:[#allocation7 + $0x3e0] sm:$0xff]
        %v1351 = vld [vmem:[#allocation7 + $0x3e8] sm:$0xff]
        %v1352 = vld [vmem:[#allocation7 + $0x3f0] sm:$0xff]
        %v1353 = vld [vmem:[#allocation7 + $0x3f8] sm:$0xff]
        %v1354 = vld [vmem:[#allocation7 + $0x400] sm:$0xff]
        %v1355 = vld [vmem:[#allocation7 + $0x408] sm:$0xff]
        %v1356 = vld [vmem:[#allocation7 + $0x410] sm:$0xff]
        %v1357 = vld [vmem:[#allocation7 + $0x418] sm:$0xff]
        %v1358 = vld [vmem:[#allocation7 + $0x420] sm:$0xff]
        %v1359 = vld [vmem:[#allocation7 + $0x428] sm:$0xff]
        %v1360 = vld [vmem:[#allocation7 + $0x430] sm:$0xff]
        %v1361 = vld [vmem:[#allocation7 + $0x438] sm:$0xff]
        %v1362 = vld [vmem:[#allocation7 + $0x440] sm:$0xff]
        %v1363 = vld [vmem:[#allocation7 + $0x448] sm:$0xff]
        %v1364 = vld [vmem:[#allocation7 + $0x450] sm:$0xff]
        %v1365 = vld [vmem:[#allocation7 + $0x458] sm:$0xff]
        %v1366 = vld [vmem:[#allocation7 + $0x460] sm:$0xff]
        %v1367 = vld [vmem:[#allocation7 + $0x468] sm:$0xff]
        %v1368 = vld [vmem:[#allocation7 + $0x470] sm:$0xff]
        %v1369 = vld [vmem:[#allocation7 + $0x478] sm:$0xff]
        %v1370 = vld [vmem:[#allocation9] sm:$0x1]
        %v1372 = vperm.slane %v1370, 0
        %1374 = vmatpush.msra.mxu0 %v1241
        %1375 = vmatpush.msra.mxu0 %v1240
        %1376 = vmatpush.msra.mxu0 %v1239
        %1377 = vmatpush.msra.mxu0 %v1238
        %1378 = vmatpush.msra.mxu0 %v1237
        %1379 = vmatpush.msra.mxu0 %v1236
        %1380 = vmatpush.msra.mxu0 %v1235
        %1381 = vmatpush.msra.mxu0 %v1234
        %1382 = vmatpush.msra.mxu0 %v1233
        %1383 = vmatpush.msra.mxu0 %v1232
        %1384 = vmatpush.msra.mxu0 %v1231
        %1385 = vmatpush.msra.mxu0 %v1230
        %1386 = vmatpush.msra.mxu0 %v1229
        %1387 = vmatpush.msra.mxu0 %v1228
        %1388 = vmatpush.msra.mxu0 %v1227
        %1389 = vmatpush.msra.mxu0 %v1226
        %1390 = vmatmul.f32.gmra.mxu0 %v938
        %v1391 = vpop.f32.mrf.mxu0
        %v1392 = vadd.f32 %v1372, %v1391
        %1393 = vmatmul.f32.gmra.mxu0 %v947
        %v1394 = vpop.f32.mrf.mxu0
        %v1395 = vadd.f32 %v1372, %v1394
        %1396 = vmatmul.f32.gmra.mxu0 %v956
        %v1397 = vpop.f32.mrf.mxu0
        %v1398 = vadd.f32 %v1372, %v1397
        %1399 = vmatmul.f32.gmra.mxu0 %v965
        %v1400 = vpop.f32.mrf.mxu0
        %v1401 = vadd.f32 %v1372, %v1400
        %1402 = vmatmul.f32.gmra.mxu0 %v974
        %v1403 = vpop.f32.mrf.mxu0
        %v1404 = vadd.f32 %v1372, %v1403
        %1405 = vmatmul.f32.gmra.mxu0 %v983
        %v1406 = vpop.f32.mrf.mxu0
        %v1407 = vadd.f32 %v1372, %v1406
        %1408 = vmatmul.f32.gmra.mxu0 %v992
        %v1409 = vpop.f32.mrf.mxu0
        %v1410 = vadd.f32 %v1372, %v1409
        %1411 = vmatmul.f32.gmra.mxu0 %v1001
        %v1412 = vpop.f32.mrf.mxu0
        %v1413 = vadd.f32 %v1372, %v1412
        %1414 = vmatmul.f32.gmra.mxu0 %v1010
        %v1415 = vpop.f32.mrf.mxu0
        %v1416 = vadd.f32 %v1372, %v1415
        %1417 = vmatmul.f32.gmra.mxu0 %v1019
        %v1418 = vpop.f32.mrf.mxu0
        %v1419 = vadd.f32 %v1372, %v1418
        %1420 = vmatmul.f32.gmra.mxu0 %v1028
        %v1421 = vpop.f32.mrf.mxu0
        %v1422 = vadd.f32 %v1372, %v1421
        %1423 = vmatmul.f32.gmra.mxu0 %v1037
        %v1424 = vpop.f32.mrf.mxu0
        %v1425 = vadd.f32 %v1372, %v1424
        %1426 = vmatmul.f32.gmra.mxu0 %v1046
        %v1427 = vpop.f32.mrf.mxu0
        %v1428 = vadd.f32 %v1372, %v1427
        %1429 = vmatmul.f32.gmra.mxu0 %v1055
        %v1430 = vpop.f32.mrf.mxu0
        %v1431 = vadd.f32 %v1372, %v1430
        %1432 = vmatmul.f32.gmra.mxu0 %v1064
        %v1433 = vpop.f32.mrf.mxu0
        %v1434 = vadd.f32 %v1372, %v1433
        %1435 = vmatmul.f32.gmra.mxu0 %v1073
        %v1436 = vpop.f32.mrf.mxu0
        %v1437 = vadd.f32 %v1372, %v1436
        %1438 = vmatmul.f32.gmra.mxu0 %v1082
        %v1439 = vpop.f32.mrf.mxu0
        %v1440 = vadd.f32 %v1372, %v1439
        %1441 = vmatmul.f32.gmra.mxu0 %v1091
        %v1442 = vpop.f32.mrf.mxu0
        %v1443 = vadd.f32 %v1372, %v1442
        %1444 = vmatmul.f32.gmra.mxu0 %v1100
        %v1445 = vpop.f32.mrf.mxu0
        %v1446 = vadd.f32 %v1372, %v1445
        %1447 = vmatmul.f32.gmra.mxu0 %v1109
        %v1448 = vpop.f32.mrf.mxu0
        %v1449 = vadd.f32 %v1372, %v1448
        %1450 = vmatmul.f32.gmra.mxu0 %v1118
        %v1451 = vpop.f32.mrf.mxu0
        %v1452 = vadd.f32 %v1372, %v1451
        %1453 = vmatmul.f32.gmra.mxu0 %v1127
        %v1454 = vpop.f32.mrf.mxu0
        %v1455 = vadd.f32 %v1372, %v1454
        %1456 = vmatmul.f32.gmra.mxu0 %v1136
        %v1457 = vpop.f32.mrf.mxu0
        %v1458 = vadd.f32 %v1372, %v1457
        %1459 = vmatmul.f32.gmra.mxu0 %v1145
        %v1460 = vpop.f32.mrf.mxu0
        %v1461 = vadd.f32 %v1372, %v1460
        %1462 = vmatmul.f32.gmra.mxu0 %v1154
        %v1463 = vpop.f32.mrf.mxu0
        %v1464 = vadd.f32 %v1372, %v1463
        %1465 = vmatmul.f32.gmra.mxu0 %v1163
        %v1466 = vpop.f32.mrf.mxu0
        %v1467 = vadd.f32 %v1372, %v1466
        %1468 = vmatmul.f32.gmra.mxu0 %v1172
        %v1469 = vpop.f32.mrf.mxu0
        %v1470 = vadd.f32 %v1372, %v1469
        %1471 = vmatmul.f32.gmra.mxu0 %v1181
        %v1472 = vpop.f32.mrf.mxu0
        %v1473 = vadd.f32 %v1372, %v1472
        %1474 = vmatmul.f32.gmra.mxu0 %v1190
        %v1475 = vpop.f32.mrf.mxu0
        %v1476 = vadd.f32 %v1372, %v1475
        %1477 = vmatmul.f32.gmra.mxu0 %v1199
        %v1478 = vpop.f32.mrf.mxu0
        %v1479 = vadd.f32 %v1372, %v1478
        %1480 = vmatmul.f32.gmra.mxu0 %v1208
        %v1481 = vpop.f32.mrf.mxu0
        %v1482 = vadd.f32 %v1372, %v1481
        %1483 = vmatmul.f32.gmra.mxu0 %v1217
        %v1484 = vpop.f32.mrf.mxu0
        %v1485 = vadd.f32 %v1372, %v1484
        %1486 = vdwg.mxu0
        %1487 = vmatpush.msra.mxu0 %v1257
        %1488 = vmatpush.msra.mxu0 %v1256
        %1489 = vmatpush.msra.mxu0 %v1255
        %1490 = vmatpush.msra.mxu0 %v1254
        %1491 = vmatpush.msra.mxu0 %v1253
        %1492 = vmatpush.msra.mxu0 %v1252
        %1493 = vmatpush.msra.mxu0 %v1251
        %1494 = vmatpush.msra.mxu0 %v1250
        %1495 = vmatpush.msra.mxu0 %v1249
        %1496 = vmatpush.msra.mxu0 %v1248
        %1497 = vmatpush.msra.mxu0 %v1247
        %1498 = vmatpush.msra.mxu0 %v1246
        %1499 = vmatpush.msra.mxu0 %v1245
        %1500 = vmatpush.msra.mxu0 %v1244
        %1501 = vmatpush.msra.mxu0 %v1243
        %1502 = vmatpush.msra.mxu0 %v1242
        %1503 = vmatmul.f32.gmra.mxu0 %v939
        %v1504 = vpop.f32.mrf.mxu0
        %v1505 = vadd.f32 %v1392, %v1504
        %1506 = vmatmul.f32.gmra.mxu0 %v948
        %v1507 = vpop.f32.mrf.mxu0
        %v1508 = vadd.f32 %v1395, %v1507
        %1509 = vmatmul.f32.gmra.mxu0 %v957
        %v1510 = vpop.f32.mrf.mxu0
        %v1511 = vadd.f32 %v1398, %v1510
        %1512 = vmatmul.f32.gmra.mxu0 %v966
        %v1513 = vpop.f32.mrf.mxu0
        %v1514 = vadd.f32 %v1401, %v1513
        %1515 = vmatmul.f32.gmra.mxu0 %v975
        %v1516 = vpop.f32.mrf.mxu0
        %v1517 = vadd.f32 %v1404, %v1516
        %1518 = vmatmul.f32.gmra.mxu0 %v984
        %v1519 = vpop.f32.mrf.mxu0
        %v1520 = vadd.f32 %v1407, %v1519
        %1521 = vmatmul.f32.gmra.mxu0 %v993
        %v1522 = vpop.f32.mrf.mxu0
        %v1523 = vadd.f32 %v1410, %v1522
        %1524 = vmatmul.f32.gmra.mxu0 %v1002
        %v1525 = vpop.f32.mrf.mxu0
        %v1526 = vadd.f32 %v1413, %v1525
        %1527 = vmatmul.f32.gmra.mxu0 %v1011
        %v1528 = vpop.f32.mrf.mxu0
        %v1529 = vadd.f32 %v1416, %v1528
        %1530 = vmatmul.f32.gmra.mxu0 %v1020
        %v1531 = vpop.f32.mrf.mxu0
        %v1532 = vadd.f32 %v1419, %v1531
        %1533 = vmatmul.f32.gmra.mxu0 %v1029
        %v1534 = vpop.f32.mrf.mxu0
        %v1535 = vadd.f32 %v1422, %v1534
        %1536 = vmatmul.f32.gmra.mxu0 %v1038
        %v1537 = vpop.f32.mrf.mxu0
        %v1538 = vadd.f32 %v1425, %v1537
        %1539 = vmatmul.f32.gmra.mxu0 %v1047
        %v1540 = vpop.f32.mrf.mxu0
        %v1541 = vadd.f32 %v1428, %v1540
        %1542 = vmatmul.f32.gmra.mxu0 %v1056
        %v1543 = vpop.f32.mrf.mxu0
        %v1544 = vadd.f32 %v1431, %v1543
        %1545 = vmatmul.f32.gmra.mxu0 %v1065
        %v1546 = vpop.f32.mrf.mxu0
        %v1547 = vadd.f32 %v1434, %v1546
        %1548 = vmatmul.f32.gmra.mxu0 %v1074
        %v1549 = vpop.f32.mrf.mxu0
        %v1550 = vadd.f32 %v1437, %v1549
        %1551 = vmatmul.f32.gmra.mxu0 %v1083
        %v1552 = vpop.f32.mrf.mxu0
        %v1553 = vadd.f32 %v1440, %v1552
        %1554 = vmatmul.f32.gmra.mxu0 %v1092
        %v1555 = vpop.f32.mrf.mxu0
        %v1556 = vadd.f32 %v1443, %v1555
        %1557 = vmatmul.f32.gmra.mxu0 %v1101
        %v1558 = vpop.f32.mrf.mxu0
        %v1559 = vadd.f32 %v1446, %v1558
        %1560 = vmatmul.f32.gmra.mxu0 %v1110
        %v1561 = vpop.f32.mrf.mxu0
        %v1562 = vadd.f32 %v1449, %v1561
        %1563 = vmatmul.f32.gmra.mxu0 %v1119
        %v1564 = vpop.f32.mrf.mxu0
        %v1565 = vadd.f32 %v1452, %v1564
        %1566 = vmatmul.f32.gmra.mxu0 %v1128
        %v1567 = vpop.f32.mrf.mxu0
        %v1568 = vadd.f32 %v1455, %v1567
        %1569 = vmatmul.f32.gmra.mxu0 %v1137
        %v1570 = vpop.f32.mrf.mxu0
        %v1571 = vadd.f32 %v1458, %v1570
        %1572 = vmatmul.f32.gmra.mxu0 %v1146
        %v1573 = vpop.f32.mrf.mxu0
        %v1574 = vadd.f32 %v1461, %v1573
        %1575 = vmatmul.f32.gmra.mxu0 %v1155
        %v1576 = vpop.f32.mrf.mxu0
        %v1577 = vadd.f32 %v1464, %v1576
        %1578 = vmatmul.f32.gmra.mxu0 %v1164
        %v1579 = vpop.f32.mrf.mxu0
        %v1580 = vadd.f32 %v1467, %v1579
        %1581 = vmatmul.f32.gmra.mxu0 %v1173
        %v1582 = vpop.f32.mrf.mxu0
        %v1583 = vadd.f32 %v1470, %v1582
        %1584 = vmatmul.f32.gmra.mxu0 %v1182
        %v1585 = vpop.f32.mrf.mxu0
        %v1586 = vadd.f32 %v1473, %v1585
        %1587 = vmatmul.f32.gmra.mxu0 %v1191
        %v1588 = vpop.f32.mrf.mxu0
        %v1589 = vadd.f32 %v1476, %v1588
        %1590 = vmatmul.f32.gmra.mxu0 %v1200
        %v1591 = vpop.f32.mrf.mxu0
        %v1592 = vadd.f32 %v1479, %v1591
        %1593 = vmatmul.f32.gmra.mxu0 %v1209
        %v1594 = vpop.f32.mrf.mxu0
        %v1595 = vadd.f32 %v1482, %v1594
        %1596 = vmatmul.f32.gmra.mxu0 %v1218
        %v1597 = vpop.f32.mrf.mxu0
        %v1598 = vadd.f32 %v1485, %v1597
        %1599 = vdwg.mxu0
        %1600 = vmatpush.msra.mxu0 %v1273
        %1601 = vmatpush.msra.mxu0 %v1272
        %1602 = vmatpush.msra.mxu0 %v1271
        %1603 = vmatpush.msra.mxu0 %v1270
        %1604 = vmatpush.msra.mxu0 %v1269
        %1605 = vmatpush.msra.mxu0 %v1268
        %1606 = vmatpush.msra.mxu0 %v1267
        %1607 = vmatpush.msra.mxu0 %v1266
        %1608 = vmatpush.msra.mxu0 %v1265
        %1609 = vmatpush.msra.mxu0 %v1264
        %1610 = vmatpush.msra.mxu0 %v1263
        %1611 = vmatpush.msra.mxu0 %v1262
        %1612 = vmatpush.msra.mxu0 %v1261
        %1613 = vmatpush.msra.mxu0 %v1260
        %1614 = vmatpush.msra.mxu0 %v1259
        %1615 = vmatpush.msra.mxu0 %v1258
        %1616 = vmatmul.f32.gmra.mxu0 %v940
        %v1617 = vpop.f32.mrf.mxu0
        %v1618 = vadd.f32 %v1505, %v1617
        %1619 = vmatmul.f32.gmra.mxu0 %v949
        %v1620 = vpop.f32.mrf.mxu0
        %v1621 = vadd.f32 %v1508, %v1620
        %1622 = vmatmul.f32.gmra.mxu0 %v958
        %v1623 = vpop.f32.mrf.mxu0
        %v1624 = vadd.f32 %v1511, %v1623
        %1625 = vmatmul.f32.gmra.mxu0 %v967
        %v1626 = vpop.f32.mrf.mxu0
        %v1627 = vadd.f32 %v1514, %v1626
        %1628 = vmatmul.f32.gmra.mxu0 %v976
        %v1629 = vpop.f32.mrf.mxu0
        %v1630 = vadd.f32 %v1517, %v1629
        %1631 = vmatmul.f32.gmra.mxu0 %v985
        %v1632 = vpop.f32.mrf.mxu0
        %v1633 = vadd.f32 %v1520, %v1632
        %1634 = vmatmul.f32.gmra.mxu0 %v994
        %v1635 = vpop.f32.mrf.mxu0
        %v1636 = vadd.f32 %v1523, %v1635
        %1637 = vmatmul.f32.gmra.mxu0 %v1003
        %v1638 = vpop.f32.mrf.mxu0
        %v1639 = vadd.f32 %v1526, %v1638
        %1640 = vmatmul.f32.gmra.mxu0 %v1012
        %v1641 = vpop.f32.mrf.mxu0
        %v1642 = vadd.f32 %v1529, %v1641
        %1643 = vmatmul.f32.gmra.mxu0 %v1021
        %v1644 = vpop.f32.mrf.mxu0
        %v1645 = vadd.f32 %v1532, %v1644
        %1646 = vmatmul.f32.gmra.mxu0 %v1030
        %v1647 = vpop.f32.mrf.mxu0
        %v1648 = vadd.f32 %v1535, %v1647
        %1649 = vmatmul.f32.gmra.mxu0 %v1039
        %v1650 = vpop.f32.mrf.mxu0
        %v1651 = vadd.f32 %v1538, %v1650
        %1652 = vmatmul.f32.gmra.mxu0 %v1048
        %v1653 = vpop.f32.mrf.mxu0
        %v1654 = vadd.f32 %v1541, %v1653
        %1655 = vmatmul.f32.gmra.mxu0 %v1057
        %v1656 = vpop.f32.mrf.mxu0
        %v1657 = vadd.f32 %v1544, %v1656
        %1658 = vmatmul.f32.gmra.mxu0 %v1066
        %v1659 = vpop.f32.mrf.mxu0
        %v1660 = vadd.f32 %v1547, %v1659
        %1661 = vmatmul.f32.gmra.mxu0 %v1075
        %v1662 = vpop.f32.mrf.mxu0
        %v1663 = vadd.f32 %v1550, %v1662
        %1664 = vmatmul.f32.gmra.mxu0 %v1084
        %v1665 = vpop.f32.mrf.mxu0
        %v1666 = vadd.f32 %v1553, %v1665
        %1667 = vmatmul.f32.gmra.mxu0 %v1093
        %v1668 = vpop.f32.mrf.mxu0
        %v1669 = vadd.f32 %v1556, %v1668
        %1670 = vmatmul.f32.gmra.mxu0 %v1102
        %v1671 = vpop.f32.mrf.mxu0
        %v1672 = vadd.f32 %v1559, %v1671
        %1673 = vmatmul.f32.gmra.mxu0 %v1111
        %v1674 = vpop.f32.mrf.mxu0
        %v1675 = vadd.f32 %v1562, %v1674
        %1676 = vmatmul.f32.gmra.mxu0 %v1120
        %v1677 = vpop.f32.mrf.mxu0
        %v1678 = vadd.f32 %v1565, %v1677
        %1679 = vmatmul.f32.gmra.mxu0 %v1129
        %v1680 = vpop.f32.mrf.mxu0
        %v1681 = vadd.f32 %v1568, %v1680
        %1682 = vmatmul.f32.gmra.mxu0 %v1138
        %v1683 = vpop.f32.mrf.mxu0
        %v1684 = vadd.f32 %v1571, %v1683
        %1685 = vmatmul.f32.gmra.mxu0 %v1147
        %v1686 = vpop.f32.mrf.mxu0
        %v1687 = vadd.f32 %v1574, %v1686
        %1688 = vmatmul.f32.gmra.mxu0 %v1156
        %v1689 = vpop.f32.mrf.mxu0
        %v1690 = vadd.f32 %v1577, %v1689
        %1691 = vmatmul.f32.gmra.mxu0 %v1165
        %v1692 = vpop.f32.mrf.mxu0
        %v1693 = vadd.f32 %v1580, %v1692
        %1694 = vmatmul.f32.gmra.mxu0 %v1174
        %v1695 = vpop.f32.mrf.mxu0
        %v1696 = vadd.f32 %v1583, %v1695
        %1697 = vmatmul.f32.gmra.mxu0 %v1183
        %v1698 = vpop.f32.mrf.mxu0
        %v1699 = vadd.f32 %v1586, %v1698
        %1700 = vmatmul.f32.gmra.mxu0 %v1192
        %v1701 = vpop.f32.mrf.mxu0
        %v1702 = vadd.f32 %v1589, %v1701
        %1703 = vmatmul.f32.gmra.mxu0 %v1201
        %v1704 = vpop.f32.mrf.mxu0
        %v1705 = vadd.f32 %v1592, %v1704
        %1706 = vmatmul.f32.gmra.mxu0 %v1210
        %v1707 = vpop.f32.mrf.mxu0
        %v1708 = vadd.f32 %v1595, %v1707
        %1709 = vmatmul.f32.gmra.mxu0 %v1219
        %v1710 = vpop.f32.mrf.mxu0
        %v1711 = vadd.f32 %v1598, %v1710
        %1712 = vdwg.mxu0
        %1713 = vmatpush.msra.mxu0 %v1289
        %1714 = vmatpush.msra.mxu0 %v1288
        %1715 = vmatpush.msra.mxu0 %v1287
        %1716 = vmatpush.msra.mxu0 %v1286
        %1717 = vmatpush.msra.mxu0 %v1285
        %1718 = vmatpush.msra.mxu0 %v1284
        %1719 = vmatpush.msra.mxu0 %v1283
        %1720 = vmatpush.msra.mxu0 %v1282
        %1721 = vmatpush.msra.mxu0 %v1281
        %1722 = vmatpush.msra.mxu0 %v1280
        %1723 = vmatpush.msra.mxu0 %v1279
        %1724 = vmatpush.msra.mxu0 %v1278
        %1725 = vmatpush.msra.mxu0 %v1277
        %1726 = vmatpush.msra.mxu0 %v1276
        %1727 = vmatpush.msra.mxu0 %v1275
        %1728 = vmatpush.msra.mxu0 %v1274
        %1729 = vmatmul.f32.gmra.mxu0 %v941
        %v1730 = vpop.f32.mrf.mxu0
        %v1731 = vadd.f32 %v1618, %v1730
        %1732 = vmatmul.f32.gmra.mxu0 %v950
        %v1733 = vpop.f32.mrf.mxu0
        %v1734 = vadd.f32 %v1621, %v1733
        %1735 = vmatmul.f32.gmra.mxu0 %v959
        %v1736 = vpop.f32.mrf.mxu0
        %v1737 = vadd.f32 %v1624, %v1736
        %1738 = vmatmul.f32.gmra.mxu0 %v968
        %v1739 = vpop.f32.mrf.mxu0
        %v1740 = vadd.f32 %v1627, %v1739
        %1741 = vmatmul.f32.gmra.mxu0 %v977
        %v1742 = vpop.f32.mrf.mxu0
        %v1743 = vadd.f32 %v1630, %v1742
        %1744 = vmatmul.f32.gmra.mxu0 %v986
        %v1745 = vpop.f32.mrf.mxu0
        %v1746 = vadd.f32 %v1633, %v1745
        %1747 = vmatmul.f32.gmra.mxu0 %v995
        %v1748 = vpop.f32.mrf.mxu0
        %v1749 = vadd.f32 %v1636, %v1748
        %1750 = vmatmul.f32.gmra.mxu0 %v1004
        %v1751 = vpop.f32.mrf.mxu0
        %v1752 = vadd.f32 %v1639, %v1751
        %1753 = vmatmul.f32.gmra.mxu0 %v1013
        %v1754 = vpop.f32.mrf.mxu0
        %v1755 = vadd.f32 %v1642, %v1754
        %1756 = vmatmul.f32.gmra.mxu0 %v1022
        %v1757 = vpop.f32.mrf.mxu0
        %v1758 = vadd.f32 %v1645, %v1757
        %1759 = vmatmul.f32.gmra.mxu0 %v1031
        %v1760 = vpop.f32.mrf.mxu0
        %v1761 = vadd.f32 %v1648, %v1760
        %1762 = vmatmul.f32.gmra.mxu0 %v1040
        %v1763 = vpop.f32.mrf.mxu0
        %v1764 = vadd.f32 %v1651, %v1763
        %1765 = vmatmul.f32.gmra.mxu0 %v1049
        %v1766 = vpop.f32.mrf.mxu0
        %v1767 = vadd.f32 %v1654, %v1766
        %1768 = vmatmul.f32.gmra.mxu0 %v1058
        %v1769 = vpop.f32.mrf.mxu0
        %v1770 = vadd.f32 %v1657, %v1769
        %1771 = vmatmul.f32.gmra.mxu0 %v1067
        %v1772 = vpop.f32.mrf.mxu0
        %v1773 = vadd.f32 %v1660, %v1772
        %1774 = vmatmul.f32.gmra.mxu0 %v1076
        %v1775 = vpop.f32.mrf.mxu0
        %v1776 = vadd.f32 %v1663, %v1775
        %1777 = vmatmul.f32.gmra.mxu0 %v1085
        %v1778 = vpop.f32.mrf.mxu0
        %v1779 = vadd.f32 %v1666, %v1778
        %1780 = vmatmul.f32.gmra.mxu0 %v1094
        %v1781 = vpop.f32.mrf.mxu0
        %v1782 = vadd.f32 %v1669, %v1781
        %1783 = vmatmul.f32.gmra.mxu0 %v1103
        %v1784 = vpop.f32.mrf.mxu0
        %v1785 = vadd.f32 %v1672, %v1784
        %1786 = vmatmul.f32.gmra.mxu0 %v1112
        %v1787 = vpop.f32.mrf.mxu0
        %v1788 = vadd.f32 %v1675, %v1787
        %1789 = vmatmul.f32.gmra.mxu0 %v1121
        %v1790 = vpop.f32.mrf.mxu0
        %v1791 = vadd.f32 %v1678, %v1790
        %1792 = vmatmul.f32.gmra.mxu0 %v1130
        %v1793 = vpop.f32.mrf.mxu0
        %v1794 = vadd.f32 %v1681, %v1793
        %1795 = vmatmul.f32.gmra.mxu0 %v1139
        %v1796 = vpop.f32.mrf.mxu0
        %v1797 = vadd.f32 %v1684, %v1796
        %1798 = vmatmul.f32.gmra.mxu0 %v1148
        %v1799 = vpop.f32.mrf.mxu0
        %v1800 = vadd.f32 %v1687, %v1799
        %1801 = vmatmul.f32.gmra.mxu0 %v1157
        %v1802 = vpop.f32.mrf.mxu0
        %v1803 = vadd.f32 %v1690, %v1802
        %1804 = vmatmul.f32.gmra.mxu0 %v1166
        %v1805 = vpop.f32.mrf.mxu0
        %v1806 = vadd.f32 %v1693, %v1805
        %1807 = vmatmul.f32.gmra.mxu0 %v1175
        %v1808 = vpop.f32.mrf.mxu0
        %v1809 = vadd.f32 %v1696, %v1808
        %1810 = vmatmul.f32.gmra.mxu0 %v1184
        %v1811 = vpop.f32.mrf.mxu0
        %v1812 = vadd.f32 %v1699, %v1811
        %1813 = vmatmul.f32.gmra.mxu0 %v1193
        %v1814 = vpop.f32.mrf.mxu0
        %v1815 = vadd.f32 %v1702, %v1814
        %1816 = vmatmul.f32.gmra.mxu0 %v1202
        %v1817 = vpop.f32.mrf.mxu0
        %v1818 = vadd.f32 %v1705, %v1817
        %1819 = vmatmul.f32.gmra.mxu0 %v1211
        %v1820 = vpop.f32.mrf.mxu0
        %v1821 = vadd.f32 %v1708, %v1820
        %1822 = vmatmul.f32.gmra.mxu0 %v1220
        %v1823 = vpop.f32.mrf.mxu0
        %v1824 = vadd.f32 %v1711, %v1823
        %1825 = vdwg.mxu0
        %1826 = vmatpush.msra.mxu0 %v1305
        %1827 = vmatpush.msra.mxu0 %v1304
        %1828 = vmatpush.msra.mxu0 %v1303
        %1829 = vmatpush.msra.mxu0 %v1302
        %1830 = vmatpush.msra.mxu0 %v1301
        %1831 = vmatpush.msra.mxu0 %v1300
        %1832 = vmatpush.msra.mxu0 %v1299
        %1833 = vmatpush.msra.mxu0 %v1298
        %1834 = vmatpush.msra.mxu0 %v1297
        %1835 = vmatpush.msra.mxu0 %v1296
        %1836 = vmatpush.msra.mxu0 %v1295
        %1837 = vmatpush.msra.mxu0 %v1294
        %1838 = vmatpush.msra.mxu0 %v1293
        %1839 = vmatpush.msra.mxu0 %v1292
        %1840 = vmatpush.msra.mxu0 %v1291
        %1841 = vmatpush.msra.mxu0 %v1290
        %1842 = vmatmul.f32.gmra.mxu0 %v942
        %v1843 = vpop.f32.mrf.mxu0
        %v1844 = vadd.f32 %v1731, %v1843
        %1845 = vmatmul.f32.gmra.mxu0 %v951
        %v1846 = vpop.f32.mrf.mxu0
        %v1847 = vadd.f32 %v1734, %v1846
        %1848 = vmatmul.f32.gmra.mxu0 %v960
        %v1849 = vpop.f32.mrf.mxu0
        %v1850 = vadd.f32 %v1737, %v1849
        %1851 = vmatmul.f32.gmra.mxu0 %v969
        %v1852 = vpop.f32.mrf.mxu0
        %v1853 = vadd.f32 %v1740, %v1852
        %1854 = vmatmul.f32.gmra.mxu0 %v978
        %v1855 = vpop.f32.mrf.mxu0
        %v1856 = vadd.f32 %v1743, %v1855
        %1857 = vmatmul.f32.gmra.mxu0 %v987
        %v1858 = vpop.f32.mrf.mxu0
        %v1859 = vadd.f32 %v1746, %v1858
        %1860 = vmatmul.f32.gmra.mxu0 %v996
        %v1861 = vpop.f32.mrf.mxu0
        %v1862 = vadd.f32 %v1749, %v1861
        %1863 = vmatmul.f32.gmra.mxu0 %v1005
        %v1864 = vpop.f32.mrf.mxu0
        %v1865 = vadd.f32 %v1752, %v1864
        %1866 = vmatmul.f32.gmra.mxu0 %v1014
        %v1867 = vpop.f32.mrf.mxu0
        %v1868 = vadd.f32 %v1755, %v1867
        %1869 = vmatmul.f32.gmra.mxu0 %v1023
        %v1870 = vpop.f32.mrf.mxu0
        %v1871 = vadd.f32 %v1758, %v1870
        %1872 = vmatmul.f32.gmra.mxu0 %v1032
        %v1873 = vpop.f32.mrf.mxu0
        %v1874 = vadd.f32 %v1761, %v1873
        %1875 = vmatmul.f32.gmra.mxu0 %v1041
        %v1876 = vpop.f32.mrf.mxu0
        %v1877 = vadd.f32 %v1764, %v1876
        %1878 = vmatmul.f32.gmra.mxu0 %v1050
        %v1879 = vpop.f32.mrf.mxu0
        %v1880 = vadd.f32 %v1767, %v1879
        %1881 = vmatmul.f32.gmra.mxu0 %v1059
        %v1882 = vpop.f32.mrf.mxu0
        %v1883 = vadd.f32 %v1770, %v1882
        %1884 = vmatmul.f32.gmra.mxu0 %v1068
        %v1885 = vpop.f32.mrf.mxu0
        %v1886 = vadd.f32 %v1773, %v1885
        %1887 = vmatmul.f32.gmra.mxu0 %v1077
        %v1888 = vpop.f32.mrf.mxu0
        %v1889 = vadd.f32 %v1776, %v1888
        %1890 = vmatmul.f32.gmra.mxu0 %v1086
        %v1891 = vpop.f32.mrf.mxu0
        %v1892 = vadd.f32 %v1779, %v1891
        %1893 = vmatmul.f32.gmra.mxu0 %v1095
        %v1894 = vpop.f32.mrf.mxu0
        %v1895 = vadd.f32 %v1782, %v1894
        %1896 = vmatmul.f32.gmra.mxu0 %v1104
        %v1897 = vpop.f32.mrf.mxu0
        %v1898 = vadd.f32 %v1785, %v1897
        %1899 = vmatmul.f32.gmra.mxu0 %v1113
        %v1900 = vpop.f32.mrf.mxu0
        %v1901 = vadd.f32 %v1788, %v1900
        %1902 = vmatmul.f32.gmra.mxu0 %v1122
        %v1903 = vpop.f32.mrf.mxu0
        %v1904 = vadd.f32 %v1791, %v1903
        %1905 = vmatmul.f32.gmra.mxu0 %v1131
        %v1906 = vpop.f32.mrf.mxu0
        %v1907 = vadd.f32 %v1794, %v1906
        %1908 = vmatmul.f32.gmra.mxu0 %v1140
        %v1909 = vpop.f32.mrf.mxu0
        %v1910 = vadd.f32 %v1797, %v1909
        %1911 = vmatmul.f32.gmra.mxu0 %v1149
        %v1912 = vpop.f32.mrf.mxu0
        %v1913 = vadd.f32 %v1800, %v1912
        %1914 = vmatmul.f32.gmra.mxu0 %v1158
        %v1915 = vpop.f32.mrf.mxu0
        %v1916 = vadd.f32 %v1803, %v1915
        %1917 = vmatmul.f32.gmra.mxu0 %v1167
        %v1918 = vpop.f32.mrf.mxu0
        %v1919 = vadd.f32 %v1806, %v1918
        %1920 = vmatmul.f32.gmra.mxu0 %v1176
        %v1921 = vpop.f32.mrf.mxu0
        %v1922 = vadd.f32 %v1809, %v1921
        %1923 = vmatmul.f32.gmra.mxu0 %v1185
        %v1924 = vpop.f32.mrf.mxu0
        %v1925 = vadd.f32 %v1812, %v1924
        %1926 = vmatmul.f32.gmra.mxu0 %v1194
        %v1927 = vpop.f32.mrf.mxu0
        %v1928 = vadd.f32 %v1815, %v1927
        %1929 = vmatmul.f32.gmra.mxu0 %v1203
        %v1930 = vpop.f32.mrf.mxu0
        %v1931 = vadd.f32 %v1818, %v1930
        %1932 = vmatmul.f32.gmra.mxu0 %v1212
        %v1933 = vpop.f32.mrf.mxu0
        %v1934 = vadd.f32 %v1821, %v1933
        %1935 = vmatmul.f32.gmra.mxu0 %v1221
        %v1936 = vpop.f32.mrf.mxu0
        %v1937 = vadd.f32 %v1824, %v1936
        %1938 = vdwg.mxu0
        %1939 = vmatpush.msra.mxu0 %v1321
        %1940 = vmatpush.msra.mxu0 %v1320
        %1941 = vmatpush.msra.mxu0 %v1319
        %1942 = vmatpush.msra.mxu0 %v1318
        %1943 = vmatpush.msra.mxu0 %v1317
        %1944 = vmatpush.msra.mxu0 %v1316
        %1945 = vmatpush.msra.mxu0 %v1315
        %1946 = vmatpush.msra.mxu0 %v1314
        %1947 = vmatpush.msra.mxu0 %v1313
        %1948 = vmatpush.msra.mxu0 %v1312
        %1949 = vmatpush.msra.mxu0 %v1311
        %1950 = vmatpush.msra.mxu0 %v1310
        %1951 = vmatpush.msra.mxu0 %v1309
        %1952 = vmatpush.msra.mxu0 %v1308
        %1953 = vmatpush.msra.mxu0 %v1307
        %1954 = vmatpush.msra.mxu0 %v1306
        %1955 = vmatmul.f32.gmra.mxu0 %v943
        %v1956 = vpop.f32.mrf.mxu0
        %v1957 = vadd.f32 %v1844, %v1956
        %1958 = vmatmul.f32.gmra.mxu0 %v952
        %v1959 = vpop.f32.mrf.mxu0
        %v1960 = vadd.f32 %v1847, %v1959
        %1961 = vmatmul.f32.gmra.mxu0 %v961
        %v1962 = vpop.f32.mrf.mxu0
        %v1963 = vadd.f32 %v1850, %v1962
        %1964 = vmatmul.f32.gmra.mxu0 %v970
        %v1965 = vpop.f32.mrf.mxu0
        %v1966 = vadd.f32 %v1853, %v1965
        %1967 = vmatmul.f32.gmra.mxu0 %v979
        %v1968 = vpop.f32.mrf.mxu0
        %v1969 = vadd.f32 %v1856, %v1968
        %1970 = vmatmul.f32.gmra.mxu0 %v988
        %v1971 = vpop.f32.mrf.mxu0
        %v1972 = vadd.f32 %v1859, %v1971
        %1973 = vmatmul.f32.gmra.mxu0 %v997
        %v1974 = vpop.f32.mrf.mxu0
        %v1975 = vadd.f32 %v1862, %v1974
        %1976 = vmatmul.f32.gmra.mxu0 %v1006
        %v1977 = vpop.f32.mrf.mxu0
        %v1978 = vadd.f32 %v1865, %v1977
        %1979 = vmatmul.f32.gmra.mxu0 %v1015
        %v1980 = vpop.f32.mrf.mxu0
        %v1981 = vadd.f32 %v1868, %v1980
        %1982 = vmatmul.f32.gmra.mxu0 %v1024
        %v1983 = vpop.f32.mrf.mxu0
        %v1984 = vadd.f32 %v1871, %v1983
        %1985 = vmatmul.f32.gmra.mxu0 %v1033
        %v1986 = vpop.f32.mrf.mxu0
        %v1987 = vadd.f32 %v1874, %v1986
        %1988 = vmatmul.f32.gmra.mxu0 %v1042
        %v1989 = vpop.f32.mrf.mxu0
        %v1990 = vadd.f32 %v1877, %v1989
        %1991 = vmatmul.f32.gmra.mxu0 %v1051
        %v1992 = vpop.f32.mrf.mxu0
        %v1993 = vadd.f32 %v1880, %v1992
        %1994 = vmatmul.f32.gmra.mxu0 %v1060
        %v1995 = vpop.f32.mrf.mxu0
        %v1996 = vadd.f32 %v1883, %v1995
        %1997 = vmatmul.f32.gmra.mxu0 %v1069
        %v1998 = vpop.f32.mrf.mxu0
        %v1999 = vadd.f32 %v1886, %v1998
        %2000 = vmatmul.f32.gmra.mxu0 %v1078
        %v2001 = vpop.f32.mrf.mxu0
        %v2002 = vadd.f32 %v1889, %v2001
        %2003 = vmatmul.f32.gmra.mxu0 %v1087
        %v2004 = vpop.f32.mrf.mxu0
        %v2005 = vadd.f32 %v1892, %v2004
        %2006 = vmatmul.f32.gmra.mxu0 %v1096
        %v2007 = vpop.f32.mrf.mxu0
        %v2008 = vadd.f32 %v1895, %v2007
        %2009 = vmatmul.f32.gmra.mxu0 %v1105
        %v2010 = vpop.f32.mrf.mxu0
        %v2011 = vadd.f32 %v1898, %v2010
        %2012 = vmatmul.f32.gmra.mxu0 %v1114
        %v2013 = vpop.f32.mrf.mxu0
        %v2014 = vadd.f32 %v1901, %v2013
        %2015 = vmatmul.f32.gmra.mxu0 %v1123
        %v2016 = vpop.f32.mrf.mxu0
        %v2017 = vadd.f32 %v1904, %v2016
        %2018 = vmatmul.f32.gmra.mxu0 %v1132
        %v2019 = vpop.f32.mrf.mxu0
        %v2020 = vadd.f32 %v1907, %v2019
        %2021 = vmatmul.f32.gmra.mxu0 %v1141
        %v2022 = vpop.f32.mrf.mxu0
        %v2023 = vadd.f32 %v1910, %v2022
        %2024 = vmatmul.f32.gmra.mxu0 %v1150
        %v2025 = vpop.f32.mrf.mxu0
        %v2026 = vadd.f32 %v1913, %v2025
        %2027 = vmatmul.f32.gmra.mxu0 %v1159
        %v2028 = vpop.f32.mrf.mxu0
        %v2029 = vadd.f32 %v1916, %v2028
        %2030 = vmatmul.f32.gmra.mxu0 %v1168
        %v2031 = vpop.f32.mrf.mxu0
        %v2032 = vadd.f32 %v1919, %v2031
        %2033 = vmatmul.f32.gmra.mxu0 %v1177
        %v2034 = vpop.f32.mrf.mxu0
        %v2035 = vadd.f32 %v1922, %v2034
        %2036 = vmatmul.f32.gmra.mxu0 %v1186
        %v2037 = vpop.f32.mrf.mxu0
        %v2038 = vadd.f32 %v1925, %v2037
        %2039 = vmatmul.f32.gmra.mxu0 %v1195
        %v2040 = vpop.f32.mrf.mxu0
        %v2041 = vadd.f32 %v1928, %v2040
        %2042 = vmatmul.f32.gmra.mxu0 %v1204
        %v2043 = vpop.f32.mrf.mxu0
        %v2044 = vadd.f32 %v1931, %v2043
        %2045 = vmatmul.f32.gmra.mxu0 %v1213
        %v2046 = vpop.f32.mrf.mxu0
        %v2047 = vadd.f32 %v1934, %v2046
        %2048 = vmatmul.f32.gmra.mxu0 %v1222
        %v2049 = vpop.f32.mrf.mxu0
        %v2050 = vadd.f32 %v1937, %v2049
        %2051 = vdwg.mxu0
        %2052 = vmatpush.msra.mxu0 %v1337
        %2053 = vmatpush.msra.mxu0 %v1336
        %2054 = vmatpush.msra.mxu0 %v1335
        %2055 = vmatpush.msra.mxu0 %v1334
        %2056 = vmatpush.msra.mxu0 %v1333
        %2057 = vmatpush.msra.mxu0 %v1332
        %2058 = vmatpush.msra.mxu0 %v1331
        %2059 = vmatpush.msra.mxu0 %v1330
        %2060 = vmatpush.msra.mxu0 %v1329
        %2061 = vmatpush.msra.mxu0 %v1328
        %2062 = vmatpush.msra.mxu0 %v1327
        %2063 = vmatpush.msra.mxu0 %v1326
        %2064 = vmatpush.msra.mxu0 %v1325
        %2065 = vmatpush.msra.mxu0 %v1324
        %2066 = vmatpush.msra.mxu0 %v1323
        %2067 = vmatpush.msra.mxu0 %v1322
        %2068 = vmatmul.f32.gmra.mxu0 %v944
        %v2069 = vpop.f32.mrf.mxu0
        %v2070 = vadd.f32 %v1957, %v2069
        %2071 = vmatmul.f32.gmra.mxu0 %v953
        %v2072 = vpop.f32.mrf.mxu0
        %v2073 = vadd.f32 %v1960, %v2072
        %2074 = vmatmul.f32.gmra.mxu0 %v962
        %v2075 = vpop.f32.mrf.mxu0
        %v2076 = vadd.f32 %v1963, %v2075
        %2077 = vmatmul.f32.gmra.mxu0 %v971
        %v2078 = vpop.f32.mrf.mxu0
        %v2079 = vadd.f32 %v1966, %v2078
        %2080 = vmatmul.f32.gmra.mxu0 %v980
        %v2081 = vpop.f32.mrf.mxu0
        %v2082 = vadd.f32 %v1969, %v2081
        %2083 = vmatmul.f32.gmra.mxu0 %v989
        %v2084 = vpop.f32.mrf.mxu0
        %v2085 = vadd.f32 %v1972, %v2084
        %2086 = vmatmul.f32.gmra.mxu0 %v998
        %v2087 = vpop.f32.mrf.mxu0
        %v2088 = vadd.f32 %v1975, %v2087
        %2089 = vmatmul.f32.gmra.mxu0 %v1007
        %v2090 = vpop.f32.mrf.mxu0
        %v2091 = vadd.f32 %v1978, %v2090
        %2092 = vmatmul.f32.gmra.mxu0 %v1016
        %v2093 = vpop.f32.mrf.mxu0
        %v2094 = vadd.f32 %v1981, %v2093
        %2095 = vmatmul.f32.gmra.mxu0 %v1025
        %v2096 = vpop.f32.mrf.mxu0
        %v2097 = vadd.f32 %v1984, %v2096
        %2098 = vmatmul.f32.gmra.mxu0 %v1034
        %v2099 = vpop.f32.mrf.mxu0
        %v2100 = vadd.f32 %v1987, %v2099
        %2101 = vmatmul.f32.gmra.mxu0 %v1043
        %v2102 = vpop.f32.mrf.mxu0
        %v2103 = vadd.f32 %v1990, %v2102
        %2104 = vmatmul.f32.gmra.mxu0 %v1052
        %v2105 = vpop.f32.mrf.mxu0
        %v2106 = vadd.f32 %v1993, %v2105
        %2107 = vmatmul.f32.gmra.mxu0 %v1061
        %v2108 = vpop.f32.mrf.mxu0
        %v2109 = vadd.f32 %v1996, %v2108
        %2110 = vmatmul.f32.gmra.mxu0 %v1070
        %v2111 = vpop.f32.mrf.mxu0
        %v2112 = vadd.f32 %v1999, %v2111
        %2113 = vmatmul.f32.gmra.mxu0 %v1079
        %v2114 = vpop.f32.mrf.mxu0
        %v2115 = vadd.f32 %v2002, %v2114
        %2116 = vmatmul.f32.gmra.mxu0 %v1088
        %v2117 = vpop.f32.mrf.mxu0
        %v2118 = vadd.f32 %v2005, %v2117
        %2119 = vmatmul.f32.gmra.mxu0 %v1097
        %v2120 = vpop.f32.mrf.mxu0
        %v2121 = vadd.f32 %v2008, %v2120
        %2122 = vmatmul.f32.gmra.mxu0 %v1106
        %v2123 = vpop.f32.mrf.mxu0
        %v2124 = vadd.f32 %v2011, %v2123
        %2125 = vmatmul.f32.gmra.mxu0 %v1115
        %v2126 = vpop.f32.mrf.mxu0
        %v2127 = vadd.f32 %v2014, %v2126
        %2128 = vmatmul.f32.gmra.mxu0 %v1124
        %v2129 = vpop.f32.mrf.mxu0
        %v2130 = vadd.f32 %v2017, %v2129
        %2131 = vmatmul.f32.gmra.mxu0 %v1133
        %v2132 = vpop.f32.mrf.mxu0
        %v2133 = vadd.f32 %v2020, %v2132
        %2134 = vmatmul.f32.gmra.mxu0 %v1142
        %v2135 = vpop.f32.mrf.mxu0
        %v2136 = vadd.f32 %v2023, %v2135
        %2137 = vmatmul.f32.gmra.mxu0 %v1151
        %v2138 = vpop.f32.mrf.mxu0
        %v2139 = vadd.f32 %v2026, %v2138
        %2140 = vmatmul.f32.gmra.mxu0 %v1160
        %v2141 = vpop.f32.mrf.mxu0
        %v2142 = vadd.f32 %v2029, %v2141
        %2143 = vmatmul.f32.gmra.mxu0 %v1169
        %v2144 = vpop.f32.mrf.mxu0
        %v2145 = vadd.f32 %v2032, %v2144
        %2146 = vmatmul.f32.gmra.mxu0 %v1178
        %v2147 = vpop.f32.mrf.mxu0
        %v2148 = vadd.f32 %v2035, %v2147
        %2149 = vmatmul.f32.gmra.mxu0 %v1187
        %v2150 = vpop.f32.mrf.mxu0
        %v2151 = vadd.f32 %v2038, %v2150
        %2152 = vmatmul.f32.gmra.mxu0 %v1196
        %v2153 = vpop.f32.mrf.mxu0
        %v2154 = vadd.f32 %v2041, %v2153
        %2155 = vmatmul.f32.gmra.mxu0 %v1205
        %v2156 = vpop.f32.mrf.mxu0
        %v2157 = vadd.f32 %v2044, %v2156
        %2158 = vmatmul.f32.gmra.mxu0 %v1214
        %v2159 = vpop.f32.mrf.mxu0
        %v2160 = vadd.f32 %v2047, %v2159
        %2161 = vmatmul.f32.gmra.mxu0 %v1223
        %v2162 = vpop.f32.mrf.mxu0
        %v2163 = vadd.f32 %v2050, %v2162
        %2164 = vdwg.mxu0
        %2165 = vmatpush.msra.mxu0 %v1353
        %2166 = vmatpush.msra.mxu0 %v1352
        %2167 = vmatpush.msra.mxu0 %v1351
        %2168 = vmatpush.msra.mxu0 %v1350
        %2169 = vmatpush.msra.mxu0 %v1349
        %2170 = vmatpush.msra.mxu0 %v1348
        %2171 = vmatpush.msra.mxu0 %v1347
        %2172 = vmatpush.msra.mxu0 %v1346
        %2173 = vmatpush.msra.mxu0 %v1345
        %2174 = vmatpush.msra.mxu0 %v1344
        %2175 = vmatpush.msra.mxu0 %v1343
        %2176 = vmatpush.msra.mxu0 %v1342
        %2177 = vmatpush.msra.mxu0 %v1341
        %2178 = vmatpush.msra.mxu0 %v1340
        %2179 = vmatpush.msra.mxu0 %v1339
        %2180 = vmatpush.msra.mxu0 %v1338
        %2181 = vmatmul.f32.gmra.mxu0 %v945
        %v2182 = vpop.f32.mrf.mxu0
        %v2183 = vadd.f32 %v2070, %v2182
        %2184 = vmatmul.f32.gmra.mxu0 %v954
        %v2185 = vpop.f32.mrf.mxu0
        %v2186 = vadd.f32 %v2073, %v2185
        %2187 = vmatmul.f32.gmra.mxu0 %v963
        %v2188 = vpop.f32.mrf.mxu0
        %v2189 = vadd.f32 %v2076, %v2188
        %2190 = vmatmul.f32.gmra.mxu0 %v972
        %v2191 = vpop.f32.mrf.mxu0
        %v2192 = vadd.f32 %v2079, %v2191
        %2193 = vmatmul.f32.gmra.mxu0 %v981
        %v2194 = vpop.f32.mrf.mxu0
        %v2195 = vadd.f32 %v2082, %v2194
        %2196 = vmatmul.f32.gmra.mxu0 %v990
        %v2197 = vpop.f32.mrf.mxu0
        %v2198 = vadd.f32 %v2085, %v2197
        %2199 = vmatmul.f32.gmra.mxu0 %v999
        %v2200 = vpop.f32.mrf.mxu0
        %v2201 = vadd.f32 %v2088, %v2200
        %2202 = vmatmul.f32.gmra.mxu0 %v1008
        %v2203 = vpop.f32.mrf.mxu0
        %v2204 = vadd.f32 %v2091, %v2203
        %2205 = vmatmul.f32.gmra.mxu0 %v1017
        %v2206 = vpop.f32.mrf.mxu0
        %v2207 = vadd.f32 %v2094, %v2206
        %2208 = vmatmul.f32.gmra.mxu0 %v1026
        %v2209 = vpop.f32.mrf.mxu0
        %v2210 = vadd.f32 %v2097, %v2209
        %2211 = vmatmul.f32.gmra.mxu0 %v1035
        %v2212 = vpop.f32.mrf.mxu0
        %v2213 = vadd.f32 %v2100, %v2212
        %2214 = vmatmul.f32.gmra.mxu0 %v1044
        %v2215 = vpop.f32.mrf.mxu0
        %v2216 = vadd.f32 %v2103, %v2215
        %2217 = vmatmul.f32.gmra.mxu0 %v1053
        %v2218 = vpop.f32.mrf.mxu0
        %v2219 = vadd.f32 %v2106, %v2218
        %2220 = vmatmul.f32.gmra.mxu0 %v1062
        %v2221 = vpop.f32.mrf.mxu0
        %v2222 = vadd.f32 %v2109, %v2221
        %2223 = vmatmul.f32.gmra.mxu0 %v1071
        %v2224 = vpop.f32.mrf.mxu0
        %v2225 = vadd.f32 %v2112, %v2224
        %2226 = vmatmul.f32.gmra.mxu0 %v1080
        %v2227 = vpop.f32.mrf.mxu0
        %v2228 = vadd.f32 %v2115, %v2227
        %2229 = vmatmul.f32.gmra.mxu0 %v1089
        %v2230 = vpop.f32.mrf.mxu0
        %v2231 = vadd.f32 %v2118, %v2230
        %2232 = vmatmul.f32.gmra.mxu0 %v1098
        %v2233 = vpop.f32.mrf.mxu0
        %v2234 = vadd.f32 %v2121, %v2233
        %2235 = vmatmul.f32.gmra.mxu0 %v1107
        %v2236 = vpop.f32.mrf.mxu0
        %v2237 = vadd.f32 %v2124, %v2236
        %2238 = vmatmul.f32.gmra.mxu0 %v1116
        %v2239 = vpop.f32.mrf.mxu0
        %v2240 = vadd.f32 %v2127, %v2239
        %2241 = vmatmul.f32.gmra.mxu0 %v1125
        %v2242 = vpop.f32.mrf.mxu0
        %v2243 = vadd.f32 %v2130, %v2242
        %2244 = vmatmul.f32.gmra.mxu0 %v1134
        %v2245 = vpop.f32.mrf.mxu0
        %v2246 = vadd.f32 %v2133, %v2245
        %2247 = vmatmul.f32.gmra.mxu0 %v1143
        %v2248 = vpop.f32.mrf.mxu0
        %v2249 = vadd.f32 %v2136, %v2248
        %2250 = vmatmul.f32.gmra.mxu0 %v1152
        %v2251 = vpop.f32.mrf.mxu0
        %v2252 = vadd.f32 %v2139, %v2251
        %2253 = vmatmul.f32.gmra.mxu0 %v1161
        %v2254 = vpop.f32.mrf.mxu0
        %v2255 = vadd.f32 %v2142, %v2254
        %2256 = vmatmul.f32.gmra.mxu0 %v1170
        %v2257 = vpop.f32.mrf.mxu0
        %v2258 = vadd.f32 %v2145, %v2257
        %2259 = vmatmul.f32.gmra.mxu0 %v1179
        %v2260 = vpop.f32.mrf.mxu0
        %v2261 = vadd.f32 %v2148, %v2260
        %2262 = vmatmul.f32.gmra.mxu0 %v1188
        %v2263 = vpop.f32.mrf.mxu0
        %v2264 = vadd.f32 %v2151, %v2263
        %2265 = vmatmul.f32.gmra.mxu0 %v1197
        %v2266 = vpop.f32.mrf.mxu0
        %v2267 = vadd.f32 %v2154, %v2266
        %2268 = vmatmul.f32.gmra.mxu0 %v1206
        %v2269 = vpop.f32.mrf.mxu0
        %v2270 = vadd.f32 %v2157, %v2269
        %2271 = vmatmul.f32.gmra.mxu0 %v1215
        %v2272 = vpop.f32.mrf.mxu0
        %v2273 = vadd.f32 %v2160, %v2272
        %2274 = vmatmul.f32.gmra.mxu0 %v1224
        %v2275 = vpop.f32.mrf.mxu0
        %v2276 = vadd.f32 %v2163, %v2275
        %2277 = vdwg.mxu0
        %2278 = vmatpush.msra.mxu0 %v1369
        %2279 = vmatpush.msra.mxu0 %v1368
        %2280 = vmatpush.msra.mxu0 %v1367
        %2281 = vmatpush.msra.mxu0 %v1366
        %2282 = vmatpush.msra.mxu0 %v1365
        %2283 = vmatpush.msra.mxu0 %v1364
        %2284 = vmatpush.msra.mxu0 %v1363
        %2285 = vmatpush.msra.mxu0 %v1362
        %2286 = vmatpush.msra.mxu0 %v1361
        %2287 = vmatpush.msra.mxu0 %v1360
        %2288 = vmatpush.msra.mxu0 %v1359
        %2289 = vmatpush.msra.mxu0 %v1358
        %2290 = vmatpush.msra.mxu0 %v1357
        %2291 = vmatpush.msra.mxu0 %v1356
        %2292 = vmatpush.msra.mxu0 %v1355
        %2293 = vmatpush.msra.mxu0 %v1354
        %2294 = vmatmul.f32.gmra.mxu0 %v946
        %v2295 = vpop.f32.mrf.mxu0
        %v2296 = vadd.f32 %v2183, %v2295
        %2297 = vmatmul.f32.gmra.mxu0 %v955
        %v2298 = vpop.f32.mrf.mxu0
        %v2299 = vadd.f32 %v2186, %v2298
        %2300 = vmatmul.f32.gmra.mxu0 %v964
        %v2301 = vpop.f32.mrf.mxu0
        %v2302 = vadd.f32 %v2189, %v2301
        %2303 = vmatmul.f32.gmra.mxu0 %v973
        %v2304 = vpop.f32.mrf.mxu0
        %v2305 = vadd.f32 %v2192, %v2304
        %2306 = vmatmul.f32.gmra.mxu0 %v982
        %v2307 = vpop.f32.mrf.mxu0
        %v2308 = vadd.f32 %v2195, %v2307
        %2309 = vmatmul.f32.gmra.mxu0 %v991
        %v2310 = vpop.f32.mrf.mxu0
        %v2311 = vadd.f32 %v2198, %v2310
        %2312 = vmatmul.f32.gmra.mxu0 %v1000
        %v2313 = vpop.f32.mrf.mxu0
        %v2314 = vadd.f32 %v2201, %v2313
        %2315 = vmatmul.f32.gmra.mxu0 %v1009
        %v2316 = vpop.f32.mrf.mxu0
        %v2317 = vadd.f32 %v2204, %v2316
        %2318 = vmatmul.f32.gmra.mxu0 %v1018
        %v2319 = vpop.f32.mrf.mxu0
        %v2320 = vadd.f32 %v2207, %v2319
        %2321 = vmatmul.f32.gmra.mxu0 %v1027
        %v2322 = vpop.f32.mrf.mxu0
        %v2323 = vadd.f32 %v2210, %v2322
        %2324 = vmatmul.f32.gmra.mxu0 %v1036
        %v2325 = vpop.f32.mrf.mxu0
        %v2326 = vadd.f32 %v2213, %v2325
        %2327 = vmatmul.f32.gmra.mxu0 %v1045
        %v2328 = vpop.f32.mrf.mxu0
        %v2329 = vadd.f32 %v2216, %v2328
        %2330 = vmatmul.f32.gmra.mxu0 %v1054
        %v2331 = vpop.f32.mrf.mxu0
        %v2332 = vadd.f32 %v2219, %v2331
        %2333 = vmatmul.f32.gmra.mxu0 %v1063
        %v2334 = vpop.f32.mrf.mxu0
        %v2335 = vadd.f32 %v2222, %v2334
        %2336 = vmatmul.f32.gmra.mxu0 %v1072
        %v2337 = vpop.f32.mrf.mxu0
        %v2338 = vadd.f32 %v2225, %v2337
        %2339 = vmatmul.f32.gmra.mxu0 %v1081
        %v2340 = vpop.f32.mrf.mxu0
        %v2341 = vadd.f32 %v2228, %v2340
        %2342 = vmatmul.f32.gmra.mxu0 %v1090
        %v2343 = vpop.f32.mrf.mxu0
        %v2344 = vadd.f32 %v2231, %v2343
        %2345 = vmatmul.f32.gmra.mxu0 %v1099
        %v2346 = vpop.f32.mrf.mxu0
        %v2347 = vadd.f32 %v2234, %v2346
        %2348 = vmatmul.f32.gmra.mxu0 %v1108
        %v2349 = vpop.f32.mrf.mxu0
        %v2350 = vadd.f32 %v2237, %v2349
        %2351 = vmatmul.f32.gmra.mxu0 %v1117
        %v2352 = vpop.f32.mrf.mxu0
        %v2353 = vadd.f32 %v2240, %v2352
        %2354 = vmatmul.f32.gmra.mxu0 %v1126
        %v2355 = vpop.f32.mrf.mxu0
        %v2356 = vadd.f32 %v2243, %v2355
        %2357 = vmatmul.f32.gmra.mxu0 %v1135
        %v2358 = vpop.f32.mrf.mxu0
        %v2359 = vadd.f32 %v2246, %v2358
        %2360 = vmatmul.f32.gmra.mxu0 %v1144
        %v2361 = vpop.f32.mrf.mxu0
        %v2362 = vadd.f32 %v2249, %v2361
        %2363 = vmatmul.f32.gmra.mxu0 %v1153
        %v2364 = vpop.f32.mrf.mxu0
        %v2365 = vadd.f32 %v2252, %v2364
        %2366 = vmatmul.f32.gmra.mxu0 %v1162
        %v2367 = vpop.f32.mrf.mxu0
        %v2368 = vadd.f32 %v2255, %v2367
        %2369 = vmatmul.f32.gmra.mxu0 %v1171
        %v2370 = vpop.f32.mrf.mxu0
        %v2371 = vadd.f32 %v2258, %v2370
        %2372 = vmatmul.f32.gmra.mxu0 %v1180
        %v2373 = vpop.f32.mrf.mxu0
        %v2374 = vadd.f32 %v2261, %v2373
        %2375 = vmatmul.f32.gmra.mxu0 %v1189
        %v2376 = vpop.f32.mrf.mxu0
        %v2377 = vadd.f32 %v2264, %v2376
        %2378 = vmatmul.f32.gmra.mxu0 %v1198
        %v2379 = vpop.f32.mrf.mxu0
        %v2380 = vadd.f32 %v2267, %v2379
        %2381 = vmatmul.f32.gmra.mxu0 %v1207
        %v2382 = vpop.f32.mrf.mxu0
        %v2383 = vadd.f32 %v2270, %v2382
        %2384 = vmatmul.f32.gmra.mxu0 %v1216
        %v2385 = vpop.f32.mrf.mxu0
        %v2386 = vadd.f32 %v2273, %v2385
        %2387 = vmatmul.f32.gmra.mxu0 %v1225
        %v2388 = vpop.f32.mrf.mxu0
        %v2389 = vadd.f32 %v2276, %v2388
        %2390 = vdwg.mxu0
        %v2391 = vmax.f32 %v2296, 0.0
        %v2392 = vmax.f32 %v2299, 0.0
        %v2393 = vmax.f32 %v2302, 0.0
        %v2394 = vmax.f32 %v2305, 0.0
        %v2395 = vmax.f32 %v2308, 0.0
        %v2396 = vmax.f32 %v2311, 0.0
        %v2397 = vmax.f32 %v2314, 0.0
        %v2398 = vmax.f32 %v2317, 0.0
        %v2399 = vmax.f32 %v2320, 0.0
        %v2400 = vmax.f32 %v2323, 0.0
        %v2401 = vmax.f32 %v2326, 0.0
        %v2402 = vmax.f32 %v2329, 0.0
        %v2403 = vmax.f32 %v2332, 0.0
        %v2404 = vmax.f32 %v2335, 0.0
        %v2405 = vmax.f32 %v2338, 0.0
        %v2406 = vmax.f32 %v2341, 0.0
        %v2407 = vmax.f32 %v2344, 0.0
        %v2408 = vmax.f32 %v2347, 0.0
        %v2409 = vmax.f32 %v2350, 0.0
        %v2410 = vmax.f32 %v2353, 0.0
        %v2411 = vmax.f32 %v2356, 0.0
        %v2412 = vmax.f32 %v2359, 0.0
        %v2413 = vmax.f32 %v2362, 0.0
        %v2414 = vmax.f32 %v2365, 0.0
        %v2415 = vmax.f32 %v2368, 0.0
        %v2416 = vmax.f32 %v2371, 0.0
        %v2417 = vmax.f32 %v2374, 0.0
        %v2418 = vmax.f32 %v2377, 0.0
        %v2419 = vmax.f32 %v2380, 0.0
        %v2420 = vmax.f32 %v2383, 0.0
        %v2421 = vmax.f32 %v2386, 0.0
        %v2422 = vmax.f32 %v2389, 0.0
        %2423 = vst [vmem:[%s328 + $0x8] sm:$0xff] %v2391
        %2424 = vst [vmem:[%s328 + $0x10] sm:$0xff] %v2392
        %2425 = vst [vmem:[%s328 + $0x28] sm:$0xff] %v2393
        %2426 = vst [vmem:[%s328 + $0x30] sm:$0xff] %v2394
        %2427 = vst [vmem:[%s328 + $0x48] sm:$0xff] %v2395
        %2428 = vst [vmem:[%s328 + $0x50] sm:$0xff] %v2396
        %2429 = vst [vmem:[%s328 + $0x68] sm:$0xff] %v2397
        %2430 = vst [vmem:[%s328 + $0x70] sm:$0xff] %v2398
        %2431 = vst [vmem:[%s328 + $0x88] sm:$0xff] %v2399
        %2432 = vst [vmem:[%s328 + $0x90] sm:$0xff] %v2400
        %2433 = vst [vmem:[%s328 + $0xa8] sm:$0xff] %v2401
        %2434 = vst [vmem:[%s328 + $0xb0] sm:$0xff] %v2402
        %2435 = vst [vmem:[%s328 + $0xc8] sm:$0xff] %v2403
        %2436 = vst [vmem:[%s328 + $0xd0] sm:$0xff] %v2404
        %2437 = vst [vmem:[%s328 + $0xe8] sm:$0xff] %v2405
        %2438 = vst [vmem:[%s328 + $0xf0] sm:$0xff] %v2406
        %2439 = vst [vmem:[%s328 + $0x108] sm:$0xff] %v2407
        %2440 = vst [vmem:[%s328 + $0x110] sm:$0xff] %v2408
        %2441 = vst [vmem:[%s328 + $0x128] sm:$0xff] %v2409
        %2442 = vst [vmem:[%s328 + $0x130] sm:$0xff] %v2410
        %2443 = vst [vmem:[%s328 + $0x148] sm:$0xff] %v2411
        %2444 = vst [vmem:[%s328 + $0x150] sm:$0xff] %v2412
        %2445 = vst [vmem:[%s328 + $0x168] sm:$0xff] %v2413
        %2446 = vst [vmem:[%s328 + $0x170] sm:$0xff] %v2414
        %2447 = vst [vmem:[%s328 + $0x188] sm:$0xff] %v2415
        %2448 = vst [vmem:[%s328 + $0x190] sm:$0xff] %v2416
        %2449 = vst [vmem:[%s328 + $0x1a8] sm:$0xff] %v2417
        %2450 = vst [vmem:[%s328 + $0x1b0] sm:$0xff] %v2418
        %2451 = vst [vmem:[%s328 + $0x1c8] sm:$0xff] %v2419
        %2452 = vst [vmem:[%s328 + $0x1d0] sm:$0xff] %v2420
        %2453 = vst [vmem:[%s328 + $0x1e8] sm:$0xff] %v2421
        %2454 = vst [vmem:[%s328 + $0x1f0] sm:$0xff] %v2422
        %v2455 = vld [vmem:[#allocation2 + $0x7] sm:$0xff]
        %v2456 = vld [vmem:[#allocation2 + $0xf] sm:$0xff]
        %v2457 = vld [vmem:[#allocation2 + $0x27] sm:$0xff]
        %v2458 = vld [vmem:[#allocation2 + $0x2f] sm:$0xff]
        %v2459 = vld [vmem:[#allocation2 + $0x47] sm:$0xff]
        %v2460 = vld [vmem:[#allocation2 + $0x4f] sm:$0xff]
        %v2461 = vld [vmem:[#allocation2 + $0x67] sm:$0xff]
        %v2462 = vld [vmem:[#allocation2 + $0x6f] sm:$0xff]
        %v2463 = vld [vmem:[#allocation2 + $0x87] sm:$0xff]
        %v2464 = vld [vmem:[#allocation2 + $0x8f] sm:$0xff]
        %v2465 = vld [vmem:[#allocation2 + $0xa7] sm:$0xff]
        %v2466 = vld [vmem:[#allocation2 + $0xaf] sm:$0xff]
        %v2467 = vld [vmem:[#allocation2 + $0xc7] sm:$0xff]
        %v2468 = vld [vmem:[#allocation2 + $0xcf] sm:$0xff]
        %v2469 = vld [vmem:[#allocation2 + $0xe7] sm:$0xff]
        %v2470 = vld [vmem:[#allocation2 + $0xef] sm:$0xff]
        %v2471 = vld [vmem:[#allocation2 + $0x107] sm:$0xff]
        %v2472 = vld [vmem:[#allocation2 + $0x10f] sm:$0xff]
        %v2473 = vld [vmem:[#allocation2 + $0x127] sm:$0xff]
        %v2474 = vld [vmem:[#allocation2 + $0x12f] sm:$0xff]
        %v2475 = vld [vmem:[#allocation2 + $0x147] sm:$0xff]
        %v2476 = vld [vmem:[#allocation2 + $0x14f] sm:$0xff]
        %v2477 = vld [vmem:[#allocation2 + $0x167] sm:$0xff]
        %v2478 = vld [vmem:[#allocation2 + $0x16f] sm:$0xff]
        %v2479 = vld [vmem:[#allocation2 + $0x187] sm:$0xff]
        %v2480 = vld [vmem:[#allocation2 + $0x18f] sm:$0xff]
        %v2481 = vld [vmem:[#allocation2 + $0x1a7] sm:$0xff]
        %v2482 = vld [vmem:[#allocation2 + $0x1af] sm:$0xff]
        %v2483 = vld [vmem:[#allocation2 + $0x1c7] sm:$0xff]
        %v2484 = vld [vmem:[#allocation2 + $0x1cf] sm:$0xff]
        %v2485 = vld [vmem:[#allocation2 + $0x1e7] sm:$0xff]
        %v2486 = vld [vmem:[#allocation2 + $0x1ef] sm:$0xff]
        %2487 = vst [vmem:[#allocation3] sm:$0xff] %v2455
        %2488 = vst [vmem:[#allocation3 + $0x48] sm:$0xff] %v2456
        %2489 = vst [vmem:[#allocation3 + $0x90] sm:$0xff] %v2457
        %2490 = vst [vmem:[#allocation3 + $0xd8] sm:$0xff] %v2458
        %2491 = vst [vmem:[#allocation3 + $0x120] sm:$0xff] %v2459
        %2492 = vst [vmem:[#allocation3 + $0x168] sm:$0xff] %v2460
        %2493 = vst [vmem:[#allocation3 + $0x1b0] sm:$0xff] %v2461
        %2494 = vst [vmem:[#allocation3 + $0x1f8] sm:$0xff] %v2462
        %2495 = vst [vmem:[#allocation3 + $0x240] sm:$0xff] %v2463
        %2496 = vst [vmem:[#allocation3 + $0x288] sm:$0xff] %v2464
        %2497 = vst [vmem:[#allocation3 + $0x2d0] sm:$0xff] %v2465
        %2498 = vst [vmem:[#allocation3 + $0x318] sm:$0xff] %v2466
        %2499 = vst [vmem:[#allocation3 + $0x360] sm:$0xff] %v2467
        %2500 = vst [vmem:[#allocation3 + $0x3a8] sm:$0xff] %v2468
        %2501 = vst [vmem:[#allocation3 + $0x3f0] sm:$0xff] %v2469
        %2502 = vst [vmem:[#allocation3 + $0x438] sm:$0xff] %v2470
        %2503 = vst [vmem:[#allocation3 + $0x480] sm:$0xff] %v2471
        %2504 = vst [vmem:[#allocation3 + $0x4c8] sm:$0xff] %v2472
        %2505 = vst [vmem:[#allocation3 + $0x510] sm:$0xff] %v2473
        %2506 = vst [vmem:[#allocation3 + $0x558] sm:$0xff] %v2474
        %2507 = vst [vmem:[#allocation3 + $0x5a0] sm:$0xff] %v2475
        %2508 = vst [vmem:[#allocation3 + $0x5e8] sm:$0xff] %v2476
        %2509 = vst [vmem:[#allocation3 + $0x630] sm:$0xff] %v2477
        %2510 = vst [vmem:[#allocation3 + $0x678] sm:$0xff] %v2478
        %2511 = vst [vmem:[#allocation3 + $0x6c0] sm:$0xff] %v2479
        %2512 = vst [vmem:[#allocation3 + $0x708] sm:$0xff] %v2480
        %2513 = vst [vmem:[#allocation3 + $0x750] sm:$0xff] %v2481
        %2514 = vst [vmem:[#allocation3 + $0x798] sm:$0xff] %v2482
        %2515 = vst [vmem:[#allocation3 + $0x7e0] sm:$0xff] %v2483
        %2516 = vst [vmem:[#allocation3 + $0x828] sm:$0xff] %v2484
        %2517 = vst [vmem:[#allocation3 + $0x870] sm:$0xff] %v2485
        %2518 = vst [vmem:[#allocation3 + $0x8b8] sm:$0xff] %v2486
        %v2519 = vld [vmem:[#allocation2 + $0x8] sm:$0xff]
        %v2520 = vld [vmem:[#allocation2 + $0x10] sm:$0xff]
        %v2521 = vld [vmem:[#allocation2 + $0x28] sm:$0xff]
        %v2522 = vld [vmem:[#allocation2 + $0x30] sm:$0xff]
        %v2523 = vld [vmem:[#allocation2 + $0x48] sm:$0xff]
        %v2524 = vld [vmem:[#allocation2 + $0x50] sm:$0xff]
        %v2525 = vld [vmem:[#allocation2 + $0x68] sm:$0xff]
        %v2526 = vld [vmem:[#allocation2 + $0x70] sm:$0xff]
        %v2527 = vld [vmem:[#allocation2 + $0x88] sm:$0xff]
        %v2528 = vld [vmem:[#allocation2 + $0x90] sm:$0xff]
        %v2529 = vld [vmem:[#allocation2 + $0xa8] sm:$0xff]
        %v2530 = vld [vmem:[#allocation2 + $0xb0] sm:$0xff]
        %v2531 = vld [vmem:[#allocation2 + $0xc8] sm:$0xff]
        %v2532 = vld [vmem:[#allocation2 + $0xd0] sm:$0xff]
        %v2533 = vld [vmem:[#allocation2 + $0xe8] sm:$0xff]
        %v2534 = vld [vmem:[#allocation2 + $0xf0] sm:$0xff]
        %v2535 = vld [vmem:[#allocation2 + $0x108] sm:$0xff]
        %v2536 = vld [vmem:[#allocation2 + $0x110] sm:$0xff]
        %v2537 = vld [vmem:[#allocation2 + $0x128] sm:$0xff]
        %v2538 = vld [vmem:[#allocation2 + $0x130] sm:$0xff]
        %v2539 = vld [vmem:[#allocation2 + $0x148] sm:$0xff]
        %v2540 = vld [vmem:[#allocation2 + $0x150] sm:$0xff]
        %v2541 = vld [vmem:[#allocation2 + $0x168] sm:$0xff]
        %v2542 = vld [vmem:[#allocation2 + $0x170] sm:$0xff]
        %v2543 = vld [vmem:[#allocation2 + $0x188] sm:$0xff]
        %v2544 = vld [vmem:[#allocation2 + $0x190] sm:$0xff]
        %v2545 = vld [vmem:[#allocation2 + $0x1a8] sm:$0xff]
        %v2546 = vld [vmem:[#allocation2 + $0x1b0] sm:$0xff]
        %v2547 = vld [vmem:[#allocation2 + $0x1c8] sm:$0xff]
        %v2548 = vld [vmem:[#allocation2 + $0x1d0] sm:$0xff]
        %v2549 = vld [vmem:[#allocation2 + $0x1e8] sm:$0xff]
        %v2550 = vld [vmem:[#allocation2 + $0x1f0] sm:$0xff]
        %2551 = vst [vmem:[#allocation3 + $0x8] sm:$0xff] %v2519
        %2552 = vst [vmem:[#allocation3 + $0x50] sm:$0xff] %v2520
        %2553 = vst [vmem:[#allocation3 + $0x98] sm:$0xff] %v2521
        %2554 = vst [vmem:[#allocation3 + $0xe0] sm:$0xff] %v2522
        %2555 = vst [vmem:[#allocation3 + $0x128] sm:$0xff] %v2523
        %2556 = vst [vmem:[#allocation3 + $0x170] sm:$0xff] %v2524
        %2557 = vst [vmem:[#allocation3 + $0x1b8] sm:$0xff] %v2525
        %2558 = vst [vmem:[#allocation3 + $0x200] sm:$0xff] %v2526
        %2559 = vst [vmem:[#allocation3 + $0x248] sm:$0xff] %v2527
        %2560 = vst [vmem:[#allocation3 + $0x290] sm:$0xff] %v2528
        %2561 = vst [vmem:[#allocation3 + $0x2d8] sm:$0xff] %v2529
        %2562 = vst [vmem:[#allocation3 + $0x320] sm:$0xff] %v2530
        %2563 = vst [vmem:[#allocation3 + $0x368] sm:$0xff] %v2531
        %2564 = vst [vmem:[#allocation3 + $0x3b0] sm:$0xff] %v2532
        %2565 = vst [vmem:[#allocation3 + $0x3f8] sm:$0xff] %v2533
        %2566 = vst [vmem:[#allocation3 + $0x440] sm:$0xff] %v2534
        %2567 = vst [vmem:[#allocation3 + $0x488] sm:$0xff] %v2535
        %2568 = vst [vmem:[#allocation3 + $0x4d0] sm:$0xff] %v2536
        %2569 = vst [vmem:[#allocation3 + $0x518] sm:$0xff] %v2537
        %2570 = vst [vmem:[#allocation3 + $0x560] sm:$0xff] %v2538
        %2571 = vst [vmem:[#allocation3 + $0x5a8] sm:$0xff] %v2539
        %2572 = vst [vmem:[#allocation3 + $0x5f0] sm:$0xff] %v2540
        %2573 = vst [vmem:[#allocation3 + $0x638] sm:$0xff] %v2541
        %2574 = vst [vmem:[#allocation3 + $0x680] sm:$0xff] %v2542
        %2575 = vst [vmem:[#allocation3 + $0x6c8] sm:$0xff] %v2543
        %2576 = vst [vmem:[#allocation3 + $0x710] sm:$0xff] %v2544
        %2577 = vst [vmem:[#allocation3 + $0x758] sm:$0xff] %v2545
        %2578 = vst [vmem:[#allocation3 + $0x7a0] sm:$0xff] %v2546
        %2579 = vst [vmem:[#allocation3 + $0x7e8] sm:$0xff] %v2547
        %2580 = vst [vmem:[#allocation3 + $0x830] sm:$0xff] %v2548
        %2581 = vst [vmem:[#allocation3 + $0x878] sm:$0xff] %v2549
        %2582 = vst [vmem:[#allocation3 + $0x8c0] sm:$0xff] %v2550
        %v2583 = vld [vmem:[#allocation2 + $0x9] sm:$0xff]
        %v2584 = vld [vmem:[#allocation2 + $0x11] sm:$0xff]
        %v2585 = vld [vmem:[#allocation2 + $0x29] sm:$0xff]
        %v2586 = vld [vmem:[#allocation2 + $0x31] sm:$0xff]
        %v2587 = vld [vmem:[#allocation2 + $0x49] sm:$0xff]
        %v2588 = vld [vmem:[#allocation2 + $0x51] sm:$0xff]
        %v2589 = vld [vmem:[#allocation2 + $0x69] sm:$0xff]
        %v2590 = vld [vmem:[#allocation2 + $0x71] sm:$0xff]
        %v2591 = vld [vmem:[#allocation2 + $0x89] sm:$0xff]
        %v2592 = vld [vmem:[#allocation2 + $0x91] sm:$0xff]
        %v2593 = vld [vmem:[#allocation2 + $0xa9] sm:$0xff]
        %v2594 = vld [vmem:[#allocation2 + $0xb1] sm:$0xff]
        %v2595 = vld [vmem:[#allocation2 + $0xc9] sm:$0xff]
        %v2596 = vld [vmem:[#allocation2 + $0xd1] sm:$0xff]
        %v2597 = vld [vmem:[#allocation2 + $0xe9] sm:$0xff]
        %v2598 = vld [vmem:[#allocation2 + $0xf1] sm:$0xff]
        %v2599 = vld [vmem:[#allocation2 + $0x109] sm:$0xff]
        %v2600 = vld [vmem:[#allocation2 + $0x111] sm:$0xff]
        %v2601 = vld [vmem:[#allocation2 + $0x129] sm:$0xff]
        %v2602 = vld [vmem:[#allocation2 + $0x131] sm:$0xff]
        %v2603 = vld [vmem:[#allocation2 + $0x149] sm:$0xff]
        %v2604 = vld [vmem:[#allocation2 + $0x151] sm:$0xff]
        %v2605 = vld [vmem:[#allocation2 + $0x169] sm:$0xff]
        %v2606 = vld [vmem:[#allocation2 + $0x171] sm:$0xff]
        %v2607 = vld [vmem:[#allocation2 + $0x189] sm:$0xff]
        %v2608 = vld [vmem:[#allocation2 + $0x191] sm:$0xff]
        %v2609 = vld [vmem:[#allocation2 + $0x1a9] sm:$0xff]
        %v2610 = vld [vmem:[#allocation2 + $0x1b1] sm:$0xff]
        %v2611 = vld [vmem:[#allocation2 + $0x1c9] sm:$0xff]
        %v2612 = vld [vmem:[#allocation2 + $0x1d1] sm:$0xff]
        %v2613 = vld [vmem:[#allocation2 + $0x1e9] sm:$0xff]
        %v2614 = vld [vmem:[#allocation2 + $0x1f1] sm:$0xff]
        %2615 = vst [vmem:[#allocation3 + $0x10] sm:$0xff] %v2583
        %2616 = vst [vmem:[#allocation3 + $0x58] sm:$0xff] %v2584
        %2617 = vst [vmem:[#allocation3 + $0xa0] sm:$0xff] %v2585
        %2618 = vst [vmem:[#allocation3 + $0xe8] sm:$0xff] %v2586
        %2619 = vst [vmem:[#allocation3 + $0x130] sm:$0xff] %v2587
        %2620 = vst [vmem:[#allocation3 + $0x178] sm:$0xff] %v2588
        %2621 = vst [vmem:[#allocation3 + $0x1c0] sm:$0xff] %v2589
        %2622 = vst [vmem:[#allocation3 + $0x208] sm:$0xff] %v2590
        %2623 = vst [vmem:[#allocation3 + $0x250] sm:$0xff] %v2591
        %2624 = vst [vmem:[#allocation3 + $0x298] sm:$0xff] %v2592
        %2625 = vst [vmem:[#allocation3 + $0x2e0] sm:$0xff] %v2593
        %2626 = vst [vmem:[#allocation3 + $0x328] sm:$0xff] %v2594
        %2627 = vst [vmem:[#allocation3 + $0x370] sm:$0xff] %v2595
        %2628 = vst [vmem:[#allocation3 + $0x3b8] sm:$0xff] %v2596
        %2629 = vst [vmem:[#allocation3 + $0x400] sm:$0xff] %v2597
        %2630 = vst [vmem:[#allocation3 + $0x448] sm:$0xff] %v2598
        %2631 = vst [vmem:[#allocation3 + $0x490] sm:$0xff] %v2599
        %2632 = vst [vmem:[#allocation3 + $0x4d8] sm:$0xff] %v2600
        %2633 = vst [vmem:[#allocation3 + $0x520] sm:$0xff] %v2601
        %2634 = vst [vmem:[#allocation3 + $0x568] sm:$0xff] %v2602
        %2635 = vst [vmem:[#allocation3 + $0x5b0] sm:$0xff] %v2603
        %2636 = vst [vmem:[#allocation3 + $0x5f8] sm:$0xff] %v2604
        %2637 = vst [vmem:[#allocation3 + $0x640] sm:$0xff] %v2605
        %2638 = vst [vmem:[#allocation3 + $0x688] sm:$0xff] %v2606
        %2639 = vst [vmem:[#allocation3 + $0x6d0] sm:$0xff] %v2607
        %2640 = vst [vmem:[#allocation3 + $0x718] sm:$0xff] %v2608
        %2641 = vst [vmem:[#allocation3 + $0x760] sm:$0xff] %v2609
        %2642 = vst [vmem:[#allocation3 + $0x7a8] sm:$0xff] %v2610
        %2643 = vst [vmem:[#allocation3 + $0x7f0] sm:$0xff] %v2611
        %2644 = vst [vmem:[#allocation3 + $0x838] sm:$0xff] %v2612
        %2645 = vst [vmem:[#allocation3 + $0x880] sm:$0xff] %v2613
        %2646 = vst [vmem:[#allocation3 + $0x8c8] sm:$0xff] %v2614
        %v2647 = vld [vmem:[%s328 + $0x7] sm:$0xff]
        %v2648 = vld [vmem:[%s328 + $0xf] sm:$0xff]
        %v2649 = vld [vmem:[%s328 + $0x27] sm:$0xff]
        %v2650 = vld [vmem:[%s328 + $0x2f] sm:$0xff]
        %v2651 = vld [vmem:[%s328 + $0x47] sm:$0xff]
        %v2652 = vld [vmem:[%s328 + $0x4f] sm:$0xff]
        %v2653 = vld [vmem:[%s328 + $0x67] sm:$0xff]
        %v2654 = vld [vmem:[%s328 + $0x6f] sm:$0xff]
        %v2655 = vld [vmem:[%s328 + $0x87] sm:$0xff]
        %v2656 = vld [vmem:[%s328 + $0x8f] sm:$0xff]
        %v2657 = vld [vmem:[%s328 + $0xa7] sm:$0xff]
        %v2658 = vld [vmem:[%s328 + $0xaf] sm:$0xff]
        %v2659 = vld [vmem:[%s328 + $0xc7] sm:$0xff]
        %v2660 = vld [vmem:[%s328 + $0xcf] sm:$0xff]
        %v2661 = vld [vmem:[%s328 + $0xe7] sm:$0xff]
        %v2662 = vld [vmem:[%s328 + $0xef] sm:$0xff]
        %v2663 = vld [vmem:[%s328 + $0x107] sm:$0xff]
        %v2664 = vld [vmem:[%s328 + $0x10f] sm:$0xff]
        %v2665 = vld [vmem:[%s328 + $0x127] sm:$0xff]
        %v2666 = vld [vmem:[%s328 + $0x12f] sm:$0xff]
        %v2667 = vld [vmem:[%s328 + $0x147] sm:$0xff]
        %v2668 = vld [vmem:[%s328 + $0x14f] sm:$0xff]
        %v2669 = vld [vmem:[%s328 + $0x167] sm:$0xff]
        %v2670 = vld [vmem:[%s328 + $0x16f] sm:$0xff]
        %v2671 = vld [vmem:[%s328 + $0x187] sm:$0xff]
        %v2672 = vld [vmem:[%s328 + $0x18f] sm:$0xff]
        %v2673 = vld [vmem:[%s328 + $0x1a7] sm:$0xff]
        %v2674 = vld [vmem:[%s328 + $0x1af] sm:$0xff]
        %v2675 = vld [vmem:[%s328 + $0x1c7] sm:$0xff]
        %v2676 = vld [vmem:[%s328 + $0x1cf] sm:$0xff]
        %v2677 = vld [vmem:[%s328 + $0x1e7] sm:$0xff]
        %v2678 = vld [vmem:[%s328 + $0x1ef] sm:$0xff]
        %2679 = vst [vmem:[#allocation3 + $0x18] sm:$0xff] %v2647
        %2680 = vst [vmem:[#allocation3 + $0x60] sm:$0xff] %v2648
        %2681 = vst [vmem:[#allocation3 + $0xa8] sm:$0xff] %v2649
        %2682 = vst [vmem:[#allocation3 + $0xf0] sm:$0xff] %v2650
        %2683 = vst [vmem:[#allocation3 + $0x138] sm:$0xff] %v2651
        %2684 = vst [vmem:[#allocation3 + $0x180] sm:$0xff] %v2652
        %2685 = vst [vmem:[#allocation3 + $0x1c8] sm:$0xff] %v2653
        %2686 = vst [vmem:[#allocation3 + $0x210] sm:$0xff] %v2654
        %2687 = vst [vmem:[#allocation3 + $0x258] sm:$0xff] %v2655
        %2688 = vst [vmem:[#allocation3 + $0x2a0] sm:$0xff] %v2656
        %2689 = vst [vmem:[#allocation3 + $0x2e8] sm:$0xff] %v2657
        %2690 = vst [vmem:[#allocation3 + $0x330] sm:$0xff] %v2658
        %2691 = vst [vmem:[#allocation3 + $0x378] sm:$0xff] %v2659
        %2692 = vst [vmem:[#allocation3 + $0x3c0] sm:$0xff] %v2660
        %2693 = vst [vmem:[#allocation3 + $0x408] sm:$0xff] %v2661
        %2694 = vst [vmem:[#allocation3 + $0x450] sm:$0xff] %v2662
        %2695 = vst [vmem:[#allocation3 + $0x498] sm:$0xff] %v2663
        %2696 = vst [vmem:[#allocation3 + $0x4e0] sm:$0xff] %v2664
        %2697 = vst [vmem:[#allocation3 + $0x528] sm:$0xff] %v2665
        %2698 = vst [vmem:[#allocation3 + $0x570] sm:$0xff] %v2666
        %2699 = vst [vmem:[#allocation3 + $0x5b8] sm:$0xff] %v2667
        %2700 = vst [vmem:[#allocation3 + $0x600] sm:$0xff] %v2668
        %2701 = vst [vmem:[#allocation3 + $0x648] sm:$0xff] %v2669
        %2702 = vst [vmem:[#allocation3 + $0x690] sm:$0xff] %v2670
        %2703 = vst [vmem:[#allocation3 + $0x6d8] sm:$0xff] %v2671
        %2704 = vst [vmem:[#allocation3 + $0x720] sm:$0xff] %v2672
        %2705 = vst [vmem:[#allocation3 + $0x768] sm:$0xff] %v2673
        %2706 = vst [vmem:[#allocation3 + $0x7b0] sm:$0xff] %v2674
        %2707 = vst [vmem:[#allocation3 + $0x7f8] sm:$0xff] %v2675
        %2708 = vst [vmem:[#allocation3 + $0x840] sm:$0xff] %v2676
        %2709 = vst [vmem:[#allocation3 + $0x888] sm:$0xff] %v2677
        %2710 = vst [vmem:[#allocation3 + $0x8d0] sm:$0xff] %v2678
        %v2711 = vld [vmem:[%s328 + $0x8] sm:$0xff]
        %v2712 = vld [vmem:[%s328 + $0x10] sm:$0xff]
        %v2713 = vld [vmem:[%s328 + $0x28] sm:$0xff]
        %v2714 = vld [vmem:[%s328 + $0x30] sm:$0xff]
        %v2715 = vld [vmem:[%s328 + $0x48] sm:$0xff]
        %v2716 = vld [vmem:[%s328 + $0x50] sm:$0xff]
        %v2717 = vld [vmem:[%s328 + $0x68] sm:$0xff]
        %v2718 = vld [vmem:[%s328 + $0x70] sm:$0xff]
        %v2719 = vld [vmem:[%s328 + $0x88] sm:$0xff]
        %v2720 = vld [vmem:[%s328 + $0x90] sm:$0xff]
        %v2721 = vld [vmem:[%s328 + $0xa8] sm:$0xff]
        %v2722 = vld [vmem:[%s328 + $0xb0] sm:$0xff]
        %v2723 = vld [vmem:[%s328 + $0xc8] sm:$0xff]
        %v2724 = vld [vmem:[%s328 + $0xd0] sm:$0xff]
        %v2725 = vld [vmem:[%s328 + $0xe8] sm:$0xff]
        %v2726 = vld [vmem:[%s328 + $0xf0] sm:$0xff]
        %v2727 = vld [vmem:[%s328 + $0x108] sm:$0xff]
        %v2728 = vld [vmem:[%s328 + $0x110] sm:$0xff]
        %v2729 = vld [vmem:[%s328 + $0x128] sm:$0xff]
        %v2730 = vld [vmem:[%s328 + $0x130] sm:$0xff]
        %v2731 = vld [vmem:[%s328 + $0x148] sm:$0xff]
        %v2732 = vld [vmem:[%s328 + $0x150] sm:$0xff]
        %v2733 = vld [vmem:[%s328 + $0x168] sm:$0xff]
        %v2734 = vld [vmem:[%s328 + $0x170] sm:$0xff]
        %v2735 = vld [vmem:[%s328 + $0x188] sm:$0xff]
        %v2736 = vld [vmem:[%s328 + $0x190] sm:$0xff]
        %v2737 = vld [vmem:[%s328 + $0x1a8] sm:$0xff]
        %v2738 = vld [vmem:[%s328 + $0x1b0] sm:$0xff]
        %v2739 = vld [vmem:[%s328 + $0x1c8] sm:$0xff]
        %v2740 = vld [vmem:[%s328 + $0x1d0] sm:$0xff]
        %v2741 = vld [vmem:[%s328 + $0x1e8] sm:$0xff]
        %v2742 = vld [vmem:[%s328 + $0x1f0] sm:$0xff]
        %2743 = vst [vmem:[#allocation3 + $0x20] sm:$0xff] %v2711
        %2744 = vst [vmem:[#allocation3 + $0x68] sm:$0xff] %v2712
        %2745 = vst [vmem:[#allocation3 + $0xb0] sm:$0xff] %v2713
        %2746 = vst [vmem:[#allocation3 + $0xf8] sm:$0xff] %v2714
        %2747 = vst [vmem:[#allocation3 + $0x140] sm:$0xff] %v2715
        %2748 = vst [vmem:[#allocation3 + $0x188] sm:$0xff] %v2716
        %2749 = vst [vmem:[#allocation3 + $0x1d0] sm:$0xff] %v2717
        %2750 = vst [vmem:[#allocation3 + $0x218] sm:$0xff] %v2718
        %2751 = vst [vmem:[#allocation3 + $0x260] sm:$0xff] %v2719
        %2752 = vst [vmem:[#allocation3 + $0x2a8] sm:$0xff] %v2720
        %2753 = vst [vmem:[#allocation3 + $0x2f0] sm:$0xff] %v2721
        %2754 = vst [vmem:[#allocation3 + $0x338] sm:$0xff] %v2722
        %2755 = vst [vmem:[#allocation3 + $0x380] sm:$0xff] %v2723
        %2756 = vst [vmem:[#allocation3 + $0x3c8] sm:$0xff] %v2724
        %2757 = vst [vmem:[#allocation3 + $0x410] sm:$0xff] %v2725
        %2758 = vst [vmem:[#allocation3 + $0x458] sm:$0xff] %v2726
        %2759 = vst [vmem:[#allocation3 + $0x4a0] sm:$0xff] %v2727
        %2760 = vst [vmem:[#allocation3 + $0x4e8] sm:$0xff] %v2728
        %2761 = vst [vmem:[#allocation3 + $0x530] sm:$0xff] %v2729
        %2762 = vst [vmem:[#allocation3 + $0x578] sm:$0xff] %v2730
        %2763 = vst [vmem:[#allocation3 + $0x5c0] sm:$0xff] %v2731
        %2764 = vst [vmem:[#allocation3 + $0x608] sm:$0xff] %v2732
        %2765 = vst [vmem:[#allocation3 + $0x650] sm:$0xff] %v2733
        %2766 = vst [vmem:[#allocation3 + $0x698] sm:$0xff] %v2734
        %2767 = vst [vmem:[#allocation3 + $0x6e0] sm:$0xff] %v2735
        %2768 = vst [vmem:[#allocation3 + $0x728] sm:$0xff] %v2736
        %2769 = vst [vmem:[#allocation3 + $0x770] sm:$0xff] %v2737
        %2770 = vst [vmem:[#allocation3 + $0x7b8] sm:$0xff] %v2738
        %2771 = vst [vmem:[#allocation3 + $0x800] sm:$0xff] %v2739
        %2772 = vst [vmem:[#allocation3 + $0x848] sm:$0xff] %v2740
        %2773 = vst [vmem:[#allocation3 + $0x890] sm:$0xff] %v2741
        %2774 = vst [vmem:[#allocation3 + $0x8d8] sm:$0xff] %v2742
        %v2775 = vld [vmem:[%s328 + $0x9] sm:$0xff]
        %v2776 = vld [vmem:[%s328 + $0x11] sm:$0xff]
        %v2777 = vld [vmem:[%s328 + $0x29] sm:$0xff]
        %v2778 = vld [vmem:[%s328 + $0x31] sm:$0xff]
        %v2779 = vld [vmem:[%s328 + $0x49] sm:$0xff]
        %v2780 = vld [vmem:[%s328 + $0x51] sm:$0xff]
        %v2781 = vld [vmem:[%s328 + $0x69] sm:$0xff]
        %v2782 = vld [vmem:[%s328 + $0x71] sm:$0xff]
        %v2783 = vld [vmem:[%s328 + $0x89] sm:$0xff]
        %v2784 = vld [vmem:[%s328 + $0x91] sm:$0xff]
        %v2785 = vld [vmem:[%s328 + $0xa9] sm:$0xff]
        %v2786 = vld [vmem:[%s328 + $0xb1] sm:$0xff]
        %v2787 = vld [vmem:[%s328 + $0xc9] sm:$0xff]
        %v2788 = vld [vmem:[%s328 + $0xd1] sm:$0xff]
        %v2789 = vld [vmem:[%s328 + $0xe9] sm:$0xff]
        %v2790 = vld [vmem:[%s328 + $0xf1] sm:$0xff]
        %v2791 = vld [vmem:[%s328 + $0x109] sm:$0xff]
        %v2792 = vld [vmem:[%s328 + $0x111] sm:$0xff]
        %v2793 = vld [vmem:[%s328 + $0x129] sm:$0xff]
        %v2794 = vld [vmem:[%s328 + $0x131] sm:$0xff]
        %v2795 = vld [vmem:[%s328 + $0x149] sm:$0xff]
        %v2796 = vld [vmem:[%s328 + $0x151] sm:$0xff]
        %v2797 = vld [vmem:[%s328 + $0x169] sm:$0xff]
        %v2798 = vld [vmem:[%s328 + $0x171] sm:$0xff]
        %v2799 = vld [vmem:[%s328 + $0x189] sm:$0xff]
        %v2800 = vld [vmem:[%s328 + $0x191] sm:$0xff]
        %v2801 = vld [vmem:[%s328 + $0x1a9] sm:$0xff]
        %v2802 = vld [vmem:[%s328 + $0x1b1] sm:$0xff]
        %v2803 = vld [vmem:[%s328 + $0x1c9] sm:$0xff]
        %v2804 = vld [vmem:[%s328 + $0x1d1] sm:$0xff]
        %v2805 = vld [vmem:[%s328 + $0x1e9] sm:$0xff]
        %v2806 = vld [vmem:[%s328 + $0x1f1] sm:$0xff]
        %2807 = vst [vmem:[#allocation3 + $0x28] sm:$0xff] %v2775
        %2808 = vst [vmem:[#allocation3 + $0x70] sm:$0xff] %v2776
        %2809 = vst [vmem:[#allocation3 + $0xb8] sm:$0xff] %v2777
        %2810 = vst [vmem:[#allocation3 + $0x100] sm:$0xff] %v2778
        %2811 = vst [vmem:[#allocation3 + $0x148] sm:$0xff] %v2779
        %2812 = vst [vmem:[#allocation3 + $0x190] sm:$0xff] %v2780
        %2813 = vst [vmem:[#allocation3 + $0x1d8] sm:$0xff] %v2781
        %2814 = vst [vmem:[#allocation3 + $0x220] sm:$0xff] %v2782
        %2815 = vst [vmem:[#allocation3 + $0x268] sm:$0xff] %v2783
        %2816 = vst [vmem:[#allocation3 + $0x2b0] sm:$0xff] %v2784
        %2817 = vst [vmem:[#allocation3 + $0x2f8] sm:$0xff] %v2785
        %2818 = vst [vmem:[#allocation3 + $0x340] sm:$0xff] %v2786
        %2819 = vst [vmem:[#allocation3 + $0x388] sm:$0xff] %v2787
        %2820 = vst [vmem:[#allocation3 + $0x3d0] sm:$0xff] %v2788
        %2821 = vst [vmem:[#allocation3 + $0x418] sm:$0xff] %v2789
        %2822 = vst [vmem:[#allocation3 + $0x460] sm:$0xff] %v2790
        %2823 = vst [vmem:[#allocation3 + $0x4a8] sm:$0xff] %v2791
        %2824 = vst [vmem:[#allocation3 + $0x4f0] sm:$0xff] %v2792
        %2825 = vst [vmem:[#allocation3 + $0x538] sm:$0xff] %v2793
        %2826 = vst [vmem:[#allocation3 + $0x580] sm:$0xff] %v2794
        %2827 = vst [vmem:[#allocation3 + $0x5c8] sm:$0xff] %v2795
        %2828 = vst [vmem:[#allocation3 + $0x610] sm:$0xff] %v2796
        %2829 = vst [vmem:[#allocation3 + $0x658] sm:$0xff] %v2797
        %2830 = vst [vmem:[#allocation3 + $0x6a0] sm:$0xff] %v2798
        %2831 = vst [vmem:[#allocation3 + $0x6e8] sm:$0xff] %v2799
        %2832 = vst [vmem:[#allocation3 + $0x730] sm:$0xff] %v2800
        %2833 = vst [vmem:[#allocation3 + $0x778] sm:$0xff] %v2801
        %2834 = vst [vmem:[#allocation3 + $0x7c0] sm:$0xff] %v2802
        %2835 = vst [vmem:[#allocation3 + $0x808] sm:$0xff] %v2803
        %2836 = vst [vmem:[#allocation3 + $0x850] sm:$0xff] %v2804
        %2837 = vst [vmem:[#allocation3 + $0x898] sm:$0xff] %v2805
        %2838 = vst [vmem:[#allocation3 + $0x8e0] sm:$0xff] %v2806
        %v2839 = vld [vmem:[%s745 + $0x7] sm:$0xff]
        %v2840 = vld [vmem:[%s745 + $0xf] sm:$0xff]
        %v2841 = vld [vmem:[%s745 + $0x27] sm:$0xff]
        %v2842 = vld [vmem:[%s745 + $0x2f] sm:$0xff]
        %v2843 = vld [vmem:[%s745 + $0x47] sm:$0xff]
        %v2844 = vld [vmem:[%s745 + $0x4f] sm:$0xff]
        %v2845 = vld [vmem:[%s745 + $0x67] sm:$0xff]
        %v2846 = vld [vmem:[%s745 + $0x6f] sm:$0xff]
        %v2847 = vld [vmem:[%s745 + $0x87] sm:$0xff]
        %v2848 = vld [vmem:[%s745 + $0x8f] sm:$0xff]
        %v2849 = vld [vmem:[%s745 + $0xa7] sm:$0xff]
        %v2850 = vld [vmem:[%s745 + $0xaf] sm:$0xff]
        %v2851 = vld [vmem:[%s745 + $0xc7] sm:$0xff]
        %v2852 = vld [vmem:[%s745 + $0xcf] sm:$0xff]
        %v2853 = vld [vmem:[%s745 + $0xe7] sm:$0xff]
        %v2854 = vld [vmem:[%s745 + $0xef] sm:$0xff]
        %v2855 = vld [vmem:[%s745 + $0x107] sm:$0xff]
        %v2856 = vld [vmem:[%s745 + $0x10f] sm:$0xff]
        %v2857 = vld [vmem:[%s745 + $0x127] sm:$0xff]
        %v2858 = vld [vmem:[%s745 + $0x12f] sm:$0xff]
        %v2859 = vld [vmem:[%s745 + $0x147] sm:$0xff]
        %v2860 = vld [vmem:[%s745 + $0x14f] sm:$0xff]
        %v2861 = vld [vmem:[%s745 + $0x167] sm:$0xff]
        %v2862 = vld [vmem:[%s745 + $0x16f] sm:$0xff]
        %v2863 = vld [vmem:[%s745 + $0x187] sm:$0xff]
        %v2864 = vld [vmem:[%s745 + $0x18f] sm:$0xff]
        %v2865 = vld [vmem:[%s745 + $0x1a7] sm:$0xff]
        %v2866 = vld [vmem:[%s745 + $0x1af] sm:$0xff]
        %v2867 = vld [vmem:[%s745 + $0x1c7] sm:$0xff]
        %v2868 = vld [vmem:[%s745 + $0x1cf] sm:$0xff]
        %v2869 = vld [vmem:[%s745 + $0x1e7] sm:$0xff]
        %v2870 = vld [vmem:[%s745 + $0x1ef] sm:$0xff]
        %2871 = vst [vmem:[#allocation3 + $0x30] sm:$0xff] %v2839
        %2872 = vst [vmem:[#allocation3 + $0x78] sm:$0xff] %v2840
        %2873 = vst [vmem:[#allocation3 + $0xc0] sm:$0xff] %v2841
        %2874 = vst [vmem:[#allocation3 + $0x108] sm:$0xff] %v2842
        %2875 = vst [vmem:[#allocation3 + $0x150] sm:$0xff] %v2843
        %2876 = vst [vmem:[#allocation3 + $0x198] sm:$0xff] %v2844
        %2877 = vst [vmem:[#allocation3 + $0x1e0] sm:$0xff] %v2845
        %2878 = vst [vmem:[#allocation3 + $0x228] sm:$0xff] %v2846
        %2879 = vst [vmem:[#allocation3 + $0x270] sm:$0xff] %v2847
        %2880 = vst [vmem:[#allocation3 + $0x2b8] sm:$0xff] %v2848
        %2881 = vst [vmem:[#allocation3 + $0x300] sm:$0xff] %v2849
        %2882 = vst [vmem:[#allocation3 + $0x348] sm:$0xff] %v2850
        %2883 = vst [vmem:[#allocation3 + $0x390] sm:$0xff] %v2851
        %2884 = vst [vmem:[#allocation3 + $0x3d8] sm:$0xff] %v2852
        %2885 = vst [vmem:[#allocation3 + $0x420] sm:$0xff] %v2853
        %2886 = vst [vmem:[#allocation3 + $0x468] sm:$0xff] %v2854
        %2887 = vst [vmem:[#allocation3 + $0x4b0] sm:$0xff] %v2855
        %2888 = vst [vmem:[#allocation3 + $0x4f8] sm:$0xff] %v2856
        %2889 = vst [vmem:[#allocation3 + $0x540] sm:$0xff] %v2857
        %2890 = vst [vmem:[#allocation3 + $0x588] sm:$0xff] %v2858
        %2891 = vst [vmem:[#allocation3 + $0x5d0] sm:$0xff] %v2859
        %2892 = vst [vmem:[#allocation3 + $0x618] sm:$0xff] %v2860
        %2893 = vst [vmem:[#allocation3 + $0x660] sm:$0xff] %v2861
        %2894 = vst [vmem:[#allocation3 + $0x6a8] sm:$0xff] %v2862
        %2895 = vst [vmem:[#allocation3 + $0x6f0] sm:$0xff] %v2863
        %2896 = vst [vmem:[#allocation3 + $0x738] sm:$0xff] %v2864
        %2897 = vst [vmem:[#allocation3 + $0x780] sm:$0xff] %v2865
        %2898 = vst [vmem:[#allocation3 + $0x7c8] sm:$0xff] %v2866
        %2899 = vst [vmem:[#allocation3 + $0x810] sm:$0xff] %v2867
        %2900 = vst [vmem:[#allocation3 + $0x858] sm:$0xff] %v2868
        %2901 = vst [vmem:[#allocation3 + $0x8a0] sm:$0xff] %v2869
        %2902 = vst [vmem:[#allocation3 + $0x8e8] sm:$0xff] %v2870
        %v2903 = vld [vmem:[%s745 + $0x8] sm:$0xff]
        %v2904 = vld [vmem:[%s745 + $0x10] sm:$0xff]
        %v2905 = vld [vmem:[%s745 + $0x28] sm:$0xff]
        %v2906 = vld [vmem:[%s745 + $0x30] sm:$0xff]
        %v2907 = vld [vmem:[%s745 + $0x48] sm:$0xff]
        %v2908 = vld [vmem:[%s745 + $0x50] sm:$0xff]
        %v2909 = vld [vmem:[%s745 + $0x68] sm:$0xff]
        %v2910 = vld [vmem:[%s745 + $0x70] sm:$0xff]
        %v2911 = vld [vmem:[%s745 + $0x88] sm:$0xff]
        %v2912 = vld [vmem:[%s745 + $0x90] sm:$0xff]
        %v2913 = vld [vmem:[%s745 + $0xa8] sm:$0xff]
        %v2914 = vld [vmem:[%s745 + $0xb0] sm:$0xff]
        %v2915 = vld [vmem:[%s745 + $0xc8] sm:$0xff]
        %v2916 = vld [vmem:[%s745 + $0xd0] sm:$0xff]
        %v2917 = vld [vmem:[%s745 + $0xe8] sm:$0xff]
        %v2918 = vld [vmem:[%s745 + $0xf0] sm:$0xff]
        %v2919 = vld [vmem:[%s745 + $0x108] sm:$0xff]
        %v2920 = vld [vmem:[%s745 + $0x110] sm:$0xff]
        %v2921 = vld [vmem:[%s745 + $0x128] sm:$0xff]
        %v2922 = vld [vmem:[%s745 + $0x130] sm:$0xff]
        %v2923 = vld [vmem:[%s745 + $0x148] sm:$0xff]
        %v2924 = vld [vmem:[%s745 + $0x150] sm:$0xff]
        %v2925 = vld [vmem:[%s745 + $0x168] sm:$0xff]
        %v2926 = vld [vmem:[%s745 + $0x170] sm:$0xff]
        %v2927 = vld [vmem:[%s745 + $0x188] sm:$0xff]
        %v2928 = vld [vmem:[%s745 + $0x190] sm:$0xff]
        %v2929 = vld [vmem:[%s745 + $0x1a8] sm:$0xff]
        %v2930 = vld [vmem:[%s745 + $0x1b0] sm:$0xff]
        %v2931 = vld [vmem:[%s745 + $0x1c8] sm:$0xff]
        %v2932 = vld [vmem:[%s745 + $0x1d0] sm:$0xff]
        %v2933 = vld [vmem:[%s745 + $0x1e8] sm:$0xff]
        %v2934 = vld [vmem:[%s745 + $0x1f0] sm:$0xff]
        %2935 = vst [vmem:[#allocation3 + $0x38] sm:$0xff] %v2903
        %2936 = vst [vmem:[#allocation3 + $0x80] sm:$0xff] %v2904
        %2937 = vst [vmem:[#allocation3 + $0xc8] sm:$0xff] %v2905
        %2938 = vst [vmem:[#allocation3 + $0x110] sm:$0xff] %v2906
        %2939 = vst [vmem:[#allocation3 + $0x158] sm:$0xff] %v2907
        %2940 = vst [vmem:[#allocation3 + $0x1a0] sm:$0xff] %v2908
        %2941 = vst [vmem:[#allocation3 + $0x1e8] sm:$0xff] %v2909
        %2942 = vst [vmem:[#allocation3 + $0x230] sm:$0xff] %v2910
        %2943 = vst [vmem:[#allocation3 + $0x278] sm:$0xff] %v2911
        %2944 = vst [vmem:[#allocation3 + $0x2c0] sm:$0xff] %v2912
        %2945 = vst [vmem:[#allocation3 + $0x308] sm:$0xff] %v2913
        %2946 = vst [vmem:[#allocation3 + $0x350] sm:$0xff] %v2914
        %2947 = vst [vmem:[#allocation3 + $0x398] sm:$0xff] %v2915
        %2948 = vst [vmem:[#allocation3 + $0x3e0] sm:$0xff] %v2916
        %2949 = vst [vmem:[#allocation3 + $0x428] sm:$0xff] %v2917
        %2950 = vst [vmem:[#allocation3 + $0x470] sm:$0xff] %v2918
        %2951 = vst [vmem:[#allocation3 + $0x4b8] sm:$0xff] %v2919
        %2952 = vst [vmem:[#allocation3 + $0x500] sm:$0xff] %v2920
        %2953 = vst [vmem:[#allocation3 + $0x548] sm:$0xff] %v2921
        %2954 = vst [vmem:[#allocation3 + $0x590] sm:$0xff] %v2922
        %2955 = vst [vmem:[#allocation3 + $0x5d8] sm:$0xff] %v2923
        %2956 = vst [vmem:[#allocation3 + $0x620] sm:$0xff] %v2924
        %2957 = vst [vmem:[#allocation3 + $0x668] sm:$0xff] %v2925
        %2958 = vst [vmem:[#allocation3 + $0x6b0] sm:$0xff] %v2926
        %2959 = vst [vmem:[#allocation3 + $0x6f8] sm:$0xff] %v2927
        %2960 = vst [vmem:[#allocation3 + $0x740] sm:$0xff] %v2928
        %2961 = vst [vmem:[#allocation3 + $0x788] sm:$0xff] %v2929
        %2962 = vst [vmem:[#allocation3 + $0x7d0] sm:$0xff] %v2930
        %2963 = vst [vmem:[#allocation3 + $0x818] sm:$0xff] %v2931
        %2964 = vst [vmem:[#allocation3 + $0x860] sm:$0xff] %v2932
        %2965 = vst [vmem:[#allocation3 + $0x8a8] sm:$0xff] %v2933
        %2966 = vst [vmem:[#allocation3 + $0x8f0] sm:$0xff] %v2934
        %v2967 = vld [vmem:[%s745 + $0x9] sm:$0xff]
        %v2968 = vld [vmem:[%s745 + $0x11] sm:$0xff]
        %v2969 = vld [vmem:[%s745 + $0x29] sm:$0xff]
        %v2970 = vld [vmem:[%s745 + $0x31] sm:$0xff]
        %v2971 = vld [vmem:[%s745 + $0x49] sm:$0xff]
        %v2972 = vld [vmem:[%s745 + $0x51] sm:$0xff]
        %v2973 = vld [vmem:[%s745 + $0x69] sm:$0xff]
        %v2974 = vld [vmem:[%s745 + $0x71] sm:$0xff]
        %v2975 = vld [vmem:[%s745 + $0x89] sm:$0xff]
        %v2976 = vld [vmem:[%s745 + $0x91] sm:$0xff]
        %v2977 = vld [vmem:[%s745 + $0xa9] sm:$0xff]
        %v2978 = vld [vmem:[%s745 + $0xb1] sm:$0xff]
        %v2979 = vld [vmem:[%s745 + $0xc9] sm:$0xff]
        %v2980 = vld [vmem:[%s745 + $0xd1] sm:$0xff]
        %v2981 = vld [vmem:[%s745 + $0xe9] sm:$0xff]
        %v2982 = vld [vmem:[%s745 + $0xf1] sm:$0xff]
        %v2983 = vld [vmem:[%s745 + $0x109] sm:$0xff]
        %v2984 = vld [vmem:[%s745 + $0x111] sm:$0xff]
        %v2985 = vld [vmem:[%s745 + $0x129] sm:$0xff]
        %v2986 = vld [vmem:[%s745 + $0x131] sm:$0xff]
        %v2987 = vld [vmem:[%s745 + $0x149] sm:$0xff]
        %v2988 = vld [vmem:[%s745 + $0x151] sm:$0xff]
        %v2989 = vld [vmem:[%s745 + $0x169] sm:$0xff]
        %v2990 = vld [vmem:[%s745 + $0x171] sm:$0xff]
        %v2991 = vld [vmem:[%s745 + $0x189] sm:$0xff]
        %v2992 = vld [vmem:[%s745 + $0x191] sm:$0xff]
        %v2993 = vld [vmem:[%s745 + $0x1a9] sm:$0xff]
        %v2994 = vld [vmem:[%s745 + $0x1b1] sm:$0xff]
        %v2995 = vld [vmem:[%s745 + $0x1c9] sm:$0xff]
        %v2996 = vld [vmem:[%s745 + $0x1d1] sm:$0xff]
        %v2997 = vld [vmem:[%s745 + $0x1e9] sm:$0xff]
        %v2998 = vld [vmem:[%s745 + $0x1f1] sm:$0xff]
        %2999 = vst [vmem:[#allocation3 + $0x40] sm:$0xff] %v2967
        %3000 = vst [vmem:[#allocation3 + $0x88] sm:$0xff] %v2968
        %3001 = vst [vmem:[#allocation3 + $0xd0] sm:$0xff] %v2969
        %3002 = vst [vmem:[#allocation3 + $0x118] sm:$0xff] %v2970
        %3003 = vst [vmem:[#allocation3 + $0x160] sm:$0xff] %v2971
        %3004 = vst [vmem:[#allocation3 + $0x1a8] sm:$0xff] %v2972
        %3005 = vst [vmem:[#allocation3 + $0x1f0] sm:$0xff] %v2973
        %3006 = vst [vmem:[#allocation3 + $0x238] sm:$0xff] %v2974
        %3007 = vst [vmem:[#allocation3 + $0x280] sm:$0xff] %v2975
        %3008 = vst [vmem:[#allocation3 + $0x2c8] sm:$0xff] %v2976
        %3009 = vst [vmem:[#allocation3 + $0x310] sm:$0xff] %v2977
        %3010 = vst [vmem:[#allocation3 + $0x358] sm:$0xff] %v2978
        %3011 = vst [vmem:[#allocation3 + $0x3a0] sm:$0xff] %v2979
        %3012 = vst [vmem:[#allocation3 + $0x3e8] sm:$0xff] %v2980
        %3013 = vst [vmem:[#allocation3 + $0x430] sm:$0xff] %v2981
        %3014 = vst [vmem:[#allocation3 + $0x478] sm:$0xff] %v2982
        %3015 = vst [vmem:[#allocation3 + $0x4c0] sm:$0xff] %v2983
        %3016 = vst [vmem:[#allocation3 + $0x508] sm:$0xff] %v2984
        %3017 = vst [vmem:[#allocation3 + $0x550] sm:$0xff] %v2985
        %3018 = vst [vmem:[#allocation3 + $0x598] sm:$0xff] %v2986
        %3019 = vst [vmem:[#allocation3 + $0x5e0] sm:$0xff] %v2987
        %3020 = vst [vmem:[#allocation3 + $0x628] sm:$0xff] %v2988
        %3021 = vst [vmem:[#allocation3 + $0x670] sm:$0xff] %v2989
        %3022 = vst [vmem:[#allocation3 + $0x6b8] sm:$0xff] %v2990
        %3023 = vst [vmem:[#allocation3 + $0x700] sm:$0xff] %v2991
        %3024 = vst [vmem:[#allocation3 + $0x748] sm:$0xff] %v2992
        %3025 = vst [vmem:[#allocation3 + $0x790] sm:$0xff] %v2993
        %3026 = vst [vmem:[#allocation3 + $0x7d8] sm:$0xff] %v2994
        %3027 = vst [vmem:[#allocation3 + $0x820] sm:$0xff] %v2995
        %3028 = vst [vmem:[#allocation3 + $0x868] sm:$0xff] %v2996
        %3029 = vst [vmem:[#allocation3 + $0x8b0] sm:$0xff] %v2997
        %3030 = vst [vmem:[#allocation3 + $0x8f8] sm:$0xff] %v2998
        %v3031 = vld [vmem:[#allocation3] sm:$0xff]
        %v3032 = vld [vmem:[#allocation3 + $0x8] sm:$0xff]
        %v3033 = vld [vmem:[#allocation3 + $0x10] sm:$0xff]
        %v3034 = vld [vmem:[#allocation3 + $0x18] sm:$0xff]
        %v3035 = vld [vmem:[#allocation3 + $0x20] sm:$0xff]
        %v3036 = vld [vmem:[#allocation3 + $0x28] sm:$0xff]
        %v3037 = vld [vmem:[#allocation3 + $0x30] sm:$0xff]
        %v3038 = vld [vmem:[#allocation3 + $0x38] sm:$0xff]
        %v3039 = vld [vmem:[#allocation3 + $0x40] sm:$0xff]
        %v3040 = vld [vmem:[#allocation3 + $0x48] sm:$0xff]
        %v3041 = vld [vmem:[#allocation3 + $0x50] sm:$0xff]
        %v3042 = vld [vmem:[#allocation3 + $0x58] sm:$0xff]
        %v3043 = vld [vmem:[#allocation3 + $0x60] sm:$0xff]
        %v3044 = vld [vmem:[#allocation3 + $0x68] sm:$0xff]
        %v3045 = vld [vmem:[#allocation3 + $0x70] sm:$0xff]
        %v3046 = vld [vmem:[#allocation3 + $0x78] sm:$0xff]
        %v3047 = vld [vmem:[#allocation3 + $0x80] sm:$0xff]
        %v3048 = vld [vmem:[#allocation3 + $0x88] sm:$0xff]
        %v3049 = vld [vmem:[#allocation3 + $0x90] sm:$0xff]
        %v3050 = vld [vmem:[#allocation3 + $0x98] sm:$0xff]
        %v3051 = vld [vmem:[#allocation3 + $0xa0] sm:$0xff]
        %v3052 = vld [vmem:[#allocation3 + $0xa8] sm:$0xff]
        %v3053 = vld [vmem:[#allocation3 + $0xb0] sm:$0xff]
        %v3054 = vld [vmem:[#allocation3 + $0xb8] sm:$0xff]
        %v3055 = vld [vmem:[#allocation3 + $0xc0] sm:$0xff]
        %v3056 = vld [vmem:[#allocation3 + $0xc8] sm:$0xff]
        %v3057 = vld [vmem:[#allocation3 + $0xd0] sm:$0xff]
        %v3058 = vld [vmem:[#allocation3 + $0xd8] sm:$0xff]
        %v3059 = vld [vmem:[#allocation3 + $0xe0] sm:$0xff]
        %v3060 = vld [vmem:[#allocation3 + $0xe8] sm:$0xff]
        %v3061 = vld [vmem:[#allocation3 + $0xf0] sm:$0xff]
        %v3062 = vld [vmem:[#allocation3 + $0xf8] sm:$0xff]
        %v3063 = vld [vmem:[#allocation3 + $0x100] sm:$0xff]
        %v3064 = vld [vmem:[#allocation3 + $0x108] sm:$0xff]
        %v3065 = vld [vmem:[#allocation3 + $0x110] sm:$0xff]
        %v3066 = vld [vmem:[#allocation3 + $0x118] sm:$0xff]
        %v3067 = vld [vmem:[#allocation3 + $0x120] sm:$0xff]
        %v3068 = vld [vmem:[#allocation3 + $0x128] sm:$0xff]
        %v3069 = vld [vmem:[#allocation3 + $0x130] sm:$0xff]
        %v3070 = vld [vmem:[#allocation3 + $0x138] sm:$0xff]
        %v3071 = vld [vmem:[#allocation3 + $0x140] sm:$0xff]
        %v3072 = vld [vmem:[#allocation3 + $0x148] sm:$0xff]
        %v3073 = vld [vmem:[#allocation3 + $0x150] sm:$0xff]
        %v3074 = vld [vmem:[#allocation3 + $0x158] sm:$0xff]
        %v3075 = vld [vmem:[#allocation3 + $0x160] sm:$0xff]
        %v3076 = vld [vmem:[#allocation3 + $0x168] sm:$0xff]
        %v3077 = vld [vmem:[#allocation3 + $0x170] sm:$0xff]
        %v3078 = vld [vmem:[#allocation3 + $0x178] sm:$0xff]
        %v3079 = vld [vmem:[#allocation3 + $0x180] sm:$0xff]
        %v3080 = vld [vmem:[#allocation3 + $0x188] sm:$0xff]
        %v3081 = vld [vmem:[#allocation3 + $0x190] sm:$0xff]
        %v3082 = vld [vmem:[#allocation3 + $0x198] sm:$0xff]
        %v3083 = vld [vmem:[#allocation3 + $0x1a0] sm:$0xff]
        %v3084 = vld [vmem:[#allocation3 + $0x1a8] sm:$0xff]
        %v3085 = vld [vmem:[#allocation3 + $0x1b0] sm:$0xff]
        %v3086 = vld [vmem:[#allocation3 + $0x1b8] sm:$0xff]
        %v3087 = vld [vmem:[#allocation3 + $0x1c0] sm:$0xff]
        %v3088 = vld [vmem:[#allocation3 + $0x1c8] sm:$0xff]
        %v3089 = vld [vmem:[#allocation3 + $0x1d0] sm:$0xff]
        %v3090 = vld [vmem:[#allocation3 + $0x1d8] sm:$0xff]
        %v3091 = vld [vmem:[#allocation3 + $0x1e0] sm:$0xff]
        %v3092 = vld [vmem:[#allocation3 + $0x1e8] sm:$0xff]
        %v3093 = vld [vmem:[#allocation3 + $0x1f0] sm:$0xff]
        %v3094 = vld [vmem:[#allocation3 + $0x1f8] sm:$0xff]
        %v3095 = vld [vmem:[#allocation3 + $0x200] sm:$0xff]
        %v3096 = vld [vmem:[#allocation3 + $0x208] sm:$0xff]
        %v3097 = vld [vmem:[#allocation3 + $0x210] sm:$0xff]
        %v3098 = vld [vmem:[#allocation3 + $0x218] sm:$0xff]
        %v3099 = vld [vmem:[#allocation3 + $0x220] sm:$0xff]
        %v3100 = vld [vmem:[#allocation3 + $0x228] sm:$0xff]
        %v3101 = vld [vmem:[#allocation3 + $0x230] sm:$0xff]
        %v3102 = vld [vmem:[#allocation3 + $0x238] sm:$0xff]
        %v3103 = vld [vmem:[#allocation3 + $0x240] sm:$0xff]
        %v3104 = vld [vmem:[#allocation3 + $0x248] sm:$0xff]
        %v3105 = vld [vmem:[#allocation3 + $0x250] sm:$0xff]
        %v3106 = vld [vmem:[#allocation3 + $0x258] sm:$0xff]
        %v3107 = vld [vmem:[#allocation3 + $0x260] sm:$0xff]
        %v3108 = vld [vmem:[#allocation3 + $0x268] sm:$0xff]
        %v3109 = vld [vmem:[#allocation3 + $0x270] sm:$0xff]
        %v3110 = vld [vmem:[#allocation3 + $0x278] sm:$0xff]
        %v3111 = vld [vmem:[#allocation3 + $0x280] sm:$0xff]
        %v3112 = vld [vmem:[#allocation3 + $0x288] sm:$0xff]
        %v3113 = vld [vmem:[#allocation3 + $0x290] sm:$0xff]
        %v3114 = vld [vmem:[#allocation3 + $0x298] sm:$0xff]
        %v3115 = vld [vmem:[#allocation3 + $0x2a0] sm:$0xff]
        %v3116 = vld [vmem:[#allocation3 + $0x2a8] sm:$0xff]
        %v3117 = vld [vmem:[#allocation3 + $0x2b0] sm:$0xff]
        %v3118 = vld [vmem:[#allocation3 + $0x2b8] sm:$0xff]
        %v3119 = vld [vmem:[#allocation3 + $0x2c0] sm:$0xff]
        %v3120 = vld [vmem:[#allocation3 + $0x2c8] sm:$0xff]
        %v3121 = vld [vmem:[#allocation3 + $0x2d0] sm:$0xff]
        %v3122 = vld [vmem:[#allocation3 + $0x2d8] sm:$0xff]
        %v3123 = vld [vmem:[#allocation3 + $0x2e0] sm:$0xff]
        %v3124 = vld [vmem:[#allocation3 + $0x2e8] sm:$0xff]
        %v3125 = vld [vmem:[#allocation3 + $0x2f0] sm:$0xff]
        %v3126 = vld [vmem:[#allocation3 + $0x2f8] sm:$0xff]
        %v3127 = vld [vmem:[#allocation3 + $0x300] sm:$0xff]
        %v3128 = vld [vmem:[#allocation3 + $0x308] sm:$0xff]
        %v3129 = vld [vmem:[#allocation3 + $0x310] sm:$0xff]
        %v3130 = vld [vmem:[#allocation3 + $0x318] sm:$0xff]
        %v3131 = vld [vmem:[#allocation3 + $0x320] sm:$0xff]
        %v3132 = vld [vmem:[#allocation3 + $0x328] sm:$0xff]
        %v3133 = vld [vmem:[#allocation3 + $0x330] sm:$0xff]
        %v3134 = vld [vmem:[#allocation3 + $0x338] sm:$0xff]
        %v3135 = vld [vmem:[#allocation3 + $0x340] sm:$0xff]
        %v3136 = vld [vmem:[#allocation3 + $0x348] sm:$0xff]
        %v3137 = vld [vmem:[#allocation3 + $0x350] sm:$0xff]
        %v3138 = vld [vmem:[#allocation3 + $0x358] sm:$0xff]
        %v3139 = vld [vmem:[#allocation3 + $0x360] sm:$0xff]
        %v3140 = vld [vmem:[#allocation3 + $0x368] sm:$0xff]
        %v3141 = vld [vmem:[#allocation3 + $0x370] sm:$0xff]
        %v3142 = vld [vmem:[#allocation3 + $0x378] sm:$0xff]
        %v3143 = vld [vmem:[#allocation3 + $0x380] sm:$0xff]
        %v3144 = vld [vmem:[#allocation3 + $0x388] sm:$0xff]
        %v3145 = vld [vmem:[#allocation3 + $0x390] sm:$0xff]
        %v3146 = vld [vmem:[#allocation3 + $0x398] sm:$0xff]
        %v3147 = vld [vmem:[#allocation3 + $0x3a0] sm:$0xff]
        %v3148 = vld [vmem:[#allocation3 + $0x3a8] sm:$0xff]
        %v3149 = vld [vmem:[#allocation3 + $0x3b0] sm:$0xff]
        %v3150 = vld [vmem:[#allocation3 + $0x3b8] sm:$0xff]
        %v3151 = vld [vmem:[#allocation3 + $0x3c0] sm:$0xff]
        %v3152 = vld [vmem:[#allocation3 + $0x3c8] sm:$0xff]
        %v3153 = vld [vmem:[#allocation3 + $0x3d0] sm:$0xff]
        %v3154 = vld [vmem:[#allocation3 + $0x3d8] sm:$0xff]
        %v3155 = vld [vmem:[#allocation3 + $0x3e0] sm:$0xff]
        %v3156 = vld [vmem:[#allocation3 + $0x3e8] sm:$0xff]
        %v3157 = vld [vmem:[#allocation3 + $0x3f0] sm:$0xff]
        %v3158 = vld [vmem:[#allocation3 + $0x3f8] sm:$0xff]
        %v3159 = vld [vmem:[#allocation3 + $0x400] sm:$0xff]
        %v3160 = vld [vmem:[#allocation3 + $0x408] sm:$0xff]
        %v3161 = vld [vmem:[#allocation3 + $0x410] sm:$0xff]
        %v3162 = vld [vmem:[#allocation3 + $0x418] sm:$0xff]
        %v3163 = vld [vmem:[#allocation3 + $0x420] sm:$0xff]
        %v3164 = vld [vmem:[#allocation3 + $0x428] sm:$0xff]
        %v3165 = vld [vmem:[#allocation3 + $0x430] sm:$0xff]
        %v3166 = vld [vmem:[#allocation3 + $0x438] sm:$0xff]
        %v3167 = vld [vmem:[#allocation3 + $0x440] sm:$0xff]
        %v3168 = vld [vmem:[#allocation3 + $0x448] sm:$0xff]
        %v3169 = vld [vmem:[#allocation3 + $0x450] sm:$0xff]
        %v3170 = vld [vmem:[#allocation3 + $0x458] sm:$0xff]
        %v3171 = vld [vmem:[#allocation3 + $0x460] sm:$0xff]
        %v3172 = vld [vmem:[#allocation3 + $0x468] sm:$0xff]
        %v3173 = vld [vmem:[#allocation3 + $0x470] sm:$0xff]
        %v3174 = vld [vmem:[#allocation3 + $0x478] sm:$0xff]
        %v3175 = vld [vmem:[#allocation3 + $0x480] sm:$0xff]
        %v3176 = vld [vmem:[#allocation3 + $0x488] sm:$0xff]
        %v3177 = vld [vmem:[#allocation3 + $0x490] sm:$0xff]
        %v3178 = vld [vmem:[#allocation3 + $0x498] sm:$0xff]
        %v3179 = vld [vmem:[#allocation3 + $0x4a0] sm:$0xff]
        %v3180 = vld [vmem:[#allocation3 + $0x4a8] sm:$0xff]
        %v3181 = vld [vmem:[#allocation3 + $0x4b0] sm:$0xff]
        %v3182 = vld [vmem:[#allocation3 + $0x4b8] sm:$0xff]
        %v3183 = vld [vmem:[#allocation3 + $0x4c0] sm:$0xff]
        %v3184 = vld [vmem:[#allocation3 + $0x4c8] sm:$0xff]
        %v3185 = vld [vmem:[#allocation3 + $0x4d0] sm:$0xff]
        %v3186 = vld [vmem:[#allocation3 + $0x4d8] sm:$0xff]
        %v3187 = vld [vmem:[#allocation3 + $0x4e0] sm:$0xff]
        %v3188 = vld [vmem:[#allocation3 + $0x4e8] sm:$0xff]
        %v3189 = vld [vmem:[#allocation3 + $0x4f0] sm:$0xff]
        %v3190 = vld [vmem:[#allocation3 + $0x4f8] sm:$0xff]
        %v3191 = vld [vmem:[#allocation3 + $0x500] sm:$0xff]
        %v3192 = vld [vmem:[#allocation3 + $0x508] sm:$0xff]
        %v3193 = vld [vmem:[#allocation3 + $0x510] sm:$0xff]
        %v3194 = vld [vmem:[#allocation3 + $0x518] sm:$0xff]
        %v3195 = vld [vmem:[#allocation3 + $0x520] sm:$0xff]
        %v3196 = vld [vmem:[#allocation3 + $0x528] sm:$0xff]
        %v3197 = vld [vmem:[#allocation3 + $0x530] sm:$0xff]
        %v3198 = vld [vmem:[#allocation3 + $0x538] sm:$0xff]
        %v3199 = vld [vmem:[#allocation3 + $0x540] sm:$0xff]
        %v3200 = vld [vmem:[#allocation3 + $0x548] sm:$0xff]
        %v3201 = vld [vmem:[#allocation3 + $0x550] sm:$0xff]
        %v3202 = vld [vmem:[#allocation3 + $0x558] sm:$0xff]
        %v3203 = vld [vmem:[#allocation3 + $0x560] sm:$0xff]
        %v3204 = vld [vmem:[#allocation3 + $0x568] sm:$0xff]
        %v3205 = vld [vmem:[#allocation3 + $0x570] sm:$0xff]
        %v3206 = vld [vmem:[#allocation3 + $0x578] sm:$0xff]
        %v3207 = vld [vmem:[#allocation3 + $0x580] sm:$0xff]
        %v3208 = vld [vmem:[#allocation3 + $0x588] sm:$0xff]
        %v3209 = vld [vmem:[#allocation3 + $0x590] sm:$0xff]
        %v3210 = vld [vmem:[#allocation3 + $0x598] sm:$0xff]
        %v3211 = vld [vmem:[#allocation3 + $0x5a0] sm:$0xff]
        %v3212 = vld [vmem:[#allocation3 + $0x5a8] sm:$0xff]
        %v3213 = vld [vmem:[#allocation3 + $0x5b0] sm:$0xff]
        %v3214 = vld [vmem:[#allocation3 + $0x5b8] sm:$0xff]
        %v3215 = vld [vmem:[#allocation3 + $0x5c0] sm:$0xff]
        %v3216 = vld [vmem:[#allocation3 + $0x5c8] sm:$0xff]
        %v3217 = vld [vmem:[#allocation3 + $0x5d0] sm:$0xff]
        %v3218 = vld [vmem:[#allocation3 + $0x5d8] sm:$0xff]
        %v3219 = vld [vmem:[#allocation3 + $0x5e0] sm:$0xff]
        %v3220 = vld [vmem:[#allocation3 + $0x5e8] sm:$0xff]
        %v3221 = vld [vmem:[#allocation3 + $0x5f0] sm:$0xff]
        %v3222 = vld [vmem:[#allocation3 + $0x5f8] sm:$0xff]
        %v3223 = vld [vmem:[#allocation3 + $0x600] sm:$0xff]
        %v3224 = vld [vmem:[#allocation3 + $0x608] sm:$0xff]
        %v3225 = vld [vmem:[#allocation3 + $0x610] sm:$0xff]
        %v3226 = vld [vmem:[#allocation3 + $0x618] sm:$0xff]
        %v3227 = vld [vmem:[#allocation3 + $0x620] sm:$0xff]
        %v3228 = vld [vmem:[#allocation3 + $0x628] sm:$0xff]
        %v3229 = vld [vmem:[#allocation3 + $0x630] sm:$0xff]
        %v3230 = vld [vmem:[#allocation3 + $0x638] sm:$0xff]
        %v3231 = vld [vmem:[#allocation3 + $0x640] sm:$0xff]
        %v3232 = vld [vmem:[#allocation3 + $0x648] sm:$0xff]
        %v3233 = vld [vmem:[#allocation3 + $0x650] sm:$0xff]
        %v3234 = vld [vmem:[#allocation3 + $0x658] sm:$0xff]
        %v3235 = vld [vmem:[#allocation3 + $0x660] sm:$0xff]
        %v3236 = vld [vmem:[#allocation3 + $0x668] sm:$0xff]
        %v3237 = vld [vmem:[#allocation3 + $0x670] sm:$0xff]
        %v3238 = vld [vmem:[#allocation3 + $0x678] sm:$0xff]
        %v3239 = vld [vmem:[#allocation3 + $0x680] sm:$0xff]
        %v3240 = vld [vmem:[#allocation3 + $0x688] sm:$0xff]
        %v3241 = vld [vmem:[#allocation3 + $0x690] sm:$0xff]
        %v3242 = vld [vmem:[#allocation3 + $0x698] sm:$0xff]
        %v3243 = vld [vmem:[#allocation3 + $0x6a0] sm:$0xff]
        %v3244 = vld [vmem:[#allocation3 + $0x6a8] sm:$0xff]
        %v3245 = vld [vmem:[#allocation3 + $0x6b0] sm:$0xff]
        %v3246 = vld [vmem:[#allocation3 + $0x6b8] sm:$0xff]
        %v3247 = vld [vmem:[#allocation3 + $0x6c0] sm:$0xff]
        %v3248 = vld [vmem:[#allocation3 + $0x6c8] sm:$0xff]
        %v3249 = vld [vmem:[#allocation3 + $0x6d0] sm:$0xff]
        %v3250 = vld [vmem:[#allocation3 + $0x6d8] sm:$0xff]
        %v3251 = vld [vmem:[#allocation3 + $0x6e0] sm:$0xff]
        %v3252 = vld [vmem:[#allocation3 + $0x6e8] sm:$0xff]
        %v3253 = vld [vmem:[#allocation3 + $0x6f0] sm:$0xff]
        %v3254 = vld [vmem:[#allocation3 + $0x6f8] sm:$0xff]
        %v3255 = vld [vmem:[#allocation3 + $0x700] sm:$0xff]
        %v3256 = vld [vmem:[#allocation3 + $0x708] sm:$0xff]
        %v3257 = vld [vmem:[#allocation3 + $0x710] sm:$0xff]
        %v3258 = vld [vmem:[#allocation3 + $0x718] sm:$0xff]
        %v3259 = vld [vmem:[#allocation3 + $0x720] sm:$0xff]
        %v3260 = vld [vmem:[#allocation3 + $0x728] sm:$0xff]
        %v3261 = vld [vmem:[#allocation3 + $0x730] sm:$0xff]
        %v3262 = vld [vmem:[#allocation3 + $0x738] sm:$0xff]
        %v3263 = vld [vmem:[#allocation3 + $0x740] sm:$0xff]
        %v3264 = vld [vmem:[#allocation3 + $0x748] sm:$0xff]
        %v3265 = vld [vmem:[#allocation3 + $0x750] sm:$0xff]
        %v3266 = vld [vmem:[#allocation3 + $0x758] sm:$0xff]
        %v3267 = vld [vmem:[#allocation3 + $0x760] sm:$0xff]
        %v3268 = vld [vmem:[#allocation3 + $0x768] sm:$0xff]
        %v3269 = vld [vmem:[#allocation3 + $0x770] sm:$0xff]
        %v3270 = vld [vmem:[#allocation3 + $0x778] sm:$0xff]
        %v3271 = vld [vmem:[#allocation3 + $0x780] sm:$0xff]
        %v3272 = vld [vmem:[#allocation3 + $0x788] sm:$0xff]
        %v3273 = vld [vmem:[#allocation3 + $0x790] sm:$0xff]
        %v3274 = vld [vmem:[#allocation3 + $0x798] sm:$0xff]
        %v3275 = vld [vmem:[#allocation3 + $0x7a0] sm:$0xff]
        %v3276 = vld [vmem:[#allocation3 + $0x7a8] sm:$0xff]
        %v3277 = vld [vmem:[#allocation3 + $0x7b0] sm:$0xff]
        %v3278 = vld [vmem:[#allocation3 + $0x7b8] sm:$0xff]
        %v3279 = vld [vmem:[#allocation3 + $0x7c0] sm:$0xff]
        %v3280 = vld [vmem:[#allocation3 + $0x7c8] sm:$0xff]
        %v3281 = vld [vmem:[#allocation3 + $0x7d0] sm:$0xff]
        %v3282 = vld [vmem:[#allocation3 + $0x7d8] sm:$0xff]
        %v3283 = vld [vmem:[#allocation3 + $0x7e0] sm:$0xff]
        %v3284 = vld [vmem:[#allocation3 + $0x7e8] sm:$0xff]
        %v3285 = vld [vmem:[#allocation3 + $0x7f0] sm:$0xff]
        %v3286 = vld [vmem:[#allocation3 + $0x7f8] sm:$0xff]
        %v3287 = vld [vmem:[#allocation3 + $0x800] sm:$0xff]
        %v3288 = vld [vmem:[#allocation3 + $0x808] sm:$0xff]
        %v3289 = vld [vmem:[#allocation3 + $0x810] sm:$0xff]
        %v3290 = vld [vmem:[#allocation3 + $0x818] sm:$0xff]
        %v3291 = vld [vmem:[#allocation3 + $0x820] sm:$0xff]
        %v3292 = vld [vmem:[#allocation3 + $0x828] sm:$0xff]
        %v3293 = vld [vmem:[#allocation3 + $0x830] sm:$0xff]
        %v3294 = vld [vmem:[#allocation3 + $0x838] sm:$0xff]
        %v3295 = vld [vmem:[#allocation3 + $0x840] sm:$0xff]
        %v3296 = vld [vmem:[#allocation3 + $0x848] sm:$0xff]
        %v3297 = vld [vmem:[#allocation3 + $0x850] sm:$0xff]
        %v3298 = vld [vmem:[#allocation3 + $0x858] sm:$0xff]
        %v3299 = vld [vmem:[#allocation3 + $0x860] sm:$0xff]
        %v3300 = vld [vmem:[#allocation3 + $0x868] sm:$0xff]
        %v3301 = vld [vmem:[#allocation3 + $0x870] sm:$0xff]
        %v3302 = vld [vmem:[#allocation3 + $0x878] sm:$0xff]
        %v3303 = vld [vmem:[#allocation3 + $0x880] sm:$0xff]
        %v3304 = vld [vmem:[#allocation3 + $0x888] sm:$0xff]
        %v3305 = vld [vmem:[#allocation3 + $0x890] sm:$0xff]
        %v3306 = vld [vmem:[#allocation3 + $0x898] sm:$0xff]
        %v3307 = vld [vmem:[#allocation3 + $0x8a0] sm:$0xff]
        %v3308 = vld [vmem:[#allocation3 + $0x8a8] sm:$0xff]
        %v3309 = vld [vmem:[#allocation3 + $0x8b0] sm:$0xff]
        %v3310 = vld [vmem:[#allocation3 + $0x8b8] sm:$0xff]
        %v3311 = vld [vmem:[#allocation3 + $0x8c0] sm:$0xff]
        %v3312 = vld [vmem:[#allocation3 + $0x8c8] sm:$0xff]
        %v3313 = vld [vmem:[#allocation3 + $0x8d0] sm:$0xff]
        %v3314 = vld [vmem:[#allocation3 + $0x8d8] sm:$0xff]
        %v3315 = vld [vmem:[#allocation3 + $0x8e0] sm:$0xff]
        %v3316 = vld [vmem:[#allocation3 + $0x8e8] sm:$0xff]
        %v3317 = vld [vmem:[#allocation3 + $0x8f0] sm:$0xff]
        %v3318 = vld [vmem:[#allocation3 + $0x8f8] sm:$0xff]
        %s3319 = scalar_lea.vmem [#allocation7], 1152
        %v3320 = vld [vmem:[%s3319] sm:$0xff]
        %v3321 = vld [vmem:[%s3319 + $0x8] sm:$0xff]
        %v3322 = vld [vmem:[%s3319 + $0x10] sm:$0xff]
        %v3323 = vld [vmem:[%s3319 + $0x18] sm:$0xff]
        %v3324 = vld [vmem:[%s3319 + $0x20] sm:$0xff]
        %v3325 = vld [vmem:[%s3319 + $0x28] sm:$0xff]
        %v3326 = vld [vmem:[%s3319 + $0x30] sm:$0xff]
        %v3327 = vld [vmem:[%s3319 + $0x38] sm:$0xff]
        %v3328 = vld [vmem:[%s3319 + $0x40] sm:$0xff]
        %v3329 = vld [vmem:[%s3319 + $0x48] sm:$0xff]
        %v3330 = vld [vmem:[%s3319 + $0x50] sm:$0xff]
        %v3331 = vld [vmem:[%s3319 + $0x58] sm:$0xff]
        %v3332 = vld [vmem:[%s3319 + $0x60] sm:$0xff]
        %v3333 = vld [vmem:[%s3319 + $0x68] sm:$0xff]
        %v3334 = vld [vmem:[%s3319 + $0x70] sm:$0xff]
        %v3335 = vld [vmem:[%s3319 + $0x78] sm:$0xff]
        %v3336 = vld [vmem:[%s3319 + $0x80] sm:$0xff]
        %v3337 = vld [vmem:[%s3319 + $0x88] sm:$0xff]
        %v3338 = vld [vmem:[%s3319 + $0x90] sm:$0xff]
        %v3339 = vld [vmem:[%s3319 + $0x98] sm:$0xff]
        %v3340 = vld [vmem:[%s3319 + $0xa0] sm:$0xff]
        %v3341 = vld [vmem:[%s3319 + $0xa8] sm:$0xff]
        %v3342 = vld [vmem:[%s3319 + $0xb0] sm:$0xff]
        %v3343 = vld [vmem:[%s3319 + $0xb8] sm:$0xff]
        %v3344 = vld [vmem:[%s3319 + $0xc0] sm:$0xff]
        %v3345 = vld [vmem:[%s3319 + $0xc8] sm:$0xff]
        %v3346 = vld [vmem:[%s3319 + $0xd0] sm:$0xff]
        %v3347 = vld [vmem:[%s3319 + $0xd8] sm:$0xff]
        %v3348 = vld [vmem:[%s3319 + $0xe0] sm:$0xff]
        %v3349 = vld [vmem:[%s3319 + $0xe8] sm:$0xff]
        %v3350 = vld [vmem:[%s3319 + $0xf0] sm:$0xff]
        %v3351 = vld [vmem:[%s3319 + $0xf8] sm:$0xff]
        %v3352 = vld [vmem:[%s3319 + $0x100] sm:$0xff]
        %v3353 = vld [vmem:[%s3319 + $0x108] sm:$0xff]
        %v3354 = vld [vmem:[%s3319 + $0x110] sm:$0xff]
        %v3355 = vld [vmem:[%s3319 + $0x118] sm:$0xff]
        %v3356 = vld [vmem:[%s3319 + $0x120] sm:$0xff]
        %v3357 = vld [vmem:[%s3319 + $0x128] sm:$0xff]
        %v3358 = vld [vmem:[%s3319 + $0x130] sm:$0xff]
        %v3359 = vld [vmem:[%s3319 + $0x138] sm:$0xff]
        %v3360 = vld [vmem:[%s3319 + $0x140] sm:$0xff]
        %v3361 = vld [vmem:[%s3319 + $0x148] sm:$0xff]
        %v3362 = vld [vmem:[%s3319 + $0x150] sm:$0xff]
        %v3363 = vld [vmem:[%s3319 + $0x158] sm:$0xff]
        %v3364 = vld [vmem:[%s3319 + $0x160] sm:$0xff]
        %v3365 = vld [vmem:[%s3319 + $0x168] sm:$0xff]
        %v3366 = vld [vmem:[%s3319 + $0x170] sm:$0xff]
        %v3367 = vld [vmem:[%s3319 + $0x178] sm:$0xff]
        %v3368 = vld [vmem:[%s3319 + $0x180] sm:$0xff]
        %v3369 = vld [vmem:[%s3319 + $0x188] sm:$0xff]
        %v3370 = vld [vmem:[%s3319 + $0x190] sm:$0xff]
        %v3371 = vld [vmem:[%s3319 + $0x198] sm:$0xff]
        %v3372 = vld [vmem:[%s3319 + $0x1a0] sm:$0xff]
        %v3373 = vld [vmem:[%s3319 + $0x1a8] sm:$0xff]
        %v3374 = vld [vmem:[%s3319 + $0x1b0] sm:$0xff]
        %v3375 = vld [vmem:[%s3319 + $0x1b8] sm:$0xff]
        %v3376 = vld [vmem:[%s3319 + $0x1c0] sm:$0xff]
        %v3377 = vld [vmem:[%s3319 + $0x1c8] sm:$0xff]
        %v3378 = vld [vmem:[%s3319 + $0x1d0] sm:$0xff]
        %v3379 = vld [vmem:[%s3319 + $0x1d8] sm:$0xff]
        %v3380 = vld [vmem:[%s3319 + $0x1e0] sm:$0xff]
        %v3381 = vld [vmem:[%s3319 + $0x1e8] sm:$0xff]
        %v3382 = vld [vmem:[%s3319 + $0x1f0] sm:$0xff]
        %v3383 = vld [vmem:[%s3319 + $0x1f8] sm:$0xff]
        %v3384 = vld [vmem:[%s3319 + $0x200] sm:$0xff]
        %v3385 = vld [vmem:[%s3319 + $0x208] sm:$0xff]
        %v3386 = vld [vmem:[%s3319 + $0x210] sm:$0xff]
        %v3387 = vld [vmem:[%s3319 + $0x218] sm:$0xff]
        %v3388 = vld [vmem:[%s3319 + $0x220] sm:$0xff]
        %v3389 = vld [vmem:[%s3319 + $0x228] sm:$0xff]
        %v3390 = vld [vmem:[%s3319 + $0x230] sm:$0xff]
        %v3391 = vld [vmem:[%s3319 + $0x238] sm:$0xff]
        %v3392 = vld [vmem:[%s3319 + $0x240] sm:$0xff]
        %v3393 = vld [vmem:[%s3319 + $0x248] sm:$0xff]
        %v3394 = vld [vmem:[%s3319 + $0x250] sm:$0xff]
        %v3395 = vld [vmem:[%s3319 + $0x258] sm:$0xff]
        %v3396 = vld [vmem:[%s3319 + $0x260] sm:$0xff]
        %v3397 = vld [vmem:[%s3319 + $0x268] sm:$0xff]
        %v3398 = vld [vmem:[%s3319 + $0x270] sm:$0xff]
        %v3399 = vld [vmem:[%s3319 + $0x278] sm:$0xff]
        %v3400 = vld [vmem:[%s3319 + $0x280] sm:$0xff]
        %v3401 = vld [vmem:[%s3319 + $0x288] sm:$0xff]
        %v3402 = vld [vmem:[%s3319 + $0x290] sm:$0xff]
        %v3403 = vld [vmem:[%s3319 + $0x298] sm:$0xff]
        %v3404 = vld [vmem:[%s3319 + $0x2a0] sm:$0xff]
        %v3405 = vld [vmem:[%s3319 + $0x2a8] sm:$0xff]
        %v3406 = vld [vmem:[%s3319 + $0x2b0] sm:$0xff]
        %v3407 = vld [vmem:[%s3319 + $0x2b8] sm:$0xff]
        %v3408 = vld [vmem:[%s3319 + $0x2c0] sm:$0xff]
        %v3409 = vld [vmem:[%s3319 + $0x2c8] sm:$0xff]
        %v3410 = vld [vmem:[%s3319 + $0x2d0] sm:$0xff]
        %v3411 = vld [vmem:[%s3319 + $0x2d8] sm:$0xff]
        %v3412 = vld [vmem:[%s3319 + $0x2e0] sm:$0xff]
        %v3413 = vld [vmem:[%s3319 + $0x2e8] sm:$0xff]
        %v3414 = vld [vmem:[%s3319 + $0x2f0] sm:$0xff]
        %v3415 = vld [vmem:[%s3319 + $0x2f8] sm:$0xff]
        %v3416 = vld [vmem:[%s3319 + $0x300] sm:$0xff]
        %v3417 = vld [vmem:[%s3319 + $0x308] sm:$0xff]
        %v3418 = vld [vmem:[%s3319 + $0x310] sm:$0xff]
        %v3419 = vld [vmem:[%s3319 + $0x318] sm:$0xff]
        %v3420 = vld [vmem:[%s3319 + $0x320] sm:$0xff]
        %v3421 = vld [vmem:[%s3319 + $0x328] sm:$0xff]
        %v3422 = vld [vmem:[%s3319 + $0x330] sm:$0xff]
        %v3423 = vld [vmem:[%s3319 + $0x338] sm:$0xff]
        %v3424 = vld [vmem:[%s3319 + $0x340] sm:$0xff]
        %v3425 = vld [vmem:[%s3319 + $0x348] sm:$0xff]
        %v3426 = vld [vmem:[%s3319 + $0x350] sm:$0xff]
        %v3427 = vld [vmem:[%s3319 + $0x358] sm:$0xff]
        %v3428 = vld [vmem:[%s3319 + $0x360] sm:$0xff]
        %v3429 = vld [vmem:[%s3319 + $0x368] sm:$0xff]
        %v3430 = vld [vmem:[%s3319 + $0x370] sm:$0xff]
        %v3431 = vld [vmem:[%s3319 + $0x378] sm:$0xff]
        %v3432 = vld [vmem:[%s3319 + $0x380] sm:$0xff]
        %v3433 = vld [vmem:[%s3319 + $0x388] sm:$0xff]
        %v3434 = vld [vmem:[%s3319 + $0x390] sm:$0xff]
        %v3435 = vld [vmem:[%s3319 + $0x398] sm:$0xff]
        %v3436 = vld [vmem:[%s3319 + $0x3a0] sm:$0xff]
        %v3437 = vld [vmem:[%s3319 + $0x3a8] sm:$0xff]
        %v3438 = vld [vmem:[%s3319 + $0x3b0] sm:$0xff]
        %v3439 = vld [vmem:[%s3319 + $0x3b8] sm:$0xff]
        %v3440 = vld [vmem:[%s3319 + $0x3c0] sm:$0xff]
        %v3441 = vld [vmem:[%s3319 + $0x3c8] sm:$0xff]
        %v3442 = vld [vmem:[%s3319 + $0x3d0] sm:$0xff]
        %v3443 = vld [vmem:[%s3319 + $0x3d8] sm:$0xff]
        %v3444 = vld [vmem:[%s3319 + $0x3e0] sm:$0xff]
        %v3445 = vld [vmem:[%s3319 + $0x3e8] sm:$0xff]
        %v3446 = vld [vmem:[%s3319 + $0x3f0] sm:$0xff]
        %v3447 = vld [vmem:[%s3319 + $0x3f8] sm:$0xff]
        %v3448 = vld [vmem:[%s3319 + $0x400] sm:$0xff]
        %v3449 = vld [vmem:[%s3319 + $0x408] sm:$0xff]
        %v3450 = vld [vmem:[%s3319 + $0x410] sm:$0xff]
        %v3451 = vld [vmem:[%s3319 + $0x418] sm:$0xff]
        %v3452 = vld [vmem:[%s3319 + $0x420] sm:$0xff]
        %v3453 = vld [vmem:[%s3319 + $0x428] sm:$0xff]
        %v3454 = vld [vmem:[%s3319 + $0x430] sm:$0xff]
        %v3455 = vld [vmem:[%s3319 + $0x438] sm:$0xff]
        %v3456 = vld [vmem:[%s3319 + $0x440] sm:$0xff]
        %v3457 = vld [vmem:[%s3319 + $0x448] sm:$0xff]
        %v3458 = vld [vmem:[%s3319 + $0x450] sm:$0xff]
        %v3459 = vld [vmem:[%s3319 + $0x458] sm:$0xff]
        %v3460 = vld [vmem:[%s3319 + $0x460] sm:$0xff]
        %v3461 = vld [vmem:[%s3319 + $0x468] sm:$0xff]
        %v3462 = vld [vmem:[%s3319 + $0x470] sm:$0xff]
        %v3463 = vld [vmem:[%s3319 + $0x478] sm:$0xff]
        %s3464 = scalar_lea.vmem [#allocation9], 1
        %v3465 = vld [vmem:[%s3464] sm:$0x1]
        %v3467 = vperm.slane %v3465, 0
        %3469 = vmatpush.msra.mxu0 %v3335
        %3470 = vmatpush.msra.mxu0 %v3334
        %3471 = vmatpush.msra.mxu0 %v3333
        %3472 = vmatpush.msra.mxu0 %v3332
        %3473 = vmatpush.msra.mxu0 %v3331
        %3474 = vmatpush.msra.mxu0 %v3330
        %3475 = vmatpush.msra.mxu0 %v3329
        %3476 = vmatpush.msra.mxu0 %v3328
        %3477 = vmatpush.msra.mxu0 %v3327
        %3478 = vmatpush.msra.mxu0 %v3326
        %3479 = vmatpush.msra.mxu0 %v3325
        %3480 = vmatpush.msra.mxu0 %v3324
        %3481 = vmatpush.msra.mxu0 %v3323
        %3482 = vmatpush.msra.mxu0 %v3322
        %3483 = vmatpush.msra.mxu0 %v3321
        %3484 = vmatpush.msra.mxu0 %v3320
        %3485 = vmatmul.f32.gmra.mxu0 %v3031
        %v3486 = vpop.f32.mrf.mxu0
        %v3487 = vadd.f32 %v3467, %v3486
        %3488 = vmatmul.f32.gmra.mxu0 %v3040
        %v3489 = vpop.f32.mrf.mxu0
        %v3490 = vadd.f32 %v3467, %v3489
        %3491 = vmatmul.f32.gmra.mxu0 %v3049
        %v3492 = vpop.f32.mrf.mxu0
        %v3493 = vadd.f32 %v3467, %v3492
        %3494 = vmatmul.f32.gmra.mxu0 %v3058
        %v3495 = vpop.f32.mrf.mxu0
        %v3496 = vadd.f32 %v3467, %v3495
        %3497 = vmatmul.f32.gmra.mxu0 %v3067
        %v3498 = vpop.f32.mrf.mxu0
        %v3499 = vadd.f32 %v3467, %v3498
        %3500 = vmatmul.f32.gmra.mxu0 %v3076
        %v3501 = vpop.f32.mrf.mxu0
        %v3502 = vadd.f32 %v3467, %v3501
        %3503 = vmatmul.f32.gmra.mxu0 %v3085
        %v3504 = vpop.f32.mrf.mxu0
        %v3505 = vadd.f32 %v3467, %v3504
        %3506 = vmatmul.f32.gmra.mxu0 %v3094
        %v3507 = vpop.f32.mrf.mxu0
        %v3508 = vadd.f32 %v3467, %v3507
        %3509 = vmatmul.f32.gmra.mxu0 %v3103
        %v3510 = vpop.f32.mrf.mxu0
        %v3511 = vadd.f32 %v3467, %v3510
        %3512 = vmatmul.f32.gmra.mxu0 %v3112
        %v3513 = vpop.f32.mrf.mxu0
        %v3514 = vadd.f32 %v3467, %v3513
        %3515 = vmatmul.f32.gmra.mxu0 %v3121
        %v3516 = vpop.f32.mrf.mxu0
        %v3517 = vadd.f32 %v3467, %v3516
        %3518 = vmatmul.f32.gmra.mxu0 %v3130
        %v3519 = vpop.f32.mrf.mxu0
        %v3520 = vadd.f32 %v3467, %v3519
        %3521 = vmatmul.f32.gmra.mxu0 %v3139
        %v3522 = vpop.f32.mrf.mxu0
        %v3523 = vadd.f32 %v3467, %v3522
        %3524 = vmatmul.f32.gmra.mxu0 %v3148
        %v3525 = vpop.f32.mrf.mxu0
        %v3526 = vadd.f32 %v3467, %v3525
        %3527 = vmatmul.f32.gmra.mxu0 %v3157
        %v3528 = vpop.f32.mrf.mxu0
        %v3529 = vadd.f32 %v3467, %v3528
        %3530 = vmatmul.f32.gmra.mxu0 %v3166
        %v3531 = vpop.f32.mrf.mxu0
        %v3532 = vadd.f32 %v3467, %v3531
        %3533 = vmatmul.f32.gmra.mxu0 %v3175
        %v3534 = vpop.f32.mrf.mxu0
        %v3535 = vadd.f32 %v3467, %v3534
        %3536 = vmatmul.f32.gmra.mxu0 %v3184
        %v3537 = vpop.f32.mrf.mxu0
        %v3538 = vadd.f32 %v3467, %v3537
        %3539 = vmatmul.f32.gmra.mxu0 %v3193
        %v3540 = vpop.f32.mrf.mxu0
        %v3541 = vadd.f32 %v3467, %v3540
        %3542 = vmatmul.f32.gmra.mxu0 %v3202
        %v3543 = vpop.f32.mrf.mxu0
        %v3544 = vadd.f32 %v3467, %v3543
        %3545 = vmatmul.f32.gmra.mxu0 %v3211
        %v3546 = vpop.f32.mrf.mxu0
        %v3547 = vadd.f32 %v3467, %v3546
        %3548 = vmatmul.f32.gmra.mxu0 %v3220
        %v3549 = vpop.f32.mrf.mxu0
        %v3550 = vadd.f32 %v3467, %v3549
        %3551 = vmatmul.f32.gmra.mxu0 %v3229
        %v3552 = vpop.f32.mrf.mxu0
        %v3553 = vadd.f32 %v3467, %v3552
        %3554 = vmatmul.f32.gmra.mxu0 %v3238
        %v3555 = vpop.f32.mrf.mxu0
        %v3556 = vadd.f32 %v3467, %v3555
        %3557 = vmatmul.f32.gmra.mxu0 %v3247
        %v3558 = vpop.f32.mrf.mxu0
        %v3559 = vadd.f32 %v3467, %v3558
        %3560 = vmatmul.f32.gmra.mxu0 %v3256
        %v3561 = vpop.f32.mrf.mxu0
        %v3562 = vadd.f32 %v3467, %v3561
        %3563 = vmatmul.f32.gmra.mxu0 %v3265
        %v3564 = vpop.f32.mrf.mxu0
        %v3565 = vadd.f32 %v3467, %v3564
        %3566 = vmatmul.f32.gmra.mxu0 %v3274
        %v3567 = vpop.f32.mrf.mxu0
        %v3568 = vadd.f32 %v3467, %v3567
        %3569 = vmatmul.f32.gmra.mxu0 %v3283
        %v3570 = vpop.f32.mrf.mxu0
        %v3571 = vadd.f32 %v3467, %v3570
        %3572 = vmatmul.f32.gmra.mxu0 %v3292
        %v3573 = vpop.f32.mrf.mxu0
        %v3574 = vadd.f32 %v3467, %v3573
        %3575 = vmatmul.f32.gmra.mxu0 %v3301
        %v3576 = vpop.f32.mrf.mxu0
        %v3577 = vadd.f32 %v3467, %v3576
        %3578 = vmatmul.f32.gmra.mxu0 %v3310
        %v3579 = vpop.f32.mrf.mxu0
        %v3580 = vadd.f32 %v3467, %v3579
        %3581 = vdwg.mxu0
        %3582 = vmatpush.msra.mxu0 %v3351
        %3583 = vmatpush.msra.mxu0 %v3350
        %3584 = vmatpush.msra.mxu0 %v3349
        %3585 = vmatpush.msra.mxu0 %v3348
        %3586 = vmatpush.msra.mxu0 %v3347
        %3587 = vmatpush.msra.mxu0 %v3346
        %3588 = vmatpush.msra.mxu0 %v3345
        %3589 = vmatpush.msra.mxu0 %v3344
        %3590 = vmatpush.msra.mxu0 %v3343
        %3591 = vmatpush.msra.mxu0 %v3342
        %3592 = vmatpush.msra.mxu0 %v3341
        %3593 = vmatpush.msra.mxu0 %v3340
        %3594 = vmatpush.msra.mxu0 %v3339
        %3595 = vmatpush.msra.mxu0 %v3338
        %3596 = vmatpush.msra.mxu0 %v3337
        %3597 = vmatpush.msra.mxu0 %v3336
        %3598 = vmatmul.f32.gmra.mxu0 %v3032
        %v3599 = vpop.f32.mrf.mxu0
        %v3600 = vadd.f32 %v3487, %v3599
        %3601 = vmatmul.f32.gmra.mxu0 %v3041
        %v3602 = vpop.f32.mrf.mxu0
        %v3603 = vadd.f32 %v3490, %v3602
        %3604 = vmatmul.f32.gmra.mxu0 %v3050
        %v3605 = vpop.f32.mrf.mxu0
        %v3606 = vadd.f32 %v3493, %v3605
        %3607 = vmatmul.f32.gmra.mxu0 %v3059
        %v3608 = vpop.f32.mrf.mxu0
        %v3609 = vadd.f32 %v3496, %v3608
        %3610 = vmatmul.f32.gmra.mxu0 %v3068
        %v3611 = vpop.f32.mrf.mxu0
        %v3612 = vadd.f32 %v3499, %v3611
        %3613 = vmatmul.f32.gmra.mxu0 %v3077
        %v3614 = vpop.f32.mrf.mxu0
        %v3615 = vadd.f32 %v3502, %v3614
        %3616 = vmatmul.f32.gmra.mxu0 %v3086
        %v3617 = vpop.f32.mrf.mxu0
        %v3618 = vadd.f32 %v3505, %v3617
        %3619 = vmatmul.f32.gmra.mxu0 %v3095
        %v3620 = vpop.f32.mrf.mxu0
        %v3621 = vadd.f32 %v3508, %v3620
        %3622 = vmatmul.f32.gmra.mxu0 %v3104
        %v3623 = vpop.f32.mrf.mxu0
        %v3624 = vadd.f32 %v3511, %v3623
        %3625 = vmatmul.f32.gmra.mxu0 %v3113
        %v3626 = vpop.f32.mrf.mxu0
        %v3627 = vadd.f32 %v3514, %v3626
        %3628 = vmatmul.f32.gmra.mxu0 %v3122
        %v3629 = vpop.f32.mrf.mxu0
        %v3630 = vadd.f32 %v3517, %v3629
        %3631 = vmatmul.f32.gmra.mxu0 %v3131
        %v3632 = vpop.f32.mrf.mxu0
        %v3633 = vadd.f32 %v3520, %v3632
        %3634 = vmatmul.f32.gmra.mxu0 %v3140
        %v3635 = vpop.f32.mrf.mxu0
        %v3636 = vadd.f32 %v3523, %v3635
        %3637 = vmatmul.f32.gmra.mxu0 %v3149
        %v3638 = vpop.f32.mrf.mxu0
        %v3639 = vadd.f32 %v3526, %v3638
        %3640 = vmatmul.f32.gmra.mxu0 %v3158
        %v3641 = vpop.f32.mrf.mxu0
        %v3642 = vadd.f32 %v3529, %v3641
        %3643 = vmatmul.f32.gmra.mxu0 %v3167
        %v3644 = vpop.f32.mrf.mxu0
        %v3645 = vadd.f32 %v3532, %v3644
        %3646 = vmatmul.f32.gmra.mxu0 %v3176
        %v3647 = vpop.f32.mrf.mxu0
        %v3648 = vadd.f32 %v3535, %v3647
        %3649 = vmatmul.f32.gmra.mxu0 %v3185
        %v3650 = vpop.f32.mrf.mxu0
        %v3651 = vadd.f32 %v3538, %v3650
        %3652 = vmatmul.f32.gmra.mxu0 %v3194
        %v3653 = vpop.f32.mrf.mxu0
        %v3654 = vadd.f32 %v3541, %v3653
        %3655 = vmatmul.f32.gmra.mxu0 %v3203
        %v3656 = vpop.f32.mrf.mxu0
        %v3657 = vadd.f32 %v3544, %v3656
        %3658 = vmatmul.f32.gmra.mxu0 %v3212
        %v3659 = vpop.f32.mrf.mxu0
        %v3660 = vadd.f32 %v3547, %v3659
        %3661 = vmatmul.f32.gmra.mxu0 %v3221
        %v3662 = vpop.f32.mrf.mxu0
        %v3663 = vadd.f32 %v3550, %v3662
        %3664 = vmatmul.f32.gmra.mxu0 %v3230
        %v3665 = vpop.f32.mrf.mxu0
        %v3666 = vadd.f32 %v3553, %v3665
        %3667 = vmatmul.f32.gmra.mxu0 %v3239
        %v3668 = vpop.f32.mrf.mxu0
        %v3669 = vadd.f32 %v3556, %v3668
        %3670 = vmatmul.f32.gmra.mxu0 %v3248
        %v3671 = vpop.f32.mrf.mxu0
        %v3672 = vadd.f32 %v3559, %v3671
        %3673 = vmatmul.f32.gmra.mxu0 %v3257
        %v3674 = vpop.f32.mrf.mxu0
        %v3675 = vadd.f32 %v3562, %v3674
        %3676 = vmatmul.f32.gmra.mxu0 %v3266
        %v3677 = vpop.f32.mrf.mxu0
        %v3678 = vadd.f32 %v3565, %v3677
        %3679 = vmatmul.f32.gmra.mxu0 %v3275
        %v3680 = vpop.f32.mrf.mxu0
        %v3681 = vadd.f32 %v3568, %v3680
        %3682 = vmatmul.f32.gmra.mxu0 %v3284
        %v3683 = vpop.f32.mrf.mxu0
        %v3684 = vadd.f32 %v3571, %v3683
        %3685 = vmatmul.f32.gmra.mxu0 %v3293
        %v3686 = vpop.f32.mrf.mxu0
        %v3687 = vadd.f32 %v3574, %v3686
        %3688 = vmatmul.f32.gmra.mxu0 %v3302
        %v3689 = vpop.f32.mrf.mxu0
        %v3690 = vadd.f32 %v3577, %v3689
        %3691 = vmatmul.f32.gmra.mxu0 %v3311
        %v3692 = vpop.f32.mrf.mxu0
        %v3693 = vadd.f32 %v3580, %v3692
        %3694 = vdwg.mxu0
        %3695 = vmatpush.msra.mxu0 %v3367
        %3696 = vmatpush.msra.mxu0 %v3366
        %3697 = vmatpush.msra.mxu0 %v3365
        %3698 = vmatpush.msra.mxu0 %v3364
        %3699 = vmatpush.msra.mxu0 %v3363
        %3700 = vmatpush.msra.mxu0 %v3362
        %3701 = vmatpush.msra.mxu0 %v3361
        %3702 = vmatpush.msra.mxu0 %v3360
        %3703 = vmatpush.msra.mxu0 %v3359
        %3704 = vmatpush.msra.mxu0 %v3358
        %3705 = vmatpush.msra.mxu0 %v3357
        %3706 = vmatpush.msra.mxu0 %v3356
        %3707 = vmatpush.msra.mxu0 %v3355
        %3708 = vmatpush.msra.mxu0 %v3354
        %3709 = vmatpush.msra.mxu0 %v3353
        %3710 = vmatpush.msra.mxu0 %v3352
        %3711 = vmatmul.f32.gmra.mxu0 %v3033
        %v3712 = vpop.f32.mrf.mxu0
        %v3713 = vadd.f32 %v3600, %v3712
        %3714 = vmatmul.f32.gmra.mxu0 %v3042
        %v3715 = vpop.f32.mrf.mxu0
        %v3716 = vadd.f32 %v3603, %v3715
        %3717 = vmatmul.f32.gmra.mxu0 %v3051
        %v3718 = vpop.f32.mrf.mxu0
        %v3719 = vadd.f32 %v3606, %v3718
        %3720 = vmatmul.f32.gmra.mxu0 %v3060
        %v3721 = vpop.f32.mrf.mxu0
        %v3722 = vadd.f32 %v3609, %v3721
        %3723 = vmatmul.f32.gmra.mxu0 %v3069
        %v3724 = vpop.f32.mrf.mxu0
        %v3725 = vadd.f32 %v3612, %v3724
        %3726 = vmatmul.f32.gmra.mxu0 %v3078
        %v3727 = vpop.f32.mrf.mxu0
        %v3728 = vadd.f32 %v3615, %v3727
        %3729 = vmatmul.f32.gmra.mxu0 %v3087
        %v3730 = vpop.f32.mrf.mxu0
        %v3731 = vadd.f32 %v3618, %v3730
        %3732 = vmatmul.f32.gmra.mxu0 %v3096
        %v3733 = vpop.f32.mrf.mxu0
        %v3734 = vadd.f32 %v3621, %v3733
        %3735 = vmatmul.f32.gmra.mxu0 %v3105
        %v3736 = vpop.f32.mrf.mxu0
        %v3737 = vadd.f32 %v3624, %v3736
        %3738 = vmatmul.f32.gmra.mxu0 %v3114
        %v3739 = vpop.f32.mrf.mxu0
        %v3740 = vadd.f32 %v3627, %v3739
        %3741 = vmatmul.f32.gmra.mxu0 %v3123
        %v3742 = vpop.f32.mrf.mxu0
        %v3743 = vadd.f32 %v3630, %v3742
        %3744 = vmatmul.f32.gmra.mxu0 %v3132
        %v3745 = vpop.f32.mrf.mxu0
        %v3746 = vadd.f32 %v3633, %v3745
        %3747 = vmatmul.f32.gmra.mxu0 %v3141
        %v3748 = vpop.f32.mrf.mxu0
        %v3749 = vadd.f32 %v3636, %v3748
        %3750 = vmatmul.f32.gmra.mxu0 %v3150
        %v3751 = vpop.f32.mrf.mxu0
        %v3752 = vadd.f32 %v3639, %v3751
        %3753 = vmatmul.f32.gmra.mxu0 %v3159
        %v3754 = vpop.f32.mrf.mxu0
        %v3755 = vadd.f32 %v3642, %v3754
        %3756 = vmatmul.f32.gmra.mxu0 %v3168
        %v3757 = vpop.f32.mrf.mxu0
        %v3758 = vadd.f32 %v3645, %v3757
        %3759 = vmatmul.f32.gmra.mxu0 %v3177
        %v3760 = vpop.f32.mrf.mxu0
        %v3761 = vadd.f32 %v3648, %v3760
        %3762 = vmatmul.f32.gmra.mxu0 %v3186
        %v3763 = vpop.f32.mrf.mxu0
        %v3764 = vadd.f32 %v3651, %v3763
        %3765 = vmatmul.f32.gmra.mxu0 %v3195
        %v3766 = vpop.f32.mrf.mxu0
        %v3767 = vadd.f32 %v3654, %v3766
        %3768 = vmatmul.f32.gmra.mxu0 %v3204
        %v3769 = vpop.f32.mrf.mxu0
        %v3770 = vadd.f32 %v3657, %v3769
        %3771 = vmatmul.f32.gmra.mxu0 %v3213
        %v3772 = vpop.f32.mrf.mxu0
        %v3773 = vadd.f32 %v3660, %v3772
        %3774 = vmatmul.f32.gmra.mxu0 %v3222
        %v3775 = vpop.f32.mrf.mxu0
        %v3776 = vadd.f32 %v3663, %v3775
        %3777 = vmatmul.f32.gmra.mxu0 %v3231
        %v3778 = vpop.f32.mrf.mxu0
        %v3779 = vadd.f32 %v3666, %v3778
        %3780 = vmatmul.f32.gmra.mxu0 %v3240
        %v3781 = vpop.f32.mrf.mxu0
        %v3782 = vadd.f32 %v3669, %v3781
        %3783 = vmatmul.f32.gmra.mxu0 %v3249
        %v3784 = vpop.f32.mrf.mxu0
        %v3785 = vadd.f32 %v3672, %v3784
        %3786 = vmatmul.f32.gmra.mxu0 %v3258
        %v3787 = vpop.f32.mrf.mxu0
        %v3788 = vadd.f32 %v3675, %v3787
        %3789 = vmatmul.f32.gmra.mxu0 %v3267
        %v3790 = vpop.f32.mrf.mxu0
        %v3791 = vadd.f32 %v3678, %v3790
        %3792 = vmatmul.f32.gmra.mxu0 %v3276
        %v3793 = vpop.f32.mrf.mxu0
        %v3794 = vadd.f32 %v3681, %v3793
        %3795 = vmatmul.f32.gmra.mxu0 %v3285
        %v3796 = vpop.f32.mrf.mxu0
        %v3797 = vadd.f32 %v3684, %v3796
        %3798 = vmatmul.f32.gmra.mxu0 %v3294
        %v3799 = vpop.f32.mrf.mxu0
        %v3800 = vadd.f32 %v3687, %v3799
        %3801 = vmatmul.f32.gmra.mxu0 %v3303
        %v3802 = vpop.f32.mrf.mxu0
        %v3803 = vadd.f32 %v3690, %v3802
        %3804 = vmatmul.f32.gmra.mxu0 %v3312
        %v3805 = vpop.f32.mrf.mxu0
        %v3806 = vadd.f32 %v3693, %v3805
        %3807 = vdwg.mxu0
        %3808 = vmatpush.msra.mxu0 %v3383
        %3809 = vmatpush.msra.mxu0 %v3382
        %3810 = vmatpush.msra.mxu0 %v3381
        %3811 = vmatpush.msra.mxu0 %v3380
        %3812 = vmatpush.msra.mxu0 %v3379
        %3813 = vmatpush.msra.mxu0 %v3378
        %3814 = vmatpush.msra.mxu0 %v3377
        %3815 = vmatpush.msra.mxu0 %v3376
        %3816 = vmatpush.msra.mxu0 %v3375
        %3817 = vmatpush.msra.mxu0 %v3374
        %3818 = vmatpush.msra.mxu0 %v3373
        %3819 = vmatpush.msra.mxu0 %v3372
        %3820 = vmatpush.msra.mxu0 %v3371
        %3821 = vmatpush.msra.mxu0 %v3370
        %3822 = vmatpush.msra.mxu0 %v3369
        %3823 = vmatpush.msra.mxu0 %v3368
        %3824 = vmatmul.f32.gmra.mxu0 %v3034
        %v3825 = vpop.f32.mrf.mxu0
        %v3826 = vadd.f32 %v3713, %v3825
        %3827 = vmatmul.f32.gmra.mxu0 %v3043
        %v3828 = vpop.f32.mrf.mxu0
        %v3829 = vadd.f32 %v3716, %v3828
        %3830 = vmatmul.f32.gmra.mxu0 %v3052
        %v3831 = vpop.f32.mrf.mxu0
        %v3832 = vadd.f32 %v3719, %v3831
        %3833 = vmatmul.f32.gmra.mxu0 %v3061
        %v3834 = vpop.f32.mrf.mxu0
        %v3835 = vadd.f32 %v3722, %v3834
        %3836 = vmatmul.f32.gmra.mxu0 %v3070
        %v3837 = vpop.f32.mrf.mxu0
        %v3838 = vadd.f32 %v3725, %v3837
        %3839 = vmatmul.f32.gmra.mxu0 %v3079
        %v3840 = vpop.f32.mrf.mxu0
        %v3841 = vadd.f32 %v3728, %v3840
        %3842 = vmatmul.f32.gmra.mxu0 %v3088
        %v3843 = vpop.f32.mrf.mxu0
        %v3844 = vadd.f32 %v3731, %v3843
        %3845 = vmatmul.f32.gmra.mxu0 %v3097
        %v3846 = vpop.f32.mrf.mxu0
        %v3847 = vadd.f32 %v3734, %v3846
        %3848 = vmatmul.f32.gmra.mxu0 %v3106
        %v3849 = vpop.f32.mrf.mxu0
        %v3850 = vadd.f32 %v3737, %v3849
        %3851 = vmatmul.f32.gmra.mxu0 %v3115
        %v3852 = vpop.f32.mrf.mxu0
        %v3853 = vadd.f32 %v3740, %v3852
        %3854 = vmatmul.f32.gmra.mxu0 %v3124
        %v3855 = vpop.f32.mrf.mxu0
        %v3856 = vadd.f32 %v3743, %v3855
        %3857 = vmatmul.f32.gmra.mxu0 %v3133
        %v3858 = vpop.f32.mrf.mxu0
        %v3859 = vadd.f32 %v3746, %v3858
        %3860 = vmatmul.f32.gmra.mxu0 %v3142
        %v3861 = vpop.f32.mrf.mxu0
        %v3862 = vadd.f32 %v3749, %v3861
        %3863 = vmatmul.f32.gmra.mxu0 %v3151
        %v3864 = vpop.f32.mrf.mxu0
        %v3865 = vadd.f32 %v3752, %v3864
        %3866 = vmatmul.f32.gmra.mxu0 %v3160
        %v3867 = vpop.f32.mrf.mxu0
        %v3868 = vadd.f32 %v3755, %v3867
        %3869 = vmatmul.f32.gmra.mxu0 %v3169
        %v3870 = vpop.f32.mrf.mxu0
        %v3871 = vadd.f32 %v3758, %v3870
        %3872 = vmatmul.f32.gmra.mxu0 %v3178
        %v3873 = vpop.f32.mrf.mxu0
        %v3874 = vadd.f32 %v3761, %v3873
        %3875 = vmatmul.f32.gmra.mxu0 %v3187
        %v3876 = vpop.f32.mrf.mxu0
        %v3877 = vadd.f32 %v3764, %v3876
        %3878 = vmatmul.f32.gmra.mxu0 %v3196
        %v3879 = vpop.f32.mrf.mxu0
        %v3880 = vadd.f32 %v3767, %v3879
        %3881 = vmatmul.f32.gmra.mxu0 %v3205
        %v3882 = vpop.f32.mrf.mxu0
        %v3883 = vadd.f32 %v3770, %v3882
        %3884 = vmatmul.f32.gmra.mxu0 %v3214
        %v3885 = vpop.f32.mrf.mxu0
        %v3886 = vadd.f32 %v3773, %v3885
        %3887 = vmatmul.f32.gmra.mxu0 %v3223
        %v3888 = vpop.f32.mrf.mxu0
        %v3889 = vadd.f32 %v3776, %v3888
        %3890 = vmatmul.f32.gmra.mxu0 %v3232
        %v3891 = vpop.f32.mrf.mxu0
        %v3892 = vadd.f32 %v3779, %v3891
        %3893 = vmatmul.f32.gmra.mxu0 %v3241
        %v3894 = vpop.f32.mrf.mxu0
        %v3895 = vadd.f32 %v3782, %v3894
        %3896 = vmatmul.f32.gmra.mxu0 %v3250
        %v3897 = vpop.f32.mrf.mxu0
        %v3898 = vadd.f32 %v3785, %v3897
        %3899 = vmatmul.f32.gmra.mxu0 %v3259
        %v3900 = vpop.f32.mrf.mxu0
        %v3901 = vadd.f32 %v3788, %v3900
        %3902 = vmatmul.f32.gmra.mxu0 %v3268
        %v3903 = vpop.f32.mrf.mxu0
        %v3904 = vadd.f32 %v3791, %v3903
        %3905 = vmatmul.f32.gmra.mxu0 %v3277
        %v3906 = vpop.f32.mrf.mxu0
        %v3907 = vadd.f32 %v3794, %v3906
        %3908 = vmatmul.f32.gmra.mxu0 %v3286
        %v3909 = vpop.f32.mrf.mxu0
        %v3910 = vadd.f32 %v3797, %v3909
        %3911 = vmatmul.f32.gmra.mxu0 %v3295
        %v3912 = vpop.f32.mrf.mxu0
        %v3913 = vadd.f32 %v3800, %v3912
        %3914 = vmatmul.f32.gmra.mxu0 %v3304
        %v3915 = vpop.f32.mrf.mxu0
        %v3916 = vadd.f32 %v3803, %v3915
        %3917 = vmatmul.f32.gmra.mxu0 %v3313
        %v3918 = vpop.f32.mrf.mxu0
        %v3919 = vadd.f32 %v3806, %v3918
        %3920 = vdwg.mxu0
        %3921 = vmatpush.msra.mxu0 %v3399
        %3922 = vmatpush.msra.mxu0 %v3398
        %3923 = vmatpush.msra.mxu0 %v3397
        %3924 = vmatpush.msra.mxu0 %v3396
        %3925 = vmatpush.msra.mxu0 %v3395
        %3926 = vmatpush.msra.mxu0 %v3394
        %3927 = vmatpush.msra.mxu0 %v3393
        %3928 = vmatpush.msra.mxu0 %v3392
        %3929 = vmatpush.msra.mxu0 %v3391
        %3930 = vmatpush.msra.mxu0 %v3390
        %3931 = vmatpush.msra.mxu0 %v3389
        %3932 = vmatpush.msra.mxu0 %v3388
        %3933 = vmatpush.msra.mxu0 %v3387
        %3934 = vmatpush.msra.mxu0 %v3386
        %3935 = vmatpush.msra.mxu0 %v3385
        %3936 = vmatpush.msra.mxu0 %v3384
        %3937 = vmatmul.f32.gmra.mxu0 %v3035
        %v3938 = vpop.f32.mrf.mxu0
        %v3939 = vadd.f32 %v3826, %v3938
        %3940 = vmatmul.f32.gmra.mxu0 %v3044
        %v3941 = vpop.f32.mrf.mxu0
        %v3942 = vadd.f32 %v3829, %v3941
        %3943 = vmatmul.f32.gmra.mxu0 %v3053
        %v3944 = vpop.f32.mrf.mxu0
        %v3945 = vadd.f32 %v3832, %v3944
        %3946 = vmatmul.f32.gmra.mxu0 %v3062
        %v3947 = vpop.f32.mrf.mxu0
        %v3948 = vadd.f32 %v3835, %v3947
        %3949 = vmatmul.f32.gmra.mxu0 %v3071
        %v3950 = vpop.f32.mrf.mxu0
        %v3951 = vadd.f32 %v3838, %v3950
        %3952 = vmatmul.f32.gmra.mxu0 %v3080
        %v3953 = vpop.f32.mrf.mxu0
        %v3954 = vadd.f32 %v3841, %v3953
        %3955 = vmatmul.f32.gmra.mxu0 %v3089
        %v3956 = vpop.f32.mrf.mxu0
        %v3957 = vadd.f32 %v3844, %v3956
        %3958 = vmatmul.f32.gmra.mxu0 %v3098
        %v3959 = vpop.f32.mrf.mxu0
        %v3960 = vadd.f32 %v3847, %v3959
        %3961 = vmatmul.f32.gmra.mxu0 %v3107
        %v3962 = vpop.f32.mrf.mxu0
        %v3963 = vadd.f32 %v3850, %v3962
        %3964 = vmatmul.f32.gmra.mxu0 %v3116
        %v3965 = vpop.f32.mrf.mxu0
        %v3966 = vadd.f32 %v3853, %v3965
        %3967 = vmatmul.f32.gmra.mxu0 %v3125
        %v3968 = vpop.f32.mrf.mxu0
        %v3969 = vadd.f32 %v3856, %v3968
        %3970 = vmatmul.f32.gmra.mxu0 %v3134
        %v3971 = vpop.f32.mrf.mxu0
        %v3972 = vadd.f32 %v3859, %v3971
        %3973 = vmatmul.f32.gmra.mxu0 %v3143
        %v3974 = vpop.f32.mrf.mxu0
        %v3975 = vadd.f32 %v3862, %v3974
        %3976 = vmatmul.f32.gmra.mxu0 %v3152
        %v3977 = vpop.f32.mrf.mxu0
        %v3978 = vadd.f32 %v3865, %v3977
        %3979 = vmatmul.f32.gmra.mxu0 %v3161
        %v3980 = vpop.f32.mrf.mxu0
        %v3981 = vadd.f32 %v3868, %v3980
        %3982 = vmatmul.f32.gmra.mxu0 %v3170
        %v3983 = vpop.f32.mrf.mxu0
        %v3984 = vadd.f32 %v3871, %v3983
        %3985 = vmatmul.f32.gmra.mxu0 %v3179
        %v3986 = vpop.f32.mrf.mxu0
        %v3987 = vadd.f32 %v3874, %v3986
        %3988 = vmatmul.f32.gmra.mxu0 %v3188
        %v3989 = vpop.f32.mrf.mxu0
        %v3990 = vadd.f32 %v3877, %v3989
        %3991 = vmatmul.f32.gmra.mxu0 %v3197
        %v3992 = vpop.f32.mrf.mxu0
        %v3993 = vadd.f32 %v3880, %v3992
        %3994 = vmatmul.f32.gmra.mxu0 %v3206
        %v3995 = vpop.f32.mrf.mxu0
        %v3996 = vadd.f32 %v3883, %v3995
        %3997 = vmatmul.f32.gmra.mxu0 %v3215
        %v3998 = vpop.f32.mrf.mxu0
        %v3999 = vadd.f32 %v3886, %v3998
        %4000 = vmatmul.f32.gmra.mxu0 %v3224
        %v4001 = vpop.f32.mrf.mxu0
        %v4002 = vadd.f32 %v3889, %v4001
        %4003 = vmatmul.f32.gmra.mxu0 %v3233
        %v4004 = vpop.f32.mrf.mxu0
        %v4005 = vadd.f32 %v3892, %v4004
        %4006 = vmatmul.f32.gmra.mxu0 %v3242
        %v4007 = vpop.f32.mrf.mxu0
        %v4008 = vadd.f32 %v3895, %v4007
        %4009 = vmatmul.f32.gmra.mxu0 %v3251
        %v4010 = vpop.f32.mrf.mxu0
        %v4011 = vadd.f32 %v3898, %v4010
        %4012 = vmatmul.f32.gmra.mxu0 %v3260
        %v4013 = vpop.f32.mrf.mxu0
        %v4014 = vadd.f32 %v3901, %v4013
        %4015 = vmatmul.f32.gmra.mxu0 %v3269
        %v4016 = vpop.f32.mrf.mxu0
        %v4017 = vadd.f32 %v3904, %v4016
        %4018 = vmatmul.f32.gmra.mxu0 %v3278
        %v4019 = vpop.f32.mrf.mxu0
        %v4020 = vadd.f32 %v3907, %v4019
        %4021 = vmatmul.f32.gmra.mxu0 %v3287
        %v4022 = vpop.f32.mrf.mxu0
        %v4023 = vadd.f32 %v3910, %v4022
        %4024 = vmatmul.f32.gmra.mxu0 %v3296
        %v4025 = vpop.f32.mrf.mxu0
        %v4026 = vadd.f32 %v3913, %v4025
        %4027 = vmatmul.f32.gmra.mxu0 %v3305
        %v4028 = vpop.f32.mrf.mxu0
        %v4029 = vadd.f32 %v3916, %v4028
        %4030 = vmatmul.f32.gmra.mxu0 %v3314
        %v4031 = vpop.f32.mrf.mxu0
        %v4032 = vadd.f32 %v3919, %v4031
        %4033 = vdwg.mxu0
        %4034 = vmatpush.msra.mxu0 %v3415
        %4035 = vmatpush.msra.mxu0 %v3414
        %4036 = vmatpush.msra.mxu0 %v3413
        %4037 = vmatpush.msra.mxu0 %v3412
        %4038 = vmatpush.msra.mxu0 %v3411
        %4039 = vmatpush.msra.mxu0 %v3410
        %4040 = vmatpush.msra.mxu0 %v3409
        %4041 = vmatpush.msra.mxu0 %v3408
        %4042 = vmatpush.msra.mxu0 %v3407
        %4043 = vmatpush.msra.mxu0 %v3406
        %4044 = vmatpush.msra.mxu0 %v3405
        %4045 = vmatpush.msra.mxu0 %v3404
        %4046 = vmatpush.msra.mxu0 %v3403
        %4047 = vmatpush.msra.mxu0 %v3402
        %4048 = vmatpush.msra.mxu0 %v3401
        %4049 = vmatpush.msra.mxu0 %v3400
        %4050 = vmatmul.f32.gmra.mxu0 %v3036
        %v4051 = vpop.f32.mrf.mxu0
        %v4052 = vadd.f32 %v3939, %v4051
        %4053 = vmatmul.f32.gmra.mxu0 %v3045
        %v4054 = vpop.f32.mrf.mxu0
        %v4055 = vadd.f32 %v3942, %v4054
        %4056 = vmatmul.f32.gmra.mxu0 %v3054
        %v4057 = vpop.f32.mrf.mxu0
        %v4058 = vadd.f32 %v3945, %v4057
        %4059 = vmatmul.f32.gmra.mxu0 %v3063
        %v4060 = vpop.f32.mrf.mxu0
        %v4061 = vadd.f32 %v3948, %v4060
        %4062 = vmatmul.f32.gmra.mxu0 %v3072
        %v4063 = vpop.f32.mrf.mxu0
        %v4064 = vadd.f32 %v3951, %v4063
        %4065 = vmatmul.f32.gmra.mxu0 %v3081
        %v4066 = vpop.f32.mrf.mxu0
        %v4067 = vadd.f32 %v3954, %v4066
        %4068 = vmatmul.f32.gmra.mxu0 %v3090
        %v4069 = vpop.f32.mrf.mxu0
        %v4070 = vadd.f32 %v3957, %v4069
        %4071 = vmatmul.f32.gmra.mxu0 %v3099
        %v4072 = vpop.f32.mrf.mxu0
        %v4073 = vadd.f32 %v3960, %v4072
        %4074 = vmatmul.f32.gmra.mxu0 %v3108
        %v4075 = vpop.f32.mrf.mxu0
        %v4076 = vadd.f32 %v3963, %v4075
        %4077 = vmatmul.f32.gmra.mxu0 %v3117
        %v4078 = vpop.f32.mrf.mxu0
        %v4079 = vadd.f32 %v3966, %v4078
        %4080 = vmatmul.f32.gmra.mxu0 %v3126
        %v4081 = vpop.f32.mrf.mxu0
        %v4082 = vadd.f32 %v3969, %v4081
        %4083 = vmatmul.f32.gmra.mxu0 %v3135
        %v4084 = vpop.f32.mrf.mxu0
        %v4085 = vadd.f32 %v3972, %v4084
        %4086 = vmatmul.f32.gmra.mxu0 %v3144
        %v4087 = vpop.f32.mrf.mxu0
        %v4088 = vadd.f32 %v3975, %v4087
        %4089 = vmatmul.f32.gmra.mxu0 %v3153
        %v4090 = vpop.f32.mrf.mxu0
        %v4091 = vadd.f32 %v3978, %v4090
        %4092 = vmatmul.f32.gmra.mxu0 %v3162
        %v4093 = vpop.f32.mrf.mxu0
        %v4094 = vadd.f32 %v3981, %v4093
        %4095 = vmatmul.f32.gmra.mxu0 %v3171
        %v4096 = vpop.f32.mrf.mxu0
        %v4097 = vadd.f32 %v3984, %v4096
        %4098 = vmatmul.f32.gmra.mxu0 %v3180
        %v4099 = vpop.f32.mrf.mxu0
        %v4100 = vadd.f32 %v3987, %v4099
        %4101 = vmatmul.f32.gmra.mxu0 %v3189
        %v4102 = vpop.f32.mrf.mxu0
        %v4103 = vadd.f32 %v3990, %v4102
        %4104 = vmatmul.f32.gmra.mxu0 %v3198
        %v4105 = vpop.f32.mrf.mxu0
        %v4106 = vadd.f32 %v3993, %v4105
        %4107 = vmatmul.f32.gmra.mxu0 %v3207
        %v4108 = vpop.f32.mrf.mxu0
        %v4109 = vadd.f32 %v3996, %v4108
        %4110 = vmatmul.f32.gmra.mxu0 %v3216
        %v4111 = vpop.f32.mrf.mxu0
        %v4112 = vadd.f32 %v3999, %v4111
        %4113 = vmatmul.f32.gmra.mxu0 %v3225
        %v4114 = vpop.f32.mrf.mxu0
        %v4115 = vadd.f32 %v4002, %v4114
        %4116 = vmatmul.f32.gmra.mxu0 %v3234
        %v4117 = vpop.f32.mrf.mxu0
        %v4118 = vadd.f32 %v4005, %v4117
        %4119 = vmatmul.f32.gmra.mxu0 %v3243
        %v4120 = vpop.f32.mrf.mxu0
        %v4121 = vadd.f32 %v4008, %v4120
        %4122 = vmatmul.f32.gmra.mxu0 %v3252
        %v4123 = vpop.f32.mrf.mxu0
        %v4124 = vadd.f32 %v4011, %v4123
        %4125 = vmatmul.f32.gmra.mxu0 %v3261
        %v4126 = vpop.f32.mrf.mxu0
        %v4127 = vadd.f32 %v4014, %v4126
        %4128 = vmatmul.f32.gmra.mxu0 %v3270
        %v4129 = vpop.f32.mrf.mxu0
        %v4130 = vadd.f32 %v4017, %v4129
        %4131 = vmatmul.f32.gmra.mxu0 %v3279
        %v4132 = vpop.f32.mrf.mxu0
        %v4133 = vadd.f32 %v4020, %v4132
        %4134 = vmatmul.f32.gmra.mxu0 %v3288
        %v4135 = vpop.f32.mrf.mxu0
        %v4136 = vadd.f32 %v4023, %v4135
        %4137 = vmatmul.f32.gmra.mxu0 %v3297
        %v4138 = vpop.f32.mrf.mxu0
        %v4139 = vadd.f32 %v4026, %v4138
        %4140 = vmatmul.f32.gmra.mxu0 %v3306
        %v4141 = vpop.f32.mrf.mxu0
        %v4142 = vadd.f32 %v4029, %v4141
        %4143 = vmatmul.f32.gmra.mxu0 %v3315
        %v4144 = vpop.f32.mrf.mxu0
        %v4145 = vadd.f32 %v4032, %v4144
        %4146 = vdwg.mxu0
        %4147 = vmatpush.msra.mxu0 %v3431
        %4148 = vmatpush.msra.mxu0 %v3430
        %4149 = vmatpush.msra.mxu0 %v3429
        %4150 = vmatpush.msra.mxu0 %v3428
        %4151 = vmatpush.msra.mxu0 %v3427
        %4152 = vmatpush.msra.mxu0 %v3426
        %4153 = vmatpush.msra.mxu0 %v3425
        %4154 = vmatpush.msra.mxu0 %v3424
        %4155 = vmatpush.msra.mxu0 %v3423
        %4156 = vmatpush.msra.mxu0 %v3422
        %4157 = vmatpush.msra.mxu0 %v3421
        %4158 = vmatpush.msra.mxu0 %v3420
        %4159 = vmatpush.msra.mxu0 %v3419
        %4160 = vmatpush.msra.mxu0 %v3418
        %4161 = vmatpush.msra.mxu0 %v3417
        %4162 = vmatpush.msra.mxu0 %v3416
        %4163 = vmatmul.f32.gmra.mxu0 %v3037
        %v4164 = vpop.f32.mrf.mxu0
        %v4165 = vadd.f32 %v4052, %v4164
        %4166 = vmatmul.f32.gmra.mxu0 %v3046
        %v4167 = vpop.f32.mrf.mxu0
        %v4168 = vadd.f32 %v4055, %v4167
        %4169 = vmatmul.f32.gmra.mxu0 %v3055
        %v4170 = vpop.f32.mrf.mxu0
        %v4171 = vadd.f32 %v4058, %v4170
        %4172 = vmatmul.f32.gmra.mxu0 %v3064
        %v4173 = vpop.f32.mrf.mxu0
        %v4174 = vadd.f32 %v4061, %v4173
        %4175 = vmatmul.f32.gmra.mxu0 %v3073
        %v4176 = vpop.f32.mrf.mxu0
        %v4177 = vadd.f32 %v4064, %v4176
        %4178 = vmatmul.f32.gmra.mxu0 %v3082
        %v4179 = vpop.f32.mrf.mxu0
        %v4180 = vadd.f32 %v4067, %v4179
        %4181 = vmatmul.f32.gmra.mxu0 %v3091
        %v4182 = vpop.f32.mrf.mxu0
        %v4183 = vadd.f32 %v4070, %v4182
        %4184 = vmatmul.f32.gmra.mxu0 %v3100
        %v4185 = vpop.f32.mrf.mxu0
        %v4186 = vadd.f32 %v4073, %v4185
        %4187 = vmatmul.f32.gmra.mxu0 %v3109
        %v4188 = vpop.f32.mrf.mxu0
        %v4189 = vadd.f32 %v4076, %v4188
        %4190 = vmatmul.f32.gmra.mxu0 %v3118
        %v4191 = vpop.f32.mrf.mxu0
        %v4192 = vadd.f32 %v4079, %v4191
        %4193 = vmatmul.f32.gmra.mxu0 %v3127
        %v4194 = vpop.f32.mrf.mxu0
        %v4195 = vadd.f32 %v4082, %v4194
        %4196 = vmatmul.f32.gmra.mxu0 %v3136
        %v4197 = vpop.f32.mrf.mxu0
        %v4198 = vadd.f32 %v4085, %v4197
        %4199 = vmatmul.f32.gmra.mxu0 %v3145
        %v4200 = vpop.f32.mrf.mxu0
        %v4201 = vadd.f32 %v4088, %v4200
        %4202 = vmatmul.f32.gmra.mxu0 %v3154
        %v4203 = vpop.f32.mrf.mxu0
        %v4204 = vadd.f32 %v4091, %v4203
        %4205 = vmatmul.f32.gmra.mxu0 %v3163
        %v4206 = vpop.f32.mrf.mxu0
        %v4207 = vadd.f32 %v4094, %v4206
        %4208 = vmatmul.f32.gmra.mxu0 %v3172
        %v4209 = vpop.f32.mrf.mxu0
        %v4210 = vadd.f32 %v4097, %v4209
        %4211 = vmatmul.f32.gmra.mxu0 %v3181
        %v4212 = vpop.f32.mrf.mxu0
        %v4213 = vadd.f32 %v4100, %v4212
        %4214 = vmatmul.f32.gmra.mxu0 %v3190
        %v4215 = vpop.f32.mrf.mxu0
        %v4216 = vadd.f32 %v4103, %v4215
        %4217 = vmatmul.f32.gmra.mxu0 %v3199
        %v4218 = vpop.f32.mrf.mxu0
        %v4219 = vadd.f32 %v4106, %v4218
        %4220 = vmatmul.f32.gmra.mxu0 %v3208
        %v4221 = vpop.f32.mrf.mxu0
        %v4222 = vadd.f32 %v4109, %v4221
        %4223 = vmatmul.f32.gmra.mxu0 %v3217
        %v4224 = vpop.f32.mrf.mxu0
        %v4225 = vadd.f32 %v4112, %v4224
        %4226 = vmatmul.f32.gmra.mxu0 %v3226
        %v4227 = vpop.f32.mrf.mxu0
        %v4228 = vadd.f32 %v4115, %v4227
        %4229 = vmatmul.f32.gmra.mxu0 %v3235
        %v4230 = vpop.f32.mrf.mxu0
        %v4231 = vadd.f32 %v4118, %v4230
        %4232 = vmatmul.f32.gmra.mxu0 %v3244
        %v4233 = vpop.f32.mrf.mxu0
        %v4234 = vadd.f32 %v4121, %v4233
        %4235 = vmatmul.f32.gmra.mxu0 %v3253
        %v4236 = vpop.f32.mrf.mxu0
        %v4237 = vadd.f32 %v4124, %v4236
        %4238 = vmatmul.f32.gmra.mxu0 %v3262
        %v4239 = vpop.f32.mrf.mxu0
        %v4240 = vadd.f32 %v4127, %v4239
        %4241 = vmatmul.f32.gmra.mxu0 %v3271
        %v4242 = vpop.f32.mrf.mxu0
        %v4243 = vadd.f32 %v4130, %v4242
        %4244 = vmatmul.f32.gmra.mxu0 %v3280
        %v4245 = vpop.f32.mrf.mxu0
        %v4246 = vadd.f32 %v4133, %v4245
        %4247 = vmatmul.f32.gmra.mxu0 %v3289
        %v4248 = vpop.f32.mrf.mxu0
        %v4249 = vadd.f32 %v4136, %v4248
        %4250 = vmatmul.f32.gmra.mxu0 %v3298
        %v4251 = vpop.f32.mrf.mxu0
        %v4252 = vadd.f32 %v4139, %v4251
        %4253 = vmatmul.f32.gmra.mxu0 %v3307
        %v4254 = vpop.f32.mrf.mxu0
        %v4255 = vadd.f32 %v4142, %v4254
        %4256 = vmatmul.f32.gmra.mxu0 %v3316
        %v4257 = vpop.f32.mrf.mxu0
        %v4258 = vadd.f32 %v4145, %v4257
        %4259 = vdwg.mxu0
        %4260 = vmatpush.msra.mxu0 %v3447
        %4261 = vmatpush.msra.mxu0 %v3446
        %4262 = vmatpush.msra.mxu0 %v3445
        %4263 = vmatpush.msra.mxu0 %v3444
        %4264 = vmatpush.msra.mxu0 %v3443
        %4265 = vmatpush.msra.mxu0 %v3442
        %4266 = vmatpush.msra.mxu0 %v3441
        %4267 = vmatpush.msra.mxu0 %v3440
        %4268 = vmatpush.msra.mxu0 %v3439
        %4269 = vmatpush.msra.mxu0 %v3438
        %4270 = vmatpush.msra.mxu0 %v3437
        %4271 = vmatpush.msra.mxu0 %v3436
        %4272 = vmatpush.msra.mxu0 %v3435
        %4273 = vmatpush.msra.mxu0 %v3434
        %4274 = vmatpush.msra.mxu0 %v3433
        %4275 = vmatpush.msra.mxu0 %v3432
        %4276 = vmatmul.f32.gmra.mxu0 %v3038
        %v4277 = vpop.f32.mrf.mxu0
        %v4278 = vadd.f32 %v4165, %v4277
        %4279 = vmatmul.f32.gmra.mxu0 %v3047
        %v4280 = vpop.f32.mrf.mxu0
        %v4281 = vadd.f32 %v4168, %v4280
        %4282 = vmatmul.f32.gmra.mxu0 %v3056
        %v4283 = vpop.f32.mrf.mxu0
        %v4284 = vadd.f32 %v4171, %v4283
        %4285 = vmatmul.f32.gmra.mxu0 %v3065
        %v4286 = vpop.f32.mrf.mxu0
        %v4287 = vadd.f32 %v4174, %v4286
        %4288 = vmatmul.f32.gmra.mxu0 %v3074
        %v4289 = vpop.f32.mrf.mxu0
        %v4290 = vadd.f32 %v4177, %v4289
        %4291 = vmatmul.f32.gmra.mxu0 %v3083
        %v4292 = vpop.f32.mrf.mxu0
        %v4293 = vadd.f32 %v4180, %v4292
        %4294 = vmatmul.f32.gmra.mxu0 %v3092
        %v4295 = vpop.f32.mrf.mxu0
        %v4296 = vadd.f32 %v4183, %v4295
        %4297 = vmatmul.f32.gmra.mxu0 %v3101
        %v4298 = vpop.f32.mrf.mxu0
        %v4299 = vadd.f32 %v4186, %v4298
        %4300 = vmatmul.f32.gmra.mxu0 %v3110
        %v4301 = vpop.f32.mrf.mxu0
        %v4302 = vadd.f32 %v4189, %v4301
        %4303 = vmatmul.f32.gmra.mxu0 %v3119
        %v4304 = vpop.f32.mrf.mxu0
        %v4305 = vadd.f32 %v4192, %v4304
        %4306 = vmatmul.f32.gmra.mxu0 %v3128
        %v4307 = vpop.f32.mrf.mxu0
        %v4308 = vadd.f32 %v4195, %v4307
        %4309 = vmatmul.f32.gmra.mxu0 %v3137
        %v4310 = vpop.f32.mrf.mxu0
        %v4311 = vadd.f32 %v4198, %v4310
        %4312 = vmatmul.f32.gmra.mxu0 %v3146
        %v4313 = vpop.f32.mrf.mxu0
        %v4314 = vadd.f32 %v4201, %v4313
        %4315 = vmatmul.f32.gmra.mxu0 %v3155
        %v4316 = vpop.f32.mrf.mxu0
        %v4317 = vadd.f32 %v4204, %v4316
        %4318 = vmatmul.f32.gmra.mxu0 %v3164
        %v4319 = vpop.f32.mrf.mxu0
        %v4320 = vadd.f32 %v4207, %v4319
        %4321 = vmatmul.f32.gmra.mxu0 %v3173
        %v4322 = vpop.f32.mrf.mxu0
        %v4323 = vadd.f32 %v4210, %v4322
        %4324 = vmatmul.f32.gmra.mxu0 %v3182
        %v4325 = vpop.f32.mrf.mxu0
        %v4326 = vadd.f32 %v4213, %v4325
        %4327 = vmatmul.f32.gmra.mxu0 %v3191
        %v4328 = vpop.f32.mrf.mxu0
        %v4329 = vadd.f32 %v4216, %v4328
        %4330 = vmatmul.f32.gmra.mxu0 %v3200
        %v4331 = vpop.f32.mrf.mxu0
        %v4332 = vadd.f32 %v4219, %v4331
        %4333 = vmatmul.f32.gmra.mxu0 %v3209
        %v4334 = vpop.f32.mrf.mxu0
        %v4335 = vadd.f32 %v4222, %v4334
        %4336 = vmatmul.f32.gmra.mxu0 %v3218
        %v4337 = vpop.f32.mrf.mxu0
        %v4338 = vadd.f32 %v4225, %v4337
        %4339 = vmatmul.f32.gmra.mxu0 %v3227
        %v4340 = vpop.f32.mrf.mxu0
        %v4341 = vadd.f32 %v4228, %v4340
        %4342 = vmatmul.f32.gmra.mxu0 %v3236
        %v4343 = vpop.f32.mrf.mxu0
        %v4344 = vadd.f32 %v4231, %v4343
        %4345 = vmatmul.f32.gmra.mxu0 %v3245
        %v4346 = vpop.f32.mrf.mxu0
        %v4347 = vadd.f32 %v4234, %v4346
        %4348 = vmatmul.f32.gmra.mxu0 %v3254
        %v4349 = vpop.f32.mrf.mxu0
        %v4350 = vadd.f32 %v4237, %v4349
        %4351 = vmatmul.f32.gmra.mxu0 %v3263
        %v4352 = vpop.f32.mrf.mxu0
        %v4353 = vadd.f32 %v4240, %v4352
        %4354 = vmatmul.f32.gmra.mxu0 %v3272
        %v4355 = vpop.f32.mrf.mxu0
        %v4356 = vadd.f32 %v4243, %v4355
        %4357 = vmatmul.f32.gmra.mxu0 %v3281
        %v4358 = vpop.f32.mrf.mxu0
        %v4359 = vadd.f32 %v4246, %v4358
        %4360 = vmatmul.f32.gmra.mxu0 %v3290
        %v4361 = vpop.f32.mrf.mxu0
        %v4362 = vadd.f32 %v4249, %v4361
        %4363 = vmatmul.f32.gmra.mxu0 %v3299
        %v4364 = vpop.f32.mrf.mxu0
        %v4365 = vadd.f32 %v4252, %v4364
        %4366 = vmatmul.f32.gmra.mxu0 %v3308
        %v4367 = vpop.f32.mrf.mxu0
        %v4368 = vadd.f32 %v4255, %v4367
        %4369 = vmatmul.f32.gmra.mxu0 %v3317
        %v4370 = vpop.f32.mrf.mxu0
        %v4371 = vadd.f32 %v4258, %v4370
        %4372 = vdwg.mxu0
        %4373 = vmatpush.msra.mxu0 %v3463
        %4374 = vmatpush.msra.mxu0 %v3462
        %4375 = vmatpush.msra.mxu0 %v3461
        %4376 = vmatpush.msra.mxu0 %v3460
        %4377 = vmatpush.msra.mxu0 %v3459
        %4378 = vmatpush.msra.mxu0 %v3458
        %4379 = vmatpush.msra.mxu0 %v3457
        %4380 = vmatpush.msra.mxu0 %v3456
        %4381 = vmatpush.msra.mxu0 %v3455
        %4382 = vmatpush.msra.mxu0 %v3454
        %4383 = vmatpush.msra.mxu0 %v3453
        %4384 = vmatpush.msra.mxu0 %v3452
        %4385 = vmatpush.msra.mxu0 %v3451
        %4386 = vmatpush.msra.mxu0 %v3450
        %4387 = vmatpush.msra.mxu0 %v3449
        %4388 = vmatpush.msra.mxu0 %v3448
        %4389 = vmatmul.f32.gmra.mxu0 %v3039
        %v4390 = vpop.f32.mrf.mxu0
        %v4391 = vadd.f32 %v4278, %v4390
        %4392 = vmatmul.f32.gmra.mxu0 %v3048
        %v4393 = vpop.f32.mrf.mxu0
        %v4394 = vadd.f32 %v4281, %v4393
        %4395 = vmatmul.f32.gmra.mxu0 %v3057
        %v4396 = vpop.f32.mrf.mxu0
        %v4397 = vadd.f32 %v4284, %v4396
        %4398 = vmatmul.f32.gmra.mxu0 %v3066
        %v4399 = vpop.f32.mrf.mxu0
        %v4400 = vadd.f32 %v4287, %v4399
        %4401 = vmatmul.f32.gmra.mxu0 %v3075
        %v4402 = vpop.f32.mrf.mxu0
        %v4403 = vadd.f32 %v4290, %v4402
        %4404 = vmatmul.f32.gmra.mxu0 %v3084
        %v4405 = vpop.f32.mrf.mxu0
        %v4406 = vadd.f32 %v4293, %v4405
        %4407 = vmatmul.f32.gmra.mxu0 %v3093
        %v4408 = vpop.f32.mrf.mxu0
        %v4409 = vadd.f32 %v4296, %v4408
        %4410 = vmatmul.f32.gmra.mxu0 %v3102
        %v4411 = vpop.f32.mrf.mxu0
        %v4412 = vadd.f32 %v4299, %v4411
        %4413 = vmatmul.f32.gmra.mxu0 %v3111
        %v4414 = vpop.f32.mrf.mxu0
        %v4415 = vadd.f32 %v4302, %v4414
        %4416 = vmatmul.f32.gmra.mxu0 %v3120
        %v4417 = vpop.f32.mrf.mxu0
        %v4418 = vadd.f32 %v4305, %v4417
        %4419 = vmatmul.f32.gmra.mxu0 %v3129
        %v4420 = vpop.f32.mrf.mxu0
        %v4421 = vadd.f32 %v4308, %v4420
        %4422 = vmatmul.f32.gmra.mxu0 %v3138
        %v4423 = vpop.f32.mrf.mxu0
        %v4424 = vadd.f32 %v4311, %v4423
        %4425 = vmatmul.f32.gmra.mxu0 %v3147
        %v4426 = vpop.f32.mrf.mxu0
        %v4427 = vadd.f32 %v4314, %v4426
        %4428 = vmatmul.f32.gmra.mxu0 %v3156
        %v4429 = vpop.f32.mrf.mxu0
        %v4430 = vadd.f32 %v4317, %v4429
        %4431 = vmatmul.f32.gmra.mxu0 %v3165
        %v4432 = vpop.f32.mrf.mxu0
        %v4433 = vadd.f32 %v4320, %v4432
        %4434 = vmatmul.f32.gmra.mxu0 %v3174
        %v4435 = vpop.f32.mrf.mxu0
        %v4436 = vadd.f32 %v4323, %v4435
        %4437 = vmatmul.f32.gmra.mxu0 %v3183
        %v4438 = vpop.f32.mrf.mxu0
        %v4439 = vadd.f32 %v4326, %v4438
        %4440 = vmatmul.f32.gmra.mxu0 %v3192
        %v4441 = vpop.f32.mrf.mxu0
        %v4442 = vadd.f32 %v4329, %v4441
        %4443 = vmatmul.f32.gmra.mxu0 %v3201
        %v4444 = vpop.f32.mrf.mxu0
        %v4445 = vadd.f32 %v4332, %v4444
        %4446 = vmatmul.f32.gmra.mxu0 %v3210
        %v4447 = vpop.f32.mrf.mxu0
        %v4448 = vadd.f32 %v4335, %v4447
        %4449 = vmatmul.f32.gmra.mxu0 %v3219
        %v4450 = vpop.f32.mrf.mxu0
        %v4451 = vadd.f32 %v4338, %v4450
        %4452 = vmatmul.f32.gmra.mxu0 %v3228
        %v4453 = vpop.f32.mrf.mxu0
        %v4454 = vadd.f32 %v4341, %v4453
        %4455 = vmatmul.f32.gmra.mxu0 %v3237
        %v4456 = vpop.f32.mrf.mxu0
        %v4457 = vadd.f32 %v4344, %v4456
        %4458 = vmatmul.f32.gmra.mxu0 %v3246
        %v4459 = vpop.f32.mrf.mxu0
        %v4460 = vadd.f32 %v4347, %v4459
        %4461 = vmatmul.f32.gmra.mxu0 %v3255
        %v4462 = vpop.f32.mrf.mxu0
        %v4463 = vadd.f32 %v4350, %v4462
        %4464 = vmatmul.f32.gmra.mxu0 %v3264
        %v4465 = vpop.f32.mrf.mxu0
        %v4466 = vadd.f32 %v4353, %v4465
        %4467 = vmatmul.f32.gmra.mxu0 %v3273
        %v4468 = vpop.f32.mrf.mxu0
        %v4469 = vadd.f32 %v4356, %v4468
        %4470 = vmatmul.f32.gmra.mxu0 %v3282
        %v4471 = vpop.f32.mrf.mxu0
        %v4472 = vadd.f32 %v4359, %v4471
        %4473 = vmatmul.f32.gmra.mxu0 %v3291
        %v4474 = vpop.f32.mrf.mxu0
        %v4475 = vadd.f32 %v4362, %v4474
        %4476 = vmatmul.f32.gmra.mxu0 %v3300
        %v4477 = vpop.f32.mrf.mxu0
        %v4478 = vadd.f32 %v4365, %v4477
        %4479 = vmatmul.f32.gmra.mxu0 %v3309
        %v4480 = vpop.f32.mrf.mxu0
        %v4481 = vadd.f32 %v4368, %v4480
        %4482 = vmatmul.f32.gmra.mxu0 %v3318
        %v4483 = vpop.f32.mrf.mxu0
        %v4484 = vadd.f32 %v4371, %v4483
        %4485 = vdwg.mxu0
        %v4486 = vmax.f32 %v4391, 0.0
        %v4487 = vmax.f32 %v4394, 0.0
        %v4488 = vmax.f32 %v4397, 0.0
        %v4489 = vmax.f32 %v4400, 0.0
        %v4490 = vmax.f32 %v4403, 0.0
        %v4491 = vmax.f32 %v4406, 0.0
        %v4492 = vmax.f32 %v4409, 0.0
        %v4493 = vmax.f32 %v4412, 0.0
        %v4494 = vmax.f32 %v4415, 0.0
        %v4495 = vmax.f32 %v4418, 0.0
        %v4496 = vmax.f32 %v4421, 0.0
        %v4497 = vmax.f32 %v4424, 0.0
        %v4498 = vmax.f32 %v4427, 0.0
        %v4499 = vmax.f32 %v4430, 0.0
        %v4500 = vmax.f32 %v4433, 0.0
        %v4501 = vmax.f32 %v4436, 0.0
        %v4502 = vmax.f32 %v4439, 0.0
        %v4503 = vmax.f32 %v4442, 0.0
        %v4504 = vmax.f32 %v4445, 0.0
        %v4505 = vmax.f32 %v4448, 0.0
        %v4506 = vmax.f32 %v4451, 0.0
        %v4507 = vmax.f32 %v4454, 0.0
        %v4508 = vmax.f32 %v4457, 0.0
        %v4509 = vmax.f32 %v4460, 0.0
        %v4510 = vmax.f32 %v4463, 0.0
        %v4511 = vmax.f32 %v4466, 0.0
        %v4512 = vmax.f32 %v4469, 0.0
        %v4513 = vmax.f32 %v4472, 0.0
        %v4514 = vmax.f32 %v4475, 0.0
        %v4515 = vmax.f32 %v4478, 0.0
        %v4516 = vmax.f32 %v4481, 0.0
        %v4517 = vmax.f32 %v4484, 0.0
        %4518 = vst [vmem:[%s328 + $0x8] sm:$0xff] %v4486
        %4519 = vst [vmem:[%s328 + $0x10] sm:$0xff] %v4487
        %4520 = vst [vmem:[%s328 + $0x28] sm:$0xff] %v4488
        %4521 = vst [vmem:[%s328 + $0x30] sm:$0xff] %v4489
        %4522 = vst [vmem:[%s328 + $0x48] sm:$0xff] %v4490
        %4523 = vst [vmem:[%s328 + $0x50] sm:$0xff] %v4491
        %4524 = vst [vmem:[%s328 + $0x68] sm:$0xff] %v4492
        %4525 = vst [vmem:[%s328 + $0x70] sm:$0xff] %v4493
        %4526 = vst [vmem:[%s328 + $0x88] sm:$0xff] %v4494
        %4527 = vst [vmem:[%s328 + $0x90] sm:$0xff] %v4495
        %4528 = vst [vmem:[%s328 + $0xa8] sm:$0xff] %v4496
        %4529 = vst [vmem:[%s328 + $0xb0] sm:$0xff] %v4497
        %4530 = vst [vmem:[%s328 + $0xc8] sm:$0xff] %v4498
        %4531 = vst [vmem:[%s328 + $0xd0] sm:$0xff] %v4499
        %4532 = vst [vmem:[%s328 + $0xe8] sm:$0xff] %v4500
        %4533 = vst [vmem:[%s328 + $0xf0] sm:$0xff] %v4501
        %4534 = vst [vmem:[%s328 + $0x108] sm:$0xff] %v4502
        %4535 = vst [vmem:[%s328 + $0x110] sm:$0xff] %v4503
        %4536 = vst [vmem:[%s328 + $0x128] sm:$0xff] %v4504
        %4537 = vst [vmem:[%s328 + $0x130] sm:$0xff] %v4505
        %4538 = vst [vmem:[%s328 + $0x148] sm:$0xff] %v4506
        %4539 = vst [vmem:[%s328 + $0x150] sm:$0xff] %v4507
        %4540 = vst [vmem:[%s328 + $0x168] sm:$0xff] %v4508
        %4541 = vst [vmem:[%s328 + $0x170] sm:$0xff] %v4509
        %4542 = vst [vmem:[%s328 + $0x188] sm:$0xff] %v4510
        %4543 = vst [vmem:[%s328 + $0x190] sm:$0xff] %v4511
        %4544 = vst [vmem:[%s328 + $0x1a8] sm:$0xff] %v4512
        %4545 = vst [vmem:[%s328 + $0x1b0] sm:$0xff] %v4513
        %4546 = vst [vmem:[%s328 + $0x1c8] sm:$0xff] %v4514
        %4547 = vst [vmem:[%s328 + $0x1d0] sm:$0xff] %v4515
        %4548 = vst [vmem:[%s328 + $0x1e8] sm:$0xff] %v4516
        %4549 = vst [vmem:[%s328 + $0x1f0] sm:$0xff] %v4517
        %v4550 = vld [vmem:[#allocation2 + $0x7] sm:$0xff]
        %v4551 = vld [vmem:[#allocation2 + $0xf] sm:$0xff]
        %v4552 = vld [vmem:[#allocation2 + $0x27] sm:$0xff]
        %v4553 = vld [vmem:[#allocation2 + $0x2f] sm:$0xff]
        %v4554 = vld [vmem:[#allocation2 + $0x47] sm:$0xff]
        %v4555 = vld [vmem:[#allocation2 + $0x4f] sm:$0xff]
        %v4556 = vld [vmem:[#allocation2 + $0x67] sm:$0xff]
        %v4557 = vld [vmem:[#allocation2 + $0x6f] sm:$0xff]
        %v4558 = vld [vmem:[#allocation2 + $0x87] sm:$0xff]
        %v4559 = vld [vmem:[#allocation2 + $0x8f] sm:$0xff]
        %v4560 = vld [vmem:[#allocation2 + $0xa7] sm:$0xff]
        %v4561 = vld [vmem:[#allocation2 + $0xaf] sm:$0xff]
        %v4562 = vld [vmem:[#allocation2 + $0xc7] sm:$0xff]
        %v4563 = vld [vmem:[#allocation2 + $0xcf] sm:$0xff]
        %v4564 = vld [vmem:[#allocation2 + $0xe7] sm:$0xff]
        %v4565 = vld [vmem:[#allocation2 + $0xef] sm:$0xff]
        %v4566 = vld [vmem:[#allocation2 + $0x107] sm:$0xff]
        %v4567 = vld [vmem:[#allocation2 + $0x10f] sm:$0xff]
        %v4568 = vld [vmem:[#allocation2 + $0x127] sm:$0xff]
        %v4569 = vld [vmem:[#allocation2 + $0x12f] sm:$0xff]
        %v4570 = vld [vmem:[#allocation2 + $0x147] sm:$0xff]
        %v4571 = vld [vmem:[#allocation2 + $0x14f] sm:$0xff]
        %v4572 = vld [vmem:[#allocation2 + $0x167] sm:$0xff]
        %v4573 = vld [vmem:[#allocation2 + $0x16f] sm:$0xff]
        %v4574 = vld [vmem:[#allocation2 + $0x187] sm:$0xff]
        %v4575 = vld [vmem:[#allocation2 + $0x18f] sm:$0xff]
        %v4576 = vld [vmem:[#allocation2 + $0x1a7] sm:$0xff]
        %v4577 = vld [vmem:[#allocation2 + $0x1af] sm:$0xff]
        %v4578 = vld [vmem:[#allocation2 + $0x1c7] sm:$0xff]
        %v4579 = vld [vmem:[#allocation2 + $0x1cf] sm:$0xff]
        %v4580 = vld [vmem:[#allocation2 + $0x1e7] sm:$0xff]
        %v4581 = vld [vmem:[#allocation2 + $0x1ef] sm:$0xff]
        %4582 = vst [vmem:[#allocation3] sm:$0xff] %v4550
        %4583 = vst [vmem:[#allocation3 + $0x48] sm:$0xff] %v4551
        %4584 = vst [vmem:[#allocation3 + $0x90] sm:$0xff] %v4552
        %4585 = vst [vmem:[#allocation3 + $0xd8] sm:$0xff] %v4553
        %4586 = vst [vmem:[#allocation3 + $0x120] sm:$0xff] %v4554
        %4587 = vst [vmem:[#allocation3 + $0x168] sm:$0xff] %v4555
        %4588 = vst [vmem:[#allocation3 + $0x1b0] sm:$0xff] %v4556
        %4589 = vst [vmem:[#allocation3 + $0x1f8] sm:$0xff] %v4557
        %4590 = vst [vmem:[#allocation3 + $0x240] sm:$0xff] %v4558
        %4591 = vst [vmem:[#allocation3 + $0x288] sm:$0xff] %v4559
        %4592 = vst [vmem:[#allocation3 + $0x2d0] sm:$0xff] %v4560
        %4593 = vst [vmem:[#allocation3 + $0x318] sm:$0xff] %v4561
        %4594 = vst [vmem:[#allocation3 + $0x360] sm:$0xff] %v4562
        %4595 = vst [vmem:[#allocation3 + $0x3a8] sm:$0xff] %v4563
        %4596 = vst [vmem:[#allocation3 + $0x3f0] sm:$0xff] %v4564
        %4597 = vst [vmem:[#allocation3 + $0x438] sm:$0xff] %v4565
        %4598 = vst [vmem:[#allocation3 + $0x480] sm:$0xff] %v4566
        %4599 = vst [vmem:[#allocation3 + $0x4c8] sm:$0xff] %v4567
        %4600 = vst [vmem:[#allocation3 + $0x510] sm:$0xff] %v4568
        %4601 = vst [vmem:[#allocation3 + $0x558] sm:$0xff] %v4569
        %4602 = vst [vmem:[#allocation3 + $0x5a0] sm:$0xff] %v4570
        %4603 = vst [vmem:[#allocation3 + $0x5e8] sm:$0xff] %v4571
        %4604 = vst [vmem:[#allocation3 + $0x630] sm:$0xff] %v4572
        %4605 = vst [vmem:[#allocation3 + $0x678] sm:$0xff] %v4573
        %4606 = vst [vmem:[#allocation3 + $0x6c0] sm:$0xff] %v4574
        %4607 = vst [vmem:[#allocation3 + $0x708] sm:$0xff] %v4575
        %4608 = vst [vmem:[#allocation3 + $0x750] sm:$0xff] %v4576
        %4609 = vst [vmem:[#allocation3 + $0x798] sm:$0xff] %v4577
        %4610 = vst [vmem:[#allocation3 + $0x7e0] sm:$0xff] %v4578
        %4611 = vst [vmem:[#allocation3 + $0x828] sm:$0xff] %v4579
        %4612 = vst [vmem:[#allocation3 + $0x870] sm:$0xff] %v4580
        %4613 = vst [vmem:[#allocation3 + $0x8b8] sm:$0xff] %v4581
        %v4614 = vld [vmem:[#allocation2 + $0x8] sm:$0xff]
        %v4615 = vld [vmem:[#allocation2 + $0x10] sm:$0xff]
        %v4616 = vld [vmem:[#allocation2 + $0x28] sm:$0xff]
        %v4617 = vld [vmem:[#allocation2 + $0x30] sm:$0xff]
        %v4618 = vld [vmem:[#allocation2 + $0x48] sm:$0xff]
        %v4619 = vld [vmem:[#allocation2 + $0x50] sm:$0xff]
        %v4620 = vld [vmem:[#allocation2 + $0x68] sm:$0xff]
        %v4621 = vld [vmem:[#allocation2 + $0x70] sm:$0xff]
        %v4622 = vld [vmem:[#allocation2 + $0x88] sm:$0xff]
        %v4623 = vld [vmem:[#allocation2 + $0x90] sm:$0xff]
        %v4624 = vld [vmem:[#allocation2 + $0xa8] sm:$0xff]
        %v4625 = vld [vmem:[#allocation2 + $0xb0] sm:$0xff]
        %v4626 = vld [vmem:[#allocation2 + $0xc8] sm:$0xff]
        %v4627 = vld [vmem:[#allocation2 + $0xd0] sm:$0xff]
        %v4628 = vld [vmem:[#allocation2 + $0xe8] sm:$0xff]
        %v4629 = vld [vmem:[#allocation2 + $0xf0] sm:$0xff]
        %v4630 = vld [vmem:[#allocation2 + $0x108] sm:$0xff]
        %v4631 = vld [vmem:[#allocation2 + $0x110] sm:$0xff]
        %v4632 = vld [vmem:[#allocation2 + $0x128] sm:$0xff]
        %v4633 = vld [vmem:[#allocation2 + $0x130] sm:$0xff]
        %v4634 = vld [vmem:[#allocation2 + $0x148] sm:$0xff]
        %v4635 = vld [vmem:[#allocation2 + $0x150] sm:$0xff]
        %v4636 = vld [vmem:[#allocation2 + $0x168] sm:$0xff]
        %v4637 = vld [vmem:[#allocation2 + $0x170] sm:$0xff]
        %v4638 = vld [vmem:[#allocation2 + $0x188] sm:$0xff]
        %v4639 = vld [vmem:[#allocation2 + $0x190] sm:$0xff]
        %v4640 = vld [vmem:[#allocation2 + $0x1a8] sm:$0xff]
        %v4641 = vld [vmem:[#allocation2 + $0x1b0] sm:$0xff]
        %v4642 = vld [vmem:[#allocation2 + $0x1c8] sm:$0xff]
        %v4643 = vld [vmem:[#allocation2 + $0x1d0] sm:$0xff]
        %v4644 = vld [vmem:[#allocation2 + $0x1e8] sm:$0xff]
        %v4645 = vld [vmem:[#allocation2 + $0x1f0] sm:$0xff]
        %4646 = vst [vmem:[#allocation3 + $0x8] sm:$0xff] %v4614
        %4647 = vst [vmem:[#allocation3 + $0x50] sm:$0xff] %v4615
        %4648 = vst [vmem:[#allocation3 + $0x98] sm:$0xff] %v4616
        %4649 = vst [vmem:[#allocation3 + $0xe0] sm:$0xff] %v4617
        %4650 = vst [vmem:[#allocation3 + $0x128] sm:$0xff] %v4618
        %4651 = vst [vmem:[#allocation3 + $0x170] sm:$0xff] %v4619
        %4652 = vst [vmem:[#allocation3 + $0x1b8] sm:$0xff] %v4620
        %4653 = vst [vmem:[#allocation3 + $0x200] sm:$0xff] %v4621
        %4654 = vst [vmem:[#allocation3 + $0x248] sm:$0xff] %v4622
        %4655 = vst [vmem:[#allocation3 + $0x290] sm:$0xff] %v4623
        %4656 = vst [vmem:[#allocation3 + $0x2d8] sm:$0xff] %v4624
        %4657 = vst [vmem:[#allocation3 + $0x320] sm:$0xff] %v4625
        %4658 = vst [vmem:[#allocation3 + $0x368] sm:$0xff] %v4626
        %4659 = vst [vmem:[#allocation3 + $0x3b0] sm:$0xff] %v4627
        %4660 = vst [vmem:[#allocation3 + $0x3f8] sm:$0xff] %v4628
        %4661 = vst [vmem:[#allocation3 + $0x440] sm:$0xff] %v4629
        %4662 = vst [vmem:[#allocation3 + $0x488] sm:$0xff] %v4630
        %4663 = vst [vmem:[#allocation3 + $0x4d0] sm:$0xff] %v4631
        %4664 = vst [vmem:[#allocation3 + $0x518] sm:$0xff] %v4632
        %4665 = vst [vmem:[#allocation3 + $0x560] sm:$0xff] %v4633
        %4666 = vst [vmem:[#allocation3 + $0x5a8] sm:$0xff] %v4634
        %4667 = vst [vmem:[#allocation3 + $0x5f0] sm:$0xff] %v4635
        %4668 = vst [vmem:[#allocation3 + $0x638] sm:$0xff] %v4636
        %4669 = vst [vmem:[#allocation3 + $0x680] sm:$0xff] %v4637
        %4670 = vst [vmem:[#allocation3 + $0x6c8] sm:$0xff] %v4638
        %4671 = vst [vmem:[#allocation3 + $0x710] sm:$0xff] %v4639
        %4672 = vst [vmem:[#allocation3 + $0x758] sm:$0xff] %v4640
        %4673 = vst [vmem:[#allocation3 + $0x7a0] sm:$0xff] %v4641
        %4674 = vst [vmem:[#allocation3 + $0x7e8] sm:$0xff] %v4642
        %4675 = vst [vmem:[#allocation3 + $0x830] sm:$0xff] %v4643
        %4676 = vst [vmem:[#allocation3 + $0x878] sm:$0xff] %v4644
        %4677 = vst [vmem:[#allocation3 + $0x8c0] sm:$0xff] %v4645
        %v4678 = vld [vmem:[#allocation2 + $0x9] sm:$0xff]
        %v4679 = vld [vmem:[#allocation2 + $0x11] sm:$0xff]
        %v4680 = vld [vmem:[#allocation2 + $0x29] sm:$0xff]
        %v4681 = vld [vmem:[#allocation2 + $0x31] sm:$0xff]
        %v4682 = vld [vmem:[#allocation2 + $0x49] sm:$0xff]
        %v4683 = vld [vmem:[#allocation2 + $0x51] sm:$0xff]
        %v4684 = vld [vmem:[#allocation2 + $0x69] sm:$0xff]
        %v4685 = vld [vmem:[#allocation2 + $0x71] sm:$0xff]
        %v4686 = vld [vmem:[#allocation2 + $0x89] sm:$0xff]
        %v4687 = vld [vmem:[#allocation2 + $0x91] sm:$0xff]
        %v4688 = vld [vmem:[#allocation2 + $0xa9] sm:$0xff]
        %v4689 = vld [vmem:[#allocation2 + $0xb1] sm:$0xff]
        %v4690 = vld [vmem:[#allocation2 + $0xc9] sm:$0xff]
        %v4691 = vld [vmem:[#allocation2 + $0xd1] sm:$0xff]
        %v4692 = vld [vmem:[#allocation2 + $0xe9] sm:$0xff]
        %v4693 = vld [vmem:[#allocation2 + $0xf1] sm:$0xff]
        %v4694 = vld [vmem:[#allocation2 + $0x109] sm:$0xff]
        %v4695 = vld [vmem:[#allocation2 + $0x111] sm:$0xff]
        %v4696 = vld [vmem:[#allocation2 + $0x129] sm:$0xff]
        %v4697 = vld [vmem:[#allocation2 + $0x131] sm:$0xff]
        %v4698 = vld [vmem:[#allocation2 + $0x149] sm:$0xff]
        %v4699 = vld [vmem:[#allocation2 + $0x151] sm:$0xff]
        %v4700 = vld [vmem:[#allocation2 + $0x169] sm:$0xff]
        %v4701 = vld [vmem:[#allocation2 + $0x171] sm:$0xff]
        %v4702 = vld [vmem:[#allocation2 + $0x189] sm:$0xff]
        %v4703 = vld [vmem:[#allocation2 + $0x191] sm:$0xff]
        %v4704 = vld [vmem:[#allocation2 + $0x1a9] sm:$0xff]
        %v4705 = vld [vmem:[#allocation2 + $0x1b1] sm:$0xff]
        %v4706 = vld [vmem:[#allocation2 + $0x1c9] sm:$0xff]
        %v4707 = vld [vmem:[#allocation2 + $0x1d1] sm:$0xff]
        %v4708 = vld [vmem:[#allocation2 + $0x1e9] sm:$0xff]
        %v4709 = vld [vmem:[#allocation2 + $0x1f1] sm:$0xff]
        %4710 = vst [vmem:[#allocation3 + $0x10] sm:$0xff] %v4678
        %4711 = vst [vmem:[#allocation3 + $0x58] sm:$0xff] %v4679
        %4712 = vst [vmem:[#allocation3 + $0xa0] sm:$0xff] %v4680
        %4713 = vst [vmem:[#allocation3 + $0xe8] sm:$0xff] %v4681
        %4714 = vst [vmem:[#allocation3 + $0x130] sm:$0xff] %v4682
        %4715 = vst [vmem:[#allocation3 + $0x178] sm:$0xff] %v4683
        %4716 = vst [vmem:[#allocation3 + $0x1c0] sm:$0xff] %v4684
        %4717 = vst [vmem:[#allocation3 + $0x208] sm:$0xff] %v4685
        %4718 = vst [vmem:[#allocation3 + $0x250] sm:$0xff] %v4686
        %4719 = vst [vmem:[#allocation3 + $0x298] sm:$0xff] %v4687
        %4720 = vst [vmem:[#allocation3 + $0x2e0] sm:$0xff] %v4688
        %4721 = vst [vmem:[#allocation3 + $0x328] sm:$0xff] %v4689
        %4722 = vst [vmem:[#allocation3 + $0x370] sm:$0xff] %v4690
        %4723 = vst [vmem:[#allocation3 + $0x3b8] sm:$0xff] %v4691
        %4724 = vst [vmem:[#allocation3 + $0x400] sm:$0xff] %v4692
        %4725 = vst [vmem:[#allocation3 + $0x448] sm:$0xff] %v4693
        %4726 = vst [vmem:[#allocation3 + $0x490] sm:$0xff] %v4694
        %4727 = vst [vmem:[#allocation3 + $0x4d8] sm:$0xff] %v4695
        %4728 = vst [vmem:[#allocation3 + $0x520] sm:$0xff] %v4696
        %4729 = vst [vmem:[#allocation3 + $0x568] sm:$0xff] %v4697
        %4730 = vst [vmem:[#allocation3 + $0x5b0] sm:$0xff] %v4698
        %4731 = vst [vmem:[#allocation3 + $0x5f8] sm:$0xff] %v4699
        %4732 = vst [vmem:[#allocation3 + $0x640] sm:$0xff] %v4700
        %4733 = vst [vmem:[#allocation3 + $0x688] sm:$0xff] %v4701
        %4734 = vst [vmem:[#allocation3 + $0x6d0] sm:$0xff] %v4702
        %4735 = vst [vmem:[#allocation3 + $0x718] sm:$0xff] %v4703
        %4736 = vst [vmem:[#allocation3 + $0x760] sm:$0xff] %v4704
        %4737 = vst [vmem:[#allocation3 + $0x7a8] sm:$0xff] %v4705
        %4738 = vst [vmem:[#allocation3 + $0x7f0] sm:$0xff] %v4706
        %4739 = vst [vmem:[#allocation3 + $0x838] sm:$0xff] %v4707
        %4740 = vst [vmem:[#allocation3 + $0x880] sm:$0xff] %v4708
        %4741 = vst [vmem:[#allocation3 + $0x8c8] sm:$0xff] %v4709
        %v4742 = vld [vmem:[%s328 + $0x7] sm:$0xff]
        %v4743 = vld [vmem:[%s328 + $0xf] sm:$0xff]
        %v4744 = vld [vmem:[%s328 + $0x27] sm:$0xff]
        %v4745 = vld [vmem:[%s328 + $0x2f] sm:$0xff]
        %v4746 = vld [vmem:[%s328 + $0x47] sm:$0xff]
        %v4747 = vld [vmem:[%s328 + $0x4f] sm:$0xff]
        %v4748 = vld [vmem:[%s328 + $0x67] sm:$0xff]
        %v4749 = vld [vmem:[%s328 + $0x6f] sm:$0xff]
        %v4750 = vld [vmem:[%s328 + $0x87] sm:$0xff]
        %v4751 = vld [vmem:[%s328 + $0x8f] sm:$0xff]
        %v4752 = vld [vmem:[%s328 + $0xa7] sm:$0xff]
        %v4753 = vld [vmem:[%s328 + $0xaf] sm:$0xff]
        %v4754 = vld [vmem:[%s328 + $0xc7] sm:$0xff]
        %v4755 = vld [vmem:[%s328 + $0xcf] sm:$0xff]
        %v4756 = vld [vmem:[%s328 + $0xe7] sm:$0xff]
        %v4757 = vld [vmem:[%s328 + $0xef] sm:$0xff]
        %v4758 = vld [vmem:[%s328 + $0x107] sm:$0xff]
        %v4759 = vld [vmem:[%s328 + $0x10f] sm:$0xff]
        %v4760 = vld [vmem:[%s328 + $0x127] sm:$0xff]
        %v4761 = vld [vmem:[%s328 + $0x12f] sm:$0xff]
        %v4762 = vld [vmem:[%s328 + $0x147] sm:$0xff]
        %v4763 = vld [vmem:[%s328 + $0x14f] sm:$0xff]
        %v4764 = vld [vmem:[%s328 + $0x167] sm:$0xff]
        %v4765 = vld [vmem:[%s328 + $0x16f] sm:$0xff]
        %v4766 = vld [vmem:[%s328 + $0x187] sm:$0xff]
        %v4767 = vld [vmem:[%s328 + $0x18f] sm:$0xff]
        %v4768 = vld [vmem:[%s328 + $0x1a7] sm:$0xff]
        %v4769 = vld [vmem:[%s328 + $0x1af] sm:$0xff]
        %v4770 = vld [vmem:[%s328 + $0x1c7] sm:$0xff]
        %v4771 = vld [vmem:[%s328 + $0x1cf] sm:$0xff]
        %v4772 = vld [vmem:[%s328 + $0x1e7] sm:$0xff]
        %v4773 = vld [vmem:[%s328 + $0x1ef] sm:$0xff]
        %4774 = vst [vmem:[#allocation3 + $0x18] sm:$0xff] %v4742
        %4775 = vst [vmem:[#allocation3 + $0x60] sm:$0xff] %v4743
        %4776 = vst [vmem:[#allocation3 + $0xa8] sm:$0xff] %v4744
        %4777 = vst [vmem:[#allocation3 + $0xf0] sm:$0xff] %v4745
        %4778 = vst [vmem:[#allocation3 + $0x138] sm:$0xff] %v4746
        %4779 = vst [vmem:[#allocation3 + $0x180] sm:$0xff] %v4747
        %4780 = vst [vmem:[#allocation3 + $0x1c8] sm:$0xff] %v4748
        %4781 = vst [vmem:[#allocation3 + $0x210] sm:$0xff] %v4749
        %4782 = vst [vmem:[#allocation3 + $0x258] sm:$0xff] %v4750
        %4783 = vst [vmem:[#allocation3 + $0x2a0] sm:$0xff] %v4751
        %4784 = vst [vmem:[#allocation3 + $0x2e8] sm:$0xff] %v4752
        %4785 = vst [vmem:[#allocation3 + $0x330] sm:$0xff] %v4753
        %4786 = vst [vmem:[#allocation3 + $0x378] sm:$0xff] %v4754
        %4787 = vst [vmem:[#allocation3 + $0x3c0] sm:$0xff] %v4755
        %4788 = vst [vmem:[#allocation3 + $0x408] sm:$0xff] %v4756
        %4789 = vst [vmem:[#allocation3 + $0x450] sm:$0xff] %v4757
        %4790 = vst [vmem:[#allocation3 + $0x498] sm:$0xff] %v4758
        %4791 = vst [vmem:[#allocation3 + $0x4e0] sm:$0xff] %v4759
        %4792 = vst [vmem:[#allocation3 + $0x528] sm:$0xff] %v4760
        %4793 = vst [vmem:[#allocation3 + $0x570] sm:$0xff] %v4761
        %4794 = vst [vmem:[#allocation3 + $0x5b8] sm:$0xff] %v4762
        %4795 = vst [vmem:[#allocation3 + $0x600] sm:$0xff] %v4763
        %4796 = vst [vmem:[#allocation3 + $0x648] sm:$0xff] %v4764
        %4797 = vst [vmem:[#allocation3 + $0x690] sm:$0xff] %v4765
        %4798 = vst [vmem:[#allocation3 + $0x6d8] sm:$0xff] %v4766
        %4799 = vst [vmem:[#allocation3 + $0x720] sm:$0xff] %v4767
        %4800 = vst [vmem:[#allocation3 + $0x768] sm:$0xff] %v4768
        %4801 = vst [vmem:[#allocation3 + $0x7b0] sm:$0xff] %v4769
        %4802 = vst [vmem:[#allocation3 + $0x7f8] sm:$0xff] %v4770
        %4803 = vst [vmem:[#allocation3 + $0x840] sm:$0xff] %v4771
        %4804 = vst [vmem:[#allocation3 + $0x888] sm:$0xff] %v4772
        %4805 = vst [vmem:[#allocation3 + $0x8d0] sm:$0xff] %v4773
        %v4806 = vld [vmem:[%s328 + $0x8] sm:$0xff]
        %v4807 = vld [vmem:[%s328 + $0x10] sm:$0xff]
        %v4808 = vld [vmem:[%s328 + $0x28] sm:$0xff]
        %v4809 = vld [vmem:[%s328 + $0x30] sm:$0xff]
        %v4810 = vld [vmem:[%s328 + $0x48] sm:$0xff]
        %v4811 = vld [vmem:[%s328 + $0x50] sm:$0xff]
        %v4812 = vld [vmem:[%s328 + $0x68] sm:$0xff]
        %v4813 = vld [vmem:[%s328 + $0x70] sm:$0xff]
        %v4814 = vld [vmem:[%s328 + $0x88] sm:$0xff]
        %v4815 = vld [vmem:[%s328 + $0x90] sm:$0xff]
        %v4816 = vld [vmem:[%s328 + $0xa8] sm:$0xff]
        %v4817 = vld [vmem:[%s328 + $0xb0] sm:$0xff]
        %v4818 = vld [vmem:[%s328 + $0xc8] sm:$0xff]
        %v4819 = vld [vmem:[%s328 + $0xd0] sm:$0xff]
        %v4820 = vld [vmem:[%s328 + $0xe8] sm:$0xff]
        %v4821 = vld [vmem:[%s328 + $0xf0] sm:$0xff]
        %v4822 = vld [vmem:[%s328 + $0x108] sm:$0xff]
        %v4823 = vld [vmem:[%s328 + $0x110] sm:$0xff]
        %v4824 = vld [vmem:[%s328 + $0x128] sm:$0xff]
        %v4825 = vld [vmem:[%s328 + $0x130] sm:$0xff]
        %v4826 = vld [vmem:[%s328 + $0x148] sm:$0xff]
        %v4827 = vld [vmem:[%s328 + $0x150] sm:$0xff]
        %v4828 = vld [vmem:[%s328 + $0x168] sm:$0xff]
        %v4829 = vld [vmem:[%s328 + $0x170] sm:$0xff]
        %v4830 = vld [vmem:[%s328 + $0x188] sm:$0xff]
        %v4831 = vld [vmem:[%s328 + $0x190] sm:$0xff]
        %v4832 = vld [vmem:[%s328 + $0x1a8] sm:$0xff]
        %v4833 = vld [vmem:[%s328 + $0x1b0] sm:$0xff]
        %v4834 = vld [vmem:[%s328 + $0x1c8] sm:$0xff]
        %v4835 = vld [vmem:[%s328 + $0x1d0] sm:$0xff]
        %v4836 = vld [vmem:[%s328 + $0x1e8] sm:$0xff]
        %v4837 = vld [vmem:[%s328 + $0x1f0] sm:$0xff]
        %4838 = vst [vmem:[#allocation3 + $0x20] sm:$0xff] %v4806
        %4839 = vst [vmem:[#allocation3 + $0x68] sm:$0xff] %v4807
        %4840 = vst [vmem:[#allocation3 + $0xb0] sm:$0xff] %v4808
        %4841 = vst [vmem:[#allocation3 + $0xf8] sm:$0xff] %v4809
        %4842 = vst [vmem:[#allocation3 + $0x140] sm:$0xff] %v4810
        %4843 = vst [vmem:[#allocation3 + $0x188] sm:$0xff] %v4811
        %4844 = vst [vmem:[#allocation3 + $0x1d0] sm:$0xff] %v4812
        %4845 = vst [vmem:[#allocation3 + $0x218] sm:$0xff] %v4813
        %4846 = vst [vmem:[#allocation3 + $0x260] sm:$0xff] %v4814
        %4847 = vst [vmem:[#allocation3 + $0x2a8] sm:$0xff] %v4815
        %4848 = vst [vmem:[#allocation3 + $0x2f0] sm:$0xff] %v4816
        %4849 = vst [vmem:[#allocation3 + $0x338] sm:$0xff] %v4817
        %4850 = vst [vmem:[#allocation3 + $0x380] sm:$0xff] %v4818
        %4851 = vst [vmem:[#allocation3 + $0x3c8] sm:$0xff] %v4819
        %4852 = vst [vmem:[#allocation3 + $0x410] sm:$0xff] %v4820
        %4853 = vst [vmem:[#allocation3 + $0x458] sm:$0xff] %v4821
        %4854 = vst [vmem:[#allocation3 + $0x4a0] sm:$0xff] %v4822
        %4855 = vst [vmem:[#allocation3 + $0x4e8] sm:$0xff] %v4823
        %4856 = vst [vmem:[#allocation3 + $0x530] sm:$0xff] %v4824
        %4857 = vst [vmem:[#allocation3 + $0x578] sm:$0xff] %v4825
        %4858 = vst [vmem:[#allocation3 + $0x5c0] sm:$0xff] %v4826
        %4859 = vst [vmem:[#allocation3 + $0x608] sm:$0xff] %v4827
        %4860 = vst [vmem:[#allocation3 + $0x650] sm:$0xff] %v4828
        %4861 = vst [vmem:[#allocation3 + $0x698] sm:$0xff] %v4829
        %4862 = vst [vmem:[#allocation3 + $0x6e0] sm:$0xff] %v4830
        %4863 = vst [vmem:[#allocation3 + $0x728] sm:$0xff] %v4831
        %4864 = vst [vmem:[#allocation3 + $0x770] sm:$0xff] %v4832
        %4865 = vst [vmem:[#allocation3 + $0x7b8] sm:$0xff] %v4833
        %4866 = vst [vmem:[#allocation3 + $0x800] sm:$0xff] %v4834
        %4867 = vst [vmem:[#allocation3 + $0x848] sm:$0xff] %v4835
        %4868 = vst [vmem:[#allocation3 + $0x890] sm:$0xff] %v4836
        %4869 = vst [vmem:[#allocation3 + $0x8d8] sm:$0xff] %v4837
        %v4870 = vld [vmem:[%s328 + $0x9] sm:$0xff]
        %v4871 = vld [vmem:[%s328 + $0x11] sm:$0xff]
        %v4872 = vld [vmem:[%s328 + $0x29] sm:$0xff]
        %v4873 = vld [vmem:[%s328 + $0x31] sm:$0xff]
        %v4874 = vld [vmem:[%s328 + $0x49] sm:$0xff]
        %v4875 = vld [vmem:[%s328 + $0x51] sm:$0xff]
        %v4876 = vld [vmem:[%s328 + $0x69] sm:$0xff]
        %v4877 = vld [vmem:[%s328 + $0x71] sm:$0xff]
        %v4878 = vld [vmem:[%s328 + $0x89] sm:$0xff]
        %v4879 = vld [vmem:[%s328 + $0x91] sm:$0xff]
        %v4880 = vld [vmem:[%s328 + $0xa9] sm:$0xff]
        %v4881 = vld [vmem:[%s328 + $0xb1] sm:$0xff]
        %v4882 = vld [vmem:[%s328 + $0xc9] sm:$0xff]
        %v4883 = vld [vmem:[%s328 + $0xd1] sm:$0xff]
        %v4884 = vld [vmem:[%s328 + $0xe9] sm:$0xff]
        %v4885 = vld [vmem:[%s328 + $0xf1] sm:$0xff]
        %v4886 = vld [vmem:[%s328 + $0x109] sm:$0xff]
        %v4887 = vld [vmem:[%s328 + $0x111] sm:$0xff]
        %v4888 = vld [vmem:[%s328 + $0x129] sm:$0xff]
        %v4889 = vld [vmem:[%s328 + $0x131] sm:$0xff]
        %v4890 = vld [vmem:[%s328 + $0x149] sm:$0xff]
        %v4891 = vld [vmem:[%s328 + $0x151] sm:$0xff]
        %v4892 = vld [vmem:[%s328 + $0x169] sm:$0xff]
        %v4893 = vld [vmem:[%s328 + $0x171] sm:$0xff]
        %v4894 = vld [vmem:[%s328 + $0x189] sm:$0xff]
        %v4895 = vld [vmem:[%s328 + $0x191] sm:$0xff]
        %v4896 = vld [vmem:[%s328 + $0x1a9] sm:$0xff]
        %v4897 = vld [vmem:[%s328 + $0x1b1] sm:$0xff]
        %v4898 = vld [vmem:[%s328 + $0x1c9] sm:$0xff]
        %v4899 = vld [vmem:[%s328 + $0x1d1] sm:$0xff]
        %v4900 = vld [vmem:[%s328 + $0x1e9] sm:$0xff]
        %v4901 = vld [vmem:[%s328 + $0x1f1] sm:$0xff]
        %4902 = vst [vmem:[#allocation3 + $0x28] sm:$0xff] %v4870
        %4903 = vst [vmem:[#allocation3 + $0x70] sm:$0xff] %v4871
        %4904 = vst [vmem:[#allocation3 + $0xb8] sm:$0xff] %v4872
        %4905 = vst [vmem:[#allocation3 + $0x100] sm:$0xff] %v4873
        %4906 = vst [vmem:[#allocation3 + $0x148] sm:$0xff] %v4874
        %4907 = vst [vmem:[#allocation3 + $0x190] sm:$0xff] %v4875
        %4908 = vst [vmem:[#allocation3 + $0x1d8] sm:$0xff] %v4876
        %4909 = vst [vmem:[#allocation3 + $0x220] sm:$0xff] %v4877
        %4910 = vst [vmem:[#allocation3 + $0x268] sm:$0xff] %v4878
        %4911 = vst [vmem:[#allocation3 + $0x2b0] sm:$0xff] %v4879
        %4912 = vst [vmem:[#allocation3 + $0x2f8] sm:$0xff] %v4880
        %4913 = vst [vmem:[#allocation3 + $0x340] sm:$0xff] %v4881
        %4914 = vst [vmem:[#allocation3 + $0x388] sm:$0xff] %v4882
        %4915 = vst [vmem:[#allocation3 + $0x3d0] sm:$0xff] %v4883
        %4916 = vst [vmem:[#allocation3 + $0x418] sm:$0xff] %v4884
        %4917 = vst [vmem:[#allocation3 + $0x460] sm:$0xff] %v4885
        %4918 = vst [vmem:[#allocation3 + $0x4a8] sm:$0xff] %v4886
        %4919 = vst [vmem:[#allocation3 + $0x4f0] sm:$0xff] %v4887
        %4920 = vst [vmem:[#allocation3 + $0x538] sm:$0xff] %v4888
        %4921 = vst [vmem:[#allocation3 + $0x580] sm:$0xff] %v4889
        %4922 = vst [vmem:[#allocation3 + $0x5c8] sm:$0xff] %v4890
        %4923 = vst [vmem:[#allocation3 + $0x610] sm:$0xff] %v4891
        %4924 = vst [vmem:[#allocation3 + $0x658] sm:$0xff] %v4892
        %4925 = vst [vmem:[#allocation3 + $0x6a0] sm:$0xff] %v4893
        %4926 = vst [vmem:[#allocation3 + $0x6e8] sm:$0xff] %v4894
        %4927 = vst [vmem:[#allocation3 + $0x730] sm:$0xff] %v4895
        %4928 = vst [vmem:[#allocation3 + $0x778] sm:$0xff] %v4896
        %4929 = vst [vmem:[#allocation3 + $0x7c0] sm:$0xff] %v4897
        %4930 = vst [vmem:[#allocation3 + $0x808] sm:$0xff] %v4898
        %4931 = vst [vmem:[#allocation3 + $0x850] sm:$0xff] %v4899
        %4932 = vst [vmem:[#allocation3 + $0x898] sm:$0xff] %v4900
        %4933 = vst [vmem:[#allocation3 + $0x8e0] sm:$0xff] %v4901
        %v4934 = vld [vmem:[%s745 + $0x7] sm:$0xff]
        %v4935 = vld [vmem:[%s745 + $0xf] sm:$0xff]
        %v4936 = vld [vmem:[%s745 + $0x27] sm:$0xff]
        %v4937 = vld [vmem:[%s745 + $0x2f] sm:$0xff]
        %v4938 = vld [vmem:[%s745 + $0x47] sm:$0xff]
        %v4939 = vld [vmem:[%s745 + $0x4f] sm:$0xff]
        %v4940 = vld [vmem:[%s745 + $0x67] sm:$0xff]
        %v4941 = vld [vmem:[%s745 + $0x6f] sm:$0xff]
        %v4942 = vld [vmem:[%s745 + $0x87] sm:$0xff]
        %v4943 = vld [vmem:[%s745 + $0x8f] sm:$0xff]
        %v4944 = vld [vmem:[%s745 + $0xa7] sm:$0xff]
        %v4945 = vld [vmem:[%s745 + $0xaf] sm:$0xff]
        %v4946 = vld [vmem:[%s745 + $0xc7] sm:$0xff]
        %v4947 = vld [vmem:[%s745 + $0xcf] sm:$0xff]
        %v4948 = vld [vmem:[%s745 + $0xe7] sm:$0xff]
        %v4949 = vld [vmem:[%s745 + $0xef] sm:$0xff]
        %v4950 = vld [vmem:[%s745 + $0x107] sm:$0xff]
        %v4951 = vld [vmem:[%s745 + $0x10f] sm:$0xff]
        %v4952 = vld [vmem:[%s745 + $0x127] sm:$0xff]
        %v4953 = vld [vmem:[%s745 + $0x12f] sm:$0xff]
        %v4954 = vld [vmem:[%s745 + $0x147] sm:$0xff]
        %v4955 = vld [vmem:[%s745 + $0x14f] sm:$0xff]
        %v4956 = vld [vmem:[%s745 + $0x167] sm:$0xff]
        %v4957 = vld [vmem:[%s745 + $0x16f] sm:$0xff]
        %v4958 = vld [vmem:[%s745 + $0x187] sm:$0xff]
        %v4959 = vld [vmem:[%s745 + $0x18f] sm:$0xff]
        %v4960 = vld [vmem:[%s745 + $0x1a7] sm:$0xff]
        %v4961 = vld [vmem:[%s745 + $0x1af] sm:$0xff]
        %v4962 = vld [vmem:[%s745 + $0x1c7] sm:$0xff]
        %v4963 = vld [vmem:[%s745 + $0x1cf] sm:$0xff]
        %v4964 = vld [vmem:[%s745 + $0x1e7] sm:$0xff]
        %v4965 = vld [vmem:[%s745 + $0x1ef] sm:$0xff]
        %4966 = vst [vmem:[#allocation3 + $0x30] sm:$0xff] %v4934
        %4967 = vst [vmem:[#allocation3 + $0x78] sm:$0xff] %v4935
        %4968 = vst [vmem:[#allocation3 + $0xc0] sm:$0xff] %v4936
        %4969 = vst [vmem:[#allocation3 + $0x108] sm:$0xff] %v4937
        %4970 = vst [vmem:[#allocation3 + $0x150] sm:$0xff] %v4938
        %4971 = vst [vmem:[#allocation3 + $0x198] sm:$0xff] %v4939
        %4972 = vst [vmem:[#allocation3 + $0x1e0] sm:$0xff] %v4940
        %4973 = vst [vmem:[#allocation3 + $0x228] sm:$0xff] %v4941
        %4974 = vst [vmem:[#allocation3 + $0x270] sm:$0xff] %v4942
        %4975 = vst [vmem:[#allocation3 + $0x2b8] sm:$0xff] %v4943
        %4976 = vst [vmem:[#allocation3 + $0x300] sm:$0xff] %v4944
        %4977 = vst [vmem:[#allocation3 + $0x348] sm:$0xff] %v4945
        %4978 = vst [vmem:[#allocation3 + $0x390] sm:$0xff] %v4946
        %4979 = vst [vmem:[#allocation3 + $0x3d8] sm:$0xff] %v4947
        %4980 = vst [vmem:[#allocation3 + $0x420] sm:$0xff] %v4948
        %4981 = vst [vmem:[#allocation3 + $0x468] sm:$0xff] %v4949
        %4982 = vst [vmem:[#allocation3 + $0x4b0] sm:$0xff] %v4950
        %4983 = vst [vmem:[#allocation3 + $0x4f8] sm:$0xff] %v4951
        %4984 = vst [vmem:[#allocation3 + $0x540] sm:$0xff] %v4952
        %4985 = vst [vmem:[#allocation3 + $0x588] sm:$0xff] %v4953
        %4986 = vst [vmem:[#allocation3 + $0x5d0] sm:$0xff] %v4954
        %4987 = vst [vmem:[#allocation3 + $0x618] sm:$0xff] %v4955
        %4988 = vst [vmem:[#allocation3 + $0x660] sm:$0xff] %v4956
        %4989 = vst [vmem:[#allocation3 + $0x6a8] sm:$0xff] %v4957
        %4990 = vst [vmem:[#allocation3 + $0x6f0] sm:$0xff] %v4958
        %4991 = vst [vmem:[#allocation3 + $0x738] sm:$0xff] %v4959
        %4992 = vst [vmem:[#allocation3 + $0x780] sm:$0xff] %v4960
        %4993 = vst [vmem:[#allocation3 + $0x7c8] sm:$0xff] %v4961
        %4994 = vst [vmem:[#allocation3 + $0x810] sm:$0xff] %v4962
        %4995 = vst [vmem:[#allocation3 + $0x858] sm:$0xff] %v4963
        %4996 = vst [vmem:[#allocation3 + $0x8a0] sm:$0xff] %v4964
        %4997 = vst [vmem:[#allocation3 + $0x8e8] sm:$0xff] %v4965
        %v4998 = vld [vmem:[%s745 + $0x8] sm:$0xff]
        %v4999 = vld [vmem:[%s745 + $0x10] sm:$0xff]
        %v5000 = vld [vmem:[%s745 + $0x28] sm:$0xff]
        %v5001 = vld [vmem:[%s745 + $0x30] sm:$0xff]
        %v5002 = vld [vmem:[%s745 + $0x48] sm:$0xff]
        %v5003 = vld [vmem:[%s745 + $0x50] sm:$0xff]
        %v5004 = vld [vmem:[%s745 + $0x68] sm:$0xff]
        %v5005 = vld [vmem:[%s745 + $0x70] sm:$0xff]
        %v5006 = vld [vmem:[%s745 + $0x88] sm:$0xff]
        %v5007 = vld [vmem:[%s745 + $0x90] sm:$0xff]
        %v5008 = vld [vmem:[%s745 + $0xa8] sm:$0xff]
        %v5009 = vld [vmem:[%s745 + $0xb0] sm:$0xff]
        %v5010 = vld [vmem:[%s745 + $0xc8] sm:$0xff]
        %v5011 = vld [vmem:[%s745 + $0xd0] sm:$0xff]
        %v5012 = vld [vmem:[%s745 + $0xe8] sm:$0xff]
        %v5013 = vld [vmem:[%s745 + $0xf0] sm:$0xff]
        %v5014 = vld [vmem:[%s745 + $0x108] sm:$0xff]
        %v5015 = vld [vmem:[%s745 + $0x110] sm:$0xff]
        %v5016 = vld [vmem:[%s745 + $0x128] sm:$0xff]
        %v5017 = vld [vmem:[%s745 + $0x130] sm:$0xff]
        %v5018 = vld [vmem:[%s745 + $0x148] sm:$0xff]
        %v5019 = vld [vmem:[%s745 + $0x150] sm:$0xff]
        %v5020 = vld [vmem:[%s745 + $0x168] sm:$0xff]
        %v5021 = vld [vmem:[%s745 + $0x170] sm:$0xff]
        %v5022 = vld [vmem:[%s745 + $0x188] sm:$0xff]
        %v5023 = vld [vmem:[%s745 + $0x190] sm:$0xff]
        %v5024 = vld [vmem:[%s745 + $0x1a8] sm:$0xff]
        %v5025 = vld [vmem:[%s745 + $0x1b0] sm:$0xff]
        %v5026 = vld [vmem:[%s745 + $0x1c8] sm:$0xff]
        %v5027 = vld [vmem:[%s745 + $0x1d0] sm:$0xff]
        %v5028 = vld [vmem:[%s745 + $0x1e8] sm:$0xff]
        %v5029 = vld [vmem:[%s745 + $0x1f0] sm:$0xff]
        %5030 = vst [vmem:[#allocation3 + $0x38] sm:$0xff] %v4998
        %5031 = vst [vmem:[#allocation3 + $0x80] sm:$0xff] %v4999
        %5032 = vst [vmem:[#allocation3 + $0xc8] sm:$0xff] %v5000
        %5033 = vst [vmem:[#allocation3 + $0x110] sm:$0xff] %v5001
        %5034 = vst [vmem:[#allocation3 + $0x158] sm:$0xff] %v5002
        %5035 = vst [vmem:[#allocation3 + $0x1a0] sm:$0xff] %v5003
        %5036 = vst [vmem:[#allocation3 + $0x1e8] sm:$0xff] %v5004
        %5037 = vst [vmem:[#allocation3 + $0x230] sm:$0xff] %v5005
        %5038 = vst [vmem:[#allocation3 + $0x278] sm:$0xff] %v5006
        %5039 = vst [vmem:[#allocation3 + $0x2c0] sm:$0xff] %v5007
        %5040 = vst [vmem:[#allocation3 + $0x308] sm:$0xff] %v5008
        %5041 = vst [vmem:[#allocation3 + $0x350] sm:$0xff] %v5009
        %5042 = vst [vmem:[#allocation3 + $0x398] sm:$0xff] %v5010
        %5043 = vst [vmem:[#allocation3 + $0x3e0] sm:$0xff] %v5011
        %5044 = vst [vmem:[#allocation3 + $0x428] sm:$0xff] %v5012
        %5045 = vst [vmem:[#allocation3 + $0x470] sm:$0xff] %v5013
        %5046 = vst [vmem:[#allocation3 + $0x4b8] sm:$0xff] %v5014
        %5047 = vst [vmem:[#allocation3 + $0x500] sm:$0xff] %v5015
        %5048 = vst [vmem:[#allocation3 + $0x548] sm:$0xff] %v5016
        %5049 = vst [vmem:[#allocation3 + $0x590] sm:$0xff] %v5017
        %5050 = vst [vmem:[#allocation3 + $0x5d8] sm:$0xff] %v5018
        %5051 = vst [vmem:[#allocation3 + $0x620] sm:$0xff] %v5019
        %5052 = vst [vmem:[#allocation3 + $0x668] sm:$0xff] %v5020
        %5053 = vst [vmem:[#allocation3 + $0x6b0] sm:$0xff] %v5021
        %5054 = vst [vmem:[#allocation3 + $0x6f8] sm:$0xff] %v5022
        %5055 = vst [vmem:[#allocation3 + $0x740] sm:$0xff] %v5023
        %5056 = vst [vmem:[#allocation3 + $0x788] sm:$0xff] %v5024
        %5057 = vst [vmem:[#allocation3 + $0x7d0] sm:$0xff] %v5025
        %5058 = vst [vmem:[#allocation3 + $0x818] sm:$0xff] %v5026
        %5059 = vst [vmem:[#allocation3 + $0x860] sm:$0xff] %v5027
        %5060 = vst [vmem:[#allocation3 + $0x8a8] sm:$0xff] %v5028
        %5061 = vst [vmem:[#allocation3 + $0x8f0] sm:$0xff] %v5029
        %v5062 = vld [vmem:[%s745 + $0x9] sm:$0xff]
        %v5063 = vld [vmem:[%s745 + $0x11] sm:$0xff]
        %v5064 = vld [vmem:[%s745 + $0x29] sm:$0xff]
        %v5065 = vld [vmem:[%s745 + $0x31] sm:$0xff]
        %v5066 = vld [vmem:[%s745 + $0x49] sm:$0xff]
        %v5067 = vld [vmem:[%s745 + $0x51] sm:$0xff]
        %v5068 = vld [vmem:[%s745 + $0x69] sm:$0xff]
        %v5069 = vld [vmem:[%s745 + $0x71] sm:$0xff]
        %v5070 = vld [vmem:[%s745 + $0x89] sm:$0xff]
        %v5071 = vld [vmem:[%s745 + $0x91] sm:$0xff]
        %v5072 = vld [vmem:[%s745 + $0xa9] sm:$0xff]
        %v5073 = vld [vmem:[%s745 + $0xb1] sm:$0xff]
        %v5074 = vld [vmem:[%s745 + $0xc9] sm:$0xff]
        %v5075 = vld [vmem:[%s745 + $0xd1] sm:$0xff]
        %v5076 = vld [vmem:[%s745 + $0xe9] sm:$0xff]
        %v5077 = vld [vmem:[%s745 + $0xf1] sm:$0xff]
        %v5078 = vld [vmem:[%s745 + $0x109] sm:$0xff]
        %v5079 = vld [vmem:[%s745 + $0x111] sm:$0xff]
        %v5080 = vld [vmem:[%s745 + $0x129] sm:$0xff]
        %v5081 = vld [vmem:[%s745 + $0x131] sm:$0xff]
        %v5082 = vld [vmem:[%s745 + $0x149] sm:$0xff]
        %v5083 = vld [vmem:[%s745 + $0x151] sm:$0xff]
        %v5084 = vld [vmem:[%s745 + $0x169] sm:$0xff]
        %v5085 = vld [vmem:[%s745 + $0x171] sm:$0xff]
        %v5086 = vld [vmem:[%s745 + $0x189] sm:$0xff]
        %v5087 = vld [vmem:[%s745 + $0x191] sm:$0xff]
        %v5088 = vld [vmem:[%s745 + $0x1a9] sm:$0xff]
        %v5089 = vld [vmem:[%s745 + $0x1b1] sm:$0xff]
        %v5090 = vld [vmem:[%s745 + $0x1c9] sm:$0xff]
        %v5091 = vld [vmem:[%s745 + $0x1d1] sm:$0xff]
        %v5092 = vld [vmem:[%s745 + $0x1e9] sm:$0xff]
        %v5093 = vld [vmem:[%s745 + $0x1f1] sm:$0xff]
        %5094 = vst [vmem:[#allocation3 + $0x40] sm:$0xff] %v5062
        %5095 = vst [vmem:[#allocation3 + $0x88] sm:$0xff] %v5063
        %5096 = vst [vmem:[#allocation3 + $0xd0] sm:$0xff] %v5064
        %5097 = vst [vmem:[#allocation3 + $0x118] sm:$0xff] %v5065
        %5098 = vst [vmem:[#allocation3 + $0x160] sm:$0xff] %v5066
        %5099 = vst [vmem:[#allocation3 + $0x1a8] sm:$0xff] %v5067
        %5100 = vst [vmem:[#allocation3 + $0x1f0] sm:$0xff] %v5068
        %5101 = vst [vmem:[#allocation3 + $0x238] sm:$0xff] %v5069
        %5102 = vst [vmem:[#allocation3 + $0x280] sm:$0xff] %v5070
        %5103 = vst [vmem:[#allocation3 + $0x2c8] sm:$0xff] %v5071
        %5104 = vst [vmem:[#allocation3 + $0x310] sm:$0xff] %v5072
        %5105 = vst [vmem:[#allocation3 + $0x358] sm:$0xff] %v5073
        %5106 = vst [vmem:[#allocation3 + $0x3a0] sm:$0xff] %v5074
        %5107 = vst [vmem:[#allocation3 + $0x3e8] sm:$0xff] %v5075
        %5108 = vst [vmem:[#allocation3 + $0x430] sm:$0xff] %v5076
        %5109 = vst [vmem:[#allocation3 + $0x478] sm:$0xff] %v5077
        %5110 = vst [vmem:[#allocation3 + $0x4c0] sm:$0xff] %v5078
        %5111 = vst [vmem:[#allocation3 + $0x508] sm:$0xff] %v5079
        %5112 = vst [vmem:[#allocation3 + $0x550] sm:$0xff] %v5080
        %5113 = vst [vmem:[#allocation3 + $0x598] sm:$0xff] %v5081
        %5114 = vst [vmem:[#allocation3 + $0x5e0] sm:$0xff] %v5082
        %5115 = vst [vmem:[#allocation3 + $0x628] sm:$0xff] %v5083
        %5116 = vst [vmem:[#allocation3 + $0x670] sm:$0xff] %v5084
        %5117 = vst [vmem:[#allocation3 + $0x6b8] sm:$0xff] %v5085
        %5118 = vst [vmem:[#allocation3 + $0x700] sm:$0xff] %v5086
        %5119 = vst [vmem:[#allocation3 + $0x748] sm:$0xff] %v5087
        %5120 = vst [vmem:[#allocation3 + $0x790] sm:$0xff] %v5088
        %5121 = vst [vmem:[#allocation3 + $0x7d8] sm:$0xff] %v5089
        %5122 = vst [vmem:[#allocation3 + $0x820] sm:$0xff] %v5090
        %5123 = vst [vmem:[#allocation3 + $0x868] sm:$0xff] %v5091
        %5124 = vst [vmem:[#allocation3 + $0x8b0] sm:$0xff] %v5092
        %5125 = vst [vmem:[#allocation3 + $0x8f8] sm:$0xff] %v5093
        %v5126 = vld [vmem:[#allocation3] sm:$0xff]
        %v5127 = vld [vmem:[#allocation3 + $0x8] sm:$0xff]
        %v5128 = vld [vmem:[#allocation3 + $0x10] sm:$0xff]
        %v5129 = vld [vmem:[#allocation3 + $0x18] sm:$0xff]
        %v5130 = vld [vmem:[#allocation3 + $0x20] sm:$0xff]
        %v5131 = vld [vmem:[#allocation3 + $0x28] sm:$0xff]
        %v5132 = vld [vmem:[#allocation3 + $0x30] sm:$0xff]
        %v5133 = vld [vmem:[#allocation3 + $0x38] sm:$0xff]
        %v5134 = vld [vmem:[#allocation3 + $0x40] sm:$0xff]
        %v5135 = vld [vmem:[#allocation3 + $0x48] sm:$0xff]
        %v5136 = vld [vmem:[#allocation3 + $0x50] sm:$0xff]
        %v5137 = vld [vmem:[#allocation3 + $0x58] sm:$0xff]
        %v5138 = vld [vmem:[#allocation3 + $0x60] sm:$0xff]
        %v5139 = vld [vmem:[#allocation3 + $0x68] sm:$0xff]
        %v5140 = vld [vmem:[#allocation3 + $0x70] sm:$0xff]
        %v5141 = vld [vmem:[#allocation3 + $0x78] sm:$0xff]
        %v5142 = vld [vmem:[#allocation3 + $0x80] sm:$0xff]
        %v5143 = vld [vmem:[#allocation3 + $0x88] sm:$0xff]
        %v5144 = vld [vmem:[#allocation3 + $0x90] sm:$0xff]
        %v5145 = vld [vmem:[#allocation3 + $0x98] sm:$0xff]
        %v5146 = vld [vmem:[#allocation3 + $0xa0] sm:$0xff]
        %v5147 = vld [vmem:[#allocation3 + $0xa8] sm:$0xff]
        %v5148 = vld [vmem:[#allocation3 + $0xb0] sm:$0xff]
        %v5149 = vld [vmem:[#allocation3 + $0xb8] sm:$0xff]
        %v5150 = vld [vmem:[#allocation3 + $0xc0] sm:$0xff]
        %v5151 = vld [vmem:[#allocation3 + $0xc8] sm:$0xff]
        %v5152 = vld [vmem:[#allocation3 + $0xd0] sm:$0xff]
        %v5153 = vld [vmem:[#allocation3 + $0xd8] sm:$0xff]
        %v5154 = vld [vmem:[#allocation3 + $0xe0] sm:$0xff]
        %v5155 = vld [vmem:[#allocation3 + $0xe8] sm:$0xff]
        %v5156 = vld [vmem:[#allocation3 + $0xf0] sm:$0xff]
        %v5157 = vld [vmem:[#allocation3 + $0xf8] sm:$0xff]
        %v5158 = vld [vmem:[#allocation3 + $0x100] sm:$0xff]
        %v5159 = vld [vmem:[#allocation3 + $0x108] sm:$0xff]
        %v5160 = vld [vmem:[#allocation3 + $0x110] sm:$0xff]
        %v5161 = vld [vmem:[#allocation3 + $0x118] sm:$0xff]
        %v5162 = vld [vmem:[#allocation3 + $0x120] sm:$0xff]
        %v5163 = vld [vmem:[#allocation3 + $0x128] sm:$0xff]
        %v5164 = vld [vmem:[#allocation3 + $0x130] sm:$0xff]
        %v5165 = vld [vmem:[#allocation3 + $0x138] sm:$0xff]
        %v5166 = vld [vmem:[#allocation3 + $0x140] sm:$0xff]
        %v5167 = vld [vmem:[#allocation3 + $0x148] sm:$0xff]
        %v5168 = vld [vmem:[#allocation3 + $0x150] sm:$0xff]
        %v5169 = vld [vmem:[#allocation3 + $0x158] sm:$0xff]
        %v5170 = vld [vmem:[#allocation3 + $0x160] sm:$0xff]
        %v5171 = vld [vmem:[#allocation3 + $0x168] sm:$0xff]
        %v5172 = vld [vmem:[#allocation3 + $0x170] sm:$0xff]
        %v5173 = vld [vmem:[#allocation3 + $0x178] sm:$0xff]
        %v5174 = vld [vmem:[#allocation3 + $0x180] sm:$0xff]
        %v5175 = vld [vmem:[#allocation3 + $0x188] sm:$0xff]
        %v5176 = vld [vmem:[#allocation3 + $0x190] sm:$0xff]
        %v5177 = vld [vmem:[#allocation3 + $0x198] sm:$0xff]
        %v5178 = vld [vmem:[#allocation3 + $0x1a0] sm:$0xff]
        %v5179 = vld [vmem:[#allocation3 + $0x1a8] sm:$0xff]
        %v5180 = vld [vmem:[#allocation3 + $0x1b0] sm:$0xff]
        %v5181 = vld [vmem:[#allocation3 + $0x1b8] sm:$0xff]
        %v5182 = vld [vmem:[#allocation3 + $0x1c0] sm:$0xff]
        %v5183 = vld [vmem:[#allocation3 + $0x1c8] sm:$0xff]
        %v5184 = vld [vmem:[#allocation3 + $0x1d0] sm:$0xff]
        %v5185 = vld [vmem:[#allocation3 + $0x1d8] sm:$0xff]
        %v5186 = vld [vmem:[#allocation3 + $0x1e0] sm:$0xff]
        %v5187 = vld [vmem:[#allocation3 + $0x1e8] sm:$0xff]
        %v5188 = vld [vmem:[#allocation3 + $0x1f0] sm:$0xff]
        %v5189 = vld [vmem:[#allocation3 + $0x1f8] sm:$0xff]
        %v5190 = vld [vmem:[#allocation3 + $0x200] sm:$0xff]
        %v5191 = vld [vmem:[#allocation3 + $0x208] sm:$0xff]
        %v5192 = vld [vmem:[#allocation3 + $0x210] sm:$0xff]
        %v5193 = vld [vmem:[#allocation3 + $0x218] sm:$0xff]
        %v5194 = vld [vmem:[#allocation3 + $0x220] sm:$0xff]
        %v5195 = vld [vmem:[#allocation3 + $0x228] sm:$0xff]
        %v5196 = vld [vmem:[#allocation3 + $0x230] sm:$0xff]
        %v5197 = vld [vmem:[#allocation3 + $0x238] sm:$0xff]
        %v5198 = vld [vmem:[#allocation3 + $0x240] sm:$0xff]
        %v5199 = vld [vmem:[#allocation3 + $0x248] sm:$0xff]
        %v5200 = vld [vmem:[#allocation3 + $0x250] sm:$0xff]
        %v5201 = vld [vmem:[#allocation3 + $0x258] sm:$0xff]
        %v5202 = vld [vmem:[#allocation3 + $0x260] sm:$0xff]
        %v5203 = vld [vmem:[#allocation3 + $0x268] sm:$0xff]
        %v5204 = vld [vmem:[#allocation3 + $0x270] sm:$0xff]
        %v5205 = vld [vmem:[#allocation3 + $0x278] sm:$0xff]
        %v5206 = vld [vmem:[#allocation3 + $0x280] sm:$0xff]
        %v5207 = vld [vmem:[#allocation3 + $0x288] sm:$0xff]
        %v5208 = vld [vmem:[#allocation3 + $0x290] sm:$0xff]
        %v5209 = vld [vmem:[#allocation3 + $0x298] sm:$0xff]
        %v5210 = vld [vmem:[#allocation3 + $0x2a0] sm:$0xff]
        %v5211 = vld [vmem:[#allocation3 + $0x2a8] sm:$0xff]
        %v5212 = vld [vmem:[#allocation3 + $0x2b0] sm:$0xff]
        %v5213 = vld [vmem:[#allocation3 + $0x2b8] sm:$0xff]
        %v5214 = vld [vmem:[#allocation3 + $0x2c0] sm:$0xff]
        %v5215 = vld [vmem:[#allocation3 + $0x2c8] sm:$0xff]
        %v5216 = vld [vmem:[#allocation3 + $0x2d0] sm:$0xff]
        %v5217 = vld [vmem:[#allocation3 + $0x2d8] sm:$0xff]
        %v5218 = vld [vmem:[#allocation3 + $0x2e0] sm:$0xff]
        %v5219 = vld [vmem:[#allocation3 + $0x2e8] sm:$0xff]
        %v5220 = vld [vmem:[#allocation3 + $0x2f0] sm:$0xff]
        %v5221 = vld [vmem:[#allocation3 + $0x2f8] sm:$0xff]
        %v5222 = vld [vmem:[#allocation3 + $0x300] sm:$0xff]
        %v5223 = vld [vmem:[#allocation3 + $0x308] sm:$0xff]
        %v5224 = vld [vmem:[#allocation3 + $0x310] sm:$0xff]
        %v5225 = vld [vmem:[#allocation3 + $0x318] sm:$0xff]
        %v5226 = vld [vmem:[#allocation3 + $0x320] sm:$0xff]
        %v5227 = vld [vmem:[#allocation3 + $0x328] sm:$0xff]
        %v5228 = vld [vmem:[#allocation3 + $0x330] sm:$0xff]
        %v5229 = vld [vmem:[#allocation3 + $0x338] sm:$0xff]
        %v5230 = vld [vmem:[#allocation3 + $0x340] sm:$0xff]
        %v5231 = vld [vmem:[#allocation3 + $0x348] sm:$0xff]
        %v5232 = vld [vmem:[#allocation3 + $0x350] sm:$0xff]
        %v5233 = vld [vmem:[#allocation3 + $0x358] sm:$0xff]
        %v5234 = vld [vmem:[#allocation3 + $0x360] sm:$0xff]
        %v5235 = vld [vmem:[#allocation3 + $0x368] sm:$0xff]
        %v5236 = vld [vmem:[#allocation3 + $0x370] sm:$0xff]
        %v5237 = vld [vmem:[#allocation3 + $0x378] sm:$0xff]
        %v5238 = vld [vmem:[#allocation3 + $0x380] sm:$0xff]
        %v5239 = vld [vmem:[#allocation3 + $0x388] sm:$0xff]
        %v5240 = vld [vmem:[#allocation3 + $0x390] sm:$0xff]
        %v5241 = vld [vmem:[#allocation3 + $0x398] sm:$0xff]
        %v5242 = vld [vmem:[#allocation3 + $0x3a0] sm:$0xff]
        %v5243 = vld [vmem:[#allocation3 + $0x3a8] sm:$0xff]
        %v5244 = vld [vmem:[#allocation3 + $0x3b0] sm:$0xff]
        %v5245 = vld [vmem:[#allocation3 + $0x3b8] sm:$0xff]
        %v5246 = vld [vmem:[#allocation3 + $0x3c0] sm:$0xff]
        %v5247 = vld [vmem:[#allocation3 + $0x3c8] sm:$0xff]
        %v5248 = vld [vmem:[#allocation3 + $0x3d0] sm:$0xff]
        %v5249 = vld [vmem:[#allocation3 + $0x3d8] sm:$0xff]
        %v5250 = vld [vmem:[#allocation3 + $0x3e0] sm:$0xff]
        %v5251 = vld [vmem:[#allocation3 + $0x3e8] sm:$0xff]
        %v5252 = vld [vmem:[#allocation3 + $0x3f0] sm:$0xff]
        %v5253 = vld [vmem:[#allocation3 + $0x3f8] sm:$0xff]
        %v5254 = vld [vmem:[#allocation3 + $0x400] sm:$0xff]
        %v5255 = vld [vmem:[#allocation3 + $0x408] sm:$0xff]
        %v5256 = vld [vmem:[#allocation3 + $0x410] sm:$0xff]
        %v5257 = vld [vmem:[#allocation3 + $0x418] sm:$0xff]
        %v5258 = vld [vmem:[#allocation3 + $0x420] sm:$0xff]
        %v5259 = vld [vmem:[#allocation3 + $0x428] sm:$0xff]
        %v5260 = vld [vmem:[#allocation3 + $0x430] sm:$0xff]
        %v5261 = vld [vmem:[#allocation3 + $0x438] sm:$0xff]
        %v5262 = vld [vmem:[#allocation3 + $0x440] sm:$0xff]
        %v5263 = vld [vmem:[#allocation3 + $0x448] sm:$0xff]
        %v5264 = vld [vmem:[#allocation3 + $0x450] sm:$0xff]
        %v5265 = vld [vmem:[#allocation3 + $0x458] sm:$0xff]
        %v5266 = vld [vmem:[#allocation3 + $0x460] sm:$0xff]
        %v5267 = vld [vmem:[#allocation3 + $0x468] sm:$0xff]
        %v5268 = vld [vmem:[#allocation3 + $0x470] sm:$0xff]
        %v5269 = vld [vmem:[#allocation3 + $0x478] sm:$0xff]
        %v5270 = vld [vmem:[#allocation3 + $0x480] sm:$0xff]
        %v5271 = vld [vmem:[#allocation3 + $0x488] sm:$0xff]
        %v5272 = vld [vmem:[#allocation3 + $0x490] sm:$0xff]
        %v5273 = vld [vmem:[#allocation3 + $0x498] sm:$0xff]
        %v5274 = vld [vmem:[#allocation3 + $0x4a0] sm:$0xff]
        %v5275 = vld [vmem:[#allocation3 + $0x4a8] sm:$0xff]
        %v5276 = vld [vmem:[#allocation3 + $0x4b0] sm:$0xff]
        %v5277 = vld [vmem:[#allocation3 + $0x4b8] sm:$0xff]
        %v5278 = vld [vmem:[#allocation3 + $0x4c0] sm:$0xff]
        %v5279 = vld [vmem:[#allocation3 + $0x4c8] sm:$0xff]
        %v5280 = vld [vmem:[#allocation3 + $0x4d0] sm:$0xff]
        %v5281 = vld [vmem:[#allocation3 + $0x4d8] sm:$0xff]
        %v5282 = vld [vmem:[#allocation3 + $0x4e0] sm:$0xff]
        %v5283 = vld [vmem:[#allocation3 + $0x4e8] sm:$0xff]
        %v5284 = vld [vmem:[#allocation3 + $0x4f0] sm:$0xff]
        %v5285 = vld [vmem:[#allocation3 + $0x4f8] sm:$0xff]
        %v5286 = vld [vmem:[#allocation3 + $0x500] sm:$0xff]
        %v5287 = vld [vmem:[#allocation3 + $0x508] sm:$0xff]
        %v5288 = vld [vmem:[#allocation3 + $0x510] sm:$0xff]
        %v5289 = vld [vmem:[#allocation3 + $0x518] sm:$0xff]
        %v5290 = vld [vmem:[#allocation3 + $0x520] sm:$0xff]
        %v5291 = vld [vmem:[#allocation3 + $0x528] sm:$0xff]
        %v5292 = vld [vmem:[#allocation3 + $0x530] sm:$0xff]
        %v5293 = vld [vmem:[#allocation3 + $0x538] sm:$0xff]
        %v5294 = vld [vmem:[#allocation3 + $0x540] sm:$0xff]
        %v5295 = vld [vmem:[#allocation3 + $0x548] sm:$0xff]
        %v5296 = vld [vmem:[#allocation3 + $0x550] sm:$0xff]
        %v5297 = vld [vmem:[#allocation3 + $0x558] sm:$0xff]
        %v5298 = vld [vmem:[#allocation3 + $0x560] sm:$0xff]
        %v5299 = vld [vmem:[#allocation3 + $0x568] sm:$0xff]
        %v5300 = vld [vmem:[#allocation3 + $0x570] sm:$0xff]
        %v5301 = vld [vmem:[#allocation3 + $0x578] sm:$0xff]
        %v5302 = vld [vmem:[#allocation3 + $0x580] sm:$0xff]
        %v5303 = vld [vmem:[#allocation3 + $0x588] sm:$0xff]
        %v5304 = vld [vmem:[#allocation3 + $0x590] sm:$0xff]
        %v5305 = vld [vmem:[#allocation3 + $0x598] sm:$0xff]
        %v5306 = vld [vmem:[#allocation3 + $0x5a0] sm:$0xff]
        %v5307 = vld [vmem:[#allocation3 + $0x5a8] sm:$0xff]
        %v5308 = vld [vmem:[#allocation3 + $0x5b0] sm:$0xff]
        %v5309 = vld [vmem:[#allocation3 + $0x5b8] sm:$0xff]
        %v5310 = vld [vmem:[#allocation3 + $0x5c0] sm:$0xff]
        %v5311 = vld [vmem:[#allocation3 + $0x5c8] sm:$0xff]
        %v5312 = vld [vmem:[#allocation3 + $0x5d0] sm:$0xff]
        %v5313 = vld [vmem:[#allocation3 + $0x5d8] sm:$0xff]
        %v5314 = vld [vmem:[#allocation3 + $0x5e0] sm:$0xff]
        %v5315 = vld [vmem:[#allocation3 + $0x5e8] sm:$0xff]
        %v5316 = vld [vmem:[#allocation3 + $0x5f0] sm:$0xff]
        %v5317 = vld [vmem:[#allocation3 + $0x5f8] sm:$0xff]
        %v5318 = vld [vmem:[#allocation3 + $0x600] sm:$0xff]
        %v5319 = vld [vmem:[#allocation3 + $0x608] sm:$0xff]
        %v5320 = vld [vmem:[#allocation3 + $0x610] sm:$0xff]
        %v5321 = vld [vmem:[#allocation3 + $0x618] sm:$0xff]
        %v5322 = vld [vmem:[#allocation3 + $0x620] sm:$0xff]
        %v5323 = vld [vmem:[#allocation3 + $0x628] sm:$0xff]
        %v5324 = vld [vmem:[#allocation3 + $0x630] sm:$0xff]
        %v5325 = vld [vmem:[#allocation3 + $0x638] sm:$0xff]
        %v5326 = vld [vmem:[#allocation3 + $0x640] sm:$0xff]
        %v5327 = vld [vmem:[#allocation3 + $0x648] sm:$0xff]
        %v5328 = vld [vmem:[#allocation3 + $0x650] sm:$0xff]
        %v5329 = vld [vmem:[#allocation3 + $0x658] sm:$0xff]
        %v5330 = vld [vmem:[#allocation3 + $0x660] sm:$0xff]
        %v5331 = vld [vmem:[#allocation3 + $0x668] sm:$0xff]
        %v5332 = vld [vmem:[#allocation3 + $0x670] sm:$0xff]
        %v5333 = vld [vmem:[#allocation3 + $0x678] sm:$0xff]
        %v5334 = vld [vmem:[#allocation3 + $0x680] sm:$0xff]
        %v5335 = vld [vmem:[#allocation3 + $0x688] sm:$0xff]
        %v5336 = vld [vmem:[#allocation3 + $0x690] sm:$0xff]
        %v5337 = vld [vmem:[#allocation3 + $0x698] sm:$0xff]
        %v5338 = vld [vmem:[#allocation3 + $0x6a0] sm:$0xff]
        %v5339 = vld [vmem:[#allocation3 + $0x6a8] sm:$0xff]
        %v5340 = vld [vmem:[#allocation3 + $0x6b0] sm:$0xff]
        %v5341 = vld [vmem:[#allocation3 + $0x6b8] sm:$0xff]
        %v5342 = vld [vmem:[#allocation3 + $0x6c0] sm:$0xff]
        %v5343 = vld [vmem:[#allocation3 + $0x6c8] sm:$0xff]
        %v5344 = vld [vmem:[#allocation3 + $0x6d0] sm:$0xff]
        %v5345 = vld [vmem:[#allocation3 + $0x6d8] sm:$0xff]
        %v5346 = vld [vmem:[#allocation3 + $0x6e0] sm:$0xff]
        %v5347 = vld [vmem:[#allocation3 + $0x6e8] sm:$0xff]
        %v5348 = vld [vmem:[#allocation3 + $0x6f0] sm:$0xff]
        %v5349 = vld [vmem:[#allocation3 + $0x6f8] sm:$0xff]
        %v5350 = vld [vmem:[#allocation3 + $0x700] sm:$0xff]
        %v5351 = vld [vmem:[#allocation3 + $0x708] sm:$0xff]
        %v5352 = vld [vmem:[#allocation3 + $0x710] sm:$0xff]
        %v5353 = vld [vmem:[#allocation3 + $0x718] sm:$0xff]
        %v5354 = vld [vmem:[#allocation3 + $0x720] sm:$0xff]
        %v5355 = vld [vmem:[#allocation3 + $0x728] sm:$0xff]
        %v5356 = vld [vmem:[#allocation3 + $0x730] sm:$0xff]
        %v5357 = vld [vmem:[#allocation3 + $0x738] sm:$0xff]
        %v5358 = vld [vmem:[#allocation3 + $0x740] sm:$0xff]
        %v5359 = vld [vmem:[#allocation3 + $0x748] sm:$0xff]
        %v5360 = vld [vmem:[#allocation3 + $0x750] sm:$0xff]
        %v5361 = vld [vmem:[#allocation3 + $0x758] sm:$0xff]
        %v5362 = vld [vmem:[#allocation3 + $0x760] sm:$0xff]
        %v5363 = vld [vmem:[#allocation3 + $0x768] sm:$0xff]
        %v5364 = vld [vmem:[#allocation3 + $0x770] sm:$0xff]
        %v5365 = vld [vmem:[#allocation3 + $0x778] sm:$0xff]
        %v5366 = vld [vmem:[#allocation3 + $0x780] sm:$0xff]
        %v5367 = vld [vmem:[#allocation3 + $0x788] sm:$0xff]
        %v5368 = vld [vmem:[#allocation3 + $0x790] sm:$0xff]
        %v5369 = vld [vmem:[#allocation3 + $0x798] sm:$0xff]
        %v5370 = vld [vmem:[#allocation3 + $0x7a0] sm:$0xff]
        %v5371 = vld [vmem:[#allocation3 + $0x7a8] sm:$0xff]
        %v5372 = vld [vmem:[#allocation3 + $0x7b0] sm:$0xff]
        %v5373 = vld [vmem:[#allocation3 + $0x7b8] sm:$0xff]
        %v5374 = vld [vmem:[#allocation3 + $0x7c0] sm:$0xff]
        %v5375 = vld [vmem:[#allocation3 + $0x7c8] sm:$0xff]
        %v5376 = vld [vmem:[#allocation3 + $0x7d0] sm:$0xff]
        %v5377 = vld [vmem:[#allocation3 + $0x7d8] sm:$0xff]
        %v5378 = vld [vmem:[#allocation3 + $0x7e0] sm:$0xff]
        %v5379 = vld [vmem:[#allocation3 + $0x7e8] sm:$0xff]
        %v5380 = vld [vmem:[#allocation3 + $0x7f0] sm:$0xff]
        %v5381 = vld [vmem:[#allocation3 + $0x7f8] sm:$0xff]
        %v5382 = vld [vmem:[#allocation3 + $0x800] sm:$0xff]
        %v5383 = vld [vmem:[#allocation3 + $0x808] sm:$0xff]
        %v5384 = vld [vmem:[#allocation3 + $0x810] sm:$0xff]
        %v5385 = vld [vmem:[#allocation3 + $0x818] sm:$0xff]
        %v5386 = vld [vmem:[#allocation3 + $0x820] sm:$0xff]
        %v5387 = vld [vmem:[#allocation3 + $0x828] sm:$0xff]
        %v5388 = vld [vmem:[#allocation3 + $0x830] sm:$0xff]
        %v5389 = vld [vmem:[#allocation3 + $0x838] sm:$0xff]
        %v5390 = vld [vmem:[#allocation3 + $0x840] sm:$0xff]
        %v5391 = vld [vmem:[#allocation3 + $0x848] sm:$0xff]
        %v5392 = vld [vmem:[#allocation3 + $0x850] sm:$0xff]
        %v5393 = vld [vmem:[#allocation3 + $0x858] sm:$0xff]
        %v5394 = vld [vmem:[#allocation3 + $0x860] sm:$0xff]
        %v5395 = vld [vmem:[#allocation3 + $0x868] sm:$0xff]
        %v5396 = vld [vmem:[#allocation3 + $0x870] sm:$0xff]
        %v5397 = vld [vmem:[#allocation3 + $0x878] sm:$0xff]
        %v5398 = vld [vmem:[#allocation3 + $0x880] sm:$0xff]
        %v5399 = vld [vmem:[#allocation3 + $0x888] sm:$0xff]
        %v5400 = vld [vmem:[#allocation3 + $0x890] sm:$0xff]
        %v5401 = vld [vmem:[#allocation3 + $0x898] sm:$0xff]
        %v5402 = vld [vmem:[#allocation3 + $0x8a0] sm:$0xff]
        %v5403 = vld [vmem:[#allocation3 + $0x8a8] sm:$0xff]
        %v5404 = vld [vmem:[#allocation3 + $0x8b0] sm:$0xff]
        %v5405 = vld [vmem:[#allocation3 + $0x8b8] sm:$0xff]
        %v5406 = vld [vmem:[#allocation3 + $0x8c0] sm:$0xff]
        %v5407 = vld [vmem:[#allocation3 + $0x8c8] sm:$0xff]
        %v5408 = vld [vmem:[#allocation3 + $0x8d0] sm:$0xff]
        %v5409 = vld [vmem:[#allocation3 + $0x8d8] sm:$0xff]
        %v5410 = vld [vmem:[#allocation3 + $0x8e0] sm:$0xff]
        %v5411 = vld [vmem:[#allocation3 + $0x8e8] sm:$0xff]
        %v5412 = vld [vmem:[#allocation3 + $0x8f0] sm:$0xff]
        %v5413 = vld [vmem:[#allocation3 + $0x8f8] sm:$0xff]
        %s5414 = scalar_lea.vmem [#allocation7], 2304
        %v5415 = vld [vmem:[%s5414] sm:$0xff]
        %v5416 = vld [vmem:[%s5414 + $0x8] sm:$0xff]
        %v5417 = vld [vmem:[%s5414 + $0x10] sm:$0xff]
        %v5418 = vld [vmem:[%s5414 + $0x18] sm:$0xff]
        %v5419 = vld [vmem:[%s5414 + $0x20] sm:$0xff]
        %v5420 = vld [vmem:[%s5414 + $0x28] sm:$0xff]
        %v5421 = vld [vmem:[%s5414 + $0x30] sm:$0xff]
        %v5422 = vld [vmem:[%s5414 + $0x38] sm:$0xff]
        %v5423 = vld [vmem:[%s5414 + $0x40] sm:$0xff]
        %v5424 = vld [vmem:[%s5414 + $0x48] sm:$0xff]
        %v5425 = vld [vmem:[%s5414 + $0x50] sm:$0xff]
        %v5426 = vld [vmem:[%s5414 + $0x58] sm:$0xff]
        %v5427 = vld [vmem:[%s5414 + $0x60] sm:$0xff]
        %v5428 = vld [vmem:[%s5414 + $0x68] sm:$0xff]
        %v5429 = vld [vmem:[%s5414 + $0x70] sm:$0xff]
        %v5430 = vld [vmem:[%s5414 + $0x78] sm:$0xff]
        %v5431 = vld [vmem:[%s5414 + $0x80] sm:$0xff]
        %v5432 = vld [vmem:[%s5414 + $0x88] sm:$0xff]
        %v5433 = vld [vmem:[%s5414 + $0x90] sm:$0xff]
        %v5434 = vld [vmem:[%s5414 + $0x98] sm:$0xff]
        %v5435 = vld [vmem:[%s5414 + $0xa0] sm:$0xff]
        %v5436 = vld [vmem:[%s5414 + $0xa8] sm:$0xff]
        %v5437 = vld [vmem:[%s5414 + $0xb0] sm:$0xff]
        %v5438 = vld [vmem:[%s5414 + $0xb8] sm:$0xff]
        %v5439 = vld [vmem:[%s5414 + $0xc0] sm:$0xff]
        %v5440 = vld [vmem:[%s5414 + $0xc8] sm:$0xff]
        %v5441 = vld [vmem:[%s5414 + $0xd0] sm:$0xff]
        %v5442 = vld [vmem:[%s5414 + $0xd8] sm:$0xff]
        %v5443 = vld [vmem:[%s5414 + $0xe0] sm:$0xff]
        %v5444 = vld [vmem:[%s5414 + $0xe8] sm:$0xff]
        %v5445 = vld [vmem:[%s5414 + $0xf0] sm:$0xff]
        %v5446 = vld [vmem:[%s5414 + $0xf8] sm:$0xff]
        %v5447 = vld [vmem:[%s5414 + $0x100] sm:$0xff]
        %v5448 = vld [vmem:[%s5414 + $0x108] sm:$0xff]
        %v5449 = vld [vmem:[%s5414 + $0x110] sm:$0xff]
        %v5450 = vld [vmem:[%s5414 + $0x118] sm:$0xff]
        %v5451 = vld [vmem:[%s5414 + $0x120] sm:$0xff]
        %v5452 = vld [vmem:[%s5414 + $0x128] sm:$0xff]
        %v5453 = vld [vmem:[%s5414 + $0x130] sm:$0xff]
        %v5454 = vld [vmem:[%s5414 + $0x138] sm:$0xff]
        %v5455 = vld [vmem:[%s5414 + $0x140] sm:$0xff]
        %v5456 = vld [vmem:[%s5414 + $0x148] sm:$0xff]
        %v5457 = vld [vmem:[%s5414 + $0x150] sm:$0xff]
        %v5458 = vld [vmem:[%s5414 + $0x158] sm:$0xff]
        %v5459 = vld [vmem:[%s5414 + $0x160] sm:$0xff]
        %v5460 = vld [vmem:[%s5414 + $0x168] sm:$0xff]
        %v5461 = vld [vmem:[%s5414 + $0x170] sm:$0xff]
        %v5462 = vld [vmem:[%s5414 + $0x178] sm:$0xff]
        %v5463 = vld [vmem:[%s5414 + $0x180] sm:$0xff]
        %v5464 = vld [vmem:[%s5414 + $0x188] sm:$0xff]
        %v5465 = vld [vmem:[%s5414 + $0x190] sm:$0xff]
        %v5466 = vld [vmem:[%s5414 + $0x198] sm:$0xff]
        %v5467 = vld [vmem:[%s5414 + $0x1a0] sm:$0xff]
        %v5468 = vld [vmem:[%s5414 + $0x1a8] sm:$0xff]
        %v5469 = vld [vmem:[%s5414 + $0x1b0] sm:$0xff]
        %v5470 = vld [vmem:[%s5414 + $0x1b8] sm:$0xff]
        %v5471 = vld [vmem:[%s5414 + $0x1c0] sm:$0xff]
        %v5472 = vld [vmem:[%s5414 + $0x1c8] sm:$0xff]
        %v5473 = vld [vmem:[%s5414 + $0x1d0] sm:$0xff]
        %v5474 = vld [vmem:[%s5414 + $0x1d8] sm:$0xff]
        %v5475 = vld [vmem:[%s5414 + $0x1e0] sm:$0xff]
        %v5476 = vld [vmem:[%s5414 + $0x1e8] sm:$0xff]
        %v5477 = vld [vmem:[%s5414 + $0x1f0] sm:$0xff]
        %v5478 = vld [vmem:[%s5414 + $0x1f8] sm:$0xff]
        %v5479 = vld [vmem:[%s5414 + $0x200] sm:$0xff]
        %v5480 = vld [vmem:[%s5414 + $0x208] sm:$0xff]
        %v5481 = vld [vmem:[%s5414 + $0x210] sm:$0xff]
        %v5482 = vld [vmem:[%s5414 + $0x218] sm:$0xff]
        %v5483 = vld [vmem:[%s5414 + $0x220] sm:$0xff]
        %v5484 = vld [vmem:[%s5414 + $0x228] sm:$0xff]
        %v5485 = vld [vmem:[%s5414 + $0x230] sm:$0xff]
        %v5486 = vld [vmem:[%s5414 + $0x238] sm:$0xff]
        %v5487 = vld [vmem:[%s5414 + $0x240] sm:$0xff]
        %v5488 = vld [vmem:[%s5414 + $0x248] sm:$0xff]
        %v5489 = vld [vmem:[%s5414 + $0x250] sm:$0xff]
        %v5490 = vld [vmem:[%s5414 + $0x258] sm:$0xff]
        %v5491 = vld [vmem:[%s5414 + $0x260] sm:$0xff]
        %v5492 = vld [vmem:[%s5414 + $0x268] sm:$0xff]
        %v5493 = vld [vmem:[%s5414 + $0x270] sm:$0xff]
        %v5494 = vld [vmem:[%s5414 + $0x278] sm:$0xff]
        %v5495 = vld [vmem:[%s5414 + $0x280] sm:$0xff]
        %v5496 = vld [vmem:[%s5414 + $0x288] sm:$0xff]
        %v5497 = vld [vmem:[%s5414 + $0x290] sm:$0xff]
        %v5498 = vld [vmem:[%s5414 + $0x298] sm:$0xff]
        %v5499 = vld [vmem:[%s5414 + $0x2a0] sm:$0xff]
        %v5500 = vld [vmem:[%s5414 + $0x2a8] sm:$0xff]
        %v5501 = vld [vmem:[%s5414 + $0x2b0] sm:$0xff]
        %v5502 = vld [vmem:[%s5414 + $0x2b8] sm:$0xff]
        %v5503 = vld [vmem:[%s5414 + $0x2c0] sm:$0xff]
        %v5504 = vld [vmem:[%s5414 + $0x2c8] sm:$0xff]
        %v5505 = vld [vmem:[%s5414 + $0x2d0] sm:$0xff]
        %v5506 = vld [vmem:[%s5414 + $0x2d8] sm:$0xff]
        %v5507 = vld [vmem:[%s5414 + $0x2e0] sm:$0xff]
        %v5508 = vld [vmem:[%s5414 + $0x2e8] sm:$0xff]
        %v5509 = vld [vmem:[%s5414 + $0x2f0] sm:$0xff]
        %v5510 = vld [vmem:[%s5414 + $0x2f8] sm:$0xff]
        %v5511 = vld [vmem:[%s5414 + $0x300] sm:$0xff]
        %v5512 = vld [vmem:[%s5414 + $0x308] sm:$0xff]
        %v5513 = vld [vmem:[%s5414 + $0x310] sm:$0xff]
        %v5514 = vld [vmem:[%s5414 + $0x318] sm:$0xff]
        %v5515 = vld [vmem:[%s5414 + $0x320] sm:$0xff]
        %v5516 = vld [vmem:[%s5414 + $0x328] sm:$0xff]
        %v5517 = vld [vmem:[%s5414 + $0x330] sm:$0xff]
        %v5518 = vld [vmem:[%s5414 + $0x338] sm:$0xff]
        %v5519 = vld [vmem:[%s5414 + $0x340] sm:$0xff]
        %v5520 = vld [vmem:[%s5414 + $0x348] sm:$0xff]
        %v5521 = vld [vmem:[%s5414 + $0x350] sm:$0xff]
        %v5522 = vld [vmem:[%s5414 + $0x358] sm:$0xff]
        %v5523 = vld [vmem:[%s5414 + $0x360] sm:$0xff]
        %v5524 = vld [vmem:[%s5414 + $0x368] sm:$0xff]
        %v5525 = vld [vmem:[%s5414 + $0x370] sm:$0xff]
        %v5526 = vld [vmem:[%s5414 + $0x378] sm:$0xff]
        %v5527 = vld [vmem:[%s5414 + $0x380] sm:$0xff]
        %v5528 = vld [vmem:[%s5414 + $0x388] sm:$0xff]
        %v5529 = vld [vmem:[%s5414 + $0x390] sm:$0xff]
        %v5530 = vld [vmem:[%s5414 + $0x398] sm:$0xff]
        %v5531 = vld [vmem:[%s5414 + $0x3a0] sm:$0xff]
        %v5532 = vld [vmem:[%s5414 + $0x3a8] sm:$0xff]
        %v5533 = vld [vmem:[%s5414 + $0x3b0] sm:$0xff]
        %v5534 = vld [vmem:[%s5414 + $0x3b8] sm:$0xff]
        %v5535 = vld [vmem:[%s5414 + $0x3c0] sm:$0xff]
        %v5536 = vld [vmem:[%s5414 + $0x3c8] sm:$0xff]
        %v5537 = vld [vmem:[%s5414 + $0x3d0] sm:$0xff]
        %v5538 = vld [vmem:[%s5414 + $0x3d8] sm:$0xff]
        %v5539 = vld [vmem:[%s5414 + $0x3e0] sm:$0xff]
        %v5540 = vld [vmem:[%s5414 + $0x3e8] sm:$0xff]
        %v5541 = vld [vmem:[%s5414 + $0x3f0] sm:$0xff]
        %v5542 = vld [vmem:[%s5414 + $0x3f8] sm:$0xff]
        %v5543 = vld [vmem:[%s5414 + $0x400] sm:$0xff]
        %v5544 = vld [vmem:[%s5414 + $0x408] sm:$0xff]
        %v5545 = vld [vmem:[%s5414 + $0x410] sm:$0xff]
        %v5546 = vld [vmem:[%s5414 + $0x418] sm:$0xff]
        %v5547 = vld [vmem:[%s5414 + $0x420] sm:$0xff]
        %v5548 = vld [vmem:[%s5414 + $0x428] sm:$0xff]
        %v5549 = vld [vmem:[%s5414 + $0x430] sm:$0xff]
        %v5550 = vld [vmem:[%s5414 + $0x438] sm:$0xff]
        %v5551 = vld [vmem:[%s5414 + $0x440] sm:$0xff]
        %v5552 = vld [vmem:[%s5414 + $0x448] sm:$0xff]
        %v5553 = vld [vmem:[%s5414 + $0x450] sm:$0xff]
        %v5554 = vld [vmem:[%s5414 + $0x458] sm:$0xff]
        %v5555 = vld [vmem:[%s5414 + $0x460] sm:$0xff]
        %v5556 = vld [vmem:[%s5414 + $0x468] sm:$0xff]
        %v5557 = vld [vmem:[%s5414 + $0x470] sm:$0xff]
        %v5558 = vld [vmem:[%s5414 + $0x478] sm:$0xff]
        %s5559 = scalar_lea.vmem [#allocation9], 2
        %v5560 = vld [vmem:[%s5559] sm:$0x1]
        %v5562 = vperm.slane %v5560, 0
        %5564 = vmatpush.msra.mxu0 %v5430
        %5565 = vmatpush.msra.mxu0 %v5429
        %5566 = vmatpush.msra.mxu0 %v5428
        %5567 = vmatpush.msra.mxu0 %v5427
        %5568 = vmatpush.msra.mxu0 %v5426
        %5569 = vmatpush.msra.mxu0 %v5425
        %5570 = vmatpush.msra.mxu0 %v5424
        %5571 = vmatpush.msra.mxu0 %v5423
        %5572 = vmatpush.msra.mxu0 %v5422
        %5573 = vmatpush.msra.mxu0 %v5421
        %5574 = vmatpush.msra.mxu0 %v5420
        %5575 = vmatpush.msra.mxu0 %v5419
        %5576 = vmatpush.msra.mxu0 %v5418
        %5577 = vmatpush.msra.mxu0 %v5417
        %5578 = vmatpush.msra.mxu0 %v5416
        %5579 = vmatpush.msra.mxu0 %v5415
        %5580 = vmatmul.f32.gmra.mxu0 %v5126
        %v5581 = vpop.f32.mrf.mxu0
        %v5582 = vadd.f32 %v5562, %v5581
        %5583 = vmatmul.f32.gmra.mxu0 %v5135
        %v5584 = vpop.f32.mrf.mxu0
        %v5585 = vadd.f32 %v5562, %v5584
        %5586 = vmatmul.f32.gmra.mxu0 %v5144
        %v5587 = vpop.f32.mrf.mxu0
        %v5588 = vadd.f32 %v5562, %v5587
        %5589 = vmatmul.f32.gmra.mxu0 %v5153
        %v5590 = vpop.f32.mrf.mxu0
        %v5591 = vadd.f32 %v5562, %v5590
        %5592 = vmatmul.f32.gmra.mxu0 %v5162
        %v5593 = vpop.f32.mrf.mxu0
        %v5594 = vadd.f32 %v5562, %v5593
        %5595 = vmatmul.f32.gmra.mxu0 %v5171
        %v5596 = vpop.f32.mrf.mxu0
        %v5597 = vadd.f32 %v5562, %v5596
        %5598 = vmatmul.f32.gmra.mxu0 %v5180
        %v5599 = vpop.f32.mrf.mxu0
        %v5600 = vadd.f32 %v5562, %v5599
        %5601 = vmatmul.f32.gmra.mxu0 %v5189
        %v5602 = vpop.f32.mrf.mxu0
        %v5603 = vadd.f32 %v5562, %v5602
        %5604 = vmatmul.f32.gmra.mxu0 %v5198
        %v5605 = vpop.f32.mrf.mxu0
        %v5606 = vadd.f32 %v5562, %v5605
        %5607 = vmatmul.f32.gmra.mxu0 %v5207
        %v5608 = vpop.f32.mrf.mxu0
        %v5609 = vadd.f32 %v5562, %v5608
        %5610 = vmatmul.f32.gmra.mxu0 %v5216
        %v5611 = vpop.f32.mrf.mxu0
        %v5612 = vadd.f32 %v5562, %v5611
        %5613 = vmatmul.f32.gmra.mxu0 %v5225
        %v5614 = vpop.f32.mrf.mxu0
        %v5615 = vadd.f32 %v5562, %v5614
        %5616 = vmatmul.f32.gmra.mxu0 %v5234
        %v5617 = vpop.f32.mrf.mxu0
        %v5618 = vadd.f32 %v5562, %v5617
        %5619 = vmatmul.f32.gmra.mxu0 %v5243
        %v5620 = vpop.f32.mrf.mxu0
        %v5621 = vadd.f32 %v5562, %v5620
        %5622 = vmatmul.f32.gmra.mxu0 %v5252
        %v5623 = vpop.f32.mrf.mxu0
        %v5624 = vadd.f32 %v5562, %v5623
        %5625 = vmatmul.f32.gmra.mxu0 %v5261
        %v5626 = vpop.f32.mrf.mxu0
        %v5627 = vadd.f32 %v5562, %v5626
        %5628 = vmatmul.f32.gmra.mxu0 %v5270
        %v5629 = vpop.f32.mrf.mxu0
        %v5630 = vadd.f32 %v5562, %v5629
        %5631 = vmatmul.f32.gmra.mxu0 %v5279
        %v5632 = vpop.f32.mrf.mxu0
        %v5633 = vadd.f32 %v5562, %v5632
        %5634 = vmatmul.f32.gmra.mxu0 %v5288
        %v5635 = vpop.f32.mrf.mxu0
        %v5636 = vadd.f32 %v5562, %v5635
        %5637 = vmatmul.f32.gmra.mxu0 %v5297
        %v5638 = vpop.f32.mrf.mxu0
        %v5639 = vadd.f32 %v5562, %v5638
        %5640 = vmatmul.f32.gmra.mxu0 %v5306
        %v5641 = vpop.f32.mrf.mxu0
        %v5642 = vadd.f32 %v5562, %v5641
        %5643 = vmatmul.f32.gmra.mxu0 %v5315
        %v5644 = vpop.f32.mrf.mxu0
        %v5645 = vadd.f32 %v5562, %v5644
        %5646 = vmatmul.f32.gmra.mxu0 %v5324
        %v5647 = vpop.f32.mrf.mxu0
        %v5648 = vadd.f32 %v5562, %v5647
        %5649 = vmatmul.f32.gmra.mxu0 %v5333
        %v5650 = vpop.f32.mrf.mxu0
        %v5651 = vadd.f32 %v5562, %v5650
        %5652 = vmatmul.f32.gmra.mxu0 %v5342
        %v5653 = vpop.f32.mrf.mxu0
        %v5654 = vadd.f32 %v5562, %v5653
        %5655 = vmatmul.f32.gmra.mxu0 %v5351
        %v5656 = vpop.f32.mrf.mxu0
        %v5657 = vadd.f32 %v5562, %v5656
        %5658 = vmatmul.f32.gmra.mxu0 %v5360
        %v5659 = vpop.f32.mrf.mxu0
        %v5660 = vadd.f32 %v5562, %v5659
        %5661 = vmatmul.f32.gmra.mxu0 %v5369
        %v5662 = vpop.f32.mrf.mxu0
        %v5663 = vadd.f32 %v5562, %v5662
        %5664 = vmatmul.f32.gmra.mxu0 %v5378
        %v5665 = vpop.f32.mrf.mxu0
        %v5666 = vadd.f32 %v5562, %v5665
        %5667 = vmatmul.f32.gmra.mxu0 %v5387
        %v5668 = vpop.f32.mrf.mxu0
        %v5669 = vadd.f32 %v5562, %v5668
        %5670 = vmatmul.f32.gmra.mxu0 %v5396
        %v5671 = vpop.f32.mrf.mxu0
        %v5672 = vadd.f32 %v5562, %v5671
        %5673 = vmatmul.f32.gmra.mxu0 %v5405
        %v5674 = vpop.f32.mrf.mxu0
        %v5675 = vadd.f32 %v5562, %v5674
        %5676 = vdwg.mxu0
        %5677 = vmatpush.msra.mxu0 %v5446
        %5678 = vmatpush.msra.mxu0 %v5445
        %5679 = vmatpush.msra.mxu0 %v5444
        %5680 = vmatpush.msra.mxu0 %v5443
        %5681 = vmatpush.msra.mxu0 %v5442
        %5682 = vmatpush.msra.mxu0 %v5441
        %5683 = vmatpush.msra.mxu0 %v5440
        %5684 = vmatpush.msra.mxu0 %v5439
        %5685 = vmatpush.msra.mxu0 %v5438
        %5686 = vmatpush.msra.mxu0 %v5437
        %5687 = vmatpush.msra.mxu0 %v5436
        %5688 = vmatpush.msra.mxu0 %v5435
        %5689 = vmatpush.msra.mxu0 %v5434
        %5690 = vmatpush.msra.mxu0 %v5433
        %5691 = vmatpush.msra.mxu0 %v5432
        %5692 = vmatpush.msra.mxu0 %v5431
        %5693 = vmatmul.f32.gmra.mxu0 %v5127
        %v5694 = vpop.f32.mrf.mxu0
        %v5695 = vadd.f32 %v5582, %v5694
        %5696 = vmatmul.f32.gmra.mxu0 %v5136
        %v5697 = vpop.f32.mrf.mxu0
        %v5698 = vadd.f32 %v5585, %v5697
        %5699 = vmatmul.f32.gmra.mxu0 %v5145
        %v5700 = vpop.f32.mrf.mxu0
        %v5701 = vadd.f32 %v5588, %v5700
        %5702 = vmatmul.f32.gmra.mxu0 %v5154
        %v5703 = vpop.f32.mrf.mxu0
        %v5704 = vadd.f32 %v5591, %v5703
        %5705 = vmatmul.f32.gmra.mxu0 %v5163
        %v5706 = vpop.f32.mrf.mxu0
        %v5707 = vadd.f32 %v5594, %v5706
        %5708 = vmatmul.f32.gmra.mxu0 %v5172
        %v5709 = vpop.f32.mrf.mxu0
        %v5710 = vadd.f32 %v5597, %v5709
        %5711 = vmatmul.f32.gmra.mxu0 %v5181
        %v5712 = vpop.f32.mrf.mxu0
        %v5713 = vadd.f32 %v5600, %v5712
        %5714 = vmatmul.f32.gmra.mxu0 %v5190
        %v5715 = vpop.f32.mrf.mxu0
        %v5716 = vadd.f32 %v5603, %v5715
        %5717 = vmatmul.f32.gmra.mxu0 %v5199
        %v5718 = vpop.f32.mrf.mxu0
        %v5719 = vadd.f32 %v5606, %v5718
        %5720 = vmatmul.f32.gmra.mxu0 %v5208
        %v5721 = vpop.f32.mrf.mxu0
        %v5722 = vadd.f32 %v5609, %v5721
        %5723 = vmatmul.f32.gmra.mxu0 %v5217
        %v5724 = vpop.f32.mrf.mxu0
        %v5725 = vadd.f32 %v5612, %v5724
        %5726 = vmatmul.f32.gmra.mxu0 %v5226
        %v5727 = vpop.f32.mrf.mxu0
        %v5728 = vadd.f32 %v5615, %v5727
        %5729 = vmatmul.f32.gmra.mxu0 %v5235
        %v5730 = vpop.f32.mrf.mxu0
        %v5731 = vadd.f32 %v5618, %v5730
        %5732 = vmatmul.f32.gmra.mxu0 %v5244
        %v5733 = vpop.f32.mrf.mxu0
        %v5734 = vadd.f32 %v5621, %v5733
        %5735 = vmatmul.f32.gmra.mxu0 %v5253
        %v5736 = vpop.f32.mrf.mxu0
        %v5737 = vadd.f32 %v5624, %v5736
        %5738 = vmatmul.f32.gmra.mxu0 %v5262
        %v5739 = vpop.f32.mrf.mxu0
        %v5740 = vadd.f32 %v5627, %v5739
        %5741 = vmatmul.f32.gmra.mxu0 %v5271
        %v5742 = vpop.f32.mrf.mxu0
        %v5743 = vadd.f32 %v5630, %v5742
        %5744 = vmatmul.f32.gmra.mxu0 %v5280
        %v5745 = vpop.f32.mrf.mxu0
        %v5746 = vadd.f32 %v5633, %v5745
        %5747 = vmatmul.f32.gmra.mxu0 %v5289
        %v5748 = vpop.f32.mrf.mxu0
        %v5749 = vadd.f32 %v5636, %v5748
        %5750 = vmatmul.f32.gmra.mxu0 %v5298
        %v5751 = vpop.f32.mrf.mxu0
        %v5752 = vadd.f32 %v5639, %v5751
        %5753 = vmatmul.f32.gmra.mxu0 %v5307
        %v5754 = vpop.f32.mrf.mxu0
        %v5755 = vadd.f32 %v5642, %v5754
        %5756 = vmatmul.f32.gmra.mxu0 %v5316
        %v5757 = vpop.f32.mrf.mxu0
        %v5758 = vadd.f32 %v5645, %v5757
        %5759 = vmatmul.f32.gmra.mxu0 %v5325
        %v5760 = vpop.f32.mrf.mxu0
        %v5761 = vadd.f32 %v5648, %v5760
        %5762 = vmatmul.f32.gmra.mxu0 %v5334
        %v5763 = vpop.f32.mrf.mxu0
        %v5764 = vadd.f32 %v5651, %v5763
        %5765 = vmatmul.f32.gmra.mxu0 %v5343
        %v5766 = vpop.f32.mrf.mxu0
        %v5767 = vadd.f32 %v5654, %v5766
        %5768 = vmatmul.f32.gmra.mxu0 %v5352
        %v5769 = vpop.f32.mrf.mxu0
        %v5770 = vadd.f32 %v5657, %v5769
        %5771 = vmatmul.f32.gmra.mxu0 %v5361
        %v5772 = vpop.f32.mrf.mxu0
        %v5773 = vadd.f32 %v5660, %v5772
        %5774 = vmatmul.f32.gmra.mxu0 %v5370
        %v5775 = vpop.f32.mrf.mxu0
        %v5776 = vadd.f32 %v5663, %v5775
        %5777 = vmatmul.f32.gmra.mxu0 %v5379
        %v5778 = vpop.f32.mrf.mxu0
        %v5779 = vadd.f32 %v5666, %v5778
        %5780 = vmatmul.f32.gmra.mxu0 %v5388
        %v5781 = vpop.f32.mrf.mxu0
        %v5782 = vadd.f32 %v5669, %v5781
        %5783 = vmatmul.f32.gmra.mxu0 %v5397
        %v5784 = vpop.f32.mrf.mxu0
        %v5785 = vadd.f32 %v5672, %v5784
        %5786 = vmatmul.f32.gmra.mxu0 %v5406
        %v5787 = vpop.f32.mrf.mxu0
        %v5788 = vadd.f32 %v5675, %v5787
        %5789 = vdwg.mxu0
        %5790 = vmatpush.msra.mxu0 %v5462
        %5791 = vmatpush.msra.mxu0 %v5461
        %5792 = vmatpush.msra.mxu0 %v5460
        %5793 = vmatpush.msra.mxu0 %v5459
        %5794 = vmatpush.msra.mxu0 %v5458
        %5795 = vmatpush.msra.mxu0 %v5457
        %5796 = vmatpush.msra.mxu0 %v5456
        %5797 = vmatpush.msra.mxu0 %v5455
        %5798 = vmatpush.msra.mxu0 %v5454
        %5799 = vmatpush.msra.mxu0 %v5453
        %5800 = vmatpush.msra.mxu0 %v5452
        %5801 = vmatpush.msra.mxu0 %v5451
        %5802 = vmatpush.msra.mxu0 %v5450
        %5803 = vmatpush.msra.mxu0 %v5449
        %5804 = vmatpush.msra.mxu0 %v5448
        %5805 = vmatpush.msra.mxu0 %v5447
        %5806 = vmatmul.f32.gmra.mxu0 %v5128
        %v5807 = vpop.f32.mrf.mxu0
        %v5808 = vadd.f32 %v5695, %v5807
        %5809 = vmatmul.f32.gmra.mxu0 %v5137
        %v5810 = vpop.f32.mrf.mxu0
        %v5811 = vadd.f32 %v5698, %v5810
        %5812 = vmatmul.f32.gmra.mxu0 %v5146
        %v5813 = vpop.f32.mrf.mxu0
        %v5814 = vadd.f32 %v5701, %v5813
        %5815 = vmatmul.f32.gmra.mxu0 %v5155
        %v5816 = vpop.f32.mrf.mxu0
        %v5817 = vadd.f32 %v5704, %v5816
        %5818 = vmatmul.f32.gmra.mxu0 %v5164
        %v5819 = vpop.f32.mrf.mxu0
        %v5820 = vadd.f32 %v5707, %v5819
        %5821 = vmatmul.f32.gmra.mxu0 %v5173
        %v5822 = vpop.f32.mrf.mxu0
        %v5823 = vadd.f32 %v5710, %v5822
        %5824 = vmatmul.f32.gmra.mxu0 %v5182
        %v5825 = vpop.f32.mrf.mxu0
        %v5826 = vadd.f32 %v5713, %v5825
        %5827 = vmatmul.f32.gmra.mxu0 %v5191
        %v5828 = vpop.f32.mrf.mxu0
        %v5829 = vadd.f32 %v5716, %v5828
        %5830 = vmatmul.f32.gmra.mxu0 %v5200
        %v5831 = vpop.f32.mrf.mxu0
        %v5832 = vadd.f32 %v5719, %v5831
        %5833 = vmatmul.f32.gmra.mxu0 %v5209
        %v5834 = vpop.f32.mrf.mxu0
        %v5835 = vadd.f32 %v5722, %v5834
        %5836 = vmatmul.f32.gmra.mxu0 %v5218
        %v5837 = vpop.f32.mrf.mxu0
        %v5838 = vadd.f32 %v5725, %v5837
        %5839 = vmatmul.f32.gmra.mxu0 %v5227
        %v5840 = vpop.f32.mrf.mxu0
        %v5841 = vadd.f32 %v5728, %v5840
        %5842 = vmatmul.f32.gmra.mxu0 %v5236
        %v5843 = vpop.f32.mrf.mxu0
        %v5844 = vadd.f32 %v5731, %v5843
        %5845 = vmatmul.f32.gmra.mxu0 %v5245
        %v5846 = vpop.f32.mrf.mxu0
        %v5847 = vadd.f32 %v5734, %v5846
        %5848 = vmatmul.f32.gmra.mxu0 %v5254
        %v5849 = vpop.f32.mrf.mxu0
        %v5850 = vadd.f32 %v5737, %v5849
        %5851 = vmatmul.f32.gmra.mxu0 %v5263
        %v5852 = vpop.f32.mrf.mxu0
        %v5853 = vadd.f32 %v5740, %v5852
        %5854 = vmatmul.f32.gmra.mxu0 %v5272
        %v5855 = vpop.f32.mrf.mxu0
        %v5856 = vadd.f32 %v5743, %v5855
        %5857 = vmatmul.f32.gmra.mxu0 %v5281
        %v5858 = vpop.f32.mrf.mxu0
        %v5859 = vadd.f32 %v5746, %v5858
        %5860 = vmatmul.f32.gmra.mxu0 %v5290
        %v5861 = vpop.f32.mrf.mxu0
        %v5862 = vadd.f32 %v5749, %v5861
        %5863 = vmatmul.f32.gmra.mxu0 %v5299
        %v5864 = vpop.f32.mrf.mxu0
        %v5865 = vadd.f32 %v5752, %v5864
        %5866 = vmatmul.f32.gmra.mxu0 %v5308
        %v5867 = vpop.f32.mrf.mxu0
        %v5868 = vadd.f32 %v5755, %v5867
        %5869 = vmatmul.f32.gmra.mxu0 %v5317
        %v5870 = vpop.f32.mrf.mxu0
        %v5871 = vadd.f32 %v5758, %v5870
        %5872 = vmatmul.f32.gmra.mxu0 %v5326
        %v5873 = vpop.f32.mrf.mxu0
        %v5874 = vadd.f32 %v5761, %v5873
        %5875 = vmatmul.f32.gmra.mxu0 %v5335
        %v5876 = vpop.f32.mrf.mxu0
        %v5877 = vadd.f32 %v5764, %v5876
        %5878 = vmatmul.f32.gmra.mxu0 %v5344
        %v5879 = vpop.f32.mrf.mxu0
        %v5880 = vadd.f32 %v5767, %v5879
        %5881 = vmatmul.f32.gmra.mxu0 %v5353
        %v5882 = vpop.f32.mrf.mxu0
        %v5883 = vadd.f32 %v5770, %v5882
        %5884 = vmatmul.f32.gmra.mxu0 %v5362
        %v5885 = vpop.f32.mrf.mxu0
        %v5886 = vadd.f32 %v5773, %v5885
        %5887 = vmatmul.f32.gmra.mxu0 %v5371
        %v5888 = vpop.f32.mrf.mxu0
        %v5889 = vadd.f32 %v5776, %v5888
        %5890 = vmatmul.f32.gmra.mxu0 %v5380
        %v5891 = vpop.f32.mrf.mxu0
        %v5892 = vadd.f32 %v5779, %v5891
        %5893 = vmatmul.f32.gmra.mxu0 %v5389
        %v5894 = vpop.f32.mrf.mxu0
        %v5895 = vadd.f32 %v5782, %v5894
        %5896 = vmatmul.f32.gmra.mxu0 %v5398
        %v5897 = vpop.f32.mrf.mxu0
        %v5898 = vadd.f32 %v5785, %v5897
        %5899 = vmatmul.f32.gmra.mxu0 %v5407
        %v5900 = vpop.f32.mrf.mxu0
        %v5901 = vadd.f32 %v5788, %v5900
        %5902 = vdwg.mxu0
        %5903 = vmatpush.msra.mxu0 %v5478
        %5904 = vmatpush.msra.mxu0 %v5477
        %5905 = vmatpush.msra.mxu0 %v5476
        %5906 = vmatpush.msra.mxu0 %v5475
        %5907 = vmatpush.msra.mxu0 %v5474
        %5908 = vmatpush.msra.mxu0 %v5473
        %5909 = vmatpush.msra.mxu0 %v5472
        %5910 = vmatpush.msra.mxu0 %v5471
        %5911 = vmatpush.msra.mxu0 %v5470
        %5912 = vmatpush.msra.mxu0 %v5469
        %5913 = vmatpush.msra.mxu0 %v5468
        %5914 = vmatpush.msra.mxu0 %v5467
        %5915 = vmatpush.msra.mxu0 %v5466
        %5916 = vmatpush.msra.mxu0 %v5465
        %5917 = vmatpush.msra.mxu0 %v5464
        %5918 = vmatpush.msra.mxu0 %v5463
        %5919 = vmatmul.f32.gmra.mxu0 %v5129
        %v5920 = vpop.f32.mrf.mxu0
        %v5921 = vadd.f32 %v5808, %v5920
        %5922 = vmatmul.f32.gmra.mxu0 %v5138
        %v5923 = vpop.f32.mrf.mxu0
        %v5924 = vadd.f32 %v5811, %v5923
        %5925 = vmatmul.f32.gmra.mxu0 %v5147
        %v5926 = vpop.f32.mrf.mxu0
        %v5927 = vadd.f32 %v5814, %v5926
        %5928 = vmatmul.f32.gmra.mxu0 %v5156
        %v5929 = vpop.f32.mrf.mxu0
        %v5930 = vadd.f32 %v5817, %v5929
        %5931 = vmatmul.f32.gmra.mxu0 %v5165
        %v5932 = vpop.f32.mrf.mxu0
        %v5933 = vadd.f32 %v5820, %v5932
        %5934 = vmatmul.f32.gmra.mxu0 %v5174
        %v5935 = vpop.f32.mrf.mxu0
        %v5936 = vadd.f32 %v5823, %v5935
        %5937 = vmatmul.f32.gmra.mxu0 %v5183
        %v5938 = vpop.f32.mrf.mxu0
        %v5939 = vadd.f32 %v5826, %v5938
        %5940 = vmatmul.f32.gmra.mxu0 %v5192
        %v5941 = vpop.f32.mrf.mxu0
        %v5942 = vadd.f32 %v5829, %v5941
        %5943 = vmatmul.f32.gmra.mxu0 %v5201
        %v5944 = vpop.f32.mrf.mxu0
        %v5945 = vadd.f32 %v5832, %v5944
        %5946 = vmatmul.f32.gmra.mxu0 %v5210
        %v5947 = vpop.f32.mrf.mxu0
        %v5948 = vadd.f32 %v5835, %v5947
        %5949 = vmatmul.f32.gmra.mxu0 %v5219
        %v5950 = vpop.f32.mrf.mxu0
        %v5951 = vadd.f32 %v5838, %v5950
        %5952 = vmatmul.f32.gmra.mxu0 %v5228
        %v5953 = vpop.f32.mrf.mxu0
        %v5954 = vadd.f32 %v5841, %v5953
        %5955 = vmatmul.f32.gmra.mxu0 %v5237
        %v5956 = vpop.f32.mrf.mxu0
        %v5957 = vadd.f32 %v5844, %v5956
        %5958 = vmatmul.f32.gmra.mxu0 %v5246
        %v5959 = vpop.f32.mrf.mxu0
        %v5960 = vadd.f32 %v5847, %v5959
        %5961 = vmatmul.f32.gmra.mxu0 %v5255
        %v5962 = vpop.f32.mrf.mxu0
        %v5963 = vadd.f32 %v5850, %v5962
        %5964 = vmatmul.f32.gmra.mxu0 %v5264
        %v5965 = vpop.f32.mrf.mxu0
        %v5966 = vadd.f32 %v5853, %v5965
        %5967 = vmatmul.f32.gmra.mxu0 %v5273
        %v5968 = vpop.f32.mrf.mxu0
        %v5969 = vadd.f32 %v5856, %v5968
        %5970 = vmatmul.f32.gmra.mxu0 %v5282
        %v5971 = vpop.f32.mrf.mxu0
        %v5972 = vadd.f32 %v5859, %v5971
        %5973 = vmatmul.f32.gmra.mxu0 %v5291
        %v5974 = vpop.f32.mrf.mxu0
        %v5975 = vadd.f32 %v5862, %v5974
        %5976 = vmatmul.f32.gmra.mxu0 %v5300
        %v5977 = vpop.f32.mrf.mxu0
        %v5978 = vadd.f32 %v5865, %v5977
        %5979 = vmatmul.f32.gmra.mxu0 %v5309
        %v5980 = vpop.f32.mrf.mxu0
        %v5981 = vadd.f32 %v5868, %v5980
        %5982 = vmatmul.f32.gmra.mxu0 %v5318
        %v5983 = vpop.f32.mrf.mxu0
        %v5984 = vadd.f32 %v5871, %v5983
        %5985 = vmatmul.f32.gmra.mxu0 %v5327
        %v5986 = vpop.f32.mrf.mxu0
        %v5987 = vadd.f32 %v5874, %v5986
        %5988 = vmatmul.f32.gmra.mxu0 %v5336
        %v5989 = vpop.f32.mrf.mxu0
        %v5990 = vadd.f32 %v5877, %v5989
        %5991 = vmatmul.f32.gmra.mxu0 %v5345
        %v5992 = vpop.f32.mrf.mxu0
        %v5993 = vadd.f32 %v5880, %v5992
        %5994 = vmatmul.f32.gmra.mxu0 %v5354
        %v5995 = vpop.f32.mrf.mxu0
        %v5996 = vadd.f32 %v5883, %v5995
        %5997 = vmatmul.f32.gmra.mxu0 %v5363
        %v5998 = vpop.f32.mrf.mxu0
        %v5999 = vadd.f32 %v5886, %v5998
        %6000 = vmatmul.f32.gmra.mxu0 %v5372
        %v6001 = vpop.f32.mrf.mxu0
        %v6002 = vadd.f32 %v5889, %v6001
        %6003 = vmatmul.f32.gmra.mxu0 %v5381
        %v6004 = vpop.f32.mrf.mxu0
        %v6005 = vadd.f32 %v5892, %v6004
        %6006 = vmatmul.f32.gmra.mxu0 %v5390
        %v6007 = vpop.f32.mrf.mxu0
        %v6008 = vadd.f32 %v5895, %v6007
        %6009 = vmatmul.f32.gmra.mxu0 %v5399
        %v6010 = vpop.f32.mrf.mxu0
        %v6011 = vadd.f32 %v5898, %v6010
        %6012 = vmatmul.f32.gmra.mxu0 %v5408
        %v6013 = vpop.f32.mrf.mxu0
        %v6014 = vadd.f32 %v5901, %v6013
        %6015 = vdwg.mxu0
        %6016 = vmatpush.msra.mxu0 %v5494
        %6017 = vmatpush.msra.mxu0 %v5493
        %6018 = vmatpush.msra.mxu0 %v5492
        %6019 = vmatpush.msra.mxu0 %v5491
        %6020 = vmatpush.msra.mxu0 %v5490
        %6021 = vmatpush.msra.mxu0 %v5489
        %6022 = vmatpush.msra.mxu0 %v5488
        %6023 = vmatpush.msra.mxu0 %v5487
        %6024 = vmatpush.msra.mxu0 %v5486
        %6025 = vmatpush.msra.mxu0 %v5485
        %6026 = vmatpush.msra.mxu0 %v5484
        %6027 = vmatpush.msra.mxu0 %v5483
        %6028 = vmatpush.msra.mxu0 %v5482
        %6029 = vmatpush.msra.mxu0 %v5481
        %6030 = vmatpush.msra.mxu0 %v5480
        %6031 = vmatpush.msra.mxu0 %v5479
        %6032 = vmatmul.f32.gmra.mxu0 %v5130
        %v6033 = vpop.f32.mrf.mxu0
        %v6034 = vadd.f32 %v5921, %v6033
        %6035 = vmatmul.f32.gmra.mxu0 %v5139
        %v6036 = vpop.f32.mrf.mxu0
        %v6037 = vadd.f32 %v5924, %v6036
        %6038 = vmatmul.f32.gmra.mxu0 %v5148
        %v6039 = vpop.f32.mrf.mxu0
        %v6040 = vadd.f32 %v5927, %v6039
        %6041 = vmatmul.f32.gmra.mxu0 %v5157
        %v6042 = vpop.f32.mrf.mxu0
        %v6043 = vadd.f32 %v5930, %v6042
        %6044 = vmatmul.f32.gmra.mxu0 %v5166
        %v6045 = vpop.f32.mrf.mxu0
        %v6046 = vadd.f32 %v5933, %v6045
        %6047 = vmatmul.f32.gmra.mxu0 %v5175
        %v6048 = vpop.f32.mrf.mxu0
        %v6049 = vadd.f32 %v5936, %v6048
        %6050 = vmatmul.f32.gmra.mxu0 %v5184
        %v6051 = vpop.f32.mrf.mxu0
        %v6052 = vadd.f32 %v5939, %v6051
        %6053 = vmatmul.f32.gmra.mxu0 %v5193
        %v6054 = vpop.f32.mrf.mxu0
        %v6055 = vadd.f32 %v5942, %v6054
        %6056 = vmatmul.f32.gmra.mxu0 %v5202
        %v6057 = vpop.f32.mrf.mxu0
        %v6058 = vadd.f32 %v5945, %v6057
        %6059 = vmatmul.f32.gmra.mxu0 %v5211
        %v6060 = vpop.f32.mrf.mxu0
        %v6061 = vadd.f32 %v5948, %v6060
        %6062 = vmatmul.f32.gmra.mxu0 %v5220
        %v6063 = vpop.f32.mrf.mxu0
        %v6064 = vadd.f32 %v5951, %v6063
        %6065 = vmatmul.f32.gmra.mxu0 %v5229
        %v6066 = vpop.f32.mrf.mxu0
        %v6067 = vadd.f32 %v5954, %v6066
        %6068 = vmatmul.f32.gmra.mxu0 %v5238
        %v6069 = vpop.f32.mrf.mxu0
        %v6070 = vadd.f32 %v5957, %v6069
        %6071 = vmatmul.f32.gmra.mxu0 %v5247
        %v6072 = vpop.f32.mrf.mxu0
        %v6073 = vadd.f32 %v5960, %v6072
        %6074 = vmatmul.f32.gmra.mxu0 %v5256
        %v6075 = vpop.f32.mrf.mxu0
        %v6076 = vadd.f32 %v5963, %v6075
        %6077 = vmatmul.f32.gmra.mxu0 %v5265
        %v6078 = vpop.f32.mrf.mxu0
        %v6079 = vadd.f32 %v5966, %v6078
        %6080 = vmatmul.f32.gmra.mxu0 %v5274
        %v6081 = vpop.f32.mrf.mxu0
        %v6082 = vadd.f32 %v5969, %v6081
        %6083 = vmatmul.f32.gmra.mxu0 %v5283
        %v6084 = vpop.f32.mrf.mxu0
        %v6085 = vadd.f32 %v5972, %v6084
        %6086 = vmatmul.f32.gmra.mxu0 %v5292
        %v6087 = vpop.f32.mrf.mxu0
        %v6088 = vadd.f32 %v5975, %v6087
        %6089 = vmatmul.f32.gmra.mxu0 %v5301
        %v6090 = vpop.f32.mrf.mxu0
        %v6091 = vadd.f32 %v5978, %v6090
        %6092 = vmatmul.f32.gmra.mxu0 %v5310
        %v6093 = vpop.f32.mrf.mxu0
        %v6094 = vadd.f32 %v5981, %v6093
        %6095 = vmatmul.f32.gmra.mxu0 %v5319
        %v6096 = vpop.f32.mrf.mxu0
        %v6097 = vadd.f32 %v5984, %v6096
        %6098 = vmatmul.f32.gmra.mxu0 %v5328
        %v6099 = vpop.f32.mrf.mxu0
        %v6100 = vadd.f32 %v5987, %v6099
        %6101 = vmatmul.f32.gmra.mxu0 %v5337
        %v6102 = vpop.f32.mrf.mxu0
        %v6103 = vadd.f32 %v5990, %v6102
        %6104 = vmatmul.f32.gmra.mxu0 %v5346
        %v6105 = vpop.f32.mrf.mxu0
        %v6106 = vadd.f32 %v5993, %v6105
        %6107 = vmatmul.f32.gmra.mxu0 %v5355
        %v6108 = vpop.f32.mrf.mxu0
        %v6109 = vadd.f32 %v5996, %v6108
        %6110 = vmatmul.f32.gmra.mxu0 %v5364
        %v6111 = vpop.f32.mrf.mxu0
        %v6112 = vadd.f32 %v5999, %v6111
        %6113 = vmatmul.f32.gmra.mxu0 %v5373
        %v6114 = vpop.f32.mrf.mxu0
        %v6115 = vadd.f32 %v6002, %v6114
        %6116 = vmatmul.f32.gmra.mxu0 %v5382
        %v6117 = vpop.f32.mrf.mxu0
        %v6118 = vadd.f32 %v6005, %v6117
        %6119 = vmatmul.f32.gmra.mxu0 %v5391
        %v6120 = vpop.f32.mrf.mxu0
        %v6121 = vadd.f32 %v6008, %v6120
        %6122 = vmatmul.f32.gmra.mxu0 %v5400
        %v6123 = vpop.f32.mrf.mxu0
        %v6124 = vadd.f32 %v6011, %v6123
        %6125 = vmatmul.f32.gmra.mxu0 %v5409
        %v6126 = vpop.f32.mrf.mxu0
        %v6127 = vadd.f32 %v6014, %v6126
        %6128 = vdwg.mxu0
        %6129 = vmatpush.msra.mxu0 %v5510
        %6130 = vmatpush.msra.mxu0 %v5509
        %6131 = vmatpush.msra.mxu0 %v5508
        %6132 = vmatpush.msra.mxu0 %v5507
        %6133 = vmatpush.msra.mxu0 %v5506
        %6134 = vmatpush.msra.mxu0 %v5505
        %6135 = vmatpush.msra.mxu0 %v5504
        %6136 = vmatpush.msra.mxu0 %v5503
        %6137 = vmatpush.msra.mxu0 %v5502
        %6138 = vmatpush.msra.mxu0 %v5501
        %6139 = vmatpush.msra.mxu0 %v5500
        %6140 = vmatpush.msra.mxu0 %v5499
        %6141 = vmatpush.msra.mxu0 %v5498
        %6142 = vmatpush.msra.mxu0 %v5497
        %6143 = vmatpush.msra.mxu0 %v5496
        %6144 = vmatpush.msra.mxu0 %v5495
        %6145 = vmatmul.f32.gmra.mxu0 %v5131
        %v6146 = vpop.f32.mrf.mxu0
        %v6147 = vadd.f32 %v6034, %v6146
        %6148 = vmatmul.f32.gmra.mxu0 %v5140
        %v6149 = vpop.f32.mrf.mxu0
        %v6150 = vadd.f32 %v6037, %v6149
        %6151 = vmatmul.f32.gmra.mxu0 %v5149
        %v6152 = vpop.f32.mrf.mxu0
        %v6153 = vadd.f32 %v6040, %v6152
        %6154 = vmatmul.f32.gmra.mxu0 %v5158
        %v6155 = vpop.f32.mrf.mxu0
        %v6156 = vadd.f32 %v6043, %v6155
        %6157 = vmatmul.f32.gmra.mxu0 %v5167
        %v6158 = vpop.f32.mrf.mxu0
        %v6159 = vadd.f32 %v6046, %v6158
        %6160 = vmatmul.f32.gmra.mxu0 %v5176
        %v6161 = vpop.f32.mrf.mxu0
        %v6162 = vadd.f32 %v6049, %v6161
        %6163 = vmatmul.f32.gmra.mxu0 %v5185
        %v6164 = vpop.f32.mrf.mxu0
        %v6165 = vadd.f32 %v6052, %v6164
        %6166 = vmatmul.f32.gmra.mxu0 %v5194
        %v6167 = vpop.f32.mrf.mxu0
        %v6168 = vadd.f32 %v6055, %v6167
        %6169 = vmatmul.f32.gmra.mxu0 %v5203
        %v6170 = vpop.f32.mrf.mxu0
        %v6171 = vadd.f32 %v6058, %v6170
        %6172 = vmatmul.f32.gmra.mxu0 %v5212
        %v6173 = vpop.f32.mrf.mxu0
        %v6174 = vadd.f32 %v6061, %v6173
        %6175 = vmatmul.f32.gmra.mxu0 %v5221
        %v6176 = vpop.f32.mrf.mxu0
        %v6177 = vadd.f32 %v6064, %v6176
        %6178 = vmatmul.f32.gmra.mxu0 %v5230
        %v6179 = vpop.f32.mrf.mxu0
        %v6180 = vadd.f32 %v6067, %v6179
        %6181 = vmatmul.f32.gmra.mxu0 %v5239
        %v6182 = vpop.f32.mrf.mxu0
        %v6183 = vadd.f32 %v6070, %v6182
        %6184 = vmatmul.f32.gmra.mxu0 %v5248
        %v6185 = vpop.f32.mrf.mxu0
        %v6186 = vadd.f32 %v6073, %v6185
        %6187 = vmatmul.f32.gmra.mxu0 %v5257
        %v6188 = vpop.f32.mrf.mxu0
        %v6189 = vadd.f32 %v6076, %v6188
        %6190 = vmatmul.f32.gmra.mxu0 %v5266
        %v6191 = vpop.f32.mrf.mxu0
        %v6192 = vadd.f32 %v6079, %v6191
        %6193 = vmatmul.f32.gmra.mxu0 %v5275
        %v6194 = vpop.f32.mrf.mxu0
        %v6195 = vadd.f32 %v6082, %v6194
        %6196 = vmatmul.f32.gmra.mxu0 %v5284
        %v6197 = vpop.f32.mrf.mxu0
        %v6198 = vadd.f32 %v6085, %v6197
        %6199 = vmatmul.f32.gmra.mxu0 %v5293
        %v6200 = vpop.f32.mrf.mxu0
        %v6201 = vadd.f32 %v6088, %v6200
        %6202 = vmatmul.f32.gmra.mxu0 %v5302
        %v6203 = vpop.f32.mrf.mxu0
        %v6204 = vadd.f32 %v6091, %v6203
        %6205 = vmatmul.f32.gmra.mxu0 %v5311
        %v6206 = vpop.f32.mrf.mxu0
        %v6207 = vadd.f32 %v6094, %v6206
        %6208 = vmatmul.f32.gmra.mxu0 %v5320
        %v6209 = vpop.f32.mrf.mxu0
        %v6210 = vadd.f32 %v6097, %v6209
        %6211 = vmatmul.f32.gmra.mxu0 %v5329
        %v6212 = vpop.f32.mrf.mxu0
        %v6213 = vadd.f32 %v6100, %v6212
        %6214 = vmatmul.f32.gmra.mxu0 %v5338
        %v6215 = vpop.f32.mrf.mxu0
        %v6216 = vadd.f32 %v6103, %v6215
        %6217 = vmatmul.f32.gmra.mxu0 %v5347
        %v6218 = vpop.f32.mrf.mxu0
        %v6219 = vadd.f32 %v6106, %v6218
        %6220 = vmatmul.f32.gmra.mxu0 %v5356
        %v6221 = vpop.f32.mrf.mxu0
        %v6222 = vadd.f32 %v6109, %v6221
        %6223 = vmatmul.f32.gmra.mxu0 %v5365
        %v6224 = vpop.f32.mrf.mxu0
        %v6225 = vadd.f32 %v6112, %v6224
        %6226 = vmatmul.f32.gmra.mxu0 %v5374
        %v6227 = vpop.f32.mrf.mxu0
        %v6228 = vadd.f32 %v6115, %v6227
        %6229 = vmatmul.f32.gmra.mxu0 %v5383
        %v6230 = vpop.f32.mrf.mxu0
        %v6231 = vadd.f32 %v6118, %v6230
        %6232 = vmatmul.f32.gmra.mxu0 %v5392
        %v6233 = vpop.f32.mrf.mxu0
        %v6234 = vadd.f32 %v6121, %v6233
        %6235 = vmatmul.f32.gmra.mxu0 %v5401
        %v6236 = vpop.f32.mrf.mxu0
        %v6237 = vadd.f32 %v6124, %v6236
        %6238 = vmatmul.f32.gmra.mxu0 %v5410
        %v6239 = vpop.f32.mrf.mxu0
        %v6240 = vadd.f32 %v6127, %v6239
        %6241 = vdwg.mxu0
        %6242 = vmatpush.msra.mxu0 %v5526
        %6243 = vmatpush.msra.mxu0 %v5525
        %6244 = vmatpush.msra.mxu0 %v5524
        %6245 = vmatpush.msra.mxu0 %v5523
        %6246 = vmatpush.msra.mxu0 %v5522
        %6247 = vmatpush.msra.mxu0 %v5521
        %6248 = vmatpush.msra.mxu0 %v5520
        %6249 = vmatpush.msra.mxu0 %v5519
        %6250 = vmatpush.msra.mxu0 %v5518
        %6251 = vmatpush.msra.mxu0 %v5517
        %6252 = vmatpush.msra.mxu0 %v5516
        %6253 = vmatpush.msra.mxu0 %v5515
        %6254 = vmatpush.msra.mxu0 %v5514
        %6255 = vmatpush.msra.mxu0 %v5513
        %6256 = vmatpush.msra.mxu0 %v5512
        %6257 = vmatpush.msra.mxu0 %v5511
        %6258 = vmatmul.f32.gmra.mxu0 %v5132
        %v6259 = vpop.f32.mrf.mxu0
        %v6260 = vadd.f32 %v6147, %v6259
        %6261 = vmatmul.f32.gmra.mxu0 %v5141
        %v6262 = vpop.f32.mrf.mxu0
        %v6263 = vadd.f32 %v6150, %v6262
        %6264 = vmatmul.f32.gmra.mxu0 %v5150
        %v6265 = vpop.f32.mrf.mxu0
        %v6266 = vadd.f32 %v6153, %v6265
        %6267 = vmatmul.f32.gmra.mxu0 %v5159
        %v6268 = vpop.f32.mrf.mxu0
        %v6269 = vadd.f32 %v6156, %v6268
        %6270 = vmatmul.f32.gmra.mxu0 %v5168
        %v6271 = vpop.f32.mrf.mxu0
        %v6272 = vadd.f32 %v6159, %v6271
        %6273 = vmatmul.f32.gmra.mxu0 %v5177
        %v6274 = vpop.f32.mrf.mxu0
        %v6275 = vadd.f32 %v6162, %v6274
        %6276 = vmatmul.f32.gmra.mxu0 %v5186
        %v6277 = vpop.f32.mrf.mxu0
        %v6278 = vadd.f32 %v6165, %v6277
        %6279 = vmatmul.f32.gmra.mxu0 %v5195
        %v6280 = vpop.f32.mrf.mxu0
        %v6281 = vadd.f32 %v6168, %v6280
        %6282 = vmatmul.f32.gmra.mxu0 %v5204
        %v6283 = vpop.f32.mrf.mxu0
        %v6284 = vadd.f32 %v6171, %v6283
        %6285 = vmatmul.f32.gmra.mxu0 %v5213
        %v6286 = vpop.f32.mrf.mxu0
        %v6287 = vadd.f32 %v6174, %v6286
        %6288 = vmatmul.f32.gmra.mxu0 %v5222
        %v6289 = vpop.f32.mrf.mxu0
        %v6290 = vadd.f32 %v6177, %v6289
        %6291 = vmatmul.f32.gmra.mxu0 %v5231
        %v6292 = vpop.f32.mrf.mxu0
        %v6293 = vadd.f32 %v6180, %v6292
        %6294 = vmatmul.f32.gmra.mxu0 %v5240
        %v6295 = vpop.f32.mrf.mxu0
        %v6296 = vadd.f32 %v6183, %v6295
        %6297 = vmatmul.f32.gmra.mxu0 %v5249
        %v6298 = vpop.f32.mrf.mxu0
        %v6299 = vadd.f32 %v6186, %v6298
        %6300 = vmatmul.f32.gmra.mxu0 %v5258
        %v6301 = vpop.f32.mrf.mxu0
        %v6302 = vadd.f32 %v6189, %v6301
        %6303 = vmatmul.f32.gmra.mxu0 %v5267
        %v6304 = vpop.f32.mrf.mxu0
        %v6305 = vadd.f32 %v6192, %v6304
        %6306 = vmatmul.f32.gmra.mxu0 %v5276
        %v6307 = vpop.f32.mrf.mxu0
        %v6308 = vadd.f32 %v6195, %v6307
        %6309 = vmatmul.f32.gmra.mxu0 %v5285
        %v6310 = vpop.f32.mrf.mxu0
        %v6311 = vadd.f32 %v6198, %v6310
        %6312 = vmatmul.f32.gmra.mxu0 %v5294
        %v6313 = vpop.f32.mrf.mxu0
        %v6314 = vadd.f32 %v6201, %v6313
        %6315 = vmatmul.f32.gmra.mxu0 %v5303
        %v6316 = vpop.f32.mrf.mxu0
        %v6317 = vadd.f32 %v6204, %v6316
        %6318 = vmatmul.f32.gmra.mxu0 %v5312
        %v6319 = vpop.f32.mrf.mxu0
        %v6320 = vadd.f32 %v6207, %v6319
        %6321 = vmatmul.f32.gmra.mxu0 %v5321
        %v6322 = vpop.f32.mrf.mxu0
        %v6323 = vadd.f32 %v6210, %v6322
        %6324 = vmatmul.f32.gmra.mxu0 %v5330
        %v6325 = vpop.f32.mrf.mxu0
        %v6326 = vadd.f32 %v6213, %v6325
        %6327 = vmatmul.f32.gmra.mxu0 %v5339
        %v6328 = vpop.f32.mrf.mxu0
        %v6329 = vadd.f32 %v6216, %v6328
        %6330 = vmatmul.f32.gmra.mxu0 %v5348
        %v6331 = vpop.f32.mrf.mxu0
        %v6332 = vadd.f32 %v6219, %v6331
        %6333 = vmatmul.f32.gmra.mxu0 %v5357
        %v6334 = vpop.f32.mrf.mxu0
        %v6335 = vadd.f32 %v6222, %v6334
        %6336 = vmatmul.f32.gmra.mxu0 %v5366
        %v6337 = vpop.f32.mrf.mxu0
        %v6338 = vadd.f32 %v6225, %v6337
        %6339 = vmatmul.f32.gmra.mxu0 %v5375
        %v6340 = vpop.f32.mrf.mxu0
        %v6341 = vadd.f32 %v6228, %v6340
        %6342 = vmatmul.f32.gmra.mxu0 %v5384
        %v6343 = vpop.f32.mrf.mxu0
        %v6344 = vadd.f32 %v6231, %v6343
        %6345 = vmatmul.f32.gmra.mxu0 %v5393
        %v6346 = vpop.f32.mrf.mxu0
        %v6347 = vadd.f32 %v6234, %v6346
        %6348 = vmatmul.f32.gmra.mxu0 %v5402
        %v6349 = vpop.f32.mrf.mxu0
        %v6350 = vadd.f32 %v6237, %v6349
        %6351 = vmatmul.f32.gmra.mxu0 %v5411
        %v6352 = vpop.f32.mrf.mxu0
        %v6353 = vadd.f32 %v6240, %v6352
        %6354 = vdwg.mxu0
        %6355 = vmatpush.msra.mxu0 %v5542
        %6356 = vmatpush.msra.mxu0 %v5541
        %6357 = vmatpush.msra.mxu0 %v5540
        %6358 = vmatpush.msra.mxu0 %v5539
        %6359 = vmatpush.msra.mxu0 %v5538
        %6360 = vmatpush.msra.mxu0 %v5537
        %6361 = vmatpush.msra.mxu0 %v5536
        %6362 = vmatpush.msra.mxu0 %v5535
        %6363 = vmatpush.msra.mxu0 %v5534
        %6364 = vmatpush.msra.mxu0 %v5533
        %6365 = vmatpush.msra.mxu0 %v5532
        %6366 = vmatpush.msra.mxu0 %v5531
        %6367 = vmatpush.msra.mxu0 %v5530
        %6368 = vmatpush.msra.mxu0 %v5529
        %6369 = vmatpush.msra.mxu0 %v5528
        %6370 = vmatpush.msra.mxu0 %v5527
        %6371 = vmatmul.f32.gmra.mxu0 %v5133
        %v6372 = vpop.f32.mrf.mxu0
        %v6373 = vadd.f32 %v6260, %v6372
        %6374 = vmatmul.f32.gmra.mxu0 %v5142
        %v6375 = vpop.f32.mrf.mxu0
        %v6376 = vadd.f32 %v6263, %v6375
        %6377 = vmatmul.f32.gmra.mxu0 %v5151
        %v6378 = vpop.f32.mrf.mxu0
        %v6379 = vadd.f32 %v6266, %v6378
        %6380 = vmatmul.f32.gmra.mxu0 %v5160
        %v6381 = vpop.f32.mrf.mxu0
        %v6382 = vadd.f32 %v6269, %v6381
        %6383 = vmatmul.f32.gmra.mxu0 %v5169
        %v6384 = vpop.f32.mrf.mxu0
        %v6385 = vadd.f32 %v6272, %v6384
        %6386 = vmatmul.f32.gmra.mxu0 %v5178
        %v6387 = vpop.f32.mrf.mxu0
        %v6388 = vadd.f32 %v6275, %v6387
        %6389 = vmatmul.f32.gmra.mxu0 %v5187
        %v6390 = vpop.f32.mrf.mxu0
        %v6391 = vadd.f32 %v6278, %v6390
        %6392 = vmatmul.f32.gmra.mxu0 %v5196
        %v6393 = vpop.f32.mrf.mxu0
        %v6394 = vadd.f32 %v6281, %v6393
        %6395 = vmatmul.f32.gmra.mxu0 %v5205
        %v6396 = vpop.f32.mrf.mxu0
        %v6397 = vadd.f32 %v6284, %v6396
        %6398 = vmatmul.f32.gmra.mxu0 %v5214
        %v6399 = vpop.f32.mrf.mxu0
        %v6400 = vadd.f32 %v6287, %v6399
        %6401 = vmatmul.f32.gmra.mxu0 %v5223
        %v6402 = vpop.f32.mrf.mxu0
        %v6403 = vadd.f32 %v6290, %v6402
        %6404 = vmatmul.f32.gmra.mxu0 %v5232
        %v6405 = vpop.f32.mrf.mxu0
        %v6406 = vadd.f32 %v6293, %v6405
        %6407 = vmatmul.f32.gmra.mxu0 %v5241
        %v6408 = vpop.f32.mrf.mxu0
        %v6409 = vadd.f32 %v6296, %v6408
        %6410 = vmatmul.f32.gmra.mxu0 %v5250
        %v6411 = vpop.f32.mrf.mxu0
        %v6412 = vadd.f32 %v6299, %v6411
        %6413 = vmatmul.f32.gmra.mxu0 %v5259
        %v6414 = vpop.f32.mrf.mxu0
        %v6415 = vadd.f32 %v6302, %v6414
        %6416 = vmatmul.f32.gmra.mxu0 %v5268
        %v6417 = vpop.f32.mrf.mxu0
        %v6418 = vadd.f32 %v6305, %v6417
        %6419 = vmatmul.f32.gmra.mxu0 %v5277
        %v6420 = vpop.f32.mrf.mxu0
        %v6421 = vadd.f32 %v6308, %v6420
        %6422 = vmatmul.f32.gmra.mxu0 %v5286
        %v6423 = vpop.f32.mrf.mxu0
        %v6424 = vadd.f32 %v6311, %v6423
        %6425 = vmatmul.f32.gmra.mxu0 %v5295
        %v6426 = vpop.f32.mrf.mxu0
        %v6427 = vadd.f32 %v6314, %v6426
        %6428 = vmatmul.f32.gmra.mxu0 %v5304
        %v6429 = vpop.f32.mrf.mxu0
        %v6430 = vadd.f32 %v6317, %v6429
        %6431 = vmatmul.f32.gmra.mxu0 %v5313
        %v6432 = vpop.f32.mrf.mxu0
        %v6433 = vadd.f32 %v6320, %v6432
        %6434 = vmatmul.f32.gmra.mxu0 %v5322
        %v6435 = vpop.f32.mrf.mxu0
        %v6436 = vadd.f32 %v6323, %v6435
        %6437 = vmatmul.f32.gmra.mxu0 %v5331
        %v6438 = vpop.f32.mrf.mxu0
        %v6439 = vadd.f32 %v6326, %v6438
        %6440 = vmatmul.f32.gmra.mxu0 %v5340
        %v6441 = vpop.f32.mrf.mxu0
        %v6442 = vadd.f32 %v6329, %v6441
        %6443 = vmatmul.f32.gmra.mxu0 %v5349
        %v6444 = vpop.f32.mrf.mxu0
        %v6445 = vadd.f32 %v6332, %v6444
        %6446 = vmatmul.f32.gmra.mxu0 %v5358
        %v6447 = vpop.f32.mrf.mxu0
        %v6448 = vadd.f32 %v6335, %v6447
        %6449 = vmatmul.f32.gmra.mxu0 %v5367
        %v6450 = vpop.f32.mrf.mxu0
        %v6451 = vadd.f32 %v6338, %v6450
        %6452 = vmatmul.f32.gmra.mxu0 %v5376
        %v6453 = vpop.f32.mrf.mxu0
        %v6454 = vadd.f32 %v6341, %v6453
        %6455 = vmatmul.f32.gmra.mxu0 %v5385
        %v6456 = vpop.f32.mrf.mxu0
        %v6457 = vadd.f32 %v6344, %v6456
        %6458 = vmatmul.f32.gmra.mxu0 %v5394
        %v6459 = vpop.f32.mrf.mxu0
        %v6460 = vadd.f32 %v6347, %v6459
        %6461 = vmatmul.f32.gmra.mxu0 %v5403
        %v6462 = vpop.f32.mrf.mxu0
        %v6463 = vadd.f32 %v6350, %v6462
        %6464 = vmatmul.f32.gmra.mxu0 %v5412
        %v6465 = vpop.f32.mrf.mxu0
        %v6466 = vadd.f32 %v6353, %v6465
        %6467 = vdwg.mxu0
        %6468 = vmatpush.msra.mxu0 %v5558
        %6469 = vmatpush.msra.mxu0 %v5557
        %6470 = vmatpush.msra.mxu0 %v5556
        %6471 = vmatpush.msra.mxu0 %v5555
        %6472 = vmatpush.msra.mxu0 %v5554
        %6473 = vmatpush.msra.mxu0 %v5553
        %6474 = vmatpush.msra.mxu0 %v5552
        %6475 = vmatpush.msra.mxu0 %v5551
        %6476 = vmatpush.msra.mxu0 %v5550
        %6477 = vmatpush.msra.mxu0 %v5549
        %6478 = vmatpush.msra.mxu0 %v5548
        %6479 = vmatpush.msra.mxu0 %v5547
        %6480 = vmatpush.msra.mxu0 %v5546
        %6481 = vmatpush.msra.mxu0 %v5545
        %6482 = vmatpush.msra.mxu0 %v5544
        %6483 = vmatpush.msra.mxu0 %v5543
        %6484 = vmatmul.f32.gmra.mxu0 %v5134
        %v6485 = vpop.f32.mrf.mxu0
        %v6486 = vadd.f32 %v6373, %v6485
        %6487 = vmatmul.f32.gmra.mxu0 %v5143
        %v6488 = vpop.f32.mrf.mxu0
        %v6489 = vadd.f32 %v6376, %v6488
        %6490 = vmatmul.f32.gmra.mxu0 %v5152
        %v6491 = vpop.f32.mrf.mxu0
        %v6492 = vadd.f32 %v6379, %v6491
        %6493 = vmatmul.f32.gmra.mxu0 %v5161
        %v6494 = vpop.f32.mrf.mxu0
        %v6495 = vadd.f32 %v6382, %v6494
        %6496 = vmatmul.f32.gmra.mxu0 %v5170
        %v6497 = vpop.f32.mrf.mxu0
        %v6498 = vadd.f32 %v6385, %v6497
        %6499 = vmatmul.f32.gmra.mxu0 %v5179
        %v6500 = vpop.f32.mrf.mxu0
        %v6501 = vadd.f32 %v6388, %v6500
        %6502 = vmatmul.f32.gmra.mxu0 %v5188
        %v6503 = vpop.f32.mrf.mxu0
        %v6504 = vadd.f32 %v6391, %v6503
        %6505 = vmatmul.f32.gmra.mxu0 %v5197
        %v6506 = vpop.f32.mrf.mxu0
        %v6507 = vadd.f32 %v6394, %v6506
        %6508 = vmatmul.f32.gmra.mxu0 %v5206
        %v6509 = vpop.f32.mrf.mxu0
        %v6510 = vadd.f32 %v6397, %v6509
        %6511 = vmatmul.f32.gmra.mxu0 %v5215
        %v6512 = vpop.f32.mrf.mxu0
        %v6513 = vadd.f32 %v6400, %v6512
        %6514 = vmatmul.f32.gmra.mxu0 %v5224
        %v6515 = vpop.f32.mrf.mxu0
        %v6516 = vadd.f32 %v6403, %v6515
        %6517 = vmatmul.f32.gmra.mxu0 %v5233
        %v6518 = vpop.f32.mrf.mxu0
        %v6519 = vadd.f32 %v6406, %v6518
        %6520 = vmatmul.f32.gmra.mxu0 %v5242
        %v6521 = vpop.f32.mrf.mxu0
        %v6522 = vadd.f32 %v6409, %v6521
        %6523 = vmatmul.f32.gmra.mxu0 %v5251
        %v6524 = vpop.f32.mrf.mxu0
        %v6525 = vadd.f32 %v6412, %v6524
        %6526 = vmatmul.f32.gmra.mxu0 %v5260
        %v6527 = vpop.f32.mrf.mxu0
        %v6528 = vadd.f32 %v6415, %v6527
        %6529 = vmatmul.f32.gmra.mxu0 %v5269
        %v6530 = vpop.f32.mrf.mxu0
        %v6531 = vadd.f32 %v6418, %v6530
        %6532 = vmatmul.f32.gmra.mxu0 %v5278
        %v6533 = vpop.f32.mrf.mxu0
        %v6534 = vadd.f32 %v6421, %v6533
        %6535 = vmatmul.f32.gmra.mxu0 %v5287
        %v6536 = vpop.f32.mrf.mxu0
        %v6537 = vadd.f32 %v6424, %v6536
        %6538 = vmatmul.f32.gmra.mxu0 %v5296
        %v6539 = vpop.f32.mrf.mxu0
        %v6540 = vadd.f32 %v6427, %v6539
        %6541 = vmatmul.f32.gmra.mxu0 %v5305
        %v6542 = vpop.f32.mrf.mxu0
        %v6543 = vadd.f32 %v6430, %v6542
        %6544 = vmatmul.f32.gmra.mxu0 %v5314
        %v6545 = vpop.f32.mrf.mxu0
        %v6546 = vadd.f32 %v6433, %v6545
        %6547 = vmatmul.f32.gmra.mxu0 %v5323
        %v6548 = vpop.f32.mrf.mxu0
        %v6549 = vadd.f32 %v6436, %v6548
        %6550 = vmatmul.f32.gmra.mxu0 %v5332
        %v6551 = vpop.f32.mrf.mxu0
        %v6552 = vadd.f32 %v6439, %v6551
        %6553 = vmatmul.f32.gmra.mxu0 %v5341
        %v6554 = vpop.f32.mrf.mxu0
        %v6555 = vadd.f32 %v6442, %v6554
        %6556 = vmatmul.f32.gmra.mxu0 %v5350
        %v6557 = vpop.f32.mrf.mxu0
        %v6558 = vadd.f32 %v6445, %v6557
        %6559 = vmatmul.f32.gmra.mxu0 %v5359
        %v6560 = vpop.f32.mrf.mxu0
        %v6561 = vadd.f32 %v6448, %v6560
        %6562 = vmatmul.f32.gmra.mxu0 %v5368
        %v6563 = vpop.f32.mrf.mxu0
        %v6564 = vadd.f32 %v6451, %v6563
        %6565 = vmatmul.f32.gmra.mxu0 %v5377
        %v6566 = vpop.f32.mrf.mxu0
        %v6567 = vadd.f32 %v6454, %v6566
        %6568 = vmatmul.f32.gmra.mxu0 %v5386
        %v6569 = vpop.f32.mrf.mxu0
        %v6570 = vadd.f32 %v6457, %v6569
        %6571 = vmatmul.f32.gmra.mxu0 %v5395
        %v6572 = vpop.f32.mrf.mxu0
        %v6573 = vadd.f32 %v6460, %v6572
        %6574 = vmatmul.f32.gmra.mxu0 %v5404
        %v6575 = vpop.f32.mrf.mxu0
        %v6576 = vadd.f32 %v6463, %v6575
        %6577 = vmatmul.f32.gmra.mxu0 %v5413
        %v6578 = vpop.f32.mrf.mxu0
        %v6579 = vadd.f32 %v6466, %v6578
        %6580 = vdwg.mxu0
        %v6581 = vmax.f32 %v6486, 0.0
        %v6582 = vmax.f32 %v6489, 0.0
        %v6583 = vmax.f32 %v6492, 0.0
        %v6584 = vmax.f32 %v6495, 0.0
        %v6585 = vmax.f32 %v6498, 0.0
        %v6586 = vmax.f32 %v6501, 0.0
        %v6587 = vmax.f32 %v6504, 0.0
        %v6588 = vmax.f32 %v6507, 0.0
        %v6589 = vmax.f32 %v6510, 0.0
        %v6590 = vmax.f32 %v6513, 0.0
        %v6591 = vmax.f32 %v6516, 0.0
        %v6592 = vmax.f32 %v6519, 0.0
        %v6593 = vmax.f32 %v6522, 0.0
        %v6594 = vmax.f32 %v6525, 0.0
        %v6595 = vmax.f32 %v6528, 0.0
        %v6596 = vmax.f32 %v6531, 0.0
        %v6597 = vmax.f32 %v6534, 0.0
        %v6598 = vmax.f32 %v6537, 0.0
        %v6599 = vmax.f32 %v6540, 0.0
        %v6600 = vmax.f32 %v6543, 0.0
        %v6601 = vmax.f32 %v6546, 0.0
        %v6602 = vmax.f32 %v6549, 0.0
        %v6603 = vmax.f32 %v6552, 0.0
        %v6604 = vmax.f32 %v6555, 0.0
        %v6605 = vmax.f32 %v6558, 0.0
        %v6606 = vmax.f32 %v6561, 0.0
        %v6607 = vmax.f32 %v6564, 0.0
        %v6608 = vmax.f32 %v6567, 0.0
        %v6609 = vmax.f32 %v6570, 0.0
        %v6610 = vmax.f32 %v6573, 0.0
        %v6611 = vmax.f32 %v6576, 0.0
        %v6612 = vmax.f32 %v6579, 0.0
        %6613 = vst [vmem:[%s328 + $0x8] sm:$0xff] %v6581
        %6614 = vst [vmem:[%s328 + $0x10] sm:$0xff] %v6582
        %6615 = vst [vmem:[%s328 + $0x28] sm:$0xff] %v6583
        %6616 = vst [vmem:[%s328 + $0x30] sm:$0xff] %v6584
        %6617 = vst [vmem:[%s328 + $0x48] sm:$0xff] %v6585
        %6618 = vst [vmem:[%s328 + $0x50] sm:$0xff] %v6586
        %6619 = vst [vmem:[%s328 + $0x68] sm:$0xff] %v6587
        %6620 = vst [vmem:[%s328 + $0x70] sm:$0xff] %v6588
        %6621 = vst [vmem:[%s328 + $0x88] sm:$0xff] %v6589
        %6622 = vst [vmem:[%s328 + $0x90] sm:$0xff] %v6590
        %6623 = vst [vmem:[%s328 + $0xa8] sm:$0xff] %v6591
        %6624 = vst [vmem:[%s328 + $0xb0] sm:$0xff] %v6592
        %6625 = vst [vmem:[%s328 + $0xc8] sm:$0xff] %v6593
        %6626 = vst [vmem:[%s328 + $0xd0] sm:$0xff] %v6594
        %6627 = vst [vmem:[%s328 + $0xe8] sm:$0xff] %v6595
        %6628 = vst [vmem:[%s328 + $0xf0] sm:$0xff] %v6596
        %6629 = vst [vmem:[%s328 + $0x108] sm:$0xff] %v6597
        %6630 = vst [vmem:[%s328 + $0x110] sm:$0xff] %v6598
        %6631 = vst [vmem:[%s328 + $0x128] sm:$0xff] %v6599
        %6632 = vst [vmem:[%s328 + $0x130] sm:$0xff] %v6600
        %6633 = vst [vmem:[%s328 + $0x148] sm:$0xff] %v6601
        %6634 = vst [vmem:[%s328 + $0x150] sm:$0xff] %v6602
        %6635 = vst [vmem:[%s328 + $0x168] sm:$0xff] %v6603
        %6636 = vst [vmem:[%s328 + $0x170] sm:$0xff] %v6604
        %6637 = vst [vmem:[%s328 + $0x188] sm:$0xff] %v6605
        %6638 = vst [vmem:[%s328 + $0x190] sm:$0xff] %v6606
        %6639 = vst [vmem:[%s328 + $0x1a8] sm:$0xff] %v6607
        %6640 = vst [vmem:[%s328 + $0x1b0] sm:$0xff] %v6608
        %6641 = vst [vmem:[%s328 + $0x1c8] sm:$0xff] %v6609
        %6642 = vst [vmem:[%s328 + $0x1d0] sm:$0xff] %v6610
        %6643 = vst [vmem:[%s328 + $0x1e8] sm:$0xff] %v6611
        %6644 = vst [vmem:[%s328 + $0x1f0] sm:$0xff] %v6612
        %v6645 = vld [vmem:[#allocation2 + $0x7] sm:$0xff]
        %v6646 = vld [vmem:[#allocation2 + $0xf] sm:$0xff]
        %v6647 = vld [vmem:[#allocation2 + $0x27] sm:$0xff]
        %v6648 = vld [vmem:[#allocation2 + $0x2f] sm:$0xff]
        %v6649 = vld [vmem:[#allocation2 + $0x47] sm:$0xff]
        %v6650 = vld [vmem:[#allocation2 + $0x4f] sm:$0xff]
        %v6651 = vld [vmem:[#allocation2 + $0x67] sm:$0xff]
        %v6652 = vld [vmem:[#allocation2 + $0x6f] sm:$0xff]
        %v6653 = vld [vmem:[#allocation2 + $0x87] sm:$0xff]
        %v6654 = vld [vmem:[#allocation2 + $0x8f] sm:$0xff]
        %v6655 = vld [vmem:[#allocation2 + $0xa7] sm:$0xff]
        %v6656 = vld [vmem:[#allocation2 + $0xaf] sm:$0xff]
        %v6657 = vld [vmem:[#allocation2 + $0xc7] sm:$0xff]
        %v6658 = vld [vmem:[#allocation2 + $0xcf] sm:$0xff]
        %v6659 = vld [vmem:[#allocation2 + $0xe7] sm:$0xff]
        %v6660 = vld [vmem:[#allocation2 + $0xef] sm:$0xff]
        %v6661 = vld [vmem:[#allocation2 + $0x107] sm:$0xff]
        %v6662 = vld [vmem:[#allocation2 + $0x10f] sm:$0xff]
        %v6663 = vld [vmem:[#allocation2 + $0x127] sm:$0xff]
        %v6664 = vld [vmem:[#allocation2 + $0x12f] sm:$0xff]
        %v6665 = vld [vmem:[#allocation2 + $0x147] sm:$0xff]
        %v6666 = vld [vmem:[#allocation2 + $0x14f] sm:$0xff]
        %v6667 = vld [vmem:[#allocation2 + $0x167] sm:$0xff]
        %v6668 = vld [vmem:[#allocation2 + $0x16f] sm:$0xff]
        %v6669 = vld [vmem:[#allocation2 + $0x187] sm:$0xff]
        %v6670 = vld [vmem:[#allocation2 + $0x18f] sm:$0xff]
        %v6671 = vld [vmem:[#allocation2 + $0x1a7] sm:$0xff]
        %v6672 = vld [vmem:[#allocation2 + $0x1af] sm:$0xff]
        %v6673 = vld [vmem:[#allocation2 + $0x1c7] sm:$0xff]
        %v6674 = vld [vmem:[#allocation2 + $0x1cf] sm:$0xff]
        %v6675 = vld [vmem:[#allocation2 + $0x1e7] sm:$0xff]
        %v6676 = vld [vmem:[#allocation2 + $0x1ef] sm:$0xff]
        %6677 = vst [vmem:[#allocation3] sm:$0xff] %v6645
        %6678 = vst [vmem:[#allocation3 + $0x48] sm:$0xff] %v6646
        %6679 = vst [vmem:[#allocation3 + $0x90] sm:$0xff] %v6647
        %6680 = vst [vmem:[#allocation3 + $0xd8] sm:$0xff] %v6648
        %6681 = vst [vmem:[#allocation3 + $0x120] sm:$0xff] %v6649
        %6682 = vst [vmem:[#allocation3 + $0x168] sm:$0xff] %v6650
        %6683 = vst [vmem:[#allocation3 + $0x1b0] sm:$0xff] %v6651
        %6684 = vst [vmem:[#allocation3 + $0x1f8] sm:$0xff] %v6652
        %6685 = vst [vmem:[#allocation3 + $0x240] sm:$0xff] %v6653
        %6686 = vst [vmem:[#allocation3 + $0x288] sm:$0xff] %v6654
        %6687 = vst [vmem:[#allocation3 + $0x2d0] sm:$0xff] %v6655
        %6688 = vst [vmem:[#allocation3 + $0x318] sm:$0xff] %v6656
        %6689 = vst [vmem:[#allocation3 + $0x360] sm:$0xff] %v6657
        %6690 = vst [vmem:[#allocation3 + $0x3a8] sm:$0xff] %v6658
        %6691 = vst [vmem:[#allocation3 + $0x3f0] sm:$0xff] %v6659
        %6692 = vst [vmem:[#allocation3 + $0x438] sm:$0xff] %v6660
        %6693 = vst [vmem:[#allocation3 + $0x480] sm:$0xff] %v6661
        %6694 = vst [vmem:[#allocation3 + $0x4c8] sm:$0xff] %v6662
        %6695 = vst [vmem:[#allocation3 + $0x510] sm:$0xff] %v6663
        %6696 = vst [vmem:[#allocation3 + $0x558] sm:$0xff] %v6664
        %6697 = vst [vmem:[#allocation3 + $0x5a0] sm:$0xff] %v6665
        %6698 = vst [vmem:[#allocation3 + $0x5e8] sm:$0xff] %v6666
        %6699 = vst [vmem:[#allocation3 + $0x630] sm:$0xff] %v6667
        %6700 = vst [vmem:[#allocation3 + $0x678] sm:$0xff] %v6668
        %6701 = vst [vmem:[#allocation3 + $0x6c0] sm:$0xff] %v6669
        %6702 = vst [vmem:[#allocation3 + $0x708] sm:$0xff] %v6670
        %6703 = vst [vmem:[#allocation3 + $0x750] sm:$0xff] %v6671
        %6704 = vst [vmem:[#allocation3 + $0x798] sm:$0xff] %v6672
        %6705 = vst [vmem:[#allocation3 + $0x7e0] sm:$0xff] %v6673
        %6706 = vst [vmem:[#allocation3 + $0x828] sm:$0xff] %v6674
        %6707 = vst [vmem:[#allocation3 + $0x870] sm:$0xff] %v6675
        %6708 = vst [vmem:[#allocation3 + $0x8b8] sm:$0xff] %v6676
        %v6709 = vld [vmem:[#allocation2 + $0x8] sm:$0xff]
        %v6710 = vld [vmem:[#allocation2 + $0x10] sm:$0xff]
        %v6711 = vld [vmem:[#allocation2 + $0x28] sm:$0xff]
        %v6712 = vld [vmem:[#allocation2 + $0x30] sm:$0xff]
        %v6713 = vld [vmem:[#allocation2 + $0x48] sm:$0xff]
        %v6714 = vld [vmem:[#allocation2 + $0x50] sm:$0xff]
        %v6715 = vld [vmem:[#allocation2 + $0x68] sm:$0xff]
        %v6716 = vld [vmem:[#allocation2 + $0x70] sm:$0xff]
        %v6717 = vld [vmem:[#allocation2 + $0x88] sm:$0xff]
        %v6718 = vld [vmem:[#allocation2 + $0x90] sm:$0xff]
        %v6719 = vld [vmem:[#allocation2 + $0xa8] sm:$0xff]
        %v6720 = vld [vmem:[#allocation2 + $0xb0] sm:$0xff]
        %v6721 = vld [vmem:[#allocation2 + $0xc8] sm:$0xff]
        %v6722 = vld [vmem:[#allocation2 + $0xd0] sm:$0xff]
        %v6723 = vld [vmem:[#allocation2 + $0xe8] sm:$0xff]
        %v6724 = vld [vmem:[#allocation2 + $0xf0] sm:$0xff]
        %v6725 = vld [vmem:[#allocation2 + $0x108] sm:$0xff]
        %v6726 = vld [vmem:[#allocation2 + $0x110] sm:$0xff]
        %v6727 = vld [vmem:[#allocation2 + $0x128] sm:$0xff]
        %v6728 = vld [vmem:[#allocation2 + $0x130] sm:$0xff]
        %v6729 = vld [vmem:[#allocation2 + $0x148] sm:$0xff]
        %v6730 = vld [vmem:[#allocation2 + $0x150] sm:$0xff]
        %v6731 = vld [vmem:[#allocation2 + $0x168] sm:$0xff]
        %v6732 = vld [vmem:[#allocation2 + $0x170] sm:$0xff]
        %v6733 = vld [vmem:[#allocation2 + $0x188] sm:$0xff]
        %v6734 = vld [vmem:[#allocation2 + $0x190] sm:$0xff]
        %v6735 = vld [vmem:[#allocation2 + $0x1a8] sm:$0xff]
        %v6736 = vld [vmem:[#allocation2 + $0x1b0] sm:$0xff]
        %v6737 = vld [vmem:[#allocation2 + $0x1c8] sm:$0xff]
        %v6738 = vld [vmem:[#allocation2 + $0x1d0] sm:$0xff]
        %v6739 = vld [vmem:[#allocation2 + $0x1e8] sm:$0xff]
        %v6740 = vld [vmem:[#allocation2 + $0x1f0] sm:$0xff]
        %6741 = vst [vmem:[#allocation3 + $0x8] sm:$0xff] %v6709
        %6742 = vst [vmem:[#allocation3 + $0x50] sm:$0xff] %v6710
        %6743 = vst [vmem:[#allocation3 + $0x98] sm:$0xff] %v6711
        %6744 = vst [vmem:[#allocation3 + $0xe0] sm:$0xff] %v6712
        %6745 = vst [vmem:[#allocation3 + $0x128] sm:$0xff] %v6713
        %6746 = vst [vmem:[#allocation3 + $0x170] sm:$0xff] %v6714
        %6747 = vst [vmem:[#allocation3 + $0x1b8] sm:$0xff] %v6715
        %6748 = vst [vmem:[#allocation3 + $0x200] sm:$0xff] %v6716
        %6749 = vst [vmem:[#allocation3 + $0x248] sm:$0xff] %v6717
        %6750 = vst [vmem:[#allocation3 + $0x290] sm:$0xff] %v6718
        %6751 = vst [vmem:[#allocation3 + $0x2d8] sm:$0xff] %v6719
        %6752 = vst [vmem:[#allocation3 + $0x320] sm:$0xff] %v6720
        %6753 = vst [vmem:[#allocation3 + $0x368] sm:$0xff] %v6721
        %6754 = vst [vmem:[#allocation3 + $0x3b0] sm:$0xff] %v6722
        %6755 = vst [vmem:[#allocation3 + $0x3f8] sm:$0xff] %v6723
        %6756 = vst [vmem:[#allocation3 + $0x440] sm:$0xff] %v6724
        %6757 = vst [vmem:[#allocation3 + $0x488] sm:$0xff] %v6725
        %6758 = vst [vmem:[#allocation3 + $0x4d0] sm:$0xff] %v6726
        %6759 = vst [vmem:[#allocation3 + $0x518] sm:$0xff] %v6727
        %6760 = vst [vmem:[#allocation3 + $0x560] sm:$0xff] %v6728
        %6761 = vst [vmem:[#allocation3 + $0x5a8] sm:$0xff] %v6729
        %6762 = vst [vmem:[#allocation3 + $0x5f0] sm:$0xff] %v6730
        %6763 = vst [vmem:[#allocation3 + $0x638] sm:$0xff] %v6731
        %6764 = vst [vmem:[#allocation3 + $0x680] sm:$0xff] %v6732
        %6765 = vst [vmem:[#allocation3 + $0x6c8] sm:$0xff] %v6733
        %6766 = vst [vmem:[#allocation3 + $0x710] sm:$0xff] %v6734
        %6767 = vst [vmem:[#allocation3 + $0x758] sm:$0xff] %v6735
        %6768 = vst [vmem:[#allocation3 + $0x7a0] sm:$0xff] %v6736
        %6769 = vst [vmem:[#allocation3 + $0x7e8] sm:$0xff] %v6737
        %6770 = vst [vmem:[#allocation3 + $0x830] sm:$0xff] %v6738
        %6771 = vst [vmem:[#allocation3 + $0x878] sm:$0xff] %v6739
        %6772 = vst [vmem:[#allocation3 + $0x8c0] sm:$0xff] %v6740
        %v6773 = vld [vmem:[#allocation2 + $0x9] sm:$0xff]
        %v6774 = vld [vmem:[#allocation2 + $0x11] sm:$0xff]
        %v6775 = vld [vmem:[#allocation2 + $0x29] sm:$0xff]
        %v6776 = vld [vmem:[#allocation2 + $0x31] sm:$0xff]
        %v6777 = vld [vmem:[#allocation2 + $0x49] sm:$0xff]
        %v6778 = vld [vmem:[#allocation2 + $0x51] sm:$0xff]
        %v6779 = vld [vmem:[#allocation2 + $0x69] sm:$0xff]
        %v6780 = vld [vmem:[#allocation2 + $0x71] sm:$0xff]
        %v6781 = vld [vmem:[#allocation2 + $0x89] sm:$0xff]
        %v6782 = vld [vmem:[#allocation2 + $0x91] sm:$0xff]
        %v6783 = vld [vmem:[#allocation2 + $0xa9] sm:$0xff]
        %v6784 = vld [vmem:[#allocation2 + $0xb1] sm:$0xff]
        %v6785 = vld [vmem:[#allocation2 + $0xc9] sm:$0xff]
        %v6786 = vld [vmem:[#allocation2 + $0xd1] sm:$0xff]
        %v6787 = vld [vmem:[#allocation2 + $0xe9] sm:$0xff]
        %v6788 = vld [vmem:[#allocation2 + $0xf1] sm:$0xff]
        %v6789 = vld [vmem:[#allocation2 + $0x109] sm:$0xff]
        %v6790 = vld [vmem:[#allocation2 + $0x111] sm:$0xff]
        %v6791 = vld [vmem:[#allocation2 + $0x129] sm:$0xff]
        %v6792 = vld [vmem:[#allocation2 + $0x131] sm:$0xff]
        %v6793 = vld [vmem:[#allocation2 + $0x149] sm:$0xff]
        %v6794 = vld [vmem:[#allocation2 + $0x151] sm:$0xff]
        %v6795 = vld [vmem:[#allocation2 + $0x169] sm:$0xff]
        %v6796 = vld [vmem:[#allocation2 + $0x171] sm:$0xff]
        %v6797 = vld [vmem:[#allocation2 + $0x189] sm:$0xff]
        %v6798 = vld [vmem:[#allocation2 + $0x191] sm:$0xff]
        %v6799 = vld [vmem:[#allocation2 + $0x1a9] sm:$0xff]
        %v6800 = vld [vmem:[#allocation2 + $0x1b1] sm:$0xff]
        %v6801 = vld [vmem:[#allocation2 + $0x1c9] sm:$0xff]
        %v6802 = vld [vmem:[#allocation2 + $0x1d1] sm:$0xff]
        %v6803 = vld [vmem:[#allocation2 + $0x1e9] sm:$0xff]
        %v6804 = vld [vmem:[#allocation2 + $0x1f1] sm:$0xff]
        %6805 = vst [vmem:[#allocation3 + $0x10] sm:$0xff] %v6773
        %6806 = vst [vmem:[#allocation3 + $0x58] sm:$0xff] %v6774
        %6807 = vst [vmem:[#allocation3 + $0xa0] sm:$0xff] %v6775
        %6808 = vst [vmem:[#allocation3 + $0xe8] sm:$0xff] %v6776
        %6809 = vst [vmem:[#allocation3 + $0x130] sm:$0xff] %v6777
        %6810 = vst [vmem:[#allocation3 + $0x178] sm:$0xff] %v6778
        %6811 = vst [vmem:[#allocation3 + $0x1c0] sm:$0xff] %v6779
        %6812 = vst [vmem:[#allocation3 + $0x208] sm:$0xff] %v6780
        %6813 = vst [vmem:[#allocation3 + $0x250] sm:$0xff] %v6781
        %6814 = vst [vmem:[#allocation3 + $0x298] sm:$0xff] %v6782
        %6815 = vst [vmem:[#allocation3 + $0x2e0] sm:$0xff] %v6783
        %6816 = vst [vmem:[#allocation3 + $0x328] sm:$0xff] %v6784
        %6817 = vst [vmem:[#allocation3 + $0x370] sm:$0xff] %v6785
        %6818 = vst [vmem:[#allocation3 + $0x3b8] sm:$0xff] %v6786
        %6819 = vst [vmem:[#allocation3 + $0x400] sm:$0xff] %v6787
        %6820 = vst [vmem:[#allocation3 + $0x448] sm:$0xff] %v6788
        %6821 = vst [vmem:[#allocation3 + $0x490] sm:$0xff] %v6789
        %6822 = vst [vmem:[#allocation3 + $0x4d8] sm:$0xff] %v6790
        %6823 = vst [vmem:[#allocation3 + $0x520] sm:$0xff] %v6791
        %6824 = vst [vmem:[#allocation3 + $0x568] sm:$0xff] %v6792
        %6825 = vst [vmem:[#allocation3 + $0x5b0] sm:$0xff] %v6793
        %6826 = vst [vmem:[#allocation3 + $0x5f8] sm:$0xff] %v6794
        %6827 = vst [vmem:[#allocation3 + $0x640] sm:$0xff] %v6795
        %6828 = vst [vmem:[#allocation3 + $0x688] sm:$0xff] %v6796
        %6829 = vst [vmem:[#allocation3 + $0x6d0] sm:$0xff] %v6797
        %6830 = vst [vmem:[#allocation3 + $0x718] sm:$0xff] %v6798
        %6831 = vst [vmem:[#allocation3 + $0x760] sm:$0xff] %v6799
        %6832 = vst [vmem:[#allocation3 + $0x7a8] sm:$0xff] %v6800
        %6833 = vst [vmem:[#allocation3 + $0x7f0] sm:$0xff] %v6801
        %6834 = vst [vmem:[#allocation3 + $0x838] sm:$0xff] %v6802
        %6835 = vst [vmem:[#allocation3 + $0x880] sm:$0xff] %v6803
        %6836 = vst [vmem:[#allocation3 + $0x8c8] sm:$0xff] %v6804
        %v6837 = vld [vmem:[%s328 + $0x7] sm:$0xff]
        %v6838 = vld [vmem:[%s328 + $0xf] sm:$0xff]
        %v6839 = vld [vmem:[%s328 + $0x27] sm:$0xff]
        %v6840 = vld [vmem:[%s328 + $0x2f] sm:$0xff]
        %v6841 = vld [vmem:[%s328 + $0x47] sm:$0xff]
        %v6842 = vld [vmem:[%s328 + $0x4f] sm:$0xff]
        %v6843 = vld [vmem:[%s328 + $0x67] sm:$0xff]
        %v6844 = vld [vmem:[%s328 + $0x6f] sm:$0xff]
        %v6845 = vld [vmem:[%s328 + $0x87] sm:$0xff]
        %v6846 = vld [vmem:[%s328 + $0x8f] sm:$0xff]
        %v6847 = vld [vmem:[%s328 + $0xa7] sm:$0xff]
        %v6848 = vld [vmem:[%s328 + $0xaf] sm:$0xff]
        %v6849 = vld [vmem:[%s328 + $0xc7] sm:$0xff]
        %v6850 = vld [vmem:[%s328 + $0xcf] sm:$0xff]
        %v6851 = vld [vmem:[%s328 + $0xe7] sm:$0xff]
        %v6852 = vld [vmem:[%s328 + $0xef] sm:$0xff]
        %v6853 = vld [vmem:[%s328 + $0x107] sm:$0xff]
        %v6854 = vld [vmem:[%s328 + $0x10f] sm:$0xff]
        %v6855 = vld [vmem:[%s328 + $0x127] sm:$0xff]
        %v6856 = vld [vmem:[%s328 + $0x12f] sm:$0xff]
        %v6857 = vld [vmem:[%s328 + $0x147] sm:$0xff]
        %v6858 = vld [vmem:[%s328 + $0x14f] sm:$0xff]
        %v6859 = vld [vmem:[%s328 + $0x167] sm:$0xff]
        %v6860 = vld [vmem:[%s328 + $0x16f] sm:$0xff]
        %v6861 = vld [vmem:[%s328 + $0x187] sm:$0xff]
        %v6862 = vld [vmem:[%s328 + $0x18f] sm:$0xff]
        %v6863 = vld [vmem:[%s328 + $0x1a7] sm:$0xff]
        %v6864 = vld [vmem:[%s328 + $0x1af] sm:$0xff]
        %v6865 = vld [vmem:[%s328 + $0x1c7] sm:$0xff]
        %v6866 = vld [vmem:[%s328 + $0x1cf] sm:$0xff]
        %v6867 = vld [vmem:[%s328 + $0x1e7] sm:$0xff]
        %v6868 = vld [vmem:[%s328 + $0x1ef] sm:$0xff]
        %6869 = vst [vmem:[#allocation3 + $0x18] sm:$0xff] %v6837
        %6870 = vst [vmem:[#allocation3 + $0x60] sm:$0xff] %v6838
        %6871 = vst [vmem:[#allocation3 + $0xa8] sm:$0xff] %v6839
        %6872 = vst [vmem:[#allocation3 + $0xf0] sm:$0xff] %v6840
        %6873 = vst [vmem:[#allocation3 + $0x138] sm:$0xff] %v6841
        %6874 = vst [vmem:[#allocation3 + $0x180] sm:$0xff] %v6842
        %6875 = vst [vmem:[#allocation3 + $0x1c8] sm:$0xff] %v6843
        %6876 = vst [vmem:[#allocation3 + $0x210] sm:$0xff] %v6844
        %6877 = vst [vmem:[#allocation3 + $0x258] sm:$0xff] %v6845
        %6878 = vst [vmem:[#allocation3 + $0x2a0] sm:$0xff] %v6846
        %6879 = vst [vmem:[#allocation3 + $0x2e8] sm:$0xff] %v6847
        %6880 = vst [vmem:[#allocation3 + $0x330] sm:$0xff] %v6848
        %6881 = vst [vmem:[#allocation3 + $0x378] sm:$0xff] %v6849
        %6882 = vst [vmem:[#allocation3 + $0x3c0] sm:$0xff] %v6850
        %6883 = vst [vmem:[#allocation3 + $0x408] sm:$0xff] %v6851
        %6884 = vst [vmem:[#allocation3 + $0x450] sm:$0xff] %v6852
        %6885 = vst [vmem:[#allocation3 + $0x498] sm:$0xff] %v6853
        %6886 = vst [vmem:[#allocation3 + $0x4e0] sm:$0xff] %v6854
        %6887 = vst [vmem:[#allocation3 + $0x528] sm:$0xff] %v6855
        %6888 = vst [vmem:[#allocation3 + $0x570] sm:$0xff] %v6856
        %6889 = vst [vmem:[#allocation3 + $0x5b8] sm:$0xff] %v6857
        %6890 = vst [vmem:[#allocation3 + $0x600] sm:$0xff] %v6858
        %6891 = vst [vmem:[#allocation3 + $0x648] sm:$0xff] %v6859
        %6892 = vst [vmem:[#allocation3 + $0x690] sm:$0xff] %v6860
        %6893 = vst [vmem:[#allocation3 + $0x6d8] sm:$0xff] %v6861
        %6894 = vst [vmem:[#allocation3 + $0x720] sm:$0xff] %v6862
        %6895 = vst [vmem:[#allocation3 + $0x768] sm:$0xff] %v6863
        %6896 = vst [vmem:[#allocation3 + $0x7b0] sm:$0xff] %v6864
        %6897 = vst [vmem:[#allocation3 + $0x7f8] sm:$0xff] %v6865
        %6898 = vst [vmem:[#allocation3 + $0x840] sm:$0xff] %v6866
        %6899 = vst [vmem:[#allocation3 + $0x888] sm:$0xff] %v6867
        %6900 = vst [vmem:[#allocation3 + $0x8d0] sm:$0xff] %v6868
        %v6901 = vld [vmem:[%s328 + $0x8] sm:$0xff]
        %v6902 = vld [vmem:[%s328 + $0x10] sm:$0xff]
        %v6903 = vld [vmem:[%s328 + $0x28] sm:$0xff]
        %v6904 = vld [vmem:[%s328 + $0x30] sm:$0xff]
        %v6905 = vld [vmem:[%s328 + $0x48] sm:$0xff]
        %v6906 = vld [vmem:[%s328 + $0x50] sm:$0xff]
        %v6907 = vld [vmem:[%s328 + $0x68] sm:$0xff]
        %v6908 = vld [vmem:[%s328 + $0x70] sm:$0xff]
        %v6909 = vld [vmem:[%s328 + $0x88] sm:$0xff]
        %v6910 = vld [vmem:[%s328 + $0x90] sm:$0xff]
        %v6911 = vld [vmem:[%s328 + $0xa8] sm:$0xff]
        %v6912 = vld [vmem:[%s328 + $0xb0] sm:$0xff]
        %v6913 = vld [vmem:[%s328 + $0xc8] sm:$0xff]
        %v6914 = vld [vmem:[%s328 + $0xd0] sm:$0xff]
        %v6915 = vld [vmem:[%s328 + $0xe8] sm:$0xff]
        %v6916 = vld [vmem:[%s328 + $0xf0] sm:$0xff]
        %v6917 = vld [vmem:[%s328 + $0x108] sm:$0xff]
        %v6918 = vld [vmem:[%s328 + $0x110] sm:$0xff]
        %v6919 = vld [vmem:[%s328 + $0x128] sm:$0xff]
        %v6920 = vld [vmem:[%s328 + $0x130] sm:$0xff]
        %v6921 = vld [vmem:[%s328 + $0x148] sm:$0xff]
        %v6922 = vld [vmem:[%s328 + $0x150] sm:$0xff]
        %v6923 = vld [vmem:[%s328 + $0x168] sm:$0xff]
        %v6924 = vld [vmem:[%s328 + $0x170] sm:$0xff]
        %v6925 = vld [vmem:[%s328 + $0x188] sm:$0xff]
        %v6926 = vld [vmem:[%s328 + $0x190] sm:$0xff]
        %v6927 = vld [vmem:[%s328 + $0x1a8] sm:$0xff]
        %v6928 = vld [vmem:[%s328 + $0x1b0] sm:$0xff]
        %v6929 = vld [vmem:[%s328 + $0x1c8] sm:$0xff]
        %v6930 = vld [vmem:[%s328 + $0x1d0] sm:$0xff]
        %v6931 = vld [vmem:[%s328 + $0x1e8] sm:$0xff]
        %v6932 = vld [vmem:[%s328 + $0x1f0] sm:$0xff]
        %6933 = vst [vmem:[#allocation3 + $0x20] sm:$0xff] %v6901
        %6934 = vst [vmem:[#allocation3 + $0x68] sm:$0xff] %v6902
        %6935 = vst [vmem:[#allocation3 + $0xb0] sm:$0xff] %v6903
        %6936 = vst [vmem:[#allocation3 + $0xf8] sm:$0xff] %v6904
        %6937 = vst [vmem:[#allocation3 + $0x140] sm:$0xff] %v6905
        %6938 = vst [vmem:[#allocation3 + $0x188] sm:$0xff] %v6906
        %6939 = vst [vmem:[#allocation3 + $0x1d0] sm:$0xff] %v6907
        %6940 = vst [vmem:[#allocation3 + $0x218] sm:$0xff] %v6908
        %6941 = vst [vmem:[#allocation3 + $0x260] sm:$0xff] %v6909
        %6942 = vst [vmem:[#allocation3 + $0x2a8] sm:$0xff] %v6910
        %6943 = vst [vmem:[#allocation3 + $0x2f0] sm:$0xff] %v6911
        %6944 = vst [vmem:[#allocation3 + $0x338] sm:$0xff] %v6912
        %6945 = vst [vmem:[#allocation3 + $0x380] sm:$0xff] %v6913
        %6946 = vst [vmem:[#allocation3 + $0x3c8] sm:$0xff] %v6914
        %6947 = vst [vmem:[#allocation3 + $0x410] sm:$0xff] %v6915
        %6948 = vst [vmem:[#allocation3 + $0x458] sm:$0xff] %v6916
        %6949 = vst [vmem:[#allocation3 + $0x4a0] sm:$0xff] %v6917
        %6950 = vst [vmem:[#allocation3 + $0x4e8] sm:$0xff] %v6918
        %6951 = vst [vmem:[#allocation3 + $0x530] sm:$0xff] %v6919
        %6952 = vst [vmem:[#allocation3 + $0x578] sm:$0xff] %v6920
        %6953 = vst [vmem:[#allocation3 + $0x5c0] sm:$0xff] %v6921
        %6954 = vst [vmem:[#allocation3 + $0x608] sm:$0xff] %v6922
        %6955 = vst [vmem:[#allocation3 + $0x650] sm:$0xff] %v6923
        %6956 = vst [vmem:[#allocation3 + $0x698] sm:$0xff] %v6924
        %6957 = vst [vmem:[#allocation3 + $0x6e0] sm:$0xff] %v6925
        %6958 = vst [vmem:[#allocation3 + $0x728] sm:$0xff] %v6926
        %6959 = vst [vmem:[#allocation3 + $0x770] sm:$0xff] %v6927
        %6960 = vst [vmem:[#allocation3 + $0x7b8] sm:$0xff] %v6928
        %6961 = vst [vmem:[#allocation3 + $0x800] sm:$0xff] %v6929
        %6962 = vst [vmem:[#allocation3 + $0x848] sm:$0xff] %v6930
        %6963 = vst [vmem:[#allocation3 + $0x890] sm:$0xff] %v6931
        %6964 = vst [vmem:[#allocation3 + $0x8d8] sm:$0xff] %v6932
        %v6965 = vld [vmem:[%s328 + $0x9] sm:$0xff]
        %v6966 = vld [vmem:[%s328 + $0x11] sm:$0xff]
        %v6967 = vld [vmem:[%s328 + $0x29] sm:$0xff]
        %v6968 = vld [vmem:[%s328 + $0x31] sm:$0xff]
        %v6969 = vld [vmem:[%s328 + $0x49] sm:$0xff]
        %v6970 = vld [vmem:[%s328 + $0x51] sm:$0xff]
        %v6971 = vld [vmem:[%s328 + $0x69] sm:$0xff]
        %v6972 = vld [vmem:[%s328 + $0x71] sm:$0xff]
        %v6973 = vld [vmem:[%s328 + $0x89] sm:$0xff]
        %v6974 = vld [vmem:[%s328 + $0x91] sm:$0xff]
        %v6975 = vld [vmem:[%s328 + $0xa9] sm:$0xff]
        %v6976 = vld [vmem:[%s328 + $0xb1] sm:$0xff]
        %v6977 = vld [vmem:[%s328 + $0xc9] sm:$0xff]
        %v6978 = vld [vmem:[%s328 + $0xd1] sm:$0xff]
        %v6979 = vld [vmem:[%s328 + $0xe9] sm:$0xff]
        %v6980 = vld [vmem:[%s328 + $0xf1] sm:$0xff]
        %v6981 = vld [vmem:[%s328 + $0x109] sm:$0xff]
        %v6982 = vld [vmem:[%s328 + $0x111] sm:$0xff]
        %v6983 = vld [vmem:[%s328 + $0x129] sm:$0xff]
        %v6984 = vld [vmem:[%s328 + $0x131] sm:$0xff]
        %v6985 = vld [vmem:[%s328 + $0x149] sm:$0xff]
        %v6986 = vld [vmem:[%s328 + $0x151] sm:$0xff]
        %v6987 = vld [vmem:[%s328 + $0x169] sm:$0xff]
        %v6988 = vld [vmem:[%s328 + $0x171] sm:$0xff]
        %v6989 = vld [vmem:[%s328 + $0x189] sm:$0xff]
        %v6990 = vld [vmem:[%s328 + $0x191] sm:$0xff]
        %v6991 = vld [vmem:[%s328 + $0x1a9] sm:$0xff]
        %v6992 = vld [vmem:[%s328 + $0x1b1] sm:$0xff]
        %v6993 = vld [vmem:[%s328 + $0x1c9] sm:$0xff]
        %v6994 = vld [vmem:[%s328 + $0x1d1] sm:$0xff]
        %v6995 = vld [vmem:[%s328 + $0x1e9] sm:$0xff]
        %v6996 = vld [vmem:[%s328 + $0x1f1] sm:$0xff]
        %6997 = vst [vmem:[#allocation3 + $0x28] sm:$0xff] %v6965
        %6998 = vst [vmem:[#allocation3 + $0x70] sm:$0xff] %v6966
        %6999 = vst [vmem:[#allocation3 + $0xb8] sm:$0xff] %v6967
        %7000 = vst [vmem:[#allocation3 + $0x100] sm:$0xff] %v6968
        %7001 = vst [vmem:[#allocation3 + $0x148] sm:$0xff] %v6969
        %7002 = vst [vmem:[#allocation3 + $0x190] sm:$0xff] %v6970
        %7003 = vst [vmem:[#allocation3 + $0x1d8] sm:$0xff] %v6971
        %7004 = vst [vmem:[#allocation3 + $0x220] sm:$0xff] %v6972
        %7005 = vst [vmem:[#allocation3 + $0x268] sm:$0xff] %v6973
        %7006 = vst [vmem:[#allocation3 + $0x2b0] sm:$0xff] %v6974
        %7007 = vst [vmem:[#allocation3 + $0x2f8] sm:$0xff] %v6975
        %7008 = vst [vmem:[#allocation3 + $0x340] sm:$0xff] %v6976
        %7009 = vst [vmem:[#allocation3 + $0x388] sm:$0xff] %v6977
        %7010 = vst [vmem:[#allocation3 + $0x3d0] sm:$0xff] %v6978
        %7011 = vst [vmem:[#allocation3 + $0x418] sm:$0xff] %v6979
        %7012 = vst [vmem:[#allocation3 + $0x460] sm:$0xff] %v6980
        %7013 = vst [vmem:[#allocation3 + $0x4a8] sm:$0xff] %v6981
        %7014 = vst [vmem:[#allocation3 + $0x4f0] sm:$0xff] %v6982
        %7015 = vst [vmem:[#allocation3 + $0x538] sm:$0xff] %v6983
        %7016 = vst [vmem:[#allocation3 + $0x580] sm:$0xff] %v6984
        %7017 = vst [vmem:[#allocation3 + $0x5c8] sm:$0xff] %v6985
        %7018 = vst [vmem:[#allocation3 + $0x610] sm:$0xff] %v6986
        %7019 = vst [vmem:[#allocation3 + $0x658] sm:$0xff] %v6987
        %7020 = vst [vmem:[#allocation3 + $0x6a0] sm:$0xff] %v6988
        %7021 = vst [vmem:[#allocation3 + $0x6e8] sm:$0xff] %v6989
        %7022 = vst [vmem:[#allocation3 + $0x730] sm:$0xff] %v6990
        %7023 = vst [vmem:[#allocation3 + $0x778] sm:$0xff] %v6991
        %7024 = vst [vmem:[#allocation3 + $0x7c0] sm:$0xff] %v6992
        %7025 = vst [vmem:[#allocation3 + $0x808] sm:$0xff] %v6993
        %7026 = vst [vmem:[#allocation3 + $0x850] sm:$0xff] %v6994
        %7027 = vst [vmem:[#allocation3 + $0x898] sm:$0xff] %v6995
        %7028 = vst [vmem:[#allocation3 + $0x8e0] sm:$0xff] %v6996
        %v7029 = vld [vmem:[%s745 + $0x7] sm:$0xff]
        %v7030 = vld [vmem:[%s745 + $0xf] sm:$0xff]
        %v7031 = vld [vmem:[%s745 + $0x27] sm:$0xff]
        %v7032 = vld [vmem:[%s745 + $0x2f] sm:$0xff]
        %v7033 = vld [vmem:[%s745 + $0x47] sm:$0xff]
        %v7034 = vld [vmem:[%s745 + $0x4f] sm:$0xff]
        %v7035 = vld [vmem:[%s745 + $0x67] sm:$0xff]
        %v7036 = vld [vmem:[%s745 + $0x6f] sm:$0xff]
        %v7037 = vld [vmem:[%s745 + $0x87] sm:$0xff]
        %v7038 = vld [vmem:[%s745 + $0x8f] sm:$0xff]
        %v7039 = vld [vmem:[%s745 + $0xa7] sm:$0xff]
        %v7040 = vld [vmem:[%s745 + $0xaf] sm:$0xff]
        %v7041 = vld [vmem:[%s745 + $0xc7] sm:$0xff]
        %v7042 = vld [vmem:[%s745 + $0xcf] sm:$0xff]
        %v7043 = vld [vmem:[%s745 + $0xe7] sm:$0xff]
        %v7044 = vld [vmem:[%s745 + $0xef] sm:$0xff]
        %v7045 = vld [vmem:[%s745 + $0x107] sm:$0xff]
        %v7046 = vld [vmem:[%s745 + $0x10f] sm:$0xff]
        %v7047 = vld [vmem:[%s745 + $0x127] sm:$0xff]
        %v7048 = vld [vmem:[%s745 + $0x12f] sm:$0xff]
        %v7049 = vld [vmem:[%s745 + $0x147] sm:$0xff]
        %v7050 = vld [vmem:[%s745 + $0x14f] sm:$0xff]
        %v7051 = vld [vmem:[%s745 + $0x167] sm:$0xff]
        %v7052 = vld [vmem:[%s745 + $0x16f] sm:$0xff]
        %v7053 = vld [vmem:[%s745 + $0x187] sm:$0xff]
        %v7054 = vld [vmem:[%s745 + $0x18f] sm:$0xff]
        %v7055 = vld [vmem:[%s745 + $0x1a7] sm:$0xff]
        %v7056 = vld [vmem:[%s745 + $0x1af] sm:$0xff]
        %v7057 = vld [vmem:[%s745 + $0x1c7] sm:$0xff]
        %v7058 = vld [vmem:[%s745 + $0x1cf] sm:$0xff]
        %v7059 = vld [vmem:[%s745 + $0x1e7] sm:$0xff]
        %v7060 = vld [vmem:[%s745 + $0x1ef] sm:$0xff]
        %7061 = vst [vmem:[#allocation3 + $0x30] sm:$0xff] %v7029
        %7062 = vst [vmem:[#allocation3 + $0x78] sm:$0xff] %v7030
        %7063 = vst [vmem:[#allocation3 + $0xc0] sm:$0xff] %v7031
        %7064 = vst [vmem:[#allocation3 + $0x108] sm:$0xff] %v7032
        %7065 = vst [vmem:[#allocation3 + $0x150] sm:$0xff] %v7033
        %7066 = vst [vmem:[#allocation3 + $0x198] sm:$0xff] %v7034
        %7067 = vst [vmem:[#allocation3 + $0x1e0] sm:$0xff] %v7035
        %7068 = vst [vmem:[#allocation3 + $0x228] sm:$0xff] %v7036
        %7069 = vst [vmem:[#allocation3 + $0x270] sm:$0xff] %v7037
        %7070 = vst [vmem:[#allocation3 + $0x2b8] sm:$0xff] %v7038
        %7071 = vst [vmem:[#allocation3 + $0x300] sm:$0xff] %v7039
        %7072 = vst [vmem:[#allocation3 + $0x348] sm:$0xff] %v7040
        %7073 = vst [vmem:[#allocation3 + $0x390] sm:$0xff] %v7041
        %7074 = vst [vmem:[#allocation3 + $0x3d8] sm:$0xff] %v7042
        %7075 = vst [vmem:[#allocation3 + $0x420] sm:$0xff] %v7043
        %7076 = vst [vmem:[#allocation3 + $0x468] sm:$0xff] %v7044
        %7077 = vst [vmem:[#allocation3 + $0x4b0] sm:$0xff] %v7045
        %7078 = vst [vmem:[#allocation3 + $0x4f8] sm:$0xff] %v7046
        %7079 = vst [vmem:[#allocation3 + $0x540] sm:$0xff] %v7047
        %7080 = vst [vmem:[#allocation3 + $0x588] sm:$0xff] %v7048
        %7081 = vst [vmem:[#allocation3 + $0x5d0] sm:$0xff] %v7049
        %7082 = vst [vmem:[#allocation3 + $0x618] sm:$0xff] %v7050
        %7083 = vst [vmem:[#allocation3 + $0x660] sm:$0xff] %v7051
        %7084 = vst [vmem:[#allocation3 + $0x6a8] sm:$0xff] %v7052
        %7085 = vst [vmem:[#allocation3 + $0x6f0] sm:$0xff] %v7053
        %7086 = vst [vmem:[#allocation3 + $0x738] sm:$0xff] %v7054
        %7087 = vst [vmem:[#allocation3 + $0x780] sm:$0xff] %v7055
        %7088 = vst [vmem:[#allocation3 + $0x7c8] sm:$0xff] %v7056
        %7089 = vst [vmem:[#allocation3 + $0x810] sm:$0xff] %v7057
        %7090 = vst [vmem:[#allocation3 + $0x858] sm:$0xff] %v7058
        %7091 = vst [vmem:[#allocation3 + $0x8a0] sm:$0xff] %v7059
        %7092 = vst [vmem:[#allocation3 + $0x8e8] sm:$0xff] %v7060
        %v7093 = vld [vmem:[%s745 + $0x8] sm:$0xff]
        %v7094 = vld [vmem:[%s745 + $0x10] sm:$0xff]
        %v7095 = vld [vmem:[%s745 + $0x28] sm:$0xff]
        %v7096 = vld [vmem:[%s745 + $0x30] sm:$0xff]
        %v7097 = vld [vmem:[%s745 + $0x48] sm:$0xff]
        %v7098 = vld [vmem:[%s745 + $0x50] sm:$0xff]
        %v7099 = vld [vmem:[%s745 + $0x68] sm:$0xff]
        %v7100 = vld [vmem:[%s745 + $0x70] sm:$0xff]
        %v7101 = vld [vmem:[%s745 + $0x88] sm:$0xff]
        %v7102 = vld [vmem:[%s745 + $0x90] sm:$0xff]
        %v7103 = vld [vmem:[%s745 + $0xa8] sm:$0xff]
        %v7104 = vld [vmem:[%s745 + $0xb0] sm:$0xff]
        %v7105 = vld [vmem:[%s745 + $0xc8] sm:$0xff]
        %v7106 = vld [vmem:[%s745 + $0xd0] sm:$0xff]
        %v7107 = vld [vmem:[%s745 + $0xe8] sm:$0xff]
        %v7108 = vld [vmem:[%s745 + $0xf0] sm:$0xff]
        %v7109 = vld [vmem:[%s745 + $0x108] sm:$0xff]
        %v7110 = vld [vmem:[%s745 + $0x110] sm:$0xff]
        %v7111 = vld [vmem:[%s745 + $0x128] sm:$0xff]
        %v7112 = vld [vmem:[%s745 + $0x130] sm:$0xff]
        %v7113 = vld [vmem:[%s745 + $0x148] sm:$0xff]
        %v7114 = vld [vmem:[%s745 + $0x150] sm:$0xff]
        %v7115 = vld [vmem:[%s745 + $0x168] sm:$0xff]
        %v7116 = vld [vmem:[%s745 + $0x170] sm:$0xff]
        %v7117 = vld [vmem:[%s745 + $0x188] sm:$0xff]
        %v7118 = vld [vmem:[%s745 + $0x190] sm:$0xff]
        %v7119 = vld [vmem:[%s745 + $0x1a8] sm:$0xff]
        %v7120 = vld [vmem:[%s745 + $0x1b0] sm:$0xff]
        %v7121 = vld [vmem:[%s745 + $0x1c8] sm:$0xff]
        %v7122 = vld [vmem:[%s745 + $0x1d0] sm:$0xff]
        %v7123 = vld [vmem:[%s745 + $0x1e8] sm:$0xff]
        %v7124 = vld [vmem:[%s745 + $0x1f0] sm:$0xff]
        %7125 = vst [vmem:[#allocation3 + $0x38] sm:$0xff] %v7093
        %7126 = vst [vmem:[#allocation3 + $0x80] sm:$0xff] %v7094
        %7127 = vst [vmem:[#allocation3 + $0xc8] sm:$0xff] %v7095
        %7128 = vst [vmem:[#allocation3 + $0x110] sm:$0xff] %v7096
        %7129 = vst [vmem:[#allocation3 + $0x158] sm:$0xff] %v7097
        %7130 = vst [vmem:[#allocation3 + $0x1a0] sm:$0xff] %v7098
        %7131 = vst [vmem:[#allocation3 + $0x1e8] sm:$0xff] %v7099
        %7132 = vst [vmem:[#allocation3 + $0x230] sm:$0xff] %v7100
        %7133 = vst [vmem:[#allocation3 + $0x278] sm:$0xff] %v7101
        %7134 = vst [vmem:[#allocation3 + $0x2c0] sm:$0xff] %v7102
        %7135 = vst [vmem:[#allocation3 + $0x308] sm:$0xff] %v7103
        %7136 = vst [vmem:[#allocation3 + $0x350] sm:$0xff] %v7104
        %7137 = vst [vmem:[#allocation3 + $0x398] sm:$0xff] %v7105
        %7138 = vst [vmem:[#allocation3 + $0x3e0] sm:$0xff] %v7106
        %7139 = vst [vmem:[#allocation3 + $0x428] sm:$0xff] %v7107
        %7140 = vst [vmem:[#allocation3 + $0x470] sm:$0xff] %v7108
        %7141 = vst [vmem:[#allocation3 + $0x4b8] sm:$0xff] %v7109
        %7142 = vst [vmem:[#allocation3 + $0x500] sm:$0xff] %v7110
        %7143 = vst [vmem:[#allocation3 + $0x548] sm:$0xff] %v7111
        %7144 = vst [vmem:[#allocation3 + $0x590] sm:$0xff] %v7112
        %7145 = vst [vmem:[#allocation3 + $0x5d8] sm:$0xff] %v7113
        %7146 = vst [vmem:[#allocation3 + $0x620] sm:$0xff] %v7114
        %7147 = vst [vmem:[#allocation3 + $0x668] sm:$0xff] %v7115
        %7148 = vst [vmem:[#allocation3 + $0x6b0] sm:$0xff] %v7116
        %7149 = vst [vmem:[#allocation3 + $0x6f8] sm:$0xff] %v7117
        %7150 = vst [vmem:[#allocation3 + $0x740] sm:$0xff] %v7118
        %7151 = vst [vmem:[#allocation3 + $0x788] sm:$0xff] %v7119
        %7152 = vst [vmem:[#allocation3 + $0x7d0] sm:$0xff] %v7120
        %7153 = vst [vmem:[#allocation3 + $0x818] sm:$0xff] %v7121
        %7154 = vst [vmem:[#allocation3 + $0x860] sm:$0xff] %v7122
        %7155 = vst [vmem:[#allocation3 + $0x8a8] sm:$0xff] %v7123
        %7156 = vst [vmem:[#allocation3 + $0x8f0] sm:$0xff] %v7124
        %v7157 = vld [vmem:[%s745 + $0x9] sm:$0xff]
        %v7158 = vld [vmem:[%s745 + $0x11] sm:$0xff]
        %v7159 = vld [vmem:[%s745 + $0x29] sm:$0xff]
        %v7160 = vld [vmem:[%s745 + $0x31] sm:$0xff]
        %v7161 = vld [vmem:[%s745 + $0x49] sm:$0xff]
        %v7162 = vld [vmem:[%s745 + $0x51] sm:$0xff]
        %v7163 = vld [vmem:[%s745 + $0x69] sm:$0xff]
        %v7164 = vld [vmem:[%s745 + $0x71] sm:$0xff]
        %v7165 = vld [vmem:[%s745 + $0x89] sm:$0xff]
        %v7166 = vld [vmem:[%s745 + $0x91] sm:$0xff]
        %v7167 = vld [vmem:[%s745 + $0xa9] sm:$0xff]
        %v7168 = vld [vmem:[%s745 + $0xb1] sm:$0xff]
        %v7169 = vld [vmem:[%s745 + $0xc9] sm:$0xff]
        %v7170 = vld [vmem:[%s745 + $0xd1] sm:$0xff]
        %v7171 = vld [vmem:[%s745 + $0xe9] sm:$0xff]
        %v7172 = vld [vmem:[%s745 + $0xf1] sm:$0xff]
        %v7173 = vld [vmem:[%s745 + $0x109] sm:$0xff]
        %v7174 = vld [vmem:[%s745 + $0x111] sm:$0xff]
        %v7175 = vld [vmem:[%s745 + $0x129] sm:$0xff]
        %v7176 = vld [vmem:[%s745 + $0x131] sm:$0xff]
        %v7177 = vld [vmem:[%s745 + $0x149] sm:$0xff]
        %v7178 = vld [vmem:[%s745 + $0x151] sm:$0xff]
        %v7179 = vld [vmem:[%s745 + $0x169] sm:$0xff]
        %v7180 = vld [vmem:[%s745 + $0x171] sm:$0xff]
        %v7181 = vld [vmem:[%s745 + $0x189] sm:$0xff]
        %v7182 = vld [vmem:[%s745 + $0x191] sm:$0xff]
        %v7183 = vld [vmem:[%s745 + $0x1a9] sm:$0xff]
        %v7184 = vld [vmem:[%s745 + $0x1b1] sm:$0xff]
        %v7185 = vld [vmem:[%s745 + $0x1c9] sm:$0xff]
        %v7186 = vld [vmem:[%s745 + $0x1d1] sm:$0xff]
        %v7187 = vld [vmem:[%s745 + $0x1e9] sm:$0xff]
        %v7188 = vld [vmem:[%s745 + $0x1f1] sm:$0xff]
        %7189 = vst [vmem:[#allocation3 + $0x40] sm:$0xff] %v7157
        %7190 = vst [vmem:[#allocation3 + $0x88] sm:$0xff] %v7158
        %7191 = vst [vmem:[#allocation3 + $0xd0] sm:$0xff] %v7159
        %7192 = vst [vmem:[#allocation3 + $0x118] sm:$0xff] %v7160
        %7193 = vst [vmem:[#allocation3 + $0x160] sm:$0xff] %v7161
        %7194 = vst [vmem:[#allocation3 + $0x1a8] sm:$0xff] %v7162
        %7195 = vst [vmem:[#allocation3 + $0x1f0] sm:$0xff] %v7163
        %7196 = vst [vmem:[#allocation3 + $0x238] sm:$0xff] %v7164
        %7197 = vst [vmem:[#allocation3 + $0x280] sm:$0xff] %v7165
        %7198 = vst [vmem:[#allocation3 + $0x2c8] sm:$0xff] %v7166
        %7199 = vst [vmem:[#allocation3 + $0x310] sm:$0xff] %v7167
        %7200 = vst [vmem:[#allocation3 + $0x358] sm:$0xff] %v7168
        %7201 = vst [vmem:[#allocation3 + $0x3a0] sm:$0xff] %v7169
        %7202 = vst [vmem:[#allocation3 + $0x3e8] sm:$0xff] %v7170
        %7203 = vst [vmem:[#allocation3 + $0x430] sm:$0xff] %v7171
        %7204 = vst [vmem:[#allocation3 + $0x478] sm:$0xff] %v7172
        %7205 = vst [vmem:[#allocation3 + $0x4c0] sm:$0xff] %v7173
        %7206 = vst [vmem:[#allocation3 + $0x508] sm:$0xff] %v7174
        %7207 = vst [vmem:[#allocation3 + $0x550] sm:$0xff] %v7175
        %7208 = vst [vmem:[#allocation3 + $0x598] sm:$0xff] %v7176
        %7209 = vst [vmem:[#allocation3 + $0x5e0] sm:$0xff] %v7177
        %7210 = vst [vmem:[#allocation3 + $0x628] sm:$0xff] %v7178
        %7211 = vst [vmem:[#allocation3 + $0x670] sm:$0xff] %v7179
        %7212 = vst [vmem:[#allocation3 + $0x6b8] sm:$0xff] %v7180
        %7213 = vst [vmem:[#allocation3 + $0x700] sm:$0xff] %v7181
        %7214 = vst [vmem:[#allocation3 + $0x748] sm:$0xff] %v7182
        %7215 = vst [vmem:[#allocation3 + $0x790] sm:$0xff] %v7183
        %7216 = vst [vmem:[#allocation3 + $0x7d8] sm:$0xff] %v7184
        %7217 = vst [vmem:[#allocation3 + $0x820] sm:$0xff] %v7185
        %7218 = vst [vmem:[#allocation3 + $0x868] sm:$0xff] %v7186
        %7219 = vst [vmem:[#allocation3 + $0x8b0] sm:$0xff] %v7187
        %7220 = vst [vmem:[#allocation3 + $0x8f8] sm:$0xff] %v7188
        %v7221 = vld [vmem:[#allocation3] sm:$0xff]
        %v7222 = vld [vmem:[#allocation3 + $0x8] sm:$0xff]
        %v7223 = vld [vmem:[#allocation3 + $0x10] sm:$0xff]
        %v7224 = vld [vmem:[#allocation3 + $0x18] sm:$0xff]
        %v7225 = vld [vmem:[#allocation3 + $0x20] sm:$0xff]
        %v7226 = vld [vmem:[#allocation3 + $0x28] sm:$0xff]
        %v7227 = vld [vmem:[#allocation3 + $0x30] sm:$0xff]
        %v7228 = vld [vmem:[#allocation3 + $0x38] sm:$0xff]
        %v7229 = vld [vmem:[#allocation3 + $0x40] sm:$0xff]
        %v7230 = vld [vmem:[#allocation3 + $0x48] sm:$0xff]
        %v7231 = vld [vmem:[#allocation3 + $0x50] sm:$0xff]
        %v7232 = vld [vmem:[#allocation3 + $0x58] sm:$0xff]
        %v7233 = vld [vmem:[#allocation3 + $0x60] sm:$0xff]
        %v7234 = vld [vmem:[#allocation3 + $0x68] sm:$0xff]
        %v7235 = vld [vmem:[#allocation3 + $0x70] sm:$0xff]
        %v7236 = vld [vmem:[#allocation3 + $0x78] sm:$0xff]
        %v7237 = vld [vmem:[#allocation3 + $0x80] sm:$0xff]
        %v7238 = vld [vmem:[#allocation3 + $0x88] sm:$0xff]
        %v7239 = vld [vmem:[#allocation3 + $0x90] sm:$0xff]
        %v7240 = vld [vmem:[#allocation3 + $0x98] sm:$0xff]
        %v7241 = vld [vmem:[#allocation3 + $0xa0] sm:$0xff]
        %v7242 = vld [vmem:[#allocation3 + $0xa8] sm:$0xff]
        %v7243 = vld [vmem:[#allocation3 + $0xb0] sm:$0xff]
        %v7244 = vld [vmem:[#allocation3 + $0xb8] sm:$0xff]
        %v7245 = vld [vmem:[#allocation3 + $0xc0] sm:$0xff]
        %v7246 = vld [vmem:[#allocation3 + $0xc8] sm:$0xff]
        %v7247 = vld [vmem:[#allocation3 + $0xd0] sm:$0xff]
        %v7248 = vld [vmem:[#allocation3 + $0xd8] sm:$0xff]
        %v7249 = vld [vmem:[#allocation3 + $0xe0] sm:$0xff]
        %v7250 = vld [vmem:[#allocation3 + $0xe8] sm:$0xff]
        %v7251 = vld [vmem:[#allocation3 + $0xf0] sm:$0xff]
        %v7252 = vld [vmem:[#allocation3 + $0xf8] sm:$0xff]
        %v7253 = vld [vmem:[#allocation3 + $0x100] sm:$0xff]
        %v7254 = vld [vmem:[#allocation3 + $0x108] sm:$0xff]
        %v7255 = vld [vmem:[#allocation3 + $0x110] sm:$0xff]
        %v7256 = vld [vmem:[#allocation3 + $0x118] sm:$0xff]
        %v7257 = vld [vmem:[#allocation3 + $0x120] sm:$0xff]
        %v7258 = vld [vmem:[#allocation3 + $0x128] sm:$0xff]
        %v7259 = vld [vmem:[#allocation3 + $0x130] sm:$0xff]
        %v7260 = vld [vmem:[#allocation3 + $0x138] sm:$0xff]
        %v7261 = vld [vmem:[#allocation3 + $0x140] sm:$0xff]
        %v7262 = vld [vmem:[#allocation3 + $0x148] sm:$0xff]
        %v7263 = vld [vmem:[#allocation3 + $0x150] sm:$0xff]
        %v7264 = vld [vmem:[#allocation3 + $0x158] sm:$0xff]
        %v7265 = vld [vmem:[#allocation3 + $0x160] sm:$0xff]
        %v7266 = vld [vmem:[#allocation3 + $0x168] sm:$0xff]
        %v7267 = vld [vmem:[#allocation3 + $0x170] sm:$0xff]
        %v7268 = vld [vmem:[#allocation3 + $0x178] sm:$0xff]
        %v7269 = vld [vmem:[#allocation3 + $0x180] sm:$0xff]
        %v7270 = vld [vmem:[#allocation3 + $0x188] sm:$0xff]
        %v7271 = vld [vmem:[#allocation3 + $0x190] sm:$0xff]
        %v7272 = vld [vmem:[#allocation3 + $0x198] sm:$0xff]
        %v7273 = vld [vmem:[#allocation3 + $0x1a0] sm:$0xff]
        %v7274 = vld [vmem:[#allocation3 + $0x1a8] sm:$0xff]
        %v7275 = vld [vmem:[#allocation3 + $0x1b0] sm:$0xff]
        %v7276 = vld [vmem:[#allocation3 + $0x1b8] sm:$0xff]
        %v7277 = vld [vmem:[#allocation3 + $0x1c0] sm:$0xff]
        %v7278 = vld [vmem:[#allocation3 + $0x1c8] sm:$0xff]
        %v7279 = vld [vmem:[#allocation3 + $0x1d0] sm:$0xff]
        %v7280 = vld [vmem:[#allocation3 + $0x1d8] sm:$0xff]
        %v7281 = vld [vmem:[#allocation3 + $0x1e0] sm:$0xff]
        %v7282 = vld [vmem:[#allocation3 + $0x1e8] sm:$0xff]
        %v7283 = vld [vmem:[#allocation3 + $0x1f0] sm:$0xff]
        %v7284 = vld [vmem:[#allocation3 + $0x1f8] sm:$0xff]
        %v7285 = vld [vmem:[#allocation3 + $0x200] sm:$0xff]
        %v7286 = vld [vmem:[#allocation3 + $0x208] sm:$0xff]
        %v7287 = vld [vmem:[#allocation3 + $0x210] sm:$0xff]
        %v7288 = vld [vmem:[#allocation3 + $0x218] sm:$0xff]
        %v7289 = vld [vmem:[#allocation3 + $0x220] sm:$0xff]
        %v7290 = vld [vmem:[#allocation3 + $0x228] sm:$0xff]
        %v7291 = vld [vmem:[#allocation3 + $0x230] sm:$0xff]
        %v7292 = vld [vmem:[#allocation3 + $0x238] sm:$0xff]
        %v7293 = vld [vmem:[#allocation3 + $0x240] sm:$0xff]
        %v7294 = vld [vmem:[#allocation3 + $0x248] sm:$0xff]
        %v7295 = vld [vmem:[#allocation3 + $0x250] sm:$0xff]
        %v7296 = vld [vmem:[#allocation3 + $0x258] sm:$0xff]
        %v7297 = vld [vmem:[#allocation3 + $0x260] sm:$0xff]
        %v7298 = vld [vmem:[#allocation3 + $0x268] sm:$0xff]
        %v7299 = vld [vmem:[#allocation3 + $0x270] sm:$0xff]
        %v7300 = vld [vmem:[#allocation3 + $0x278] sm:$0xff]
        %v7301 = vld [vmem:[#allocation3 + $0x280] sm:$0xff]
        %v7302 = vld [vmem:[#allocation3 + $0x288] sm:$0xff]
        %v7303 = vld [vmem:[#allocation3 + $0x290] sm:$0xff]
        %v7304 = vld [vmem:[#allocation3 + $0x298] sm:$0xff]
        %v7305 = vld [vmem:[#allocation3 + $0x2a0] sm:$0xff]
        %v7306 = vld [vmem:[#allocation3 + $0x2a8] sm:$0xff]
        %v7307 = vld [vmem:[#allocation3 + $0x2b0] sm:$0xff]
        %v7308 = vld [vmem:[#allocation3 + $0x2b8] sm:$0xff]
        %v7309 = vld [vmem:[#allocation3 + $0x2c0] sm:$0xff]
        %v7310 = vld [vmem:[#allocation3 + $0x2c8] sm:$0xff]
        %v7311 = vld [vmem:[#allocation3 + $0x2d0] sm:$0xff]
        %v7312 = vld [vmem:[#allocation3 + $0x2d8] sm:$0xff]
        %v7313 = vld [vmem:[#allocation3 + $0x2e0] sm:$0xff]
        %v7314 = vld [vmem:[#allocation3 + $0x2e8] sm:$0xff]
        %v7315 = vld [vmem:[#allocation3 + $0x2f0] sm:$0xff]
        %v7316 = vld [vmem:[#allocation3 + $0x2f8] sm:$0xff]
        %v7317 = vld [vmem:[#allocation3 + $0x300] sm:$0xff]
        %v7318 = vld [vmem:[#allocation3 + $0x308] sm:$0xff]
        %v7319 = vld [vmem:[#allocation3 + $0x310] sm:$0xff]
        %v7320 = vld [vmem:[#allocation3 + $0x318] sm:$0xff]
        %v7321 = vld [vmem:[#allocation3 + $0x320] sm:$0xff]
        %v7322 = vld [vmem:[#allocation3 + $0x328] sm:$0xff]
        %v7323 = vld [vmem:[#allocation3 + $0x330] sm:$0xff]
        %v7324 = vld [vmem:[#allocation3 + $0x338] sm:$0xff]
        %v7325 = vld [vmem:[#allocation3 + $0x340] sm:$0xff]
        %v7326 = vld [vmem:[#allocation3 + $0x348] sm:$0xff]
        %v7327 = vld [vmem:[#allocation3 + $0x350] sm:$0xff]
        %v7328 = vld [vmem:[#allocation3 + $0x358] sm:$0xff]
        %v7329 = vld [vmem:[#allocation3 + $0x360] sm:$0xff]
        %v7330 = vld [vmem:[#allocation3 + $0x368] sm:$0xff]
        %v7331 = vld [vmem:[#allocation3 + $0x370] sm:$0xff]
        %v7332 = vld [vmem:[#allocation3 + $0x378] sm:$0xff]
        %v7333 = vld [vmem:[#allocation3 + $0x380] sm:$0xff]
        %v7334 = vld [vmem:[#allocation3 + $0x388] sm:$0xff]
        %v7335 = vld [vmem:[#allocation3 + $0x390] sm:$0xff]
        %v7336 = vld [vmem:[#allocation3 + $0x398] sm:$0xff]
        %v7337 = vld [vmem:[#allocation3 + $0x3a0] sm:$0xff]
        %v7338 = vld [vmem:[#allocation3 + $0x3a8] sm:$0xff]
        %v7339 = vld [vmem:[#allocation3 + $0x3b0] sm:$0xff]
        %v7340 = vld [vmem:[#allocation3 + $0x3b8] sm:$0xff]
        %v7341 = vld [vmem:[#allocation3 + $0x3c0] sm:$0xff]
        %v7342 = vld [vmem:[#allocation3 + $0x3c8] sm:$0xff]
        %v7343 = vld [vmem:[#allocation3 + $0x3d0] sm:$0xff]
        %v7344 = vld [vmem:[#allocation3 + $0x3d8] sm:$0xff]
        %v7345 = vld [vmem:[#allocation3 + $0x3e0] sm:$0xff]
        %v7346 = vld [vmem:[#allocation3 + $0x3e8] sm:$0xff]
        %v7347 = vld [vmem:[#allocation3 + $0x3f0] sm:$0xff]
        %v7348 = vld [vmem:[#allocation3 + $0x3f8] sm:$0xff]
        %v7349 = vld [vmem:[#allocation3 + $0x400] sm:$0xff]
        %v7350 = vld [vmem:[#allocation3 + $0x408] sm:$0xff]
        %v7351 = vld [vmem:[#allocation3 + $0x410] sm:$0xff]
        %v7352 = vld [vmem:[#allocation3 + $0x418] sm:$0xff]
        %v7353 = vld [vmem:[#allocation3 + $0x420] sm:$0xff]
        %v7354 = vld [vmem:[#allocation3 + $0x428] sm:$0xff]
        %v7355 = vld [vmem:[#allocation3 + $0x430] sm:$0xff]
        %v7356 = vld [vmem:[#allocation3 + $0x438] sm:$0xff]
        %v7357 = vld [vmem:[#allocation3 + $0x440] sm:$0xff]
        %v7358 = vld [vmem:[#allocation3 + $0x448] sm:$0xff]
        %v7359 = vld [vmem:[#allocation3 + $0x450] sm:$0xff]
        %v7360 = vld [vmem:[#allocation3 + $0x458] sm:$0xff]
        %v7361 = vld [vmem:[#allocation3 + $0x460] sm:$0xff]
        %v7362 = vld [vmem:[#allocation3 + $0x468] sm:$0xff]
        %v7363 = vld [vmem:[#allocation3 + $0x470] sm:$0xff]
        %v7364 = vld [vmem:[#allocation3 + $0x478] sm:$0xff]
        %v7365 = vld [vmem:[#allocation3 + $0x480] sm:$0xff]
        %v7366 = vld [vmem:[#allocation3 + $0x488] sm:$0xff]
        %v7367 = vld [vmem:[#allocation3 + $0x490] sm:$0xff]
        %v7368 = vld [vmem:[#allocation3 + $0x498] sm:$0xff]
        %v7369 = vld [vmem:[#allocation3 + $0x4a0] sm:$0xff]
        %v7370 = vld [vmem:[#allocation3 + $0x4a8] sm:$0xff]
        %v7371 = vld [vmem:[#allocation3 + $0x4b0] sm:$0xff]
        %v7372 = vld [vmem:[#allocation3 + $0x4b8] sm:$0xff]
        %v7373 = vld [vmem:[#allocation3 + $0x4c0] sm:$0xff]
        %v7374 = vld [vmem:[#allocation3 + $0x4c8] sm:$0xff]
        %v7375 = vld [vmem:[#allocation3 + $0x4d0] sm:$0xff]
        %v7376 = vld [vmem:[#allocation3 + $0x4d8] sm:$0xff]
        %v7377 = vld [vmem:[#allocation3 + $0x4e0] sm:$0xff]
        %v7378 = vld [vmem:[#allocation3 + $0x4e8] sm:$0xff]
        %v7379 = vld [vmem:[#allocation3 + $0x4f0] sm:$0xff]
        %v7380 = vld [vmem:[#allocation3 + $0x4f8] sm:$0xff]
        %v7381 = vld [vmem:[#allocation3 + $0x500] sm:$0xff]
        %v7382 = vld [vmem:[#allocation3 + $0x508] sm:$0xff]
        %v7383 = vld [vmem:[#allocation3 + $0x510] sm:$0xff]
        %v7384 = vld [vmem:[#allocation3 + $0x518] sm:$0xff]
        %v7385 = vld [vmem:[#allocation3 + $0x520] sm:$0xff]
        %v7386 = vld [vmem:[#allocation3 + $0x528] sm:$0xff]
        %v7387 = vld [vmem:[#allocation3 + $0x530] sm:$0xff]
        %v7388 = vld [vmem:[#allocation3 + $0x538] sm:$0xff]
        %v7389 = vld [vmem:[#allocation3 + $0x540] sm:$0xff]
        %v7390 = vld [vmem:[#allocation3 + $0x548] sm:$0xff]
        %v7391 = vld [vmem:[#allocation3 + $0x550] sm:$0xff]
        %v7392 = vld [vmem:[#allocation3 + $0x558] sm:$0xff]
        %v7393 = vld [vmem:[#allocation3 + $0x560] sm:$0xff]
        %v7394 = vld [vmem:[#allocation3 + $0x568] sm:$0xff]
        %v7395 = vld [vmem:[#allocation3 + $0x570] sm:$0xff]
        %v7396 = vld [vmem:[#allocation3 + $0x578] sm:$0xff]
        %v7397 = vld [vmem:[#allocation3 + $0x580] sm:$0xff]
        %v7398 = vld [vmem:[#allocation3 + $0x588] sm:$0xff]
        %v7399 = vld [vmem:[#allocation3 + $0x590] sm:$0xff]
        %v7400 = vld [vmem:[#allocation3 + $0x598] sm:$0xff]
        %v7401 = vld [vmem:[#allocation3 + $0x5a0] sm:$0xff]
        %v7402 = vld [vmem:[#allocation3 + $0x5a8] sm:$0xff]
        %v7403 = vld [vmem:[#allocation3 + $0x5b0] sm:$0xff]
        %v7404 = vld [vmem:[#allocation3 + $0x5b8] sm:$0xff]
        %v7405 = vld [vmem:[#allocation3 + $0x5c0] sm:$0xff]
        %v7406 = vld [vmem:[#allocation3 + $0x5c8] sm:$0xff]
        %v7407 = vld [vmem:[#allocation3 + $0x5d0] sm:$0xff]
        %v7408 = vld [vmem:[#allocation3 + $0x5d8] sm:$0xff]
        %v7409 = vld [vmem:[#allocation3 + $0x5e0] sm:$0xff]
        %v7410 = vld [vmem:[#allocation3 + $0x5e8] sm:$0xff]
        %v7411 = vld [vmem:[#allocation3 + $0x5f0] sm:$0xff]
        %v7412 = vld [vmem:[#allocation3 + $0x5f8] sm:$0xff]
        %v7413 = vld [vmem:[#allocation3 + $0x600] sm:$0xff]
        %v7414 = vld [vmem:[#allocation3 + $0x608] sm:$0xff]
        %v7415 = vld [vmem:[#allocation3 + $0x610] sm:$0xff]
        %v7416 = vld [vmem:[#allocation3 + $0x618] sm:$0xff]
        %v7417 = vld [vmem:[#allocation3 + $0x620] sm:$0xff]
        %v7418 = vld [vmem:[#allocation3 + $0x628] sm:$0xff]
        %v7419 = vld [vmem:[#allocation3 + $0x630] sm:$0xff]
        %v7420 = vld [vmem:[#allocation3 + $0x638] sm:$0xff]
        %v7421 = vld [vmem:[#allocation3 + $0x640] sm:$0xff]
        %v7422 = vld [vmem:[#allocation3 + $0x648] sm:$0xff]
        %v7423 = vld [vmem:[#allocation3 + $0x650] sm:$0xff]
        %v7424 = vld [vmem:[#allocation3 + $0x658] sm:$0xff]
        %v7425 = vld [vmem:[#allocation3 + $0x660] sm:$0xff]
        %v7426 = vld [vmem:[#allocation3 + $0x668] sm:$0xff]
        %v7427 = vld [vmem:[#allocation3 + $0x670] sm:$0xff]
        %v7428 = vld [vmem:[#allocation3 + $0x678] sm:$0xff]
        %v7429 = vld [vmem:[#allocation3 + $0x680] sm:$0xff]
        %v7430 = vld [vmem:[#allocation3 + $0x688] sm:$0xff]
        %v7431 = vld [vmem:[#allocation3 + $0x690] sm:$0xff]
        %v7432 = vld [vmem:[#allocation3 + $0x698] sm:$0xff]
        %v7433 = vld [vmem:[#allocation3 + $0x6a0] sm:$0xff]
        %v7434 = vld [vmem:[#allocation3 + $0x6a8] sm:$0xff]
        %v7435 = vld [vmem:[#allocation3 + $0x6b0] sm:$0xff]
        %v7436 = vld [vmem:[#allocation3 + $0x6b8] sm:$0xff]
        %v7437 = vld [vmem:[#allocation3 + $0x6c0] sm:$0xff]
        %v7438 = vld [vmem:[#allocation3 + $0x6c8] sm:$0xff]
        %v7439 = vld [vmem:[#allocation3 + $0x6d0] sm:$0xff]
        %v7440 = vld [vmem:[#allocation3 + $0x6d8] sm:$0xff]
        %v7441 = vld [vmem:[#allocation3 + $0x6e0] sm:$0xff]
        %v7442 = vld [vmem:[#allocation3 + $0x6e8] sm:$0xff]
        %v7443 = vld [vmem:[#allocation3 + $0x6f0] sm:$0xff]
        %v7444 = vld [vmem:[#allocation3 + $0x6f8] sm:$0xff]
        %v7445 = vld [vmem:[#allocation3 + $0x700] sm:$0xff]
        %v7446 = vld [vmem:[#allocation3 + $0x708] sm:$0xff]
        %v7447 = vld [vmem:[#allocation3 + $0x710] sm:$0xff]
        %v7448 = vld [vmem:[#allocation3 + $0x718] sm:$0xff]
        %v7449 = vld [vmem:[#allocation3 + $0x720] sm:$0xff]
        %v7450 = vld [vmem:[#allocation3 + $0x728] sm:$0xff]
        %v7451 = vld [vmem:[#allocation3 + $0x730] sm:$0xff]
        %v7452 = vld [vmem:[#allocation3 + $0x738] sm:$0xff]
        %v7453 = vld [vmem:[#allocation3 + $0x740] sm:$0xff]
        %v7454 = vld [vmem:[#allocation3 + $0x748] sm:$0xff]
        %v7455 = vld [vmem:[#allocation3 + $0x750] sm:$0xff]
        %v7456 = vld [vmem:[#allocation3 + $0x758] sm:$0xff]
        %v7457 = vld [vmem:[#allocation3 + $0x760] sm:$0xff]
        %v7458 = vld [vmem:[#allocation3 + $0x768] sm:$0xff]
        %v7459 = vld [vmem:[#allocation3 + $0x770] sm:$0xff]
        %v7460 = vld [vmem:[#allocation3 + $0x778] sm:$0xff]
        %v7461 = vld [vmem:[#allocation3 + $0x780] sm:$0xff]
        %v7462 = vld [vmem:[#allocation3 + $0x788] sm:$0xff]
        %v7463 = vld [vmem:[#allocation3 + $0x790] sm:$0xff]
        %v7464 = vld [vmem:[#allocation3 + $0x798] sm:$0xff]
        %v7465 = vld [vmem:[#allocation3 + $0x7a0] sm:$0xff]
        %v7466 = vld [vmem:[#allocation3 + $0x7a8] sm:$0xff]
        %v7467 = vld [vmem:[#allocation3 + $0x7b0] sm:$0xff]
        %v7468 = vld [vmem:[#allocation3 + $0x7b8] sm:$0xff]
        %v7469 = vld [vmem:[#allocation3 + $0x7c0] sm:$0xff]
        %v7470 = vld [vmem:[#allocation3 + $0x7c8] sm:$0xff]
        %v7471 = vld [vmem:[#allocation3 + $0x7d0] sm:$0xff]
        %v7472 = vld [vmem:[#allocation3 + $0x7d8] sm:$0xff]
        %v7473 = vld [vmem:[#allocation3 + $0x7e0] sm:$0xff]
        %v7474 = vld [vmem:[#allocation3 + $0x7e8] sm:$0xff]
        %v7475 = vld [vmem:[#allocation3 + $0x7f0] sm:$0xff]
        %v7476 = vld [vmem:[#allocation3 + $0x7f8] sm:$0xff]
        %v7477 = vld [vmem:[#allocation3 + $0x800] sm:$0xff]
        %v7478 = vld [vmem:[#allocation3 + $0x808] sm:$0xff]
        %v7479 = vld [vmem:[#allocation3 + $0x810] sm:$0xff]
        %v7480 = vld [vmem:[#allocation3 + $0x818] sm:$0xff]
        %v7481 = vld [vmem:[#allocation3 + $0x820] sm:$0xff]
        %v7482 = vld [vmem:[#allocation3 + $0x828] sm:$0xff]
        %v7483 = vld [vmem:[#allocation3 + $0x830] sm:$0xff]
        %v7484 = vld [vmem:[#allocation3 + $0x838] sm:$0xff]
        %v7485 = vld [vmem:[#allocation3 + $0x840] sm:$0xff]
        %v7486 = vld [vmem:[#allocation3 + $0x848] sm:$0xff]
        %v7487 = vld [vmem:[#allocation3 + $0x850] sm:$0xff]
        %v7488 = vld [vmem:[#allocation3 + $0x858] sm:$0xff]
        %v7489 = vld [vmem:[#allocation3 + $0x860] sm:$0xff]
        %v7490 = vld [vmem:[#allocation3 + $0x868] sm:$0xff]
        %v7491 = vld [vmem:[#allocation3 + $0x870] sm:$0xff]
        %v7492 = vld [vmem:[#allocation3 + $0x878] sm:$0xff]
        %v7493 = vld [vmem:[#allocation3 + $0x880] sm:$0xff]
        %v7494 = vld [vmem:[#allocation3 + $0x888] sm:$0xff]
        %v7495 = vld [vmem:[#allocation3 + $0x890] sm:$0xff]
        %v7496 = vld [vmem:[#allocation3 + $0x898] sm:$0xff]
        %v7497 = vld [vmem:[#allocation3 + $0x8a0] sm:$0xff]
        %v7498 = vld [vmem:[#allocation3 + $0x8a8] sm:$0xff]
        %v7499 = vld [vmem:[#allocation3 + $0x8b0] sm:$0xff]
        %v7500 = vld [vmem:[#allocation3 + $0x8b8] sm:$0xff]
        %v7501 = vld [vmem:[#allocation3 + $0x8c0] sm:$0xff]
        %v7502 = vld [vmem:[#allocation3 + $0x8c8] sm:$0xff]
        %v7503 = vld [vmem:[#allocation3 + $0x8d0] sm:$0xff]
        %v7504 = vld [vmem:[#allocation3 + $0x8d8] sm:$0xff]
        %v7505 = vld [vmem:[#allocation3 + $0x8e0] sm:$0xff]
        %v7506 = vld [vmem:[#allocation3 + $0x8e8] sm:$0xff]
        %v7507 = vld [vmem:[#allocation3 + $0x8f0] sm:$0xff]
        %v7508 = vld [vmem:[#allocation3 + $0x8f8] sm:$0xff]
        %s7509 = scalar_lea.vmem [#allocation7], 3456
        %v7510 = vld [vmem:[%s7509] sm:$0xff]
        %v7511 = vld [vmem:[%s7509 + $0x8] sm:$0xff]
        %v7512 = vld [vmem:[%s7509 + $0x10] sm:$0xff]
        %v7513 = vld [vmem:[%s7509 + $0x18] sm:$0xff]
        %v7514 = vld [vmem:[%s7509 + $0x20] sm:$0xff]
        %v7515 = vld [vmem:[%s7509 + $0x28] sm:$0xff]
        %v7516 = vld [vmem:[%s7509 + $0x30] sm:$0xff]
        %v7517 = vld [vmem:[%s7509 + $0x38] sm:$0xff]
        %v7518 = vld [vmem:[%s7509 + $0x40] sm:$0xff]
        %v7519 = vld [vmem:[%s7509 + $0x48] sm:$0xff]
        %v7520 = vld [vmem:[%s7509 + $0x50] sm:$0xff]
        %v7521 = vld [vmem:[%s7509 + $0x58] sm:$0xff]
        %v7522 = vld [vmem:[%s7509 + $0x60] sm:$0xff]
        %v7523 = vld [vmem:[%s7509 + $0x68] sm:$0xff]
        %v7524 = vld [vmem:[%s7509 + $0x70] sm:$0xff]
        %v7525 = vld [vmem:[%s7509 + $0x78] sm:$0xff]
        %v7526 = vld [vmem:[%s7509 + $0x80] sm:$0xff]
        %v7527 = vld [vmem:[%s7509 + $0x88] sm:$0xff]
        %v7528 = vld [vmem:[%s7509 + $0x90] sm:$0xff]
        %v7529 = vld [vmem:[%s7509 + $0x98] sm:$0xff]
        %v7530 = vld [vmem:[%s7509 + $0xa0] sm:$0xff]
        %v7531 = vld [vmem:[%s7509 + $0xa8] sm:$0xff]
        %v7532 = vld [vmem:[%s7509 + $0xb0] sm:$0xff]
        %v7533 = vld [vmem:[%s7509 + $0xb8] sm:$0xff]
        %v7534 = vld [vmem:[%s7509 + $0xc0] sm:$0xff]
        %v7535 = vld [vmem:[%s7509 + $0xc8] sm:$0xff]
        %v7536 = vld [vmem:[%s7509 + $0xd0] sm:$0xff]
        %v7537 = vld [vmem:[%s7509 + $0xd8] sm:$0xff]
        %v7538 = vld [vmem:[%s7509 + $0xe0] sm:$0xff]
        %v7539 = vld [vmem:[%s7509 + $0xe8] sm:$0xff]
        %v7540 = vld [vmem:[%s7509 + $0xf0] sm:$0xff]
        %v7541 = vld [vmem:[%s7509 + $0xf8] sm:$0xff]
        %v7542 = vld [vmem:[%s7509 + $0x100] sm:$0xff]
        %v7543 = vld [vmem:[%s7509 + $0x108] sm:$0xff]
        %v7544 = vld [vmem:[%s7509 + $0x110] sm:$0xff]
        %v7545 = vld [vmem:[%s7509 + $0x118] sm:$0xff]
        %v7546 = vld [vmem:[%s7509 + $0x120] sm:$0xff]
        %v7547 = vld [vmem:[%s7509 + $0x128] sm:$0xff]
        %v7548 = vld [vmem:[%s7509 + $0x130] sm:$0xff]
        %v7549 = vld [vmem:[%s7509 + $0x138] sm:$0xff]
        %v7550 = vld [vmem:[%s7509 + $0x140] sm:$0xff]
        %v7551 = vld [vmem:[%s7509 + $0x148] sm:$0xff]
        %v7552 = vld [vmem:[%s7509 + $0x150] sm:$0xff]
        %v7553 = vld [vmem:[%s7509 + $0x158] sm:$0xff]
        %v7554 = vld [vmem:[%s7509 + $0x160] sm:$0xff]
        %v7555 = vld [vmem:[%s7509 + $0x168] sm:$0xff]
        %v7556 = vld [vmem:[%s7509 + $0x170] sm:$0xff]
        %v7557 = vld [vmem:[%s7509 + $0x178] sm:$0xff]
        %v7558 = vld [vmem:[%s7509 + $0x180] sm:$0xff]
        %v7559 = vld [vmem:[%s7509 + $0x188] sm:$0xff]
        %v7560 = vld [vmem:[%s7509 + $0x190] sm:$0xff]
        %v7561 = vld [vmem:[%s7509 + $0x198] sm:$0xff]
        %v7562 = vld [vmem:[%s7509 + $0x1a0] sm:$0xff]
        %v7563 = vld [vmem:[%s7509 + $0x1a8] sm:$0xff]
        %v7564 = vld [vmem:[%s7509 + $0x1b0] sm:$0xff]
        %v7565 = vld [vmem:[%s7509 + $0x1b8] sm:$0xff]
        %v7566 = vld [vmem:[%s7509 + $0x1c0] sm:$0xff]
        %v7567 = vld [vmem:[%s7509 + $0x1c8] sm:$0xff]
        %v7568 = vld [vmem:[%s7509 + $0x1d0] sm:$0xff]
        %v7569 = vld [vmem:[%s7509 + $0x1d8] sm:$0xff]
        %v7570 = vld [vmem:[%s7509 + $0x1e0] sm:$0xff]
        %v7571 = vld [vmem:[%s7509 + $0x1e8] sm:$0xff]
        %v7572 = vld [vmem:[%s7509 + $0x1f0] sm:$0xff]
        %v7573 = vld [vmem:[%s7509 + $0x1f8] sm:$0xff]
        %v7574 = vld [vmem:[%s7509 + $0x200] sm:$0xff]
        %v7575 = vld [vmem:[%s7509 + $0x208] sm:$0xff]
        %v7576 = vld [vmem:[%s7509 + $0x210] sm:$0xff]
        %v7577 = vld [vmem:[%s7509 + $0x218] sm:$0xff]
        %v7578 = vld [vmem:[%s7509 + $0x220] sm:$0xff]
        %v7579 = vld [vmem:[%s7509 + $0x228] sm:$0xff]
        %v7580 = vld [vmem:[%s7509 + $0x230] sm:$0xff]
        %v7581 = vld [vmem:[%s7509 + $0x238] sm:$0xff]
        %v7582 = vld [vmem:[%s7509 + $0x240] sm:$0xff]
        %v7583 = vld [vmem:[%s7509 + $0x248] sm:$0xff]
        %v7584 = vld [vmem:[%s7509 + $0x250] sm:$0xff]
        %v7585 = vld [vmem:[%s7509 + $0x258] sm:$0xff]
        %v7586 = vld [vmem:[%s7509 + $0x260] sm:$0xff]
        %v7587 = vld [vmem:[%s7509 + $0x268] sm:$0xff]
        %v7588 = vld [vmem:[%s7509 + $0x270] sm:$0xff]
        %v7589 = vld [vmem:[%s7509 + $0x278] sm:$0xff]
        %v7590 = vld [vmem:[%s7509 + $0x280] sm:$0xff]
        %v7591 = vld [vmem:[%s7509 + $0x288] sm:$0xff]
        %v7592 = vld [vmem:[%s7509 + $0x290] sm:$0xff]
        %v7593 = vld [vmem:[%s7509 + $0x298] sm:$0xff]
        %v7594 = vld [vmem:[%s7509 + $0x2a0] sm:$0xff]
        %v7595 = vld [vmem:[%s7509 + $0x2a8] sm:$0xff]
        %v7596 = vld [vmem:[%s7509 + $0x2b0] sm:$0xff]
        %v7597 = vld [vmem:[%s7509 + $0x2b8] sm:$0xff]
        %v7598 = vld [vmem:[%s7509 + $0x2c0] sm:$0xff]
        %v7599 = vld [vmem:[%s7509 + $0x2c8] sm:$0xff]
        %v7600 = vld [vmem:[%s7509 + $0x2d0] sm:$0xff]
        %v7601 = vld [vmem:[%s7509 + $0x2d8] sm:$0xff]
        %v7602 = vld [vmem:[%s7509 + $0x2e0] sm:$0xff]
        %v7603 = vld [vmem:[%s7509 + $0x2e8] sm:$0xff]
        %v7604 = vld [vmem:[%s7509 + $0x2f0] sm:$0xff]
        %v7605 = vld [vmem:[%s7509 + $0x2f8] sm:$0xff]
        %v7606 = vld [vmem:[%s7509 + $0x300] sm:$0xff]
        %v7607 = vld [vmem:[%s7509 + $0x308] sm:$0xff]
        %v7608 = vld [vmem:[%s7509 + $0x310] sm:$0xff]
        %v7609 = vld [vmem:[%s7509 + $0x318] sm:$0xff]
        %v7610 = vld [vmem:[%s7509 + $0x320] sm:$0xff]
        %v7611 = vld [vmem:[%s7509 + $0x328] sm:$0xff]
        %v7612 = vld [vmem:[%s7509 + $0x330] sm:$0xff]
        %v7613 = vld [vmem:[%s7509 + $0x338] sm:$0xff]
        %v7614 = vld [vmem:[%s7509 + $0x340] sm:$0xff]
        %v7615 = vld [vmem:[%s7509 + $0x348] sm:$0xff]
        %v7616 = vld [vmem:[%s7509 + $0x350] sm:$0xff]
        %v7617 = vld [vmem:[%s7509 + $0x358] sm:$0xff]
        %v7618 = vld [vmem:[%s7509 + $0x360] sm:$0xff]
        %v7619 = vld [vmem:[%s7509 + $0x368] sm:$0xff]
        %v7620 = vld [vmem:[%s7509 + $0x370] sm:$0xff]
        %v7621 = vld [vmem:[%s7509 + $0x378] sm:$0xff]
        %v7622 = vld [vmem:[%s7509 + $0x380] sm:$0xff]
        %v7623 = vld [vmem:[%s7509 + $0x388] sm:$0xff]
        %v7624 = vld [vmem:[%s7509 + $0x390] sm:$0xff]
        %v7625 = vld [vmem:[%s7509 + $0x398] sm:$0xff]
        %v7626 = vld [vmem:[%s7509 + $0x3a0] sm:$0xff]
        %v7627 = vld [vmem:[%s7509 + $0x3a8] sm:$0xff]
        %v7628 = vld [vmem:[%s7509 + $0x3b0] sm:$0xff]
        %v7629 = vld [vmem:[%s7509 + $0x3b8] sm:$0xff]
        %v7630 = vld [vmem:[%s7509 + $0x3c0] sm:$0xff]
        %v7631 = vld [vmem:[%s7509 + $0x3c8] sm:$0xff]
        %v7632 = vld [vmem:[%s7509 + $0x3d0] sm:$0xff]
        %v7633 = vld [vmem:[%s7509 + $0x3d8] sm:$0xff]
        %v7634 = vld [vmem:[%s7509 + $0x3e0] sm:$0xff]
        %v7635 = vld [vmem:[%s7509 + $0x3e8] sm:$0xff]
        %v7636 = vld [vmem:[%s7509 + $0x3f0] sm:$0xff]
        %v7637 = vld [vmem:[%s7509 + $0x3f8] sm:$0xff]
        %v7638 = vld [vmem:[%s7509 + $0x400] sm:$0xff]
        %v7639 = vld [vmem:[%s7509 + $0x408] sm:$0xff]
        %v7640 = vld [vmem:[%s7509 + $0x410] sm:$0xff]
        %v7641 = vld [vmem:[%s7509 + $0x418] sm:$0xff]
        %v7642 = vld [vmem:[%s7509 + $0x420] sm:$0xff]
        %v7643 = vld [vmem:[%s7509 + $0x428] sm:$0xff]
        %v7644 = vld [vmem:[%s7509 + $0x430] sm:$0xff]
        %v7645 = vld [vmem:[%s7509 + $0x438] sm:$0xff]
        %v7646 = vld [vmem:[%s7509 + $0x440] sm:$0xff]
        %v7647 = vld [vmem:[%s7509 + $0x448] sm:$0xff]
        %v7648 = vld [vmem:[%s7509 + $0x450] sm:$0xff]
        %v7649 = vld [vmem:[%s7509 + $0x458] sm:$0xff]
        %v7650 = vld [vmem:[%s7509 + $0x460] sm:$0xff]
        %v7651 = vld [vmem:[%s7509 + $0x468] sm:$0xff]
        %v7652 = vld [vmem:[%s7509 + $0x470] sm:$0xff]
        %v7653 = vld [vmem:[%s7509 + $0x478] sm:$0xff]
        %s7654 = scalar_lea.vmem [#allocation9], 3
        %v7655 = vld [vmem:[%s7654] sm:$0x1]
        %v7657 = vperm.slane %v7655, 0
        %7659 = vmatpush.msra.mxu0 %v7525
        %7660 = vmatpush.msra.mxu0 %v7524
        %7661 = vmatpush.msra.mxu0 %v7523
        %7662 = vmatpush.msra.mxu0 %v7522
        %7663 = vmatpush.msra.mxu0 %v7521
        %7664 = vmatpush.msra.mxu0 %v7520
        %7665 = vmatpush.msra.mxu0 %v7519
        %7666 = vmatpush.msra.mxu0 %v7518
        %7667 = vmatpush.msra.mxu0 %v7517
        %7668 = vmatpush.msra.mxu0 %v7516
        %7669 = vmatpush.msra.mxu0 %v7515
        %7670 = vmatpush.msra.mxu0 %v7514
        %7671 = vmatpush.msra.mxu0 %v7513
        %7672 = vmatpush.msra.mxu0 %v7512
        %7673 = vmatpush.msra.mxu0 %v7511
        %7674 = vmatpush.msra.mxu0 %v7510
        %7675 = vmatmul.f32.gmra.mxu0 %v7221
        %v7676 = vpop.f32.mrf.mxu0
        %v7677 = vadd.f32 %v7657, %v7676
        %7678 = vmatmul.f32.gmra.mxu0 %v7230
        %v7679 = vpop.f32.mrf.mxu0
        %v7680 = vadd.f32 %v7657, %v7679
        %7681 = vmatmul.f32.gmra.mxu0 %v7239
        %v7682 = vpop.f32.mrf.mxu0
        %v7683 = vadd.f32 %v7657, %v7682
        %7684 = vmatmul.f32.gmra.mxu0 %v7248
        %v7685 = vpop.f32.mrf.mxu0
        %v7686 = vadd.f32 %v7657, %v7685
        %7687 = vmatmul.f32.gmra.mxu0 %v7257
        %v7688 = vpop.f32.mrf.mxu0
        %v7689 = vadd.f32 %v7657, %v7688
        %7690 = vmatmul.f32.gmra.mxu0 %v7266
        %v7691 = vpop.f32.mrf.mxu0
        %v7692 = vadd.f32 %v7657, %v7691
        %7693 = vmatmul.f32.gmra.mxu0 %v7275
        %v7694 = vpop.f32.mrf.mxu0
        %v7695 = vadd.f32 %v7657, %v7694
        %7696 = vmatmul.f32.gmra.mxu0 %v7284
        %v7697 = vpop.f32.mrf.mxu0
        %v7698 = vadd.f32 %v7657, %v7697
        %7699 = vmatmul.f32.gmra.mxu0 %v7293
        %v7700 = vpop.f32.mrf.mxu0
        %v7701 = vadd.f32 %v7657, %v7700
        %7702 = vmatmul.f32.gmra.mxu0 %v7302
        %v7703 = vpop.f32.mrf.mxu0
        %v7704 = vadd.f32 %v7657, %v7703
        %7705 = vmatmul.f32.gmra.mxu0 %v7311
        %v7706 = vpop.f32.mrf.mxu0
        %v7707 = vadd.f32 %v7657, %v7706
        %7708 = vmatmul.f32.gmra.mxu0 %v7320
        %v7709 = vpop.f32.mrf.mxu0
        %v7710 = vadd.f32 %v7657, %v7709
        %7711 = vmatmul.f32.gmra.mxu0 %v7329
        %v7712 = vpop.f32.mrf.mxu0
        %v7713 = vadd.f32 %v7657, %v7712
        %7714 = vmatmul.f32.gmra.mxu0 %v7338
        %v7715 = vpop.f32.mrf.mxu0
        %v7716 = vadd.f32 %v7657, %v7715
        %7717 = vmatmul.f32.gmra.mxu0 %v7347
        %v7718 = vpop.f32.mrf.mxu0
        %v7719 = vadd.f32 %v7657, %v7718
        %7720 = vmatmul.f32.gmra.mxu0 %v7356
        %v7721 = vpop.f32.mrf.mxu0
        %v7722 = vadd.f32 %v7657, %v7721
        %7723 = vmatmul.f32.gmra.mxu0 %v7365
        %v7724 = vpop.f32.mrf.mxu0
        %v7725 = vadd.f32 %v7657, %v7724
        %7726 = vmatmul.f32.gmra.mxu0 %v7374
        %v7727 = vpop.f32.mrf.mxu0
        %v7728 = vadd.f32 %v7657, %v7727
        %7729 = vmatmul.f32.gmra.mxu0 %v7383
        %v7730 = vpop.f32.mrf.mxu0
        %v7731 = vadd.f32 %v7657, %v7730
        %7732 = vmatmul.f32.gmra.mxu0 %v7392
        %v7733 = vpop.f32.mrf.mxu0
        %v7734 = vadd.f32 %v7657, %v7733
        %7735 = vmatmul.f32.gmra.mxu0 %v7401
        %v7736 = vpop.f32.mrf.mxu0
        %v7737 = vadd.f32 %v7657, %v7736
        %7738 = vmatmul.f32.gmra.mxu0 %v7410
        %v7739 = vpop.f32.mrf.mxu0
        %v7740 = vadd.f32 %v7657, %v7739
        %7741 = vmatmul.f32.gmra.mxu0 %v7419
        %v7742 = vpop.f32.mrf.mxu0
        %v7743 = vadd.f32 %v7657, %v7742
        %7744 = vmatmul.f32.gmra.mxu0 %v7428
        %v7745 = vpop.f32.mrf.mxu0
        %v7746 = vadd.f32 %v7657, %v7745
        %7747 = vmatmul.f32.gmra.mxu0 %v7437
        %v7748 = vpop.f32.mrf.mxu0
        %v7749 = vadd.f32 %v7657, %v7748
        %7750 = vmatmul.f32.gmra.mxu0 %v7446
        %v7751 = vpop.f32.mrf.mxu0
        %v7752 = vadd.f32 %v7657, %v7751
        %7753 = vmatmul.f32.gmra.mxu0 %v7455
        %v7754 = vpop.f32.mrf.mxu0
        %v7755 = vadd.f32 %v7657, %v7754
        %7756 = vmatmul.f32.gmra.mxu0 %v7464
        %v7757 = vpop.f32.mrf.mxu0
        %v7758 = vadd.f32 %v7657, %v7757
        %7759 = vmatmul.f32.gmra.mxu0 %v7473
        %v7760 = vpop.f32.mrf.mxu0
        %v7761 = vadd.f32 %v7657, %v7760
        %7762 = vmatmul.f32.gmra.mxu0 %v7482
        %v7763 = vpop.f32.mrf.mxu0
        %v7764 = vadd.f32 %v7657, %v7763
        %7765 = vmatmul.f32.gmra.mxu0 %v7491
        %v7766 = vpop.f32.mrf.mxu0
        %v7767 = vadd.f32 %v7657, %v7766
        %7768 = vmatmul.f32.gmra.mxu0 %v7500
        %v7769 = vpop.f32.mrf.mxu0
        %v7770 = vadd.f32 %v7657, %v7769
        %7771 = vdwg.mxu0
        %7772 = vmatpush.msra.mxu0 %v7541
        %7773 = vmatpush.msra.mxu0 %v7540
        %7774 = vmatpush.msra.mxu0 %v7539
        %7775 = vmatpush.msra.mxu0 %v7538
        %7776 = vmatpush.msra.mxu0 %v7537
        %7777 = vmatpush.msra.mxu0 %v7536
        %7778 = vmatpush.msra.mxu0 %v7535
        %7779 = vmatpush.msra.mxu0 %v7534
        %7780 = vmatpush.msra.mxu0 %v7533
        %7781 = vmatpush.msra.mxu0 %v7532
        %7782 = vmatpush.msra.mxu0 %v7531
        %7783 = vmatpush.msra.mxu0 %v7530
        %7784 = vmatpush.msra.mxu0 %v7529
        %7785 = vmatpush.msra.mxu0 %v7528
        %7786 = vmatpush.msra.mxu0 %v7527
        %7787 = vmatpush.msra.mxu0 %v7526
        %7788 = vmatmul.f32.gmra.mxu0 %v7222
        %v7789 = vpop.f32.mrf.mxu0
        %v7790 = vadd.f32 %v7677, %v7789
        %7791 = vmatmul.f32.gmra.mxu0 %v7231
        %v7792 = vpop.f32.mrf.mxu0
        %v7793 = vadd.f32 %v7680, %v7792
        %7794 = vmatmul.f32.gmra.mxu0 %v7240
        %v7795 = vpop.f32.mrf.mxu0
        %v7796 = vadd.f32 %v7683, %v7795
        %7797 = vmatmul.f32.gmra.mxu0 %v7249
        %v7798 = vpop.f32.mrf.mxu0
        %v7799 = vadd.f32 %v7686, %v7798
        %7800 = vmatmul.f32.gmra.mxu0 %v7258
        %v7801 = vpop.f32.mrf.mxu0
        %v7802 = vadd.f32 %v7689, %v7801
        %7803 = vmatmul.f32.gmra.mxu0 %v7267
        %v7804 = vpop.f32.mrf.mxu0
        %v7805 = vadd.f32 %v7692, %v7804
        %7806 = vmatmul.f32.gmra.mxu0 %v7276
        %v7807 = vpop.f32.mrf.mxu0
        %v7808 = vadd.f32 %v7695, %v7807
        %7809 = vmatmul.f32.gmra.mxu0 %v7285
        %v7810 = vpop.f32.mrf.mxu0
        %v7811 = vadd.f32 %v7698, %v7810
        %7812 = vmatmul.f32.gmra.mxu0 %v7294
        %v7813 = vpop.f32.mrf.mxu0
        %v7814 = vadd.f32 %v7701, %v7813
        %7815 = vmatmul.f32.gmra.mxu0 %v7303
        %v7816 = vpop.f32.mrf.mxu0
        %v7817 = vadd.f32 %v7704, %v7816
        %7818 = vmatmul.f32.gmra.mxu0 %v7312
        %v7819 = vpop.f32.mrf.mxu0
        %v7820 = vadd.f32 %v7707, %v7819
        %7821 = vmatmul.f32.gmra.mxu0 %v7321
        %v7822 = vpop.f32.mrf.mxu0
        %v7823 = vadd.f32 %v7710, %v7822
        %7824 = vmatmul.f32.gmra.mxu0 %v7330
        %v7825 = vpop.f32.mrf.mxu0
        %v7826 = vadd.f32 %v7713, %v7825
        %7827 = vmatmul.f32.gmra.mxu0 %v7339
        %v7828 = vpop.f32.mrf.mxu0
        %v7829 = vadd.f32 %v7716, %v7828
        %7830 = vmatmul.f32.gmra.mxu0 %v7348
        %v7831 = vpop.f32.mrf.mxu0
        %v7832 = vadd.f32 %v7719, %v7831
        %7833 = vmatmul.f32.gmra.mxu0 %v7357
        %v7834 = vpop.f32.mrf.mxu0
        %v7835 = vadd.f32 %v7722, %v7834
        %7836 = vmatmul.f32.gmra.mxu0 %v7366
        %v7837 = vpop.f32.mrf.mxu0
        %v7838 = vadd.f32 %v7725, %v7837
        %7839 = vmatmul.f32.gmra.mxu0 %v7375
        %v7840 = vpop.f32.mrf.mxu0
        %v7841 = vadd.f32 %v7728, %v7840
        %7842 = vmatmul.f32.gmra.mxu0 %v7384
        %v7843 = vpop.f32.mrf.mxu0
        %v7844 = vadd.f32 %v7731, %v7843
        %7845 = vmatmul.f32.gmra.mxu0 %v7393
        %v7846 = vpop.f32.mrf.mxu0
        %v7847 = vadd.f32 %v7734, %v7846
        %7848 = vmatmul.f32.gmra.mxu0 %v7402
        %v7849 = vpop.f32.mrf.mxu0
        %v7850 = vadd.f32 %v7737, %v7849
        %7851 = vmatmul.f32.gmra.mxu0 %v7411
        %v7852 = vpop.f32.mrf.mxu0
        %v7853 = vadd.f32 %v7740, %v7852
        %7854 = vmatmul.f32.gmra.mxu0 %v7420
        %v7855 = vpop.f32.mrf.mxu0
        %v7856 = vadd.f32 %v7743, %v7855
        %7857 = vmatmul.f32.gmra.mxu0 %v7429
        %v7858 = vpop.f32.mrf.mxu0
        %v7859 = vadd.f32 %v7746, %v7858
        %7860 = vmatmul.f32.gmra.mxu0 %v7438
        %v7861 = vpop.f32.mrf.mxu0
        %v7862 = vadd.f32 %v7749, %v7861
        %7863 = vmatmul.f32.gmra.mxu0 %v7447
        %v7864 = vpop.f32.mrf.mxu0
        %v7865 = vadd.f32 %v7752, %v7864
        %7866 = vmatmul.f32.gmra.mxu0 %v7456
        %v7867 = vpop.f32.mrf.mxu0
        %v7868 = vadd.f32 %v7755, %v7867
        %7869 = vmatmul.f32.gmra.mxu0 %v7465
        %v7870 = vpop.f32.mrf.mxu0
        %v7871 = vadd.f32 %v7758, %v7870
        %7872 = vmatmul.f32.gmra.mxu0 %v7474
        %v7873 = vpop.f32.mrf.mxu0
        %v7874 = vadd.f32 %v7761, %v7873
        %7875 = vmatmul.f32.gmra.mxu0 %v7483
        %v7876 = vpop.f32.mrf.mxu0
        %v7877 = vadd.f32 %v7764, %v7876
        %7878 = vmatmul.f32.gmra.mxu0 %v7492
        %v7879 = vpop.f32.mrf.mxu0
        %v7880 = vadd.f32 %v7767, %v7879
        %7881 = vmatmul.f32.gmra.mxu0 %v7501
        %v7882 = vpop.f32.mrf.mxu0
        %v7883 = vadd.f32 %v7770, %v7882
        %7884 = vdwg.mxu0
        %7885 = vmatpush.msra.mxu0 %v7557
        %7886 = vmatpush.msra.mxu0 %v7556
        %7887 = vmatpush.msra.mxu0 %v7555
        %7888 = vmatpush.msra.mxu0 %v7554
        %7889 = vmatpush.msra.mxu0 %v7553
        %7890 = vmatpush.msra.mxu0 %v7552
        %7891 = vmatpush.msra.mxu0 %v7551
        %7892 = vmatpush.msra.mxu0 %v7550
        %7893 = vmatpush.msra.mxu0 %v7549
        %7894 = vmatpush.msra.mxu0 %v7548
        %7895 = vmatpush.msra.mxu0 %v7547
        %7896 = vmatpush.msra.mxu0 %v7546
        %7897 = vmatpush.msra.mxu0 %v7545
        %7898 = vmatpush.msra.mxu0 %v7544
        %7899 = vmatpush.msra.mxu0 %v7543
        %7900 = vmatpush.msra.mxu0 %v7542
        %7901 = vmatmul.f32.gmra.mxu0 %v7223
        %v7902 = vpop.f32.mrf.mxu0
        %v7903 = vadd.f32 %v7790, %v7902
        %7904 = vmatmul.f32.gmra.mxu0 %v7232
        %v7905 = vpop.f32.mrf.mxu0
        %v7906 = vadd.f32 %v7793, %v7905
        %7907 = vmatmul.f32.gmra.mxu0 %v7241
        %v7908 = vpop.f32.mrf.mxu0
        %v7909 = vadd.f32 %v7796, %v7908
        %7910 = vmatmul.f32.gmra.mxu0 %v7250
        %v7911 = vpop.f32.mrf.mxu0
        %v7912 = vadd.f32 %v7799, %v7911
        %7913 = vmatmul.f32.gmra.mxu0 %v7259
        %v7914 = vpop.f32.mrf.mxu0
        %v7915 = vadd.f32 %v7802, %v7914
        %7916 = vmatmul.f32.gmra.mxu0 %v7268
        %v7917 = vpop.f32.mrf.mxu0
        %v7918 = vadd.f32 %v7805, %v7917
        %7919 = vmatmul.f32.gmra.mxu0 %v7277
        %v7920 = vpop.f32.mrf.mxu0
        %v7921 = vadd.f32 %v7808, %v7920
        %7922 = vmatmul.f32.gmra.mxu0 %v7286
        %v7923 = vpop.f32.mrf.mxu0
        %v7924 = vadd.f32 %v7811, %v7923
        %7925 = vmatmul.f32.gmra.mxu0 %v7295
        %v7926 = vpop.f32.mrf.mxu0
        %v7927 = vadd.f32 %v7814, %v7926
        %7928 = vmatmul.f32.gmra.mxu0 %v7304
        %v7929 = vpop.f32.mrf.mxu0
        %v7930 = vadd.f32 %v7817, %v7929
        %7931 = vmatmul.f32.gmra.mxu0 %v7313
        %v7932 = vpop.f32.mrf.mxu0
        %v7933 = vadd.f32 %v7820, %v7932
        %7934 = vmatmul.f32.gmra.mxu0 %v7322
        %v7935 = vpop.f32.mrf.mxu0
        %v7936 = vadd.f32 %v7823, %v7935
        %7937 = vmatmul.f32.gmra.mxu0 %v7331
        %v7938 = vpop.f32.mrf.mxu0
        %v7939 = vadd.f32 %v7826, %v7938
        %7940 = vmatmul.f32.gmra.mxu0 %v7340
        %v7941 = vpop.f32.mrf.mxu0
        %v7942 = vadd.f32 %v7829, %v7941
        %7943 = vmatmul.f32.gmra.mxu0 %v7349
        %v7944 = vpop.f32.mrf.mxu0
        %v7945 = vadd.f32 %v7832, %v7944
        %7946 = vmatmul.f32.gmra.mxu0 %v7358
        %v7947 = vpop.f32.mrf.mxu0
        %v7948 = vadd.f32 %v7835, %v7947
        %7949 = vmatmul.f32.gmra.mxu0 %v7367
        %v7950 = vpop.f32.mrf.mxu0
        %v7951 = vadd.f32 %v7838, %v7950
        %7952 = vmatmul.f32.gmra.mxu0 %v7376
        %v7953 = vpop.f32.mrf.mxu0
        %v7954 = vadd.f32 %v7841, %v7953
        %7955 = vmatmul.f32.gmra.mxu0 %v7385
        %v7956 = vpop.f32.mrf.mxu0
        %v7957 = vadd.f32 %v7844, %v7956
        %7958 = vmatmul.f32.gmra.mxu0 %v7394
        %v7959 = vpop.f32.mrf.mxu0
        %v7960 = vadd.f32 %v7847, %v7959
        %7961 = vmatmul.f32.gmra.mxu0 %v7403
        %v7962 = vpop.f32.mrf.mxu0
        %v7963 = vadd.f32 %v7850, %v7962
        %7964 = vmatmul.f32.gmra.mxu0 %v7412
        %v7965 = vpop.f32.mrf.mxu0
        %v7966 = vadd.f32 %v7853, %v7965
        %7967 = vmatmul.f32.gmra.mxu0 %v7421
        %v7968 = vpop.f32.mrf.mxu0
        %v7969 = vadd.f32 %v7856, %v7968
        %7970 = vmatmul.f32.gmra.mxu0 %v7430
        %v7971 = vpop.f32.mrf.mxu0
        %v7972 = vadd.f32 %v7859, %v7971
        %7973 = vmatmul.f32.gmra.mxu0 %v7439
        %v7974 = vpop.f32.mrf.mxu0
        %v7975 = vadd.f32 %v7862, %v7974
        %7976 = vmatmul.f32.gmra.mxu0 %v7448
        %v7977 = vpop.f32.mrf.mxu0
        %v7978 = vadd.f32 %v7865, %v7977
        %7979 = vmatmul.f32.gmra.mxu0 %v7457
        %v7980 = vpop.f32.mrf.mxu0
        %v7981 = vadd.f32 %v7868, %v7980
        %7982 = vmatmul.f32.gmra.mxu0 %v7466
        %v7983 = vpop.f32.mrf.mxu0
        %v7984 = vadd.f32 %v7871, %v7983
        %7985 = vmatmul.f32.gmra.mxu0 %v7475
        %v7986 = vpop.f32.mrf.mxu0
        %v7987 = vadd.f32 %v7874, %v7986
        %7988 = vmatmul.f32.gmra.mxu0 %v7484
        %v7989 = vpop.f32.mrf.mxu0
        %v7990 = vadd.f32 %v7877, %v7989
        %7991 = vmatmul.f32.gmra.mxu0 %v7493
        %v7992 = vpop.f32.mrf.mxu0
        %v7993 = vadd.f32 %v7880, %v7992
        %7994 = vmatmul.f32.gmra.mxu0 %v7502
        %v7995 = vpop.f32.mrf.mxu0
        %v7996 = vadd.f32 %v7883, %v7995
        %7997 = vdwg.mxu0
        %7998 = vmatpush.msra.mxu0 %v7573
        %7999 = vmatpush.msra.mxu0 %v7572
        %8000 = vmatpush.msra.mxu0 %v7571
        %8001 = vmatpush.msra.mxu0 %v7570
        %8002 = vmatpush.msra.mxu0 %v7569
        %8003 = vmatpush.msra.mxu0 %v7568
        %8004 = vmatpush.msra.mxu0 %v7567
        %8005 = vmatpush.msra.mxu0 %v7566
        %8006 = vmatpush.msra.mxu0 %v7565
        %8007 = vmatpush.msra.mxu0 %v7564
        %8008 = vmatpush.msra.mxu0 %v7563
        %8009 = vmatpush.msra.mxu0 %v7562
        %8010 = vmatpush.msra.mxu0 %v7561
        %8011 = vmatpush.msra.mxu0 %v7560
        %8012 = vmatpush.msra.mxu0 %v7559
        %8013 = vmatpush.msra.mxu0 %v7558
        %8014 = vmatmul.f32.gmra.mxu0 %v7224
        %v8015 = vpop.f32.mrf.mxu0
        %v8016 = vadd.f32 %v7903, %v8015
        %8017 = vmatmul.f32.gmra.mxu0 %v7233
        %v8018 = vpop.f32.mrf.mxu0
        %v8019 = vadd.f32 %v7906, %v8018
        %8020 = vmatmul.f32.gmra.mxu0 %v7242
        %v8021 = vpop.f32.mrf.mxu0
        %v8022 = vadd.f32 %v7909, %v8021
        %8023 = vmatmul.f32.gmra.mxu0 %v7251
        %v8024 = vpop.f32.mrf.mxu0
        %v8025 = vadd.f32 %v7912, %v8024
        %8026 = vmatmul.f32.gmra.mxu0 %v7260
        %v8027 = vpop.f32.mrf.mxu0
        %v8028 = vadd.f32 %v7915, %v8027
        %8029 = vmatmul.f32.gmra.mxu0 %v7269
        %v8030 = vpop.f32.mrf.mxu0
        %v8031 = vadd.f32 %v7918, %v8030
        %8032 = vmatmul.f32.gmra.mxu0 %v7278
        %v8033 = vpop.f32.mrf.mxu0
        %v8034 = vadd.f32 %v7921, %v8033
        %8035 = vmatmul.f32.gmra.mxu0 %v7287
        %v8036 = vpop.f32.mrf.mxu0
        %v8037 = vadd.f32 %v7924, %v8036
        %8038 = vmatmul.f32.gmra.mxu0 %v7296
        %v8039 = vpop.f32.mrf.mxu0
        %v8040 = vadd.f32 %v7927, %v8039
        %8041 = vmatmul.f32.gmra.mxu0 %v7305
        %v8042 = vpop.f32.mrf.mxu0
        %v8043 = vadd.f32 %v7930, %v8042
        %8044 = vmatmul.f32.gmra.mxu0 %v7314
        %v8045 = vpop.f32.mrf.mxu0
        %v8046 = vadd.f32 %v7933, %v8045
        %8047 = vmatmul.f32.gmra.mxu0 %v7323
        %v8048 = vpop.f32.mrf.mxu0
        %v8049 = vadd.f32 %v7936, %v8048
        %8050 = vmatmul.f32.gmra.mxu0 %v7332
        %v8051 = vpop.f32.mrf.mxu0
        %v8052 = vadd.f32 %v7939, %v8051
        %8053 = vmatmul.f32.gmra.mxu0 %v7341
        %v8054 = vpop.f32.mrf.mxu0
        %v8055 = vadd.f32 %v7942, %v8054
        %8056 = vmatmul.f32.gmra.mxu0 %v7350
        %v8057 = vpop.f32.mrf.mxu0
        %v8058 = vadd.f32 %v7945, %v8057
        %8059 = vmatmul.f32.gmra.mxu0 %v7359
        %v8060 = vpop.f32.mrf.mxu0
        %v8061 = vadd.f32 %v7948, %v8060
        %8062 = vmatmul.f32.gmra.mxu0 %v7368
        %v8063 = vpop.f32.mrf.mxu0
        %v8064 = vadd.f32 %v7951, %v8063
        %8065 = vmatmul.f32.gmra.mxu0 %v7377
        %v8066 = vpop.f32.mrf.mxu0
        %v8067 = vadd.f32 %v7954, %v8066
        %8068 = vmatmul.f32.gmra.mxu0 %v7386
        %v8069 = vpop.f32.mrf.mxu0
        %v8070 = vadd.f32 %v7957, %v8069
        %8071 = vmatmul.f32.gmra.mxu0 %v7395
        %v8072 = vpop.f32.mrf.mxu0
        %v8073 = vadd.f32 %v7960, %v8072
        %8074 = vmatmul.f32.gmra.mxu0 %v7404
        %v8075 = vpop.f32.mrf.mxu0
        %v8076 = vadd.f32 %v7963, %v8075
        %8077 = vmatmul.f32.gmra.mxu0 %v7413
        %v8078 = vpop.f32.mrf.mxu0
        %v8079 = vadd.f32 %v7966, %v8078
        %8080 = vmatmul.f32.gmra.mxu0 %v7422
        %v8081 = vpop.f32.mrf.mxu0
        %v8082 = vadd.f32 %v7969, %v8081
        %8083 = vmatmul.f32.gmra.mxu0 %v7431
        %v8084 = vpop.f32.mrf.mxu0
        %v8085 = vadd.f32 %v7972, %v8084
        %8086 = vmatmul.f32.gmra.mxu0 %v7440
        %v8087 = vpop.f32.mrf.mxu0
        %v8088 = vadd.f32 %v7975, %v8087
        %8089 = vmatmul.f32.gmra.mxu0 %v7449
        %v8090 = vpop.f32.mrf.mxu0
        %v8091 = vadd.f32 %v7978, %v8090
        %8092 = vmatmul.f32.gmra.mxu0 %v7458
        %v8093 = vpop.f32.mrf.mxu0
        %v8094 = vadd.f32 %v7981, %v8093
        %8095 = vmatmul.f32.gmra.mxu0 %v7467
        %v8096 = vpop.f32.mrf.mxu0
        %v8097 = vadd.f32 %v7984, %v8096
        %8098 = vmatmul.f32.gmra.mxu0 %v7476
        %v8099 = vpop.f32.mrf.mxu0
        %v8100 = vadd.f32 %v7987, %v8099
        %8101 = vmatmul.f32.gmra.mxu0 %v7485
        %v8102 = vpop.f32.mrf.mxu0
        %v8103 = vadd.f32 %v7990, %v8102
        %8104 = vmatmul.f32.gmra.mxu0 %v7494
        %v8105 = vpop.f32.mrf.mxu0
        %v8106 = vadd.f32 %v7993, %v8105
        %8107 = vmatmul.f32.gmra.mxu0 %v7503
        %v8108 = vpop.f32.mrf.mxu0
        %v8109 = vadd.f32 %v7996, %v8108
        %8110 = vdwg.mxu0
        %8111 = vmatpush.msra.mxu0 %v7589
        %8112 = vmatpush.msra.mxu0 %v7588
        %8113 = vmatpush.msra.mxu0 %v7587
        %8114 = vmatpush.msra.mxu0 %v7586
        %8115 = vmatpush.msra.mxu0 %v7585
        %8116 = vmatpush.msra.mxu0 %v7584
        %8117 = vmatpush.msra.mxu0 %v7583
        %8118 = vmatpush.msra.mxu0 %v7582
        %8119 = vmatpush.msra.mxu0 %v7581
        %8120 = vmatpush.msra.mxu0 %v7580
        %8121 = vmatpush.msra.mxu0 %v7579
        %8122 = vmatpush.msra.mxu0 %v7578
        %8123 = vmatpush.msra.mxu0 %v7577
        %8124 = vmatpush.msra.mxu0 %v7576
        %8125 = vmatpush.msra.mxu0 %v7575
        %8126 = vmatpush.msra.mxu0 %v7574
        %8127 = vmatmul.f32.gmra.mxu0 %v7225
        %v8128 = vpop.f32.mrf.mxu0
        %v8129 = vadd.f32 %v8016, %v8128
        %8130 = vmatmul.f32.gmra.mxu0 %v7234
        %v8131 = vpop.f32.mrf.mxu0
        %v8132 = vadd.f32 %v8019, %v8131
        %8133 = vmatmul.f32.gmra.mxu0 %v7243
        %v8134 = vpop.f32.mrf.mxu0
        %v8135 = vadd.f32 %v8022, %v8134
        %8136 = vmatmul.f32.gmra.mxu0 %v7252
        %v8137 = vpop.f32.mrf.mxu0
        %v8138 = vadd.f32 %v8025, %v8137
        %8139 = vmatmul.f32.gmra.mxu0 %v7261
        %v8140 = vpop.f32.mrf.mxu0
        %v8141 = vadd.f32 %v8028, %v8140
        %8142 = vmatmul.f32.gmra.mxu0 %v7270
        %v8143 = vpop.f32.mrf.mxu0
        %v8144 = vadd.f32 %v8031, %v8143
        %8145 = vmatmul.f32.gmra.mxu0 %v7279
        %v8146 = vpop.f32.mrf.mxu0
        %v8147 = vadd.f32 %v8034, %v8146
        %8148 = vmatmul.f32.gmra.mxu0 %v7288
        %v8149 = vpop.f32.mrf.mxu0
        %v8150 = vadd.f32 %v8037, %v8149
        %8151 = vmatmul.f32.gmra.mxu0 %v7297
        %v8152 = vpop.f32.mrf.mxu0
        %v8153 = vadd.f32 %v8040, %v8152
        %8154 = vmatmul.f32.gmra.mxu0 %v7306
        %v8155 = vpop.f32.mrf.mxu0
        %v8156 = vadd.f32 %v8043, %v8155
        %8157 = vmatmul.f32.gmra.mxu0 %v7315
        %v8158 = vpop.f32.mrf.mxu0
        %v8159 = vadd.f32 %v8046, %v8158
        %8160 = vmatmul.f32.gmra.mxu0 %v7324
        %v8161 = vpop.f32.mrf.mxu0
        %v8162 = vadd.f32 %v8049, %v8161
        %8163 = vmatmul.f32.gmra.mxu0 %v7333
        %v8164 = vpop.f32.mrf.mxu0
        %v8165 = vadd.f32 %v8052, %v8164
        %8166 = vmatmul.f32.gmra.mxu0 %v7342
        %v8167 = vpop.f32.mrf.mxu0
        %v8168 = vadd.f32 %v8055, %v8167
        %8169 = vmatmul.f32.gmra.mxu0 %v7351
        %v8170 = vpop.f32.mrf.mxu0
        %v8171 = vadd.f32 %v8058, %v8170
        %8172 = vmatmul.f32.gmra.mxu0 %v7360
        %v8173 = vpop.f32.mrf.mxu0
        %v8174 = vadd.f32 %v8061, %v8173
        %8175 = vmatmul.f32.gmra.mxu0 %v7369
        %v8176 = vpop.f32.mrf.mxu0
        %v8177 = vadd.f32 %v8064, %v8176
        %8178 = vmatmul.f32.gmra.mxu0 %v7378
        %v8179 = vpop.f32.mrf.mxu0
        %v8180 = vadd.f32 %v8067, %v8179
        %8181 = vmatmul.f32.gmra.mxu0 %v7387
        %v8182 = vpop.f32.mrf.mxu0
        %v8183 = vadd.f32 %v8070, %v8182
        %8184 = vmatmul.f32.gmra.mxu0 %v7396
        %v8185 = vpop.f32.mrf.mxu0
        %v8186 = vadd.f32 %v8073, %v8185
        %8187 = vmatmul.f32.gmra.mxu0 %v7405
        %v8188 = vpop.f32.mrf.mxu0
        %v8189 = vadd.f32 %v8076, %v8188
        %8190 = vmatmul.f32.gmra.mxu0 %v7414
        %v8191 = vpop.f32.mrf.mxu0
        %v8192 = vadd.f32 %v8079, %v8191
        %8193 = vmatmul.f32.gmra.mxu0 %v7423
        %v8194 = vpop.f32.mrf.mxu0
        %v8195 = vadd.f32 %v8082, %v8194
        %8196 = vmatmul.f32.gmra.mxu0 %v7432
        %v8197 = vpop.f32.mrf.mxu0
        %v8198 = vadd.f32 %v8085, %v8197
        %8199 = vmatmul.f32.gmra.mxu0 %v7441
        %v8200 = vpop.f32.mrf.mxu0
        %v8201 = vadd.f32 %v8088, %v8200
        %8202 = vmatmul.f32.gmra.mxu0 %v7450
        %v8203 = vpop.f32.mrf.mxu0
        %v8204 = vadd.f32 %v8091, %v8203
        %8205 = vmatmul.f32.gmra.mxu0 %v7459
        %v8206 = vpop.f32.mrf.mxu0
        %v8207 = vadd.f32 %v8094, %v8206
        %8208 = vmatmul.f32.gmra.mxu0 %v7468
        %v8209 = vpop.f32.mrf.mxu0
        %v8210 = vadd.f32 %v8097, %v8209
        %8211 = vmatmul.f32.gmra.mxu0 %v7477
        %v8212 = vpop.f32.mrf.mxu0
        %v8213 = vadd.f32 %v8100, %v8212
        %8214 = vmatmul.f32.gmra.mxu0 %v7486
        %v8215 = vpop.f32.mrf.mxu0
        %v8216 = vadd.f32 %v8103, %v8215
        %8217 = vmatmul.f32.gmra.mxu0 %v7495
        %v8218 = vpop.f32.mrf.mxu0
        %v8219 = vadd.f32 %v8106, %v8218
        %8220 = vmatmul.f32.gmra.mxu0 %v7504
        %v8221 = vpop.f32.mrf.mxu0
        %v8222 = vadd.f32 %v8109, %v8221
        %8223 = vdwg.mxu0
        %8224 = vmatpush.msra.mxu0 %v7605
        %8225 = vmatpush.msra.mxu0 %v7604
        %8226 = vmatpush.msra.mxu0 %v7603
        %8227 = vmatpush.msra.mxu0 %v7602
        %8228 = vmatpush.msra.mxu0 %v7601
        %8229 = vmatpush.msra.mxu0 %v7600
        %8230 = vmatpush.msra.mxu0 %v7599
        %8231 = vmatpush.msra.mxu0 %v7598
        %8232 = vmatpush.msra.mxu0 %v7597
        %8233 = vmatpush.msra.mxu0 %v7596
        %8234 = vmatpush.msra.mxu0 %v7595
        %8235 = vmatpush.msra.mxu0 %v7594
        %8236 = vmatpush.msra.mxu0 %v7593
        %8237 = vmatpush.msra.mxu0 %v7592
        %8238 = vmatpush.msra.mxu0 %v7591
        %8239 = vmatpush.msra.mxu0 %v7590
        %8240 = vmatmul.f32.gmra.mxu0 %v7226
        %v8241 = vpop.f32.mrf.mxu0
        %v8242 = vadd.f32 %v8129, %v8241
        %8243 = vmatmul.f32.gmra.mxu0 %v7235
        %v8244 = vpop.f32.mrf.mxu0
        %v8245 = vadd.f32 %v8132, %v8244
        %8246 = vmatmul.f32.gmra.mxu0 %v7244
        %v8247 = vpop.f32.mrf.mxu0
        %v8248 = vadd.f32 %v8135, %v8247
        %8249 = vmatmul.f32.gmra.mxu0 %v7253
        %v8250 = vpop.f32.mrf.mxu0
        %v8251 = vadd.f32 %v8138, %v8250
        %8252 = vmatmul.f32.gmra.mxu0 %v7262
        %v8253 = vpop.f32.mrf.mxu0
        %v8254 = vadd.f32 %v8141, %v8253
        %8255 = vmatmul.f32.gmra.mxu0 %v7271
        %v8256 = vpop.f32.mrf.mxu0
        %v8257 = vadd.f32 %v8144, %v8256
        %8258 = vmatmul.f32.gmra.mxu0 %v7280
        %v8259 = vpop.f32.mrf.mxu0
        %v8260 = vadd.f32 %v8147, %v8259
        %8261 = vmatmul.f32.gmra.mxu0 %v7289
        %v8262 = vpop.f32.mrf.mxu0
        %v8263 = vadd.f32 %v8150, %v8262
        %8264 = vmatmul.f32.gmra.mxu0 %v7298
        %v8265 = vpop.f32.mrf.mxu0
        %v8266 = vadd.f32 %v8153, %v8265
        %8267 = vmatmul.f32.gmra.mxu0 %v7307
        %v8268 = vpop.f32.mrf.mxu0
        %v8269 = vadd.f32 %v8156, %v8268
        %8270 = vmatmul.f32.gmra.mxu0 %v7316
        %v8271 = vpop.f32.mrf.mxu0
        %v8272 = vadd.f32 %v8159, %v8271
        %8273 = vmatmul.f32.gmra.mxu0 %v7325
        %v8274 = vpop.f32.mrf.mxu0
        %v8275 = vadd.f32 %v8162, %v8274
        %8276 = vmatmul.f32.gmra.mxu0 %v7334
        %v8277 = vpop.f32.mrf.mxu0
        %v8278 = vadd.f32 %v8165, %v8277
        %8279 = vmatmul.f32.gmra.mxu0 %v7343
        %v8280 = vpop.f32.mrf.mxu0
        %v8281 = vadd.f32 %v8168, %v8280
        %8282 = vmatmul.f32.gmra.mxu0 %v7352
        %v8283 = vpop.f32.mrf.mxu0
        %v8284 = vadd.f32 %v8171, %v8283
        %8285 = vmatmul.f32.gmra.mxu0 %v7361
        %v8286 = vpop.f32.mrf.mxu0
        %v8287 = vadd.f32 %v8174, %v8286
        %8288 = vmatmul.f32.gmra.mxu0 %v7370
        %v8289 = vpop.f32.mrf.mxu0
        %v8290 = vadd.f32 %v8177, %v8289
        %8291 = vmatmul.f32.gmra.mxu0 %v7379
        %v8292 = vpop.f32.mrf.mxu0
        %v8293 = vadd.f32 %v8180, %v8292
        %8294 = vmatmul.f32.gmra.mxu0 %v7388
        %v8295 = vpop.f32.mrf.mxu0
        %v8296 = vadd.f32 %v8183, %v8295
        %8297 = vmatmul.f32.gmra.mxu0 %v7397
        %v8298 = vpop.f32.mrf.mxu0
        %v8299 = vadd.f32 %v8186, %v8298
        %8300 = vmatmul.f32.gmra.mxu0 %v7406
        %v8301 = vpop.f32.mrf.mxu0
        %v8302 = vadd.f32 %v8189, %v8301
        %8303 = vmatmul.f32.gmra.mxu0 %v7415
        %v8304 = vpop.f32.mrf.mxu0
        %v8305 = vadd.f32 %v8192, %v8304
        %8306 = vmatmul.f32.gmra.mxu0 %v7424
        %v8307 = vpop.f32.mrf.mxu0
        %v8308 = vadd.f32 %v8195, %v8307
        %8309 = vmatmul.f32.gmra.mxu0 %v7433
        %v8310 = vpop.f32.mrf.mxu0
        %v8311 = vadd.f32 %v8198, %v8310
        %8312 = vmatmul.f32.gmra.mxu0 %v7442
        %v8313 = vpop.f32.mrf.mxu0
        %v8314 = vadd.f32 %v8201, %v8313
        %8315 = vmatmul.f32.gmra.mxu0 %v7451
        %v8316 = vpop.f32.mrf.mxu0
        %v8317 = vadd.f32 %v8204, %v8316
        %8318 = vmatmul.f32.gmra.mxu0 %v7460
        %v8319 = vpop.f32.mrf.mxu0
        %v8320 = vadd.f32 %v8207, %v8319
        %8321 = vmatmul.f32.gmra.mxu0 %v7469
        %v8322 = vpop.f32.mrf.mxu0
        %v8323 = vadd.f32 %v8210, %v8322
        %8324 = vmatmul.f32.gmra.mxu0 %v7478
        %v8325 = vpop.f32.mrf.mxu0
        %v8326 = vadd.f32 %v8213, %v8325
        %8327 = vmatmul.f32.gmra.mxu0 %v7487
        %v8328 = vpop.f32.mrf.mxu0
        %v8329 = vadd.f32 %v8216, %v8328
        %8330 = vmatmul.f32.gmra.mxu0 %v7496
        %v8331 = vpop.f32.mrf.mxu0
        %v8332 = vadd.f32 %v8219, %v8331
        %8333 = vmatmul.f32.gmra.mxu0 %v7505
        %v8334 = vpop.f32.mrf.mxu0
        %v8335 = vadd.f32 %v8222, %v8334
        %8336 = vdwg.mxu0
        %8337 = vmatpush.msra.mxu0 %v7621
        %8338 = vmatpush.msra.mxu0 %v7620
        %8339 = vmatpush.msra.mxu0 %v7619
        %8340 = vmatpush.msra.mxu0 %v7618
        %8341 = vmatpush.msra.mxu0 %v7617
        %8342 = vmatpush.msra.mxu0 %v7616
        %8343 = vmatpush.msra.mxu0 %v7615
        %8344 = vmatpush.msra.mxu0 %v7614
        %8345 = vmatpush.msra.mxu0 %v7613
        %8346 = vmatpush.msra.mxu0 %v7612
        %8347 = vmatpush.msra.mxu0 %v7611
        %8348 = vmatpush.msra.mxu0 %v7610
        %8349 = vmatpush.msra.mxu0 %v7609
        %8350 = vmatpush.msra.mxu0 %v7608
        %8351 = vmatpush.msra.mxu0 %v7607
        %8352 = vmatpush.msra.mxu0 %v7606
        %8353 = vmatmul.f32.gmra.mxu0 %v7227
        %v8354 = vpop.f32.mrf.mxu0
        %v8355 = vadd.f32 %v8242, %v8354
        %8356 = vmatmul.f32.gmra.mxu0 %v7236
        %v8357 = vpop.f32.mrf.mxu0
        %v8358 = vadd.f32 %v8245, %v8357
        %8359 = vmatmul.f32.gmra.mxu0 %v7245
        %v8360 = vpop.f32.mrf.mxu0
        %v8361 = vadd.f32 %v8248, %v8360
        %8362 = vmatmul.f32.gmra.mxu0 %v7254
        %v8363 = vpop.f32.mrf.mxu0
        %v8364 = vadd.f32 %v8251, %v8363
        %8365 = vmatmul.f32.gmra.mxu0 %v7263
        %v8366 = vpop.f32.mrf.mxu0
        %v8367 = vadd.f32 %v8254, %v8366
        %8368 = vmatmul.f32.gmra.mxu0 %v7272
        %v8369 = vpop.f32.mrf.mxu0
        %v8370 = vadd.f32 %v8257, %v8369
        %8371 = vmatmul.f32.gmra.mxu0 %v7281
        %v8372 = vpop.f32.mrf.mxu0
        %v8373 = vadd.f32 %v8260, %v8372
        %8374 = vmatmul.f32.gmra.mxu0 %v7290
        %v8375 = vpop.f32.mrf.mxu0
        %v8376 = vadd.f32 %v8263, %v8375
        %8377 = vmatmul.f32.gmra.mxu0 %v7299
        %v8378 = vpop.f32.mrf.mxu0
        %v8379 = vadd.f32 %v8266, %v8378
        %8380 = vmatmul.f32.gmra.mxu0 %v7308
        %v8381 = vpop.f32.mrf.mxu0
        %v8382 = vadd.f32 %v8269, %v8381
        %8383 = vmatmul.f32.gmra.mxu0 %v7317
        %v8384 = vpop.f32.mrf.mxu0
        %v8385 = vadd.f32 %v8272, %v8384
        %8386 = vmatmul.f32.gmra.mxu0 %v7326
        %v8387 = vpop.f32.mrf.mxu0
        %v8388 = vadd.f32 %v8275, %v8387
        %8389 = vmatmul.f32.gmra.mxu0 %v7335
        %v8390 = vpop.f32.mrf.mxu0
        %v8391 = vadd.f32 %v8278, %v8390
        %8392 = vmatmul.f32.gmra.mxu0 %v7344
        %v8393 = vpop.f32.mrf.mxu0
        %v8394 = vadd.f32 %v8281, %v8393
        %8395 = vmatmul.f32.gmra.mxu0 %v7353
        %v8396 = vpop.f32.mrf.mxu0
        %v8397 = vadd.f32 %v8284, %v8396
        %8398 = vmatmul.f32.gmra.mxu0 %v7362
        %v8399 = vpop.f32.mrf.mxu0
        %v8400 = vadd.f32 %v8287, %v8399
        %8401 = vmatmul.f32.gmra.mxu0 %v7371
        %v8402 = vpop.f32.mrf.mxu0
        %v8403 = vadd.f32 %v8290, %v8402
        %8404 = vmatmul.f32.gmra.mxu0 %v7380
        %v8405 = vpop.f32.mrf.mxu0
        %v8406 = vadd.f32 %v8293, %v8405
        %8407 = vmatmul.f32.gmra.mxu0 %v7389
        %v8408 = vpop.f32.mrf.mxu0
        %v8409 = vadd.f32 %v8296, %v8408
        %8410 = vmatmul.f32.gmra.mxu0 %v7398
        %v8411 = vpop.f32.mrf.mxu0
        %v8412 = vadd.f32 %v8299, %v8411
        %8413 = vmatmul.f32.gmra.mxu0 %v7407
        %v8414 = vpop.f32.mrf.mxu0
        %v8415 = vadd.f32 %v8302, %v8414
        %8416 = vmatmul.f32.gmra.mxu0 %v7416
        %v8417 = vpop.f32.mrf.mxu0
        %v8418 = vadd.f32 %v8305, %v8417
        %8419 = vmatmul.f32.gmra.mxu0 %v7425
        %v8420 = vpop.f32.mrf.mxu0
        %v8421 = vadd.f32 %v8308, %v8420
        %8422 = vmatmul.f32.gmra.mxu0 %v7434
        %v8423 = vpop.f32.mrf.mxu0
        %v8424 = vadd.f32 %v8311, %v8423
        %8425 = vmatmul.f32.gmra.mxu0 %v7443
        %v8426 = vpop.f32.mrf.mxu0
        %v8427 = vadd.f32 %v8314, %v8426
        %8428 = vmatmul.f32.gmra.mxu0 %v7452
        %v8429 = vpop.f32.mrf.mxu0
        %v8430 = vadd.f32 %v8317, %v8429
        %8431 = vmatmul.f32.gmra.mxu0 %v7461
        %v8432 = vpop.f32.mrf.mxu0
        %v8433 = vadd.f32 %v8320, %v8432
        %8434 = vmatmul.f32.gmra.mxu0 %v7470
        %v8435 = vpop.f32.mrf.mxu0
        %v8436 = vadd.f32 %v8323, %v8435
        %8437 = vmatmul.f32.gmra.mxu0 %v7479
        %v8438 = vpop.f32.mrf.mxu0
        %v8439 = vadd.f32 %v8326, %v8438
        %8440 = vmatmul.f32.gmra.mxu0 %v7488
        %v8441 = vpop.f32.mrf.mxu0
        %v8442 = vadd.f32 %v8329, %v8441
        %8443 = vmatmul.f32.gmra.mxu0 %v7497
        %v8444 = vpop.f32.mrf.mxu0
        %v8445 = vadd.f32 %v8332, %v8444
        %8446 = vmatmul.f32.gmra.mxu0 %v7506
        %v8447 = vpop.f32.mrf.mxu0
        %v8448 = vadd.f32 %v8335, %v8447
        %8449 = vdwg.mxu0
        %8450 = vmatpush.msra.mxu0 %v7637
        %8451 = vmatpush.msra.mxu0 %v7636
        %8452 = vmatpush.msra.mxu0 %v7635
        %8453 = vmatpush.msra.mxu0 %v7634
        %8454 = vmatpush.msra.mxu0 %v7633
        %8455 = vmatpush.msra.mxu0 %v7632
        %8456 = vmatpush.msra.mxu0 %v7631
        %8457 = vmatpush.msra.mxu0 %v7630
        %8458 = vmatpush.msra.mxu0 %v7629
        %8459 = vmatpush.msra.mxu0 %v7628
        %8460 = vmatpush.msra.mxu0 %v7627
        %8461 = vmatpush.msra.mxu0 %v7626
        %8462 = vmatpush.msra.mxu0 %v7625
        %8463 = vmatpush.msra.mxu0 %v7624
        %8464 = vmatpush.msra.mxu0 %v7623
        %8465 = vmatpush.msra.mxu0 %v7622
        %8466 = vmatmul.f32.gmra.mxu0 %v7228
        %v8467 = vpop.f32.mrf.mxu0
        %v8468 = vadd.f32 %v8355, %v8467
        %8469 = vmatmul.f32.gmra.mxu0 %v7237
        %v8470 = vpop.f32.mrf.mxu0
        %v8471 = vadd.f32 %v8358, %v8470
        %8472 = vmatmul.f32.gmra.mxu0 %v7246
        %v8473 = vpop.f32.mrf.mxu0
        %v8474 = vadd.f32 %v8361, %v8473
        %8475 = vmatmul.f32.gmra.mxu0 %v7255
        %v8476 = vpop.f32.mrf.mxu0
        %v8477 = vadd.f32 %v8364, %v8476
        %8478 = vmatmul.f32.gmra.mxu0 %v7264
        %v8479 = vpop.f32.mrf.mxu0
        %v8480 = vadd.f32 %v8367, %v8479
        %8481 = vmatmul.f32.gmra.mxu0 %v7273
        %v8482 = vpop.f32.mrf.mxu0
        %v8483 = vadd.f32 %v8370, %v8482
        %8484 = vmatmul.f32.gmra.mxu0 %v7282
        %v8485 = vpop.f32.mrf.mxu0
        %v8486 = vadd.f32 %v8373, %v8485
        %8487 = vmatmul.f32.gmra.mxu0 %v7291
        %v8488 = vpop.f32.mrf.mxu0
        %v8489 = vadd.f32 %v8376, %v8488
        %8490 = vmatmul.f32.gmra.mxu0 %v7300
        %v8491 = vpop.f32.mrf.mxu0
        %v8492 = vadd.f32 %v8379, %v8491
        %8493 = vmatmul.f32.gmra.mxu0 %v7309
        %v8494 = vpop.f32.mrf.mxu0
        %v8495 = vadd.f32 %v8382, %v8494
        %8496 = vmatmul.f32.gmra.mxu0 %v7318
        %v8497 = vpop.f32.mrf.mxu0
        %v8498 = vadd.f32 %v8385, %v8497
        %8499 = vmatmul.f32.gmra.mxu0 %v7327
        %v8500 = vpop.f32.mrf.mxu0
        %v8501 = vadd.f32 %v8388, %v8500
        %8502 = vmatmul.f32.gmra.mxu0 %v7336
        %v8503 = vpop.f32.mrf.mxu0
        %v8504 = vadd.f32 %v8391, %v8503
        %8505 = vmatmul.f32.gmra.mxu0 %v7345
        %v8506 = vpop.f32.mrf.mxu0
        %v8507 = vadd.f32 %v8394, %v8506
        %8508 = vmatmul.f32.gmra.mxu0 %v7354
        %v8509 = vpop.f32.mrf.mxu0
        %v8510 = vadd.f32 %v8397, %v8509
        %8511 = vmatmul.f32.gmra.mxu0 %v7363
        %v8512 = vpop.f32.mrf.mxu0
        %v8513 = vadd.f32 %v8400, %v8512
        %8514 = vmatmul.f32.gmra.mxu0 %v7372
        %v8515 = vpop.f32.mrf.mxu0
        %v8516 = vadd.f32 %v8403, %v8515
        %8517 = vmatmul.f32.gmra.mxu0 %v7381
        %v8518 = vpop.f32.mrf.mxu0
        %v8519 = vadd.f32 %v8406, %v8518
        %8520 = vmatmul.f32.gmra.mxu0 %v7390
        %v8521 = vpop.f32.mrf.mxu0
        %v8522 = vadd.f32 %v8409, %v8521
        %8523 = vmatmul.f32.gmra.mxu0 %v7399
        %v8524 = vpop.f32.mrf.mxu0
        %v8525 = vadd.f32 %v8412, %v8524
        %8526 = vmatmul.f32.gmra.mxu0 %v7408
        %v8527 = vpop.f32.mrf.mxu0
        %v8528 = vadd.f32 %v8415, %v8527
        %8529 = vmatmul.f32.gmra.mxu0 %v7417
        %v8530 = vpop.f32.mrf.mxu0
        %v8531 = vadd.f32 %v8418, %v8530
        %8532 = vmatmul.f32.gmra.mxu0 %v7426
        %v8533 = vpop.f32.mrf.mxu0
        %v8534 = vadd.f32 %v8421, %v8533
        %8535 = vmatmul.f32.gmra.mxu0 %v7435
        %v8536 = vpop.f32.mrf.mxu0
        %v8537 = vadd.f32 %v8424, %v8536
        %8538 = vmatmul.f32.gmra.mxu0 %v7444
        %v8539 = vpop.f32.mrf.mxu0
        %v8540 = vadd.f32 %v8427, %v8539
        %8541 = vmatmul.f32.gmra.mxu0 %v7453
        %v8542 = vpop.f32.mrf.mxu0
        %v8543 = vadd.f32 %v8430, %v8542
        %8544 = vmatmul.f32.gmra.mxu0 %v7462
        %v8545 = vpop.f32.mrf.mxu0
        %v8546 = vadd.f32 %v8433, %v8545
        %8547 = vmatmul.f32.gmra.mxu0 %v7471
        %v8548 = vpop.f32.mrf.mxu0
        %v8549 = vadd.f32 %v8436, %v8548
        %8550 = vmatmul.f32.gmra.mxu0 %v7480
        %v8551 = vpop.f32.mrf.mxu0
        %v8552 = vadd.f32 %v8439, %v8551
        %8553 = vmatmul.f32.gmra.mxu0 %v7489
        %v8554 = vpop.f32.mrf.mxu0
        %v8555 = vadd.f32 %v8442, %v8554
        %8556 = vmatmul.f32.gmra.mxu0 %v7498
        %v8557 = vpop.f32.mrf.mxu0
        %v8558 = vadd.f32 %v8445, %v8557
        %8559 = vmatmul.f32.gmra.mxu0 %v7507
        %v8560 = vpop.f32.mrf.mxu0
        %v8561 = vadd.f32 %v8448, %v8560
        %8562 = vdwg.mxu0
        %8563 = vmatpush.msra.mxu0 %v7653
        %8564 = vmatpush.msra.mxu0 %v7652
        %8565 = vmatpush.msra.mxu0 %v7651
        %8566 = vmatpush.msra.mxu0 %v7650
        %8567 = vmatpush.msra.mxu0 %v7649
        %8568 = vmatpush.msra.mxu0 %v7648
        %8569 = vmatpush.msra.mxu0 %v7647
        %8570 = vmatpush.msra.mxu0 %v7646
        %8571 = vmatpush.msra.mxu0 %v7645
        %8572 = vmatpush.msra.mxu0 %v7644
        %8573 = vmatpush.msra.mxu0 %v7643
        %8574 = vmatpush.msra.mxu0 %v7642
        %8575 = vmatpush.msra.mxu0 %v7641
        %8576 = vmatpush.msra.mxu0 %v7640
        %8577 = vmatpush.msra.mxu0 %v7639
        %8578 = vmatpush.msra.mxu0 %v7638
        %8579 = vmatmul.f32.gmra.mxu0 %v7229
        %v8580 = vpop.f32.mrf.mxu0
        %v8581 = vadd.f32 %v8468, %v8580
        %8582 = vmatmul.f32.gmra.mxu0 %v7238
        %v8583 = vpop.f32.mrf.mxu0
        %v8584 = vadd.f32 %v8471, %v8583
        %8585 = vmatmul.f32.gmra.mxu0 %v7247
        %v8586 = vpop.f32.mrf.mxu0
        %v8587 = vadd.f32 %v8474, %v8586
        %8588 = vmatmul.f32.gmra.mxu0 %v7256
        %v8589 = vpop.f32.mrf.mxu0
        %v8590 = vadd.f32 %v8477, %v8589
        %8591 = vmatmul.f32.gmra.mxu0 %v7265
        %v8592 = vpop.f32.mrf.mxu0
        %v8593 = vadd.f32 %v8480, %v8592
        %8594 = vmatmul.f32.gmra.mxu0 %v7274
        %v8595 = vpop.f32.mrf.mxu0
        %v8596 = vadd.f32 %v8483, %v8595
        %8597 = vmatmul.f32.gmra.mxu0 %v7283
        %v8598 = vpop.f32.mrf.mxu0
        %v8599 = vadd.f32 %v8486, %v8598
        %8600 = vmatmul.f32.gmra.mxu0 %v7292
        %v8601 = vpop.f32.mrf.mxu0
        %v8602 = vadd.f32 %v8489, %v8601
        %8603 = vmatmul.f32.gmra.mxu0 %v7301
        %v8604 = vpop.f32.mrf.mxu0
        %v8605 = vadd.f32 %v8492, %v8604
        %8606 = vmatmul.f32.gmra.mxu0 %v7310
        %v8607 = vpop.f32.mrf.mxu0
        %v8608 = vadd.f32 %v8495, %v8607
        %8609 = vmatmul.f32.gmra.mxu0 %v7319
        %v8610 = vpop.f32.mrf.mxu0
        %v8611 = vadd.f32 %v8498, %v8610
        %8612 = vmatmul.f32.gmra.mxu0 %v7328
        %v8613 = vpop.f32.mrf.mxu0
        %v8614 = vadd.f32 %v8501, %v8613
        %8615 = vmatmul.f32.gmra.mxu0 %v7337
        %v8616 = vpop.f32.mrf.mxu0
        %v8617 = vadd.f32 %v8504, %v8616
        %8618 = vmatmul.f32.gmra.mxu0 %v7346
        %v8619 = vpop.f32.mrf.mxu0
        %v8620 = vadd.f32 %v8507, %v8619
        %8621 = vmatmul.f32.gmra.mxu0 %v7355
        %v8622 = vpop.f32.mrf.mxu0
        %v8623 = vadd.f32 %v8510, %v8622
        %8624 = vmatmul.f32.gmra.mxu0 %v7364
        %v8625 = vpop.f32.mrf.mxu0
        %v8626 = vadd.f32 %v8513, %v8625
        %8627 = vmatmul.f32.gmra.mxu0 %v7373
        %v8628 = vpop.f32.mrf.mxu0
        %v8629 = vadd.f32 %v8516, %v8628
        %8630 = vmatmul.f32.gmra.mxu0 %v7382
        %v8631 = vpop.f32.mrf.mxu0
        %v8632 = vadd.f32 %v8519, %v8631
        %8633 = vmatmul.f32.gmra.mxu0 %v7391
        %v8634 = vpop.f32.mrf.mxu0
        %v8635 = vadd.f32 %v8522, %v8634
        %8636 = vmatmul.f32.gmra.mxu0 %v7400
        %v8637 = vpop.f32.mrf.mxu0
        %v8638 = vadd.f32 %v8525, %v8637
        %8639 = vmatmul.f32.gmra.mxu0 %v7409
        %v8640 = vpop.f32.mrf.mxu0
        %v8641 = vadd.f32 %v8528, %v8640
        %8642 = vmatmul.f32.gmra.mxu0 %v7418
        %v8643 = vpop.f32.mrf.mxu0
        %v8644 = vadd.f32 %v8531, %v8643
        %8645 = vmatmul.f32.gmra.mxu0 %v7427
        %v8646 = vpop.f32.mrf.mxu0
        %v8647 = vadd.f32 %v8534, %v8646
        %8648 = vmatmul.f32.gmra.mxu0 %v7436
        %v8649 = vpop.f32.mrf.mxu0
        %v8650 = vadd.f32 %v8537, %v8649
        %8651 = vmatmul.f32.gmra.mxu0 %v7445
        %v8652 = vpop.f32.mrf.mxu0
        %v8653 = vadd.f32 %v8540, %v8652
        %8654 = vmatmul.f32.gmra.mxu0 %v7454
        %v8655 = vpop.f32.mrf.mxu0
        %v8656 = vadd.f32 %v8543, %v8655
        %8657 = vmatmul.f32.gmra.mxu0 %v7463
        %v8658 = vpop.f32.mrf.mxu0
        %v8659 = vadd.f32 %v8546, %v8658
        %8660 = vmatmul.f32.gmra.mxu0 %v7472
        %v8661 = vpop.f32.mrf.mxu0
        %v8662 = vadd.f32 %v8549, %v8661
        %8663 = vmatmul.f32.gmra.mxu0 %v7481
        %v8664 = vpop.f32.mrf.mxu0
        %v8665 = vadd.f32 %v8552, %v8664
        %8666 = vmatmul.f32.gmra.mxu0 %v7490
        %v8667 = vpop.f32.mrf.mxu0
        %v8668 = vadd.f32 %v8555, %v8667
        %8669 = vmatmul.f32.gmra.mxu0 %v7499
        %v8670 = vpop.f32.mrf.mxu0
        %v8671 = vadd.f32 %v8558, %v8670
        %8672 = vmatmul.f32.gmra.mxu0 %v7508
        %v8673 = vpop.f32.mrf.mxu0
        %v8674 = vadd.f32 %v8561, %v8673
        %8675 = vdwg.mxu0
        %8676 = vst [vmem:[%s223] sm:$0xff] %v8581
        %8677 = vst [vmem:[%s223 + $0x8] sm:$0xff] %v8584
        %8678 = vst [vmem:[%s223 + $0x10] sm:$0xff] %v8587
        %8679 = vst [vmem:[%s223 + $0x18] sm:$0xff] %v8590
        %8680 = vst [vmem:[%s223 + $0x20] sm:$0xff] %v8593
        %8681 = vst [vmem:[%s223 + $0x28] sm:$0xff] %v8596
        %8682 = vst [vmem:[%s223 + $0x30] sm:$0xff] %v8599
        %8683 = vst [vmem:[%s223 + $0x38] sm:$0xff] %v8602
        %8684 = vst [vmem:[%s223 + $0x40] sm:$0xff] %v8605
        %8685 = vst [vmem:[%s223 + $0x48] sm:$0xff] %v8608
        %8686 = vst [vmem:[%s223 + $0x50] sm:$0xff] %v8611
        %8687 = vst [vmem:[%s223 + $0x58] sm:$0xff] %v8614
        %8688 = vst [vmem:[%s223 + $0x60] sm:$0xff] %v8617
        %8689 = vst [vmem:[%s223 + $0x68] sm:$0xff] %v8620
        %8690 = vst [vmem:[%s223 + $0x70] sm:$0xff] %v8623
        %8691 = vst [vmem:[%s223 + $0x78] sm:$0xff] %v8626
        %8692 = vst [vmem:[%s223 + $0x80] sm:$0xff] %v8629
        %8693 = vst [vmem:[%s223 + $0x88] sm:$0xff] %v8632
        %8694 = vst [vmem:[%s223 + $0x90] sm:$0xff] %v8635
        %8695 = vst [vmem:[%s223 + $0x98] sm:$0xff] %v8638
        %8696 = vst [vmem:[%s223 + $0xa0] sm:$0xff] %v8641
        %8697 = vst [vmem:[%s223 + $0xa8] sm:$0xff] %v8644
        %8698 = vst [vmem:[%s223 + $0xb0] sm:$0xff] %v8647
        %8699 = vst [vmem:[%s223 + $0xb8] sm:$0xff] %v8650
        %8700 = vst [vmem:[%s223 + $0xc0] sm:$0xff] %v8653
        %8701 = vst [vmem:[%s223 + $0xc8] sm:$0xff] %v8656
        %8702 = vst [vmem:[%s223 + $0xd0] sm:$0xff] %v8659
        %8703 = vst [vmem:[%s223 + $0xd8] sm:$0xff] %v8662
        %8704 = vst [vmem:[%s223 + $0xe0] sm:$0xff] %v8665
        %8705 = vst [vmem:[%s223 + $0xe8] sm:$0xff] %v8668
        %8706 = vst [vmem:[%s223 + $0xf0] sm:$0xff] %v8671
        %8707 = vst [vmem:[%s223 + $0xf8] sm:$0xff] %v8674
        %s8708 = sand.u32 %s97, 1
        %s8709 = scalar_lea.sflag [#allocation6], %s8708
        %s8710 = sand.u32 %s97, 1
        %s8711 = smul.addr %s8710, 256
        %s8712 = scalar_lea.vmem [#allocation10], %s8711
        // Predicated region
        $region45: #{tpu_custom_call.1} parent=31 // pred_check
          %p8713 = pneg %p107
        $region46: #{tpu_custom_call.1} parent=31 // pred_check_branch
          %8715 = sbr.rel (%p8713) target = $region48
        $region47: #{tpu_custom_call.1} parent=31 // pred_region
          %8717 = vsyncadd %s8709, 0
          %s8718 = smul.addr %s21, 32
          %s8719 = smul.addr %s8718, 8
          %s8720 = scalar_lea.hbm %s3, %s8719
          %s8721 = sshll.u32 %s8712, 4
          %s8722 = int_to_ptr.vmem [resolvable:$true] %s8721
          %s8723 = sshll.u32 %s8720, 4
          %s8724 = int_to_ptr.hbm [resolvable:$true] %s8723
          %8729 = dma.vmem_to_hbm [thread:$0]  %s8722, 4096, %s8724, %s8709, 128, 128, 8
        $region48: #{tpu_custom_call.1} parent=31 // pred_fallthru
          _
      $region32: #{tpu_custom_call.1} parent=5 // pred_fallthru
        _
      %p8730 = scmp.le.s32.totalorder 2, %s16
      // Predicated region
      $region49: #{tpu_custom_call.1} parent=5 // pred_check
        %p8731 = pneg %p8730
      $region50: #{tpu_custom_call.1} parent=5 // pred_check_branch
        %8733 = sbr.rel (%p8731) target = $region52
      $region51: #{tpu_custom_call.1} parent=5 // pred_region
        %s8734 = ssub.s32 %s16, 2
        // Predicated region
        $region53: #{tpu_custom_call.1} parent=51 // pred_check
          %p8735 = pneg %p113
        $region54: #{tpu_custom_call.1} parent=51 // pred_check_branch
          %8737 = sbr.rel (%p8735) target = $region56
        $region55: #{tpu_custom_call.1} parent=51 // pred_region
          %s8738 = sand.u32 %s98, 1
          %s8739 = scalar_lea.sflag [#allocation6], %s8738
          %s8740 = sand.u32 %s98, 1
          %s8741 = smul.addr %s8740, 256
          %s8742 = scalar_lea.vmem [#allocation10], %s8741
          %8744 = dma.done %s8739, 4096
        $region56: #{tpu_custom_call.1} parent=51 // pred_fallthru
          _
      $region52: #{tpu_custom_call.1} parent=5 // pred_fallthru
        _
    $region6: #{tpu_custom_call.1} parent=1 // loop_footer
      %s20 = sadd.s32 1, %s16
    $region7: #{tpu_custom_call.1} parent=1 // loop_footer_branch
      %15 = sbr.rel target = $region3
    $region8: #{tpu_custom_call.1} parent=1 // loop_exit
      _
    %8745 = vsyncpa [#allocation5], 1
    %s8746 = scalar_lea.sflag [#allocation5], 1
    %8747 = vsyncpa %s8746, 1
    %8748 = vsyncpa [#allocation8], 1
    %8749 = vsyncpa [#allocation6], 1
    %s8750 = scalar_lea.sflag [#allocation6], 1
    %8751 = vsyncpa %s8750, 1

</llo_original>
